<compile_context>
chip_gen: v6e
topology: v6e:2x2x1
jax: 0.10.0
libtpu: 0.0.40
codegen_flags: <defaults>
</compile_context>

<pallas_src>
from functools import partial

import jax
import jax.numpy as jnp
from jax.experimental import pallas as pl
from jax.experimental.pallas import tpu as pltpu


def _prescnn_kernel(H, W, dils,
                    x_ref, w1_ref, b1_ref, w2_ref, b2_ref, w3_ref, b3_ref,
                    o_ref, pad1, pad2, pad3):
    """Fused 3-layer ASPP forward for one batch element.

    x_ref : (1, H, W, C0)         input image (NHWC)
    wL_ref: (9, CinL, CoutL)      folded conv+BN weight, one (Cin, Cout) per tap
    bL_ref: (1, CoutL)            folded BN bias
    o_ref : (1, C3, H*W)          output, channels-first, spatial on lanes
    padL  : (H+2dL, W+2dL, CinL)  zero-padded activation scratch (VMEM)
    """
    d1, d2, d3 = dils

    def layer(pad_ref, w_ref, b_ref, d):
        # Dilated 3x3 conv + bias + ReLU over the whole image: nine shifted
        # (H*W, Cin) x (Cin, Cout) MXU matmuls accumulated in f32.
        # NOTE: the review suggested a single K=9*Cin im2col contraction; at
        # Cin <= 8 both forms under-fill the 128/256-deep MXU identically, and
        # building the im2col tile needs lane-unaligned concatenates / lane-
        # offset ref windows whose Mosaic lowering is less portable, so the
        # 9-tap accumulation is kept (the extra adds are ~16 VALU ops/layer).
        cin = pad_ref.shape[-1]
        cout = w_ref.shape[-1]
        acc = jnp.zeros((H * W, cout), jnp.float32)
        for ky in range(3):
            for kx in range(3):
                tap = pad_ref[ky * d:ky * d + H, kx * d:kx * d + W, :]
                acc += jnp.dot(tap.reshape(H * W, cin), w_ref[3 * ky + kx],
                               preferred_element_type=jnp.float32)
        return jnp.maximum(acc + b_ref[...], 0.0)            # bias + ReLU, f32

    # In-kernel zero padding: zero the halos, then stage each layer's input
    # into the centre of its padded VMEM scratch buffer.
    pad1[...] = jnp.zeros_like(pad1)
    pad2[...] = jnp.zeros_like(pad2)
    pad3[...] = jnp.zeros_like(pad3)

    pad1[d1:d1 + H, d1:d1 + W, :] = x_ref[0]
    y1 = layer(pad1, w1_ref, b1_ref, d1)                     # (H*W, C1)
    pad2[d2:d2 + H, d2:d2 + W, :] = y1.reshape(H, W, y1.shape[-1])
    y2 = layer(pad2, w2_ref, b2_ref, d2)                     # (H*W, C2)
    pad3[d3:d3 + H, d3:d3 + W, :] = y2.reshape(H, W, y2.shape[-1])
    y3 = layer(pad3, w3_ref, b3_ref, d3)                     # (H*W, C3p>=128)

    # Lane-dense store: transpose to channels-first so the minor dim is H*W
    # (>= 128) and the HBM store is an unmasked vst.  y3's channel dim was
    # zero-padded to 128 in the wrapper, so this transpose is tile-aligned.
    y3_t = jnp.transpose(y3, (1, 0))                         # (C3p, H*W)
    o_ref[0] = y3_t[:o_ref.shape[1], :]                      # (C3, H*W)


def _fold_bn_into_conv(w, gamma, beta, mean, var, eps=1e-5):
    """Fold eval-mode BN into the (bias-free) conv -> per-tap weights + bias."""
    cout, cin = w.shape[0], w.shape[1]
    s = gamma / jnp.sqrt(var + eps)                          # (Cout,)
    w_f = w * s[:, None, None, None]                         # (Cout, Cin, 3, 3)
    b_f = beta - mean * s                                    # (Cout,)
    # w_taps[3*ky+kx][ci, co] = w_f[co, ci, ky, kx]
    w_taps = jnp.transpose(w_f, (2, 3, 1, 0)).reshape(9, cin, cout)
    return w_taps.astype(jnp.float32), b_f.reshape(1, cout).astype(jnp.float32)


def prescnn_forward(x_nchw, params, dilations=(12, 6, 3)):
    """x: (N, C_in, H, W) float32.  Returns (N, C_in, H, W) float32."""
    assert all(int(d) > 1 for d in dilations), "dilation==1 branch not implemented"
    N, C0, H, W = x_nchw.shape
    d1, d2, d3 = (int(d) for d in dilations)

    w1, b1 = _fold_bn_into_conv(*params[0])
    w2, b2 = _fold_bn_into_conv(*params[1])
    w3, b3 = _fold_bn_into_conv(*params[2])
    C1, C2, C3 = w1.shape[-1], w2.shape[-1], w3.shape[-1]
    assert w1.shape[1] == C0 and w2.shape[1] == C1 and w3.shape[1] == C2

    # Pad the LAST layer's output channels up to a lane-aligned width (>=128)
    # so the in-kernel result transpose is tile-aligned.  Costs nothing on the
    # MXU (<=128 output lanes is one pass); only the real C3 rows are stored.
    C3p = max(128, -(-C3 // 128) * 128)
    w3p = jnp.zeros((9, C2, C3p), jnp.float32).at[:, :, :C3].set(w3)
    b3p = jnp.zeros((1, C3p), jnp.float32).at[:, :C3].set(b3)

    x_nhwc = jnp.transpose(x_nchw, (0, 2, 3, 1)).astype(jnp.float32)

    kernel = partial(_prescnn_kernel, H, W, (d1, d2, d3))
    out = pl.pallas_call(
        kernel,
        out_shape=jax.ShapeDtypeStruct((N, C3, H * W), jnp.float32),
        grid=(N,),
        in_specs=[
            # Input image of the current batch element.
            pl.BlockSpec((1, H, W, C0), lambda n: (n, 0, 0, 0)),
            # Folded weights / biases: constant index_map -> fetched once and
            # resident in VMEM for the whole grid.
            pl.BlockSpec((9, C0, C1), lambda n: (0, 0, 0)),
            pl.BlockSpec((1, C1), lambda n: (0, 0)),
            pl.BlockSpec((9, C1, C2), lambda n: (0, 0, 0)),
            pl.BlockSpec((1, C2), lambda n: (0, 0)),
            pl.BlockSpec((9, C2, C3p), lambda n: (0, 0, 0)),
            pl.BlockSpec((1, C3p), lambda n: (0, 0)),
        ],
        # Channels-first with spatial flattened onto lanes (H*W >= 128).
        out_specs=pl.BlockSpec((1, C3, H * W), lambda n: (n, 0, 0)),
        scratch_shapes=[
            pltpu.VMEM((H + 2 * d1, W + 2 * d1, C0), jnp.float32),
            pltpu.VMEM((H + 2 * d2, W + 2 * d2, C1), jnp.float32),
            pltpu.VMEM((H + 2 * d3, W + 2 * d3, C2), jnp.float32),
        ],
        compiler_params=pltpu.CompilerParams(
            # One batch element per step; N >= 2 keeps both v7x TensorCores
            # busy.  Total scratch + blocks is ~2 MiB here, well under the
            # default scoped-VMEM limit; raise vmem_limit_bytes only if H/W/C
            # grow (and re-derive against 64 MiB total on v7x).
            dimension_semantics=("parallel",),
        ),
        cost_estimate=pl.CostEstimate(
            flops=2 * N * H * W * 9 * (C0 * C1 + C1 * C2 + C2 * C3),
            transcendentals=0,
            bytes_accessed=4 * (N * H * W * (C0 + C3)
                                + 9 * (C0 * C1 + C1 * C2 + C2 * C3p)
                                + C1 + C2 + C3p),
        ),
    )(x_nhwc, w1, b1, w2, b2, w3p, b3p)
    return out.reshape(N, C3, H, W)                          # already NCHW order


def make_params(key, in_ch, out_ch):
    """Deterministic synthetic parameters matching the PyTorch module's shapes."""
    chans = [(in_ch, out_ch), (out_ch, out_ch), (out_ch, in_ch)]
    params = []
    for k, (ci, co) in zip(jax.random.split(key, len(chans)), chans):
        k1, k2, k3, k4, k5 = jax.random.split(k, 5)
        w = 0.1 * jax.random.normal(k1, (co, ci, 3, 3), jnp.float32)   # Conv2d weight
        gamma = 1.0 + 0.1 * jax.random.normal(k2, (co,), jnp.float32)  # BN weight
        beta = 0.1 * jax.random.normal(k3, (co,), jnp.float32)         # BN bias
        mean = 0.1 * jax.random.normal(k4, (co,), jnp.float32)         # running mean
        var = jax.random.uniform(k5, (co,), jnp.float32, 0.5, 1.5)     # running var
        params.append((w, gamma, beta, mean, var))
    return params


def reference_forward(x, params, dilations=(12, 6, 3), eps=1e-5):
    """Pure-JAX reference (eval-mode BN, HIGHEST precision) for checking."""
    out = x.astype(jnp.float32)
    for (w, g, b, m, v), d in zip(params, dilations):
        out = jax.lax.conv_general_dilated(
            out, w, window_strides=(1, 1), padding=[(d, d), (d, d)],
            rhs_dilation=(d, d),
            dimension_numbers=("NCHW", "OIHW", "NCHW"),
            precision=jax.lax.Precision.HIGHEST)
        out = (out - m[None, :, None, None]) / jnp.sqrt(v[None, :, None, None] + eps)
        out = out * g[None, :, None, None] + b[None, :, None, None]
        out = jnp.maximum(out, 0.0)
    return out


if __name__ == "__main__":
    key = jax.random.PRNGKey(0)
    k_x, k_p = jax.random.split(key)

    N, C_in, C_out, H, W = 2, 8, 4, 16, 16
    x = jax.random.normal(k_x, (N, C_in, H, W), jnp.float32)
    params = make_params(k_p, C_in, C_out)

    out = jax.block_until_ready(prescnn_forward(x, params))
    ref = jax.block_until_ready(reference_forward(x, params))

    assert out.shape == (N, C_in, H, W)
    # Tolerance documents MXU default precision in the kernel vs the HIGHEST
    # precision reference across three cascaded matmul layers; genuine bugs
    # (wrong tap offsets / BN fold) produce O(0.1-1) errors and still trip it.
    assert jnp.allclose(out, ref, atol=2e-2, rtol=2e-2), (
        "mismatch vs reference: max abs err = "
        f"{float(jnp.max(jnp.abs(out - ref)))}")

    print("KERNEL_OK")
</pallas_src>

<mosaic_0001>
module attributes {stable_mosaic.version = 11 : i64} {
  func.func @_prescnn_kernel(%arg0: i32, %arg1: memref<1x16x16x8xf32, #tpu.memory_space<vmem>>, %arg2: memref<9x8x4xf32, #tpu.memory_space<vmem>>, %arg3: memref<1x4xf32, #tpu.memory_space<vmem>>, %arg4: memref<9x4x4xf32, #tpu.memory_space<vmem>>, %arg5: memref<1x4xf32, #tpu.memory_space<vmem>>, %arg6: memref<9x4x128xf32, #tpu.memory_space<vmem>>, %arg7: memref<1x128xf32, #tpu.memory_space<vmem>>, %arg8: memref<1x8x256xf32, #tpu.memory_space<vmem>>, %arg9: memref<40x40x8xf32, #tpu.memory_space<vmem>>, %arg10: memref<28x28x4xf32, #tpu.memory_space<vmem>>, %arg11: memref<22x22x4xf32, #tpu.memory_space<vmem>>) attributes {dimension_semantics = [#tpu.dimension_semantics<parallel>], iteration_bounds = array<i64: 2>, scalar_prefetch = 0 : i64, scratch_operands = 3 : i64, tpu.core_type = #tpu.core_type<tc>, window_params = [{transform_indices = @transform_0, window_bounds = array<i64: 1, 16, 16, 8>}, {pipeline_mode = #tpu.pipeline_mode<synchronous>, transform_indices = @transform_1, window_bounds = array<i64: 9, 8, 4>}, {pipeline_mode = #tpu.pipeline_mode<synchronous>, transform_indices = @transform_2, window_bounds = array<i64: 1, 4>}, {pipeline_mode = #tpu.pipeline_mode<synchronous>, transform_indices = @transform_3, window_bounds = array<i64: 9, 4, 4>}, {pipeline_mode = #tpu.pipeline_mode<synchronous>, transform_indices = @transform_4, window_bounds = array<i64: 1, 4>}, {pipeline_mode = #tpu.pipeline_mode<synchronous>, transform_indices = @transform_5, window_bounds = array<i64: 9, 4, 128>}, {pipeline_mode = #tpu.pipeline_mode<synchronous>, transform_indices = @transform_6, window_bounds = array<i64: 1, 128>}, {transform_indices = @transform_7, window_bounds = array<i64: 1, 8, 256>}]} {
    %cst = arith.constant 0.000000e+00 : f32
    %0 = vector.broadcast %cst : f32 to vector<40x40x8xf32>
    %c0 = arith.constant 0 : index
    %c0_0 = arith.constant 0 : index
    %c0_1 = arith.constant 0 : index
    %1 = vector.load %arg9[%c0, %c0_0, %c0_1] : memref<40x40x8xf32, #tpu.memory_space<vmem>>, vector<40x40x8xf32>
    tpu.vector_store %arg9[%c0, %c0_0, %c0_1], %0 {strides = array<i32>} : memref<40x40x8xf32, #tpu.memory_space<vmem>>, vector<40x40x8xf32>,
    %cst_2 = arith.constant 0.000000e+00 : f32
    %2 = vector.broadcast %cst_2 : f32 to vector<28x28x4xf32>
    %c0_3 = arith.constant 0 : index
    %c0_4 = arith.constant 0 : index
    %c0_5 = arith.constant 0 : index
    %3 = vector.load %arg10[%c0_3, %c0_4, %c0_5] : memref<28x28x4xf32, #tpu.memory_space<vmem>>, vector<28x28x4xf32>
    tpu.vector_store %arg10[%c0_3, %c0_4, %c0_5], %2 {strides = array<i32>} : memref<28x28x4xf32, #tpu.memory_space<vmem>>, vector<28x28x4xf32>,
    %cst_6 = arith.constant 0.000000e+00 : f32
    %4 = vector.broadcast %cst_6 : f32 to vector<22x22x4xf32>
    %c0_7 = arith.constant 0 : index
    %c0_8 = arith.constant 0 : index
    %c0_9 = arith.constant 0 : index
    %5 = vector.load %arg11[%c0_7, %c0_8, %c0_9] : memref<22x22x4xf32, #tpu.memory_space<vmem>>, vector<22x22x4xf32>
    tpu.vector_store %arg11[%c0_7, %c0_8, %c0_9], %4 {strides = array<i32>} : memref<22x22x4xf32, #tpu.memory_space<vmem>>, vector<22x22x4xf32>,
    %c0_10 = arith.constant 0 : index
    %c0_11 = arith.constant 0 : index
    %c0_12 = arith.constant 0 : index
    %c0_13 = arith.constant 0 : index
    %6 = vector.load %arg1[%c0_10, %c0_11, %c0_12, %c0_13] : memref<1x16x16x8xf32, #tpu.memory_space<vmem>>, vector<1x16x16x8xf32>
    %7 = vector.shape_cast %6 : vector<1x16x16x8xf32> to vector<16x16x8xf32>
    %c12 = arith.constant 12 : index
    %c12_14 = arith.constant 12 : index
    %c0_15 = arith.constant 0 : index
    %8 = vector.load %arg9[%c12, %c12_14, %c0_15] : memref<40x40x8xf32, #tpu.memory_space<vmem>>, vector<16x16x8xf32>
    tpu.vector_store %arg9[%c12, %c12_14, %c0_15], %7 {strides = array<i32>} : memref<40x40x8xf32, #tpu.memory_space<vmem>>, vector<16x16x8xf32>,
    %cst_16 = arith.constant 0.000000e+00 : f32
    %9 = vector.broadcast %cst_16 : f32 to vector<256x4xf32>
    %c0_17 = arith.constant 0 : index
    %c0_18 = arith.constant 0 : index
    %c0_19 = arith.constant 0 : index
    %10 = vector.load %arg9[%c0_17, %c0_18, %c0_19] : memref<40x40x8xf32, #tpu.memory_space<vmem>>, vector<16x16x8xf32>
    %11 = vector.shape_cast %10 : vector<16x16x8xf32> to vector<256x8xf32>
    %c0_20 = arith.constant 0 : index
    %c0_21 = arith.constant 0 : index
    %c0_22 = arith.constant 0 : index
    %12 = vector.load %arg2[%c0_20, %c0_21, %c0_22] : memref<9x8x4xf32, #tpu.memory_space<vmem>>, vector<1x8x4xf32>
    %13 = vector.shape_cast %12 : vector<1x8x4xf32> to vector<8x4xf32>
    %cst_23 = arith.constant dense<0.000000e+00> : vector<256x4xf32>
    %14 = tpu.matmul %11, %13, %cst_23 {dimension_numbers = #tpu.dot_dimension_numbers<[1], [0], [0], [1], [0, 0, 1, 1], [], []>} : vector<256x8xf32>, vector<8x4xf32>, vector<256x4xf32> -> vector<256x4xf32>
    %15 = arith.addf %9, %14 : vector<256x4xf32>
    %c0_24 = arith.constant 0 : index
    %c12_25 = arith.constant 12 : index
    %c0_26 = arith.constant 0 : index
    %16 = vector.load %arg9[%c0_24, %c12_25, %c0_26] : memref<40x40x8xf32, #tpu.memory_space<vmem>>, vector<16x16x8xf32>
    %17 = vector.shape_cast %16 : vector<16x16x8xf32> to vector<256x8xf32>
    %c1 = arith.constant 1 : index
    %c0_27 = arith.constant 0 : index
    %c0_28 = arith.constant 0 : index
    %18 = vector.load %arg2[%c1, %c0_27, %c0_28] : memref<9x8x4xf32, #tpu.memory_space<vmem>>, vector<1x8x4xf32>
    %19 = vector.shape_cast %18 : vector<1x8x4xf32> to vector<8x4xf32>
    %cst_29 = arith.constant dense<0.000000e+00> : vector<256x4xf32>
    %20 = tpu.matmul %17, %19, %cst_29 {dimension_numbers = #tpu.dot_dimension_numbers<[1], [0], [0], [1], [0, 0, 1, 1], [], []>} : vector<256x8xf32>, vector<8x4xf32>, vector<256x4xf32> -> vector<256x4xf32>
    %21 = arith.addf %15, %20 : vector<256x4xf32>
    %c0_30 = arith.constant 0 : index
    %c24 = arith.constant 24 : index
    %c0_31 = arith.constant 0 : index
    %22 = vector.load %arg9[%c0_30, %c24, %c0_31] : memref<40x40x8xf32, #tpu.memory_space<vmem>>, vector<16x16x8xf32>
    %23 = vector.shape_cast %22 : vector<16x16x8xf32> to vector<256x8xf32>
    %c2 = arith.constant 2 : index
    %c0_32 = arith.constant 0 : index
    %c0_33 = arith.constant 0 : index
    %24 = vector.load %arg2[%c2, %c0_32, %c0_33] : memref<9x8x4xf32, #tpu.memory_space<vmem>>, vector<1x8x4xf32>
    %25 = vector.shape_cast %24 : vector<1x8x4xf32> to vector<8x4xf32>
    %cst_34 = arith.constant dense<0.000000e+00> : vector<256x4xf32>
    %26 = tpu.matmul %23, %25, %cst_34 {dimension_numbers = #tpu.dot_dimension_numbers<[1], [0], [0], [1], [0, 0, 1, 1], [], []>} : vector<256x8xf32>, vector<8x4xf32>, vector<256x4xf32> -> vector<256x4xf32>
    %27 = arith.addf %21, %26 : vector<256x4xf32>
    %c12_35 = arith.constant 12 : index
    %c0_36 = arith.constant 0 : index
    %c0_37 = arith.constant 0 : index
    %28 = vector.load %arg9[%c12_35, %c0_36, %c0_37] : memref<40x40x8xf32, #tpu.memory_space<vmem>>, vector<16x16x8xf32>
    %29 = vector.shape_cast %28 : vector<16x16x8xf32> to vector<256x8xf32>
    %c3 = arith.constant 3 : index
    %c0_38 = arith.constant 0 : index
    %c0_39 = arith.constant 0 : index
    %30 = vector.load %arg2[%c3, %c0_38, %c0_39] : memref<9x8x4xf32, #tpu.memory_space<vmem>>, vector<1x8x4xf32>
    %31 = vector.shape_cast %30 : vector<1x8x4xf32> to vector<8x4xf32>
    %cst_40 = arith.constant dense<0.000000e+00> : vector<256x4xf32>
    %32 = tpu.matmul %29, %31, %cst_40 {dimension_numbers = #tpu.dot_dimension_numbers<[1], [0], [0], [1], [0, 0, 1, 1], [], []>} : vector<256x8xf32>, vector<8x4xf32>, vector<256x4xf32> -> vector<256x4xf32>
    %33 = arith.addf %27, %32 : vector<256x4xf32>
    %c12_41 = arith.constant 12 : index
    %c12_42 = arith.constant 12 : index
    %c0_43 = arith.constant 0 : index
    %34 = vector.load %arg9[%c12_41, %c12_42, %c0_43] : memref<40x40x8xf32, #tpu.memory_space<vmem>>, vector<16x16x8xf32>
    %35 = vector.shape_cast %34 : vector<16x16x8xf32> to vector<256x8xf32>
    %c4 = arith.constant 4 : index
    %c0_44 = arith.constant 0 : index
    %c0_45 = arith.constant 0 : index
    %36 = vector.load %arg2[%c4, %c0_44, %c0_45] : memref<9x8x4xf32, #tpu.memory_space<vmem>>, vector<1x8x4xf32>
    %37 = vector.shape_cast %36 : vector<1x8x4xf32> to vector<8x4xf32>
    %cst_46 = arith.constant dense<0.000000e+00> : vector<256x4xf32>
    %38 = tpu.matmul %35, %37, %cst_46 {dimension_numbers = #tpu.dot_dimension_numbers<[1], [0], [0], [1], [0, 0, 1, 1], [], []>} : vector<256x8xf32>, vector<8x4xf32>, vector<256x4xf32> -> vector<256x4xf32>
    %39 = arith.addf %33, %38 : vector<256x4xf32>
    %c12_47 = arith.constant 12 : index
    %c24_48 = arith.constant 24 : index
    %c0_49 = arith.constant 0 : index
    %40 = vector.load %arg9[%c12_47, %c24_48, %c0_49] : memref<40x40x8xf32, #tpu.memory_space<vmem>>, vector<16x16x8xf32>
    %41 = vector.shape_cast %40 : vector<16x16x8xf32> to vector<256x8xf32>
    %c5 = arith.constant 5 : index
    %c0_50 = arith.constant 0 : index
    %c0_51 = arith.constant 0 : index
    %42 = vector.load %arg2[%c5, %c0_50, %c0_51] : memref<9x8x4xf32, #tpu.memory_space<vmem>>, vector<1x8x4xf32>
    %43 = vector.shape_cast %42 : vector<1x8x4xf32> to vector<8x4xf32>
    %cst_52 = arith.constant dense<0.000000e+00> : vector<256x4xf32>
    %44 = tpu.matmul %41, %43, %cst_52 {dimension_numbers = #tpu.dot_dimension_numbers<[1], [0], [0], [1], [0, 0, 1, 1], [], []>} : vector<256x8xf32>, vector<8x4xf32>, vector<256x4xf32> -> vector<256x4xf32>
    %45 = arith.addf %39, %44 : vector<256x4xf32>
    %c24_53 = arith.constant 24 : index
    %c0_54 = arith.constant 0 : index
    %c0_55 = arith.constant 0 : index
    %46 = vector.load %arg9[%c24_53, %c0_54, %c0_55] : memref<40x40x8xf32, #tpu.memory_space<vmem>>, vector<16x16x8xf32>
    %47 = vector.shape_cast %46 : vector<16x16x8xf32> to vector<256x8xf32>
    %c6 = arith.constant 6 : index
    %c0_56 = arith.constant 0 : index
    %c0_57 = arith.constant 0 : index
    %48 = vector.load %arg2[%c6, %c0_56, %c0_57] : memref<9x8x4xf32, #tpu.memory_space<vmem>>, vector<1x8x4xf32>
    %49 = vector.shape_cast %48 : vector<1x8x4xf32> to vector<8x4xf32>
    %cst_58 = arith.constant dense<0.000000e+00> : vector<256x4xf32>
    %50 = tpu.matmul %47, %49, %cst_58 {dimension_numbers = #tpu.dot_dimension_numbers<[1], [0], [0], [1], [0, 0, 1, 1], [], []>} : vector<256x8xf32>, vector<8x4xf32>, vector<256x4xf32> -> vector<256x4xf32>
    %51 = arith.addf %45, %50 : vector<256x4xf32>
    %c24_59 = arith.constant 24 : index
    %c12_60 = arith.constant 12 : index
    %c0_61 = arith.constant 0 : index
    %52 = vector.load %arg9[%c24_59, %c12_60, %c0_61] : memref<40x40x8xf32, #tpu.memory_space<vmem>>, vector<16x16x8xf32>
    %53 = vector.shape_cast %52 : vector<16x16x8xf32> to vector<256x8xf32>
    %c7 = arith.constant 7 : index
    %c0_62 = arith.constant 0 : index
    %c0_63 = arith.constant 0 : index
    %54 = vector.load %arg2[%c7, %c0_62, %c0_63] : memref<9x8x4xf32, #tpu.memory_space<vmem>>, vector<1x8x4xf32>
    %55 = vector.shape_cast %54 : vector<1x8x4xf32> to vector<8x4xf32>
    %cst_64 = arith.constant dense<0.000000e+00> : vector<256x4xf32>
    %56 = tpu.matmul %53, %55, %cst_64 {dimension_numbers = #tpu.dot_dimension_numbers<[1], [0], [0], [1], [0, 0, 1, 1], [], []>} : vector<256x8xf32>, vector<8x4xf32>, vector<256x4xf32> -> vector<256x4xf32>
    %57 = arith.addf %51, %56 : vector<256x4xf32>
    %c24_65 = arith.constant 24 : index
    %c24_66 = arith.constant 24 : index
    %c0_67 = arith.constant 0 : index
    %58 = vector.load %arg9[%c24_65, %c24_66, %c0_67] : memref<40x40x8xf32, #tpu.memory_space<vmem>>, vector<16x16x8xf32>
    %59 = vector.shape_cast %58 : vector<16x16x8xf32> to vector<256x8xf32>
    %c8 = arith.constant 8 : index
    %c0_68 = arith.constant 0 : index
    %c0_69 = arith.constant 0 : index
    %60 = vector.load %arg2[%c8, %c0_68, %c0_69] : memref<9x8x4xf32, #tpu.memory_space<vmem>>, vector<1x8x4xf32>
    %61 = vector.shape_cast %60 : vector<1x8x4xf32> to vector<8x4xf32>
    %cst_70 = arith.constant dense<0.000000e+00> : vector<256x4xf32>
    %62 = tpu.matmul %59, %61, %cst_70 {dimension_numbers = #tpu.dot_dimension_numbers<[1], [0], [0], [1], [0, 0, 1, 1], [], []>} : vector<256x8xf32>, vector<8x4xf32>, vector<256x4xf32> -> vector<256x4xf32>
    %63 = arith.addf %57, %62 : vector<256x4xf32>
    %c0_71 = arith.constant 0 : index
    %c0_72 = arith.constant 0 : index
    %64 = vector.load %arg3[%c0_71, %c0_72] : memref<1x4xf32, #tpu.memory_space<vmem>>, vector<1x4xf32>
    %65 = vector.broadcast %64 : vector<1x4xf32> to vector<256x4xf32>
    %66 = arith.addf %63, %65 : vector<256x4xf32>
    %cst_73 = arith.constant 0.000000e+00 : f32
    %67 = vector.broadcast %cst_73 : f32 to vector<256x4xf32>
    %68 = arith.maximumf %66, %67 : vector<256x4xf32>
    %69 = vector.shape_cast %68 : vector<256x4xf32> to vector<16x16x4xf32>
    %c6_74 = arith.constant 6 : index
    %c6_75 = arith.constant 6 : index
    %c0_76 = arith.constant 0 : index
    %70 = vector.load %arg10[%c6_74, %c6_75, %c0_76] : memref<28x28x4xf32, #tpu.memory_space<vmem>>, vector<16x16x4xf32>
    tpu.vector_store %arg10[%c6_74, %c6_75, %c0_76], %69 {strides = array<i32>} : memref<28x28x4xf32, #tpu.memory_space<vmem>>, vector<16x16x4xf32>,
    %cst_77 = arith.constant 0.000000e+00 : f32
    %71 = vector.broadcast %cst_77 : f32 to vector<256x4xf32>
    %c0_78 = arith.constant 0 : index
    %c0_79 = arith.constant 0 : index
    %c0_80 = arith.constant 0 : index
    %72 = vector.load %arg10[%c0_78, %c0_79, %c0_80] : memref<28x28x4xf32, #tpu.memory_space<vmem>>, vector<16x16x4xf32>
    %73 = vector.shape_cast %72 : vector<16x16x4xf32> to vector<256x4xf32>
    %c0_81 = arith.constant 0 : index
    %c0_82 = arith.constant 0 : index
    %c0_83 = arith.constant 0 : index
    %74 = vector.load %arg4[%c0_81, %c0_82, %c0_83] : memref<9x4x4xf32, #tpu.memory_space<vmem>>, vector<1x4x4xf32>
    %75 = vector.shape_cast %74 : vector<1x4x4xf32> to vector<4x4xf32>
    %cst_84 = arith.constant dense<0.000000e+00> : vector<256x4xf32>
    %76 = tpu.matmul %73, %75, %cst_84 {dimension_numbers = #tpu.dot_dimension_numbers<[1], [0], [0], [1], [0, 0, 1, 1], [], []>} : vector<256x4xf32>, vector<4x4xf32>, vector<256x4xf32> -> vector<256x4xf32>
    %77 = arith.addf %71, %76 : vector<256x4xf32>
    %c0_85 = arith.constant 0 : index
    %c6_86 = arith.constant 6 : index
    %c0_87 = arith.constant 0 : index
    %78 = vector.load %arg10[%c0_85, %c6_86, %c0_87] : memref<28x28x4xf32, #tpu.memory_space<vmem>>, vector<16x16x4xf32>
    %79 = vector.shape_cast %78 : vector<16x16x4xf32> to vector<256x4xf32>
    %c1_88 = arith.constant 1 : index
    %c0_89 = arith.constant 0 : index
    %c0_90 = arith.constant 0 : index
    %80 = vector.load %arg4[%c1_88, %c0_89, %c0_90] : memref<9x4x4xf32, #tpu.memory_space<vmem>>, vector<1x4x4xf32>
    %81 = vector.shape_cast %80 : vector<1x4x4xf32> to vector<4x4xf32>
    %cst_91 = arith.constant dense<0.000000e+00> : vector<256x4xf32>
    %82 = tpu.matmul %79, %81, %cst_91 {dimension_numbers = #tpu.dot_dimension_numbers<[1], [0], [0], [1], [0, 0, 1, 1], [], []>} : vector<256x4xf32>, vector<4x4xf32>, vector<256x4xf32> -> vector<256x4xf32>
    %83 = arith.addf %77, %82 : vector<256x4xf32>
    %c0_92 = arith.constant 0 : index
    %c12_93 = arith.constant 12 : index
    %c0_94 = arith.constant 0 : index
    %84 = vector.load %arg10[%c0_92, %c12_93, %c0_94] : memref<28x28x4xf32, #tpu.memory_space<vmem>>, vector<16x16x4xf32>
    %85 = vector.shape_cast %84 : vector<16x16x4xf32> to vector<256x4xf32>
    %c2_95 = arith.constant 2 : index
    %c0_96 = arith.constant 0 : index
    %c0_97 = arith.constant 0 : index
    %86 = vector.load %arg4[%c2_95, %c0_96, %c0_97] : memref<9x4x4xf32, #tpu.memory_space<vmem>>, vector<1x4x4xf32>
    %87 = vector.shape_cast %86 : vector<1x4x4xf32> to vector<4x4xf32>
    %cst_98 = arith.constant dense<0.000000e+00> : vector<256x4xf32>
    %88 = tpu.matmul %85, %87, %cst_98 {dimension_numbers = #tpu.dot_dimension_numbers<[1], [0], [0], [1], [0, 0, 1, 1], [], []>} : vector<256x4xf32>, vector<4x4xf32>, vector<256x4xf32> -> vector<256x4xf32>
    %89 = arith.addf %83, %88 : vector<256x4xf32>
    %c6_99 = arith.constant 6 : index
    %c0_100 = arith.constant 0 : index
    %c0_101 = arith.constant 0 : index
    %90 = vector.load %arg10[%c6_99, %c0_100, %c0_101] : memref<28x28x4xf32, #tpu.memory_space<vmem>>, vector<16x16x4xf32>
    %91 = vector.shape_cast %90 : vector<16x16x4xf32> to vector<256x4xf32>
    %c3_102 = arith.constant 3 : index
    %c0_103 = arith.constant 0 : index
    %c0_104 = arith.constant 0 : index
    %92 = vector.load %arg4[%c3_102, %c0_103, %c0_104] : memref<9x4x4xf32, #tpu.memory_space<vmem>>, vector<1x4x4xf32>
    %93 = vector.shape_cast %92 : vector<1x4x4xf32> to vector<4x4xf32>
    %cst_105 = arith.constant dense<0.000000e+00> : vector<256x4xf32>
    %94 = tpu.matmul %91, %93, %cst_105 {dimension_numbers = #tpu.dot_dimension_numbers<[1], [0], [0], [1], [0, 0, 1, 1], [], []>} : vector<256x4xf32>, vector<4x4xf32>, vector<256x4xf32> -> vector<256x4xf32>
    %95 = arith.addf %89, %94 : vector<256x4xf32>
    %c6_106 = arith.constant 6 : index
    %c6_107 = arith.constant 6 : index
    %c0_108 = arith.constant 0 : index
    %96 = vector.load %arg10[%c6_106, %c6_107, %c0_108] : memref<28x28x4xf32, #tpu.memory_space<vmem>>, vector<16x16x4xf32>
    %97 = vector.shape_cast %96 : vector<16x16x4xf32> to vector<256x4xf32>
    %c4_109 = arith.constant 4 : index
    %c0_110 = arith.constant 0 : index
    %c0_111 = arith.constant 0 : index
    %98 = vector.load %arg4[%c4_109, %c0_110, %c0_111] : memref<9x4x4xf32, #tpu.memory_space<vmem>>, vector<1x4x4xf32>
    %99 = vector.shape_cast %98 : vector<1x4x4xf32> to vector<4x4xf32>
    %cst_112 = arith.constant dense<0.000000e+00> : vector<256x4xf32>
    %100 = tpu.matmul %97, %99, %cst_112 {dimension_numbers = #tpu.dot_dimension_numbers<[1], [0], [0], [1], [0, 0, 1, 1], [], []>} : vector<256x4xf32>, vector<4x4xf32>, vector<256x4xf32> -> vector<256x4xf32>
    %101 = arith.addf %95, %100 : vector<256x4xf32>
    %c6_113 = arith.constant 6 : index
    %c12_114 = arith.constant 12 : index
    %c0_115 = arith.constant 0 : index
    %102 = vector.load %arg10[%c6_113, %c12_114, %c0_115] : memref<28x28x4xf32, #tpu.memory_space<vmem>>, vector<16x16x4xf32>
    %103 = vector.shape_cast %102 : vector<16x16x4xf32> to vector<256x4xf32>
    %c5_116 = arith.constant 5 : index
    %c0_117 = arith.constant 0 : index
    %c0_118 = arith.constant 0 : index
    %104 = vector.load %arg4[%c5_116, %c0_117, %c0_118] : memref<9x4x4xf32, #tpu.memory_space<vmem>>, vector<1x4x4xf32>
    %105 = vector.shape_cast %104 : vector<1x4x4xf32> to vector<4x4xf32>
    %cst_119 = arith.constant dense<0.000000e+00> : vector<256x4xf32>
    %106 = tpu.matmul %103, %105, %cst_119 {dimension_numbers = #tpu.dot_dimension_numbers<[1], [0], [0], [1], [0, 0, 1, 1], [], []>} : vector<256x4xf32>, vector<4x4xf32>, vector<256x4xf32> -> vector<256x4xf32>
    %107 = arith.addf %101, %106 : vector<256x4xf32>
    %c12_120 = arith.constant 12 : index
    %c0_121 = arith.constant 0 : index
    %c0_122 = arith.constant 0 : index
    %108 = vector.load %arg10[%c12_120, %c0_121, %c0_122] : memref<28x28x4xf32, #tpu.memory_space<vmem>>, vector<16x16x4xf32>
    %109 = vector.shape_cast %108 : vector<16x16x4xf32> to vector<256x4xf32>
    %c6_123 = arith.constant 6 : index
    %c0_124 = arith.constant 0 : index
    %c0_125 = arith.constant 0 : index
    %110 = vector.load %arg4[%c6_123, %c0_124, %c0_125] : memref<9x4x4xf32, #tpu.memory_space<vmem>>, vector<1x4x4xf32>
    %111 = vector.shape_cast %110 : vector<1x4x4xf32> to vector<4x4xf32>
    %cst_126 = arith.constant dense<0.000000e+00> : vector<256x4xf32>
    %112 = tpu.matmul %109, %111, %cst_126 {dimension_numbers = #tpu.dot_dimension_numbers<[1], [0], [0], [1], [0, 0, 1, 1], [], []>} : vector<256x4xf32>, vector<4x4xf32>, vector<256x4xf32> -> vector<256x4xf32>
    %113 = arith.addf %107, %112 : vector<256x4xf32>
    %c12_127 = arith.constant 12 : index
    %c6_128 = arith.constant 6 : index
    %c0_129 = arith.constant 0 : index
    %114 = vector.load %arg10[%c12_127, %c6_128, %c0_129] : memref<28x28x4xf32, #tpu.memory_space<vmem>>, vector<16x16x4xf32>
    %115 = vector.shape_cast %114 : vector<16x16x4xf32> to vector<256x4xf32>
    %c7_130 = arith.constant 7 : index
    %c0_131 = arith.constant 0 : index
    %c0_132 = arith.constant 0 : index
    %116 = vector.load %arg4[%c7_130, %c0_131, %c0_132] : memref<9x4x4xf32, #tpu.memory_space<vmem>>, vector<1x4x4xf32>
    %117 = vector.shape_cast %116 : vector<1x4x4xf32> to vector<4x4xf32>
    %cst_133 = arith.constant dense<0.000000e+00> : vector<256x4xf32>
    %118 = tpu.matmul %115, %117, %cst_133 {dimension_numbers = #tpu.dot_dimension_numbers<[1], [0], [0], [1], [0, 0, 1, 1], [], []>} : vector<256x4xf32>, vector<4x4xf32>, vector<256x4xf32> -> vector<256x4xf32>
    %119 = arith.addf %113, %118 : vector<256x4xf32>
    %c12_134 = arith.constant 12 : index
    %c12_135 = arith.constant 12 : index
    %c0_136 = arith.constant 0 : index
    %120 = vector.load %arg10[%c12_134, %c12_135, %c0_136] : memref<28x28x4xf32, #tpu.memory_space<vmem>>, vector<16x16x4xf32>
    %121 = vector.shape_cast %120 : vector<16x16x4xf32> to vector<256x4xf32>
    %c8_137 = arith.constant 8 : index
    %c0_138 = arith.constant 0 : index
    %c0_139 = arith.constant 0 : index
    %122 = vector.load %arg4[%c8_137, %c0_138, %c0_139] : memref<9x4x4xf32, #tpu.memory_space<vmem>>, vector<1x4x4xf32>
    %123 = vector.shape_cast %122 : vector<1x4x4xf32> to vector<4x4xf32>
    %cst_140 = arith.constant dense<0.000000e+00> : vector<256x4xf32>
    %124 = tpu.matmul %121, %123, %cst_140 {dimension_numbers = #tpu.dot_dimension_numbers<[1], [0], [0], [1], [0, 0, 1, 1], [], []>} : vector<256x4xf32>, vector<4x4xf32>, vector<256x4xf32> -> vector<256x4xf32>
    %125 = arith.addf %119, %124 : vector<256x4xf32>
    %c0_141 = arith.constant 0 : index
    %c0_142 = arith.constant 0 : index
    %126 = vector.load %arg5[%c0_141, %c0_142] : memref<1x4xf32, #tpu.memory_space<vmem>>, vector<1x4xf32>
    %127 = vector.broadcast %126 : vector<1x4xf32> to vector<256x4xf32>
    %128 = arith.addf %125, %127 : vector<256x4xf32>
    %cst_143 = arith.constant 0.000000e+00 : f32
    %129 = vector.broadcast %cst_143 : f32 to vector<256x4xf32>
    %130 = arith.maximumf %128, %129 : vector<256x4xf32>
    %131 = vector.shape_cast %130 : vector<256x4xf32> to vector<16x16x4xf32>
    %c3_144 = arith.constant 3 : index
    %c3_145 = arith.constant 3 : index
    %c0_146 = arith.constant 0 : index
    %132 = vector.load %arg11[%c3_144, %c3_145, %c0_146] : memref<22x22x4xf32, #tpu.memory_space<vmem>>, vector<16x16x4xf32>
    tpu.vector_store %arg11[%c3_144, %c3_145, %c0_146], %131 {strides = array<i32>} : memref<22x22x4xf32, #tpu.memory_space<vmem>>, vector<16x16x4xf32>,
    %cst_147 = arith.constant 0.000000e+00 : f32
    %133 = vector.broadcast %cst_147 : f32 to vector<256x128xf32>
    %c0_148 = arith.constant 0 : index
    %c0_149 = arith.constant 0 : index
    %c0_150 = arith.constant 0 : index
    %134 = vector.load %arg11[%c0_148, %c0_149, %c0_150] : memref<22x22x4xf32, #tpu.memory_space<vmem>>, vector<16x16x4xf32>
    %135 = vector.shape_cast %134 : vector<16x16x4xf32> to vector<256x4xf32>
    %c0_151 = arith.constant 0 : index
    %c0_152 = arith.constant 0 : index
    %c0_153 = arith.constant 0 : index
    %136 = vector.load %arg6[%c0_151, %c0_152, %c0_153] : memref<9x4x128xf32, #tpu.memory_space<vmem>>, vector<1x4x128xf32>
    %137 = vector.shape_cast %136 : vector<1x4x128xf32> to vector<4x128xf32>
    %cst_154 = arith.constant dense<0.000000e+00> : vector<256x128xf32>
    %138 = tpu.matmul %135, %137, %cst_154 {dimension_numbers = #tpu.dot_dimension_numbers<[1], [0], [0], [1], [0, 0, 1, 1], [], []>} : vector<256x4xf32>, vector<4x128xf32>, vector<256x128xf32> -> vector<256x128xf32>
    %139 = arith.addf %133, %138 : vector<256x128xf32>
    %c0_155 = arith.constant 0 : index
    %c3_156 = arith.constant 3 : index
    %c0_157 = arith.constant 0 : index
    %140 = vector.load %arg11[%c0_155, %c3_156, %c0_157] : memref<22x22x4xf32, #tpu.memory_space<vmem>>, vector<16x16x4xf32>
    %141 = vector.shape_cast %140 : vector<16x16x4xf32> to vector<256x4xf32>
    %c1_158 = arith.constant 1 : index
    %c0_159 = arith.constant 0 : index
    %c0_160 = arith.constant 0 : index
    %142 = vector.load %arg6[%c1_158, %c0_159, %c0_160] : memref<9x4x128xf32, #tpu.memory_space<vmem>>, vector<1x4x128xf32>
    %143 = vector.shape_cast %142 : vector<1x4x128xf32> to vector<4x128xf32>
    %cst_161 = arith.constant dense<0.000000e+00> : vector<256x128xf32>
    %144 = tpu.matmul %141, %143, %cst_161 {dimension_numbers = #tpu.dot_dimension_numbers<[1], [0], [0], [1], [0, 0, 1, 1], [], []>} : vector<256x4xf32>, vector<4x128xf32>, vector<256x128xf32> -> vector<256x128xf32>
    %145 = arith.addf %139, %144 : vector<256x128xf32>
    %c0_162 = arith.constant 0 : index
    %c6_163 = arith.constant 6 : index
    %c0_164 = arith.constant 0 : index
    %146 = vector.load %arg11[%c0_162, %c6_163, %c0_164] : memref<22x22x4xf32, #tpu.memory_space<vmem>>, vector<16x16x4xf32>
    %147 = vector.shape_cast %146 : vector<16x16x4xf32> to vector<256x4xf32>
    %c2_165 = arith.constant 2 : index
    %c0_166 = arith.constant 0 : index
    %c0_167 = arith.constant 0 : index
    %148 = vector.load %arg6[%c2_165, %c0_166, %c0_167] : memref<9x4x128xf32, #tpu.memory_space<vmem>>, vector<1x4x128xf32>
    %149 = vector.shape_cast %148 : vector<1x4x128xf32> to vector<4x128xf32>
    %cst_168 = arith.constant dense<0.000000e+00> : vector<256x128xf32>
    %150 = tpu.matmul %147, %149, %cst_168 {dimension_numbers = #tpu.dot_dimension_numbers<[1], [0], [0], [1], [0, 0, 1, 1], [], []>} : vector<256x4xf32>, vector<4x128xf32>, vector<256x128xf32> -> vector<256x128xf32>
    %151 = arith.addf %145, %150 : vector<256x128xf32>
    %c3_169 = arith.constant 3 : index
    %c0_170 = arith.constant 0 : index
    %c0_171 = arith.constant 0 : index
    %152 = vector.load %arg11[%c3_169, %c0_170, %c0_171] : memref<22x22x4xf32, #tpu.memory_space<vmem>>, vector<16x16x4xf32>
    %153 = vector.shape_cast %152 : vector<16x16x4xf32> to vector<256x4xf32>
    %c3_172 = arith.constant 3 : index
    %c0_173 = arith.constant 0 : index
    %c0_174 = arith.constant 0 : index
    %154 = vector.load %arg6[%c3_172, %c0_173, %c0_174] : memref<9x4x128xf32, #tpu.memory_space<vmem>>, vector<1x4x128xf32>
    %155 = vector.shape_cast %154 : vector<1x4x128xf32> to vector<4x128xf32>
    %cst_175 = arith.constant dense<0.000000e+00> : vector<256x128xf32>
    %156 = tpu.matmul %153, %155, %cst_175 {dimension_numbers = #tpu.dot_dimension_numbers<[1], [0], [0], [1], [0, 0, 1, 1], [], []>} : vector<256x4xf32>, vector<4x128xf32>, vector<256x128xf32> -> vector<256x128xf32>
    %157 = arith.addf %151, %156 : vector<256x128xf32>
    %c3_176 = arith.constant 3 : index
    %c3_177 = arith.constant 3 : index
    %c0_178 = arith.constant 0 : index
    %158 = vector.load %arg11[%c3_176, %c3_177, %c0_178] : memref<22x22x4xf32, #tpu.memory_space<vmem>>, vector<16x16x4xf32>
    %159 = vector.shape_cast %158 : vector<16x16x4xf32> to vector<256x4xf32>
    %c4_179 = arith.constant 4 : index
    %c0_180 = arith.constant 0 : index
    %c0_181 = arith.constant 0 : index
    %160 = vector.load %arg6[%c4_179, %c0_180, %c0_181] : memref<9x4x128xf32, #tpu.memory_space<vmem>>, vector<1x4x128xf32>
    %161 = vector.shape_cast %160 : vector<1x4x128xf32> to vector<4x128xf32>
    %cst_182 = arith.constant dense<0.000000e+00> : vector<256x128xf32>
    %162 = tpu.matmul %159, %161, %cst_182 {dimension_numbers = #tpu.dot_dimension_numbers<[1], [0], [0], [1], [0, 0, 1, 1], [], []>} : vector<256x4xf32>, vector<4x128xf32>, vector<256x128xf32> -> vector<256x128xf32>
    %163 = arith.addf %157, %162 : vector<256x128xf32>
    %c3_183 = arith.constant 3 : index
    %c6_184 = arith.constant 6 : index
    %c0_185 = arith.constant 0 : index
    %164 = vector.load %arg11[%c3_183, %c6_184, %c0_185] : memref<22x22x4xf32, #tpu.memory_space<vmem>>, vector<16x16x4xf32>
    %165 = vector.shape_cast %164 : vector<16x16x4xf32> to vector<256x4xf32>
    %c5_186 = arith.constant 5 : index
    %c0_187 = arith.constant 0 : index
    %c0_188 = arith.constant 0 : index
    %166 = vector.load %arg6[%c5_186, %c0_187, %c0_188] : memref<9x4x128xf32, #tpu.memory_space<vmem>>, vector<1x4x128xf32>
    %167 = vector.shape_cast %166 : vector<1x4x128xf32> to vector<4x128xf32>
    %cst_189 = arith.constant dense<0.000000e+00> : vector<256x128xf32>
    %168 = tpu.matmul %165, %167, %cst_189 {dimension_numbers = #tpu.dot_dimension_numbers<[1], [0], [0], [1], [0, 0, 1, 1], [], []>} : vector<256x4xf32>, vector<4x128xf32>, vector<256x128xf32> -> vector<256x128xf32>
    %169 = arith.addf %163, %168 : vector<256x128xf32>
    %c6_190 = arith.constant 6 : index
    %c0_191 = arith.constant 0 : index
    %c0_192 = arith.constant 0 : index
    %170 = vector.load %arg11[%c6_190, %c0_191, %c0_192] : memref<22x22x4xf32, #tpu.memory_space<vmem>>, vector<16x16x4xf32>
    %171 = vector.shape_cast %170 : vector<16x16x4xf32> to vector<256x4xf32>
    %c6_193 = arith.constant 6 : index
    %c0_194 = arith.constant 0 : index
    %c0_195 = arith.constant 0 : index
    %172 = vector.load %arg6[%c6_193, %c0_194, %c0_195] : memref<9x4x128xf32, #tpu.memory_space<vmem>>, vector<1x4x128xf32>
    %173 = vector.shape_cast %172 : vector<1x4x128xf32> to vector<4x128xf32>
    %cst_196 = arith.constant dense<0.000000e+00> : vector<256x128xf32>
    %174 = tpu.matmul %171, %173, %cst_196 {dimension_numbers = #tpu.dot_dimension_numbers<[1], [0], [0], [1], [0, 0, 1, 1], [], []>} : vector<256x4xf32>, vector<4x128xf32>, vector<256x128xf32> -> vector<256x128xf32>
    %175 = arith.addf %169, %174 : vector<256x128xf32>
    %c6_197 = arith.constant 6 : index
    %c3_198 = arith.constant 3 : index
    %c0_199 = arith.constant 0 : index
    %176 = vector.load %arg11[%c6_197, %c3_198, %c0_199] : memref<22x22x4xf32, #tpu.memory_space<vmem>>, vector<16x16x4xf32>
    %177 = vector.shape_cast %176 : vector<16x16x4xf32> to vector<256x4xf32>
    %c7_200 = arith.constant 7 : index
    %c0_201 = arith.constant 0 : index
    %c0_202 = arith.constant 0 : index
    %178 = vector.load %arg6[%c7_200, %c0_201, %c0_202] : memref<9x4x128xf32, #tpu.memory_space<vmem>>, vector<1x4x128xf32>
    %179 = vector.shape_cast %178 : vector<1x4x128xf32> to vector<4x128xf32>
    %cst_203 = arith.constant dense<0.000000e+00> : vector<256x128xf32>
    %180 = tpu.matmul %177, %179, %cst_203 {dimension_numbers = #tpu.dot_dimension_numbers<[1], [0], [0], [1], [0, 0, 1, 1], [], []>} : vector<256x4xf32>, vector<4x128xf32>, vector<256x128xf32> -> vector<256x128xf32>
    %181 = arith.addf %175, %180 : vector<256x128xf32>
    %c6_204 = arith.constant 6 : index
    %c6_205 = arith.constant 6 : index
    %c0_206 = arith.constant 0 : index
    %182 = vector.load %arg11[%c6_204, %c6_205, %c0_206] : memref<22x22x4xf32, #tpu.memory_space<vmem>>, vector<16x16x4xf32>
    %183 = vector.shape_cast %182 : vector<16x16x4xf32> to vector<256x4xf32>
    %c8_207 = arith.constant 8 : index
    %c0_208 = arith.constant 0 : index
    %c0_209 = arith.constant 0 : index
    %184 = vector.load %arg6[%c8_207, %c0_208, %c0_209] : memref<9x4x128xf32, #tpu.memory_space<vmem>>, vector<1x4x128xf32>
    %185 = vector.shape_cast %184 : vector<1x4x128xf32> to vector<4x128xf32>
    %cst_210 = arith.constant dense<0.000000e+00> : vector<256x128xf32>
    %186 = tpu.matmul %183, %185, %cst_210 {dimension_numbers = #tpu.dot_dimension_numbers<[1], [0], [0], [1], [0, 0, 1, 1], [], []>} : vector<256x4xf32>, vector<4x128xf32>, vector<256x128xf32> -> vector<256x128xf32>
    %187 = arith.addf %181, %186 : vector<256x128xf32>
    %c0_211 = arith.constant 0 : index
    %c0_212 = arith.constant 0 : index
    %188 = vector.load %arg7[%c0_211, %c0_212] : memref<1x128xf32, #tpu.memory_space<vmem>>, vector<1x128xf32>
    %189 = vector.broadcast %188 : vector<1x128xf32> to vector<256x128xf32>
    %190 = arith.addf %187, %189 : vector<256x128xf32>
    %cst_213 = arith.constant 0.000000e+00 : f32
    %191 = vector.broadcast %cst_213 : f32 to vector<256x128xf32>
    %192 = arith.maximumf %190, %191 : vector<256x128xf32>
    %193 = tpu.transpose %192, [1, 0] : vector<256x128xf32> -> vector<128x256xf32>
    %194 = vector.extract_strided_slice %193 {offsets = [0, 0], sizes = [8, 256], strides = [1, 1]} : vector<128x256xf32> to vector<8x256xf32>
    %c0_214 = arith.constant 0 : index
    %c0_215 = arith.constant 0 : index
    %c0_216 = arith.constant 0 : index
    %195 = vector.load %arg8[%c0_214, %c0_215, %c0_216] : memref<1x8x256xf32, #tpu.memory_space<vmem>>, vector<1x8x256xf32>
    %196 = vector.shape_cast %195 : vector<1x8x256xf32> to vector<8x256xf32>
    %197 = vector.shape_cast %194 : vector<8x256xf32> to vector<1x8x256xf32>
    tpu.vector_store %arg8[%c0_214, %c0_215, %c0_216], %197 {strides = array<i32>} : memref<1x8x256xf32, #tpu.memory_space<vmem>>, vector<1x8x256xf32>,
    return
  }
  func.func @transform_0(%arg0: i32) -> (i32, i32, i32, i32) {
    %c0_i32 = arith.constant 0 : i32
    %c0_i32_0 = arith.constant 0 : i32
    %c0_i32_1 = arith.constant 0 : i32
    %c0_i32_2 = arith.constant 0 : i32
    return %arg0, %c0_i32, %c0_i32_0, %c0_i32_1 : i32, i32, i32, i32
  }
  func.func @transform_1(%arg0: i32) -> (i32, i32, i32) {
    %c0_i32 = arith.constant 0 : i32
    %c0_i32_0 = arith.constant 0 : i32
    %c0_i32_1 = arith.constant 0 : i32
    %c0_i32_2 = arith.constant 0 : i32
    return %c0_i32, %c0_i32_0, %c0_i32_1 : i32, i32, i32
  }
  func.func @transform_2(%arg0: i32) -> (i32, i32) {
    %c0_i32 = arith.constant 0 : i32
    %c0_i32_0 = arith.constant 0 : i32
    %c0_i32_1 = arith.constant 0 : i32
    return %c0_i32, %c0_i32_0 : i32, i32
  }
  func.func @transform_3(%arg0: i32) -> (i32, i32, i32) {
    %c0_i32 = arith.constant 0 : i32
    %c0_i32_0 = arith.constant 0 : i32
    %c0_i32_1 = arith.constant 0 : i32
    %c0_i32_2 = arith.constant 0 : i32
    return %c0_i32, %c0_i32_0, %c0_i32_1 : i32, i32, i32
  }
  func.func @transform_4(%arg0: i32) -> (i32, i32) {
    %c0_i32 = arith.constant 0 : i32
    %c0_i32_0 = arith.constant 0 : i32
    %c0_i32_1 = arith.constant 0 : i32
    return %c0_i32, %c0_i32_0 : i32, i32
  }
  func.func @transform_5(%arg0: i32) -> (i32, i32, i32) {
    %c0_i32 = arith.constant 0 : i32
    %c0_i32_0 = arith.constant 0 : i32
    %c0_i32_1 = arith.constant 0 : i32
    %c0_i32_2 = arith.constant 0 : i32
    return %c0_i32, %c0_i32_0, %c0_i32_1 : i32, i32, i32
  }
  func.func @transform_6(%arg0: i32) -> (i32, i32) {
    %c0_i32 = arith.constant 0 : i32
    %c0_i32_0 = arith.constant 0 : i32
    %c0_i32_1 = arith.constant 0 : i32
    return %c0_i32, %c0_i32_0 : i32, i32
  }
  func.func @transform_7(%arg0: i32) -> (i32, i32, i32) {
    %c0_i32 = arith.constant 0 : i32
    %c0_i32_0 = arith.constant 0 : i32
    %c0_i32_1 = arith.constant 0 : i32
    return %arg0, %c0_i32, %c0_i32_0 : i32, i32, i32
  }
}

</mosaic_0001>

<llo_original>
// kernel: tpu_custom_call.1
$region0: #{tpu_custom_call.1}
  #allocation0 [shape = 'u32[]', space=smem, size = 0x4, offset = 0x4, fixed_abs, tag = 'smem constant byte address 0x4 - core index']
  #allocation1 [shape = 'u32[144,128]{1,0:T(1,128)}', space=vmem, size = 0x12000, scoped, tag = 'internal scratch']
  #allocation2 [shape = 'f32[40,40,8]{2,1,0:T(8,128)}', space=vmem, size = 0xc8000, scoped, tag = 'scratch operand']
  #allocation3 [shape = 'f32[28,28,4]{2,1,0:T(8,128)}', space=vmem, size = 0x70000, scoped, tag = 'scratch operand']
  #allocation4 [shape = 'f32[22,22,4]{2,1,0:T(8,128)}', space=vmem, size = 0x42000, scoped, tag = 'scratch operand']
  %s0 = inlined_call_operand.vmem [shape: f32[2,16,16,8], index: 0, kind: input, shape index: {}]
  %s1 = inlined_call_operand.vmem [shape: f32[9,8,4], index: 1, kind: input, shape index: {}]
  %s2 = inlined_call_operand.vmem [shape: f32[1,4], index: 2, kind: input, shape index: {}]
  %s3 = inlined_call_operand.vmem [shape: f32[9,4,4], index: 3, kind: input, shape index: {}]
  %s4 = inlined_call_operand.vmem [shape: f32[1,4], index: 4, kind: input, shape index: {}]
  %s5 = inlined_call_operand.vmem [shape: f32[9,4,128], index: 5, kind: input, shape index: {}]
  %s6 = inlined_call_operand.vmem [shape: f32[1,128], index: 6, kind: input, shape index: {}]
  %s7 = inlined_call_operand.hbm [shape: f32[2,8,256], index: 7, kind: output, shape index: {}]
  %s8 = sld [smem:[#allocation0]]
  $region61: #{tpu_custom_call.1} parent=0
    _
  %s10 = ssub.s32 1, %s8
  %s11 = scalar_select 0, %s10, %s8
  $region1: #{tpu_custom_call.1} parent=0
    #allocation5 [shape = 'u8[16384]{0}', space=vmem, size = 0x4000, scoped, tag = 'output window, operand 0']
    #allocation6 [shape = 's32[2]{0}', space=sflag, size = 0x8, scoped, tag = 'scoped memory for tpu_custom_call.1']
    %12 = vsyncpa [#allocation6], 0
    %s13 = scalar_lea.sflag [#allocation6], 1
    %14 = vsyncpa %s13, 0
    loop: start=0, step=1, limit=4
    $region2: #{tpu_custom_call.1} parent=1 // loop_pre_header
      _
    $region3: #{tpu_custom_call.1} parent=1 // loop_header
      %s16 = sphi 0, %s20
      %p17 = scmp.ge.s32.totalorder %s16, 4
      %s26 = sphi 0, %s28
      %s29 = sphi 0, %s26
      %s30 = sphi 0, %s29
      %s46 = sphi 0, %s30
      %s50 = sphi 0, %s50
      %s52 = sphi 0, %s50
      %s53 = sphi 0, %s52
      %s67 = sphi 0, %s53
      %s71 = sphi 0, %s71
      %s73 = sphi 0, %s71
      %s74 = sphi 0, %s73
      %s88 = sphi 0, %s74
      %s92 = sphi 0, %s92
      %s94 = sphi 0, %s92
      %s95 = sphi 0, %s94
      %s109 = sphi 0, %s95
      %s113 = sphi 0, %s113
      %s115 = sphi 0, %s113
      %s116 = sphi 0, %s115
      %s130 = sphi 0, %s116
      %s134 = sphi 0, %s134
      %s136 = sphi 0, %s134
      %s137 = sphi 0, %s136
      %s151 = sphi 0, %s137
      %s155 = sphi 0, %s155
      %s157 = sphi 0, %s155
      %s158 = sphi 0, %s157
      %s172 = sphi 0, %s158
      %s178 = sphi 0, %s180
      %s181 = sphi 0, %s178
      %s182 = sphi 0, %s181
      %s198 = sphi 0, %s182
    $region4: #{tpu_custom_call.1} parent=1 // loop_header_branch
      %19 = sbr.rel (%p17) target = $region8
    $region5: #{tpu_custom_call.1} parent=1 // loop_body
      %s21 = ssub.s32 %s16, 1
      %s22 = ssub.s32 %s16, 2
      %s23 = sadd.s32 %s16, 1
      %s24 = ssub.s32 %s16, %s23
      %p25 = scmp.eq.s32.totalorder %s24, 0
      %s27 = sadd.s32 %s26, 1
      %s28 = scalar_select %p25, %s26, %s27
      %p31 = pneg %p25
      %p32 = scmp.eq.s32.totalorder %s16, 1
      %p33 = por %p31, %p32
      %p34 = scmp.ne.s32.totalorder %s26, %s29
      %p35 = scmp.eq.s32.totalorder %s16, 0
      %p36 = por %p34, %p35
      %p37 = scmp.ne.s32.totalorder %s26, %s29
      %p38 = scmp.eq.s32.totalorder %s21, 1
      %p39 = por %p37, %p38
      %p40 = scmp.ne.s32.totalorder %s29, %s30
      %p41 = scmp.eq.s32.totalorder %s21, 0
      %p42 = por %p40, %p41
      %p43 = scmp.ne.s32.totalorder %s29, %s30
      %p44 = scmp.eq.s32.totalorder %s22, 1
      %p45 = por %p43, %p44
      %p47 = scmp.ne.s32.totalorder %s30, %s46
      %p48 = scmp.eq.s32.totalorder %s22, 0
      %p49 = por %p47, %p48
      %s51 = sadd.s32 %s50, 1
      %p54 = scmp.eq.s32.totalorder %s16, 1
      %p55 = scmp.ne.s32.totalorder %s50, %s52
      %p56 = scmp.eq.s32.totalorder %s16, 0
      %p57 = por %p55, %p56
      %p58 = scmp.ne.s32.totalorder %s50, %s52
      %p59 = scmp.eq.s32.totalorder %s21, 1
      %p60 = por %p58, %p59
      %p61 = scmp.ne.s32.totalorder %s52, %s53
      %p62 = scmp.eq.s32.totalorder %s21, 0
      %p63 = por %p61, %p62
      %p64 = scmp.ne.s32.totalorder %s52, %s53
      %p65 = scmp.eq.s32.totalorder %s22, 1
      %p66 = por %p64, %p65
      %p68 = scmp.ne.s32.totalorder %s53, %s67
      %p69 = scmp.eq.s32.totalorder %s22, 0
      %p70 = por %p68, %p69
      %s72 = sadd.s32 %s71, 1
      %p75 = scmp.eq.s32.totalorder %s16, 1
      %p76 = scmp.ne.s32.totalorder %s71, %s73
      %p77 = scmp.eq.s32.totalorder %s16, 0
      %p78 = por %p76, %p77
      %p79 = scmp.ne.s32.totalorder %s71, %s73
      %p80 = scmp.eq.s32.totalorder %s21, 1
      %p81 = por %p79, %p80
      %p82 = scmp.ne.s32.totalorder %s73, %s74
      %p83 = scmp.eq.s32.totalorder %s21, 0
      %p84 = por %p82, %p83
      %p85 = scmp.ne.s32.totalorder %s73, %s74
      %p86 = scmp.eq.s32.totalorder %s22, 1
      %p87 = por %p85, %p86
      %p89 = scmp.ne.s32.totalorder %s74, %s88
      %p90 = scmp.eq.s32.totalorder %s22, 0
      %p91 = por %p89, %p90
      %s93 = sadd.s32 %s92, 1
      %p96 = scmp.eq.s32.totalorder %s16, 1
      %p97 = scmp.ne.s32.totalorder %s92, %s94
      %p98 = scmp.eq.s32.totalorder %s16, 0
      %p99 = por %p97, %p98
      %p100 = scmp.ne.s32.totalorder %s92, %s94
      %p101 = scmp.eq.s32.totalorder %s21, 1
      %p102 = por %p100, %p101
      %p103 = scmp.ne.s32.totalorder %s94, %s95
      %p104 = scmp.eq.s32.totalorder %s21, 0
      %p105 = por %p103, %p104
      %p106 = scmp.ne.s32.totalorder %s94, %s95
      %p107 = scmp.eq.s32.totalorder %s22, 1
      %p108 = por %p106, %p107
      %p110 = scmp.ne.s32.totalorder %s95, %s109
      %p111 = scmp.eq.s32.totalorder %s22, 0
      %p112 = por %p110, %p111
      %s114 = sadd.s32 %s113, 1
      %p117 = scmp.eq.s32.totalorder %s16, 1
      %p118 = scmp.ne.s32.totalorder %s113, %s115
      %p119 = scmp.eq.s32.totalorder %s16, 0
      %p120 = por %p118, %p119
      %p121 = scmp.ne.s32.totalorder %s113, %s115
      %p122 = scmp.eq.s32.totalorder %s21, 1
      %p123 = por %p121, %p122
      %p124 = scmp.ne.s32.totalorder %s115, %s116
      %p125 = scmp.eq.s32.totalorder %s21, 0
      %p126 = por %p124, %p125
      %p127 = scmp.ne.s32.totalorder %s115, %s116
      %p128 = scmp.eq.s32.totalorder %s22, 1
      %p129 = por %p127, %p128
      %p131 = scmp.ne.s32.totalorder %s116, %s130
      %p132 = scmp.eq.s32.totalorder %s22, 0
      %p133 = por %p131, %p132
      %s135 = sadd.s32 %s134, 1
      %p138 = scmp.eq.s32.totalorder %s16, 1
      %p139 = scmp.ne.s32.totalorder %s134, %s136
      %p140 = scmp.eq.s32.totalorder %s16, 0
      %p141 = por %p139, %p140
      %p142 = scmp.ne.s32.totalorder %s134, %s136
      %p143 = scmp.eq.s32.totalorder %s21, 1
      %p144 = por %p142, %p143
      %p145 = scmp.ne.s32.totalorder %s136, %s137
      %p146 = scmp.eq.s32.totalorder %s21, 0
      %p147 = por %p145, %p146
      %p148 = scmp.ne.s32.totalorder %s136, %s137
      %p149 = scmp.eq.s32.totalorder %s22, 1
      %p150 = por %p148, %p149
      %p152 = scmp.ne.s32.totalorder %s137, %s151
      %p153 = scmp.eq.s32.totalorder %s22, 0
      %p154 = por %p152, %p153
      %s156 = sadd.s32 %s155, 1
      %p159 = scmp.eq.s32.totalorder %s16, 1
      %p160 = scmp.ne.s32.totalorder %s155, %s157
      %p161 = scmp.eq.s32.totalorder %s16, 0
      %p162 = por %p160, %p161
      %p163 = scmp.ne.s32.totalorder %s155, %s157
      %p164 = scmp.eq.s32.totalorder %s21, 1
      %p165 = por %p163, %p164
      %p166 = scmp.ne.s32.totalorder %s157, %s158
      %p167 = scmp.eq.s32.totalorder %s21, 0
      %p168 = por %p166, %p167
      %p169 = scmp.ne.s32.totalorder %s157, %s158
      %p170 = scmp.eq.s32.totalorder %s22, 1
      %p171 = por %p169, %p170
      %p173 = scmp.ne.s32.totalorder %s158, %s172
      %p174 = scmp.eq.s32.totalorder %s22, 0
      %p175 = por %p173, %p174
      %s176 = ssub.s32 %s16, %s23
      %p177 = scmp.eq.s32.totalorder %s176, 0
      %s179 = sadd.s32 %s178, 1
      %s180 = scalar_select %p177, %s178, %s179
      %p183 = pneg %p177
      %p184 = scmp.eq.s32.totalorder %s16, 1
      %p185 = por %p183, %p184
      %p186 = scmp.ne.s32.totalorder %s178, %s181
      %p187 = scmp.eq.s32.totalorder %s16, 0
      %p188 = por %p186, %p187
      %p189 = scmp.ne.s32.totalorder %s178, %s181
      %p190 = scmp.eq.s32.totalorder %s21, 1
      %p191 = por %p189, %p190
      %p192 = scmp.ne.s32.totalorder %s181, %s182
      %p193 = scmp.eq.s32.totalorder %s21, 0
      %p194 = por %p192, %p193
      %p195 = scmp.ne.s32.totalorder %s181, %s182
      %p196 = scmp.eq.s32.totalorder %s22, 1
      %p197 = por %p195, %p196
      %p199 = scmp.ne.s32.totalorder %s182, %s198
      %p200 = scmp.eq.s32.totalorder %s22, 0
      %p201 = por %p199, %p200
      %p202 = scmp.le.s32.totalorder 1, %s16
      %p203 = scmp.lt.s32.totalorder %s16, 3
      %p204 = pnand %p202, %p203
      %p205 = pneg %p204
      // Predicated region
      $region9: #{tpu_custom_call.1} parent=5 // pred_check
        _
      $region10: #{tpu_custom_call.1} parent=5 // pred_check_branch
        %207 = sbr.rel (%p204) target = $region12
      $region11: #{tpu_custom_call.1} parent=5 // pred_region
        %s208 = ssub.s32 %s16, 1
        // Predicated region
        $region13: #{tpu_custom_call.1} parent=11 // pred_check
          %p209 = pneg %p63
        $region14: #{tpu_custom_call.1} parent=11 // pred_check_branch
          %211 = sbr.rel (%p209) target = $region16
        $region15: #{tpu_custom_call.1} parent=11 // pred_region
          _
        $region16: #{tpu_custom_call.1} parent=11 // pred_fallthru
          _
        // Predicated region
        $region17: #{tpu_custom_call.1} parent=11 // pred_check
          %p212 = pneg %p84
        $region18: #{tpu_custom_call.1} parent=11 // pred_check_branch
          %214 = sbr.rel (%p212) target = $region20
        $region19: #{tpu_custom_call.1} parent=11 // pred_region
          _
        $region20: #{tpu_custom_call.1} parent=11 // pred_fallthru
          _
        // Predicated region
        $region21: #{tpu_custom_call.1} parent=11 // pred_check
          %p215 = pneg %p105
        $region22: #{tpu_custom_call.1} parent=11 // pred_check_branch
          %217 = sbr.rel (%p215) target = $region24
        $region23: #{tpu_custom_call.1} parent=11 // pred_region
          _
        $region24: #{tpu_custom_call.1} parent=11 // pred_fallthru
          _
        // Predicated region
        $region25: #{tpu_custom_call.1} parent=11 // pred_check
          %p218 = pneg %p126
        $region26: #{tpu_custom_call.1} parent=11 // pred_check_branch
          %220 = sbr.rel (%p218) target = $region28
        $region27: #{tpu_custom_call.1} parent=11 // pred_region
          _
        $region28: #{tpu_custom_call.1} parent=11 // pred_fallthru
          _
        // Predicated region
        $region29: #{tpu_custom_call.1} parent=11 // pred_check
          %p221 = pneg %p147
        $region30: #{tpu_custom_call.1} parent=11 // pred_check_branch
          %223 = sbr.rel (%p221) target = $region32
        $region31: #{tpu_custom_call.1} parent=11 // pred_region
          _
        $region32: #{tpu_custom_call.1} parent=11 // pred_fallthru
          _
        // Predicated region
        $region33: #{tpu_custom_call.1} parent=11 // pred_check
          %p224 = pneg %p168
        $region34: #{tpu_custom_call.1} parent=11 // pred_check_branch
          %226 = sbr.rel (%p224) target = $region36
        $region35: #{tpu_custom_call.1} parent=11 // pred_region
          _
        $region36: #{tpu_custom_call.1} parent=11 // pred_fallthru
          _
      $region12: #{tpu_custom_call.1} parent=5 // pred_fallthru
        _
      %p227 = scmp.lt.s32.totalorder %s16, 2
      // Predicated region
      $region37: #{tpu_custom_call.1} parent=5 // pred_check
        %p228 = pneg %p227
      $region38: #{tpu_custom_call.1} parent=5 // pred_check_branch
        %230 = sbr.rel (%p228) target = $region40
      $region39: #{tpu_custom_call.1} parent=5 // pred_region
        // Predicated region
        $region41: #{tpu_custom_call.1} parent=39 // pred_check
          %p231 = pneg %p36
        $region42: #{tpu_custom_call.1} parent=39 // pred_check_branch
          %233 = sbr.rel (%p231) target = $region44
        $region43: #{tpu_custom_call.1} parent=39 // pred_region
          %p234 = scmp.lt.s32.totalorder %s16, 1
          %s235 = scalar_select %p234, %s16, 1
          %s236 = smul.addr %s235, 32
          %s237 = smul.addr %s236, 8
          %s238 = scalar_lea.vmem %s0, %s237
        $region44: #{tpu_custom_call.1} parent=39 // pred_fallthru
          _
      $region40: #{tpu_custom_call.1} parent=5 // pred_fallthru
        _
      %p239 = scmp.le.s32.totalorder 1, %s16
      %p240 = scmp.lt.s32.totalorder %s16, 3
      %p241 = pnand %p239, %p240
      %p242 = pneg %p241
      // Predicated region
      $region45: #{tpu_custom_call.1} parent=5 // pred_check
        _
      $region46: #{tpu_custom_call.1} parent=5 // pred_check_branch
        %244 = sbr.rel (%p241) target = $region48
      $region47: #{tpu_custom_call.1} parent=5 // pred_region
        %s245 = ssub.s32 %s16, 1
        %p246 = scmp.lt.s32.totalorder %s21, 1
        %s247 = scalar_select %p246, %s21, 1
        %s248 = smul.addr %s247, 32
        %s249 = smul.addr %s248, 8
        %s250 = scalar_lea.vmem %s0, %s249
        %p251 = pneg %p42
        %p252 = pneg %p39
        %p253 = pneg %p63
        %p254 = pneg %p60
        %p255 = pneg %p84
        %p256 = pneg %p81
        %p257 = pneg %p105
        %p258 = pneg %p102
        %p259 = pneg %p126
        %p260 = pneg %p123
        %p261 = pneg %p147
        %p262 = pneg %p144
        %p263 = pneg %p168
        %p264 = pneg %p165
        %p265 = pneg %p194
        %p266 = pneg %p191
        %s267 = sand.u32 %s181, 1
        %s268 = scalar_lea.sflag [#allocation6], %s267
        %s269 = sand.u32 %s181, 1
        %s270 = smul.addr %s269, 16
        %s271 = scalar_lea.vmem [#allocation5], %s270
        %p272 = scmp.lt.s32.totalorder %s21, 1
        %s273 = scalar_select %p272, %s21, 1
        %s274 = smul.addr %s273, 32
        %s275 = smul.addr %s274, 8
        %s276 = scalar_lea.vmem %s0, %s275
        %vm277 = vcmask 64512
        %278 = vst.msk [vmem:[#allocation2] sm:$0xff] %vm277, 0.0
        %279 = vst.msk [vmem:[#allocation2 + $0x8] sm:$0xff] %vm277, 0.0
        %280 = vst.msk [vmem:[#allocation2 + $0x10] sm:$0xff] %vm277, 0.0
        %281 = vst.msk [vmem:[#allocation2 + $0x18] sm:$0xff] %vm277, 0.0
        %282 = vst.msk [vmem:[#allocation2 + $0x20] sm:$0xff] %vm277, 0.0
        %283 = vst.msk [vmem:[#allocation2 + $0x28] sm:$0xff] %vm277, 0.0
        %284 = vst.msk [vmem:[#allocation2 + $0x30] sm:$0xff] %vm277, 0.0
        %285 = vst.msk [vmem:[#allocation2 + $0x38] sm:$0xff] %vm277, 0.0
        %286 = vst.msk [vmem:[#allocation2 + $0x40] sm:$0xff] %vm277, 0.0
        %287 = vst.msk [vmem:[#allocation2 + $0x48] sm:$0xff] %vm277, 0.0
        %288 = vst.msk [vmem:[#allocation2 + $0x50] sm:$0xff] %vm277, 0.0
        %289 = vst.msk [vmem:[#allocation2 + $0x58] sm:$0xff] %vm277, 0.0
        %290 = vst.msk [vmem:[#allocation2 + $0x60] sm:$0xff] %vm277, 0.0
        %291 = vst.msk [vmem:[#allocation2 + $0x68] sm:$0xff] %vm277, 0.0
        %292 = vst.msk [vmem:[#allocation2 + $0x70] sm:$0xff] %vm277, 0.0
        %293 = vst.msk [vmem:[#allocation2 + $0x78] sm:$0xff] %vm277, 0.0
        %294 = vst.msk [vmem:[#allocation2 + $0x80] sm:$0xff] %vm277, 0.0
        %295 = vst.msk [vmem:[#allocation2 + $0x88] sm:$0xff] %vm277, 0.0
        %296 = vst.msk [vmem:[#allocation2 + $0x90] sm:$0xff] %vm277, 0.0
        %297 = vst.msk [vmem:[#allocation2 + $0x98] sm:$0xff] %vm277, 0.0
        %298 = vst.msk [vmem:[#allocation2 + $0xa0] sm:$0xff] %vm277, 0.0
        %299 = vst.msk [vmem:[#allocation2 + $0xa8] sm:$0xff] %vm277, 0.0
        %300 = vst.msk [vmem:[#allocation2 + $0xb0] sm:$0xff] %vm277, 0.0
        %301 = vst.msk [vmem:[#allocation2 + $0xb8] sm:$0xff] %vm277, 0.0
        %302 = vst.msk [vmem:[#allocation2 + $0xc0] sm:$0xff] %vm277, 0.0
        %303 = vst.msk [vmem:[#allocation2 + $0xc8] sm:$0xff] %vm277, 0.0
        %304 = vst.msk [vmem:[#allocation2 + $0xd0] sm:$0xff] %vm277, 0.0
        %305 = vst.msk [vmem:[#allocation2 + $0xd8] sm:$0xff] %vm277, 0.0
        %306 = vst.msk [vmem:[#allocation2 + $0xe0] sm:$0xff] %vm277, 0.0
        %307 = vst.msk [vmem:[#allocation2 + $0xe8] sm:$0xff] %vm277, 0.0
        %308 = vst.msk [vmem:[#allocation2 + $0xf0] sm:$0xff] %vm277, 0.0
        %309 = vst.msk [vmem:[#allocation2 + $0xf8] sm:$0xff] %vm277, 0.0
        %310 = vst.msk [vmem:[#allocation2 + $0x100] sm:$0xff] %vm277, 0.0
        %311 = vst.msk [vmem:[#allocation2 + $0x108] sm:$0xff] %vm277, 0.0
        %312 = vst.msk [vmem:[#allocation2 + $0x110] sm:$0xff] %vm277, 0.0
        %313 = vst.msk [vmem:[#allocation2 + $0x118] sm:$0xff] %vm277, 0.0
        %314 = vst.msk [vmem:[#allocation2 + $0x120] sm:$0xff] %vm277, 0.0
        %315 = vst.msk [vmem:[#allocation2 + $0x128] sm:$0xff] %vm277, 0.0
        %316 = vst.msk [vmem:[#allocation2 + $0x130] sm:$0xff] %vm277, 0.0
        %317 = vst.msk [vmem:[#allocation2 + $0x138] sm:$0xff] %vm277, 0.0
        %318 = vst.msk [vmem:[#allocation2 + $0x140] sm:$0xff] %vm277, 0.0
        %319 = vst.msk [vmem:[#allocation2 + $0x148] sm:$0xff] %vm277, 0.0
        %320 = vst.msk [vmem:[#allocation2 + $0x150] sm:$0xff] %vm277, 0.0
        %321 = vst.msk [vmem:[#allocation2 + $0x158] sm:$0xff] %vm277, 0.0
        %322 = vst.msk [vmem:[#allocation2 + $0x160] sm:$0xff] %vm277, 0.0
        %323 = vst.msk [vmem:[#allocation2 + $0x168] sm:$0xff] %vm277, 0.0
        %324 = vst.msk [vmem:[#allocation2 + $0x170] sm:$0xff] %vm277, 0.0
        %325 = vst.msk [vmem:[#allocation2 + $0x178] sm:$0xff] %vm277, 0.0
        %326 = vst.msk [vmem:[#allocation2 + $0x180] sm:$0xff] %vm277, 0.0
        %327 = vst.msk [vmem:[#allocation2 + $0x188] sm:$0xff] %vm277, 0.0
        %328 = vst.msk [vmem:[#allocation2 + $0x190] sm:$0xff] %vm277, 0.0
        %329 = vst.msk [vmem:[#allocation2 + $0x198] sm:$0xff] %vm277, 0.0
        %330 = vst.msk [vmem:[#allocation2 + $0x1a0] sm:$0xff] %vm277, 0.0
        %331 = vst.msk [vmem:[#allocation2 + $0x1a8] sm:$0xff] %vm277, 0.0
        %332 = vst.msk [vmem:[#allocation2 + $0x1b0] sm:$0xff] %vm277, 0.0
        %333 = vst.msk [vmem:[#allocation2 + $0x1b8] sm:$0xff] %vm277, 0.0
        %334 = vst.msk [vmem:[#allocation2 + $0x1c0] sm:$0xff] %vm277, 0.0
        %335 = vst.msk [vmem:[#allocation2 + $0x1c8] sm:$0xff] %vm277, 0.0
        %336 = vst.msk [vmem:[#allocation2 + $0x1d0] sm:$0xff] %vm277, 0.0
        %337 = vst.msk [vmem:[#allocation2 + $0x1d8] sm:$0xff] %vm277, 0.0
        %338 = vst.msk [vmem:[#allocation2 + $0x1e0] sm:$0xff] %vm277, 0.0
        %339 = vst.msk [vmem:[#allocation2 + $0x1e8] sm:$0xff] %vm277, 0.0
        %340 = vst.msk [vmem:[#allocation2 + $0x1f0] sm:$0xff] %vm277, 0.0
        %341 = vst.msk [vmem:[#allocation2 + $0x1f8] sm:$0xff] %vm277, 0.0
        %342 = vst.msk [vmem:[#allocation2 + $0x200] sm:$0xff] %vm277, 0.0
        %343 = vst.msk [vmem:[#allocation2 + $0x208] sm:$0xff] %vm277, 0.0
        %344 = vst.msk [vmem:[#allocation2 + $0x210] sm:$0xff] %vm277, 0.0
        %345 = vst.msk [vmem:[#allocation2 + $0x218] sm:$0xff] %vm277, 0.0
        %346 = vst.msk [vmem:[#allocation2 + $0x220] sm:$0xff] %vm277, 0.0
        %347 = vst.msk [vmem:[#allocation2 + $0x228] sm:$0xff] %vm277, 0.0
        %348 = vst.msk [vmem:[#allocation2 + $0x230] sm:$0xff] %vm277, 0.0
        %349 = vst.msk [vmem:[#allocation2 + $0x238] sm:$0xff] %vm277, 0.0
        %350 = vst.msk [vmem:[#allocation2 + $0x240] sm:$0xff] %vm277, 0.0
        %351 = vst.msk [vmem:[#allocation2 + $0x248] sm:$0xff] %vm277, 0.0
        %352 = vst.msk [vmem:[#allocation2 + $0x250] sm:$0xff] %vm277, 0.0
        %353 = vst.msk [vmem:[#allocation2 + $0x258] sm:$0xff] %vm277, 0.0
        %354 = vst.msk [vmem:[#allocation2 + $0x260] sm:$0xff] %vm277, 0.0
        %355 = vst.msk [vmem:[#allocation2 + $0x268] sm:$0xff] %vm277, 0.0
        %356 = vst.msk [vmem:[#allocation2 + $0x270] sm:$0xff] %vm277, 0.0
        %357 = vst.msk [vmem:[#allocation2 + $0x278] sm:$0xff] %vm277, 0.0
        %358 = vst.msk [vmem:[#allocation2 + $0x280] sm:$0xff] %vm277, 0.0
        %359 = vst.msk [vmem:[#allocation2 + $0x288] sm:$0xff] %vm277, 0.0
        %360 = vst.msk [vmem:[#allocation2 + $0x290] sm:$0xff] %vm277, 0.0
        %361 = vst.msk [vmem:[#allocation2 + $0x298] sm:$0xff] %vm277, 0.0
        %362 = vst.msk [vmem:[#allocation2 + $0x2a0] sm:$0xff] %vm277, 0.0
        %363 = vst.msk [vmem:[#allocation2 + $0x2a8] sm:$0xff] %vm277, 0.0
        %364 = vst.msk [vmem:[#allocation2 + $0x2b0] sm:$0xff] %vm277, 0.0
        %365 = vst.msk [vmem:[#allocation2 + $0x2b8] sm:$0xff] %vm277, 0.0
        %366 = vst.msk [vmem:[#allocation2 + $0x2c0] sm:$0xff] %vm277, 0.0
        %367 = vst.msk [vmem:[#allocation2 + $0x2c8] sm:$0xff] %vm277, 0.0
        %368 = vst.msk [vmem:[#allocation2 + $0x2d0] sm:$0xff] %vm277, 0.0
        %369 = vst.msk [vmem:[#allocation2 + $0x2d8] sm:$0xff] %vm277, 0.0
        %370 = vst.msk [vmem:[#allocation2 + $0x2e0] sm:$0xff] %vm277, 0.0
        %371 = vst.msk [vmem:[#allocation2 + $0x2e8] sm:$0xff] %vm277, 0.0
        %372 = vst.msk [vmem:[#allocation2 + $0x2f0] sm:$0xff] %vm277, 0.0
        %373 = vst.msk [vmem:[#allocation2 + $0x2f8] sm:$0xff] %vm277, 0.0
        %374 = vst.msk [vmem:[#allocation2 + $0x300] sm:$0xff] %vm277, 0.0
        %375 = vst.msk [vmem:[#allocation2 + $0x308] sm:$0xff] %vm277, 0.0
        %376 = vst.msk [vmem:[#allocation2 + $0x310] sm:$0xff] %vm277, 0.0
        %377 = vst.msk [vmem:[#allocation2 + $0x318] sm:$0xff] %vm277, 0.0
        %378 = vst.msk [vmem:[#allocation2 + $0x320] sm:$0xff] %vm277, 0.0
        %379 = vst.msk [vmem:[#allocation2 + $0x328] sm:$0xff] %vm277, 0.0
        %380 = vst.msk [vmem:[#allocation2 + $0x330] sm:$0xff] %vm277, 0.0
        %381 = vst.msk [vmem:[#allocation2 + $0x338] sm:$0xff] %vm277, 0.0
        %382 = vst.msk [vmem:[#allocation2 + $0x340] sm:$0xff] %vm277, 0.0
        %383 = vst.msk [vmem:[#allocation2 + $0x348] sm:$0xff] %vm277, 0.0
        %384 = vst.msk [vmem:[#allocation2 + $0x350] sm:$0xff] %vm277, 0.0
        %385 = vst.msk [vmem:[#allocation2 + $0x358] sm:$0xff] %vm277, 0.0
        %386 = vst.msk [vmem:[#allocation2 + $0x360] sm:$0xff] %vm277, 0.0
        %387 = vst.msk [vmem:[#allocation2 + $0x368] sm:$0xff] %vm277, 0.0
        %388 = vst.msk [vmem:[#allocation2 + $0x370] sm:$0xff] %vm277, 0.0
        %389 = vst.msk [vmem:[#allocation2 + $0x378] sm:$0xff] %vm277, 0.0
        %390 = vst.msk [vmem:[#allocation2 + $0x380] sm:$0xff] %vm277, 0.0
        %391 = vst.msk [vmem:[#allocation2 + $0x388] sm:$0xff] %vm277, 0.0
        %392 = vst.msk [vmem:[#allocation2 + $0x390] sm:$0xff] %vm277, 0.0
        %393 = vst.msk [vmem:[#allocation2 + $0x398] sm:$0xff] %vm277, 0.0
        %394 = vst.msk [vmem:[#allocation2 + $0x3a0] sm:$0xff] %vm277, 0.0
        %395 = vst.msk [vmem:[#allocation2 + $0x3a8] sm:$0xff] %vm277, 0.0
        %396 = vst.msk [vmem:[#allocation2 + $0x3b0] sm:$0xff] %vm277, 0.0
        %397 = vst.msk [vmem:[#allocation2 + $0x3b8] sm:$0xff] %vm277, 0.0
        %398 = vst.msk [vmem:[#allocation2 + $0x3c0] sm:$0xff] %vm277, 0.0
        %399 = vst.msk [vmem:[#allocation2 + $0x3c8] sm:$0xff] %vm277, 0.0
        %400 = vst.msk [vmem:[#allocation2 + $0x3d0] sm:$0xff] %vm277, 0.0
        %401 = vst.msk [vmem:[#allocation2 + $0x3d8] sm:$0xff] %vm277, 0.0
        %402 = vst.msk [vmem:[#allocation2 + $0x3e0] sm:$0xff] %vm277, 0.0
        %403 = vst.msk [vmem:[#allocation2 + $0x3e8] sm:$0xff] %vm277, 0.0
        %404 = vst.msk [vmem:[#allocation2 + $0x3f0] sm:$0xff] %vm277, 0.0
        %405 = vst.msk [vmem:[#allocation2 + $0x3f8] sm:$0xff] %vm277, 0.0
        %406 = vst.msk [vmem:[#allocation2 + $0x400] sm:$0xff] %vm277, 0.0
        %407 = vst.msk [vmem:[#allocation2 + $0x408] sm:$0xff] %vm277, 0.0
        %408 = vst.msk [vmem:[#allocation2 + $0x410] sm:$0xff] %vm277, 0.0
        %409 = vst.msk [vmem:[#allocation2 + $0x418] sm:$0xff] %vm277, 0.0
        %410 = vst.msk [vmem:[#allocation2 + $0x420] sm:$0xff] %vm277, 0.0
        %411 = vst.msk [vmem:[#allocation2 + $0x428] sm:$0xff] %vm277, 0.0
        %412 = vst.msk [vmem:[#allocation2 + $0x430] sm:$0xff] %vm277, 0.0
        %413 = vst.msk [vmem:[#allocation2 + $0x438] sm:$0xff] %vm277, 0.0
        %414 = vst.msk [vmem:[#allocation2 + $0x440] sm:$0xff] %vm277, 0.0
        %415 = vst.msk [vmem:[#allocation2 + $0x448] sm:$0xff] %vm277, 0.0
        %416 = vst.msk [vmem:[#allocation2 + $0x450] sm:$0xff] %vm277, 0.0
        %417 = vst.msk [vmem:[#allocation2 + $0x458] sm:$0xff] %vm277, 0.0
        %418 = vst.msk [vmem:[#allocation2 + $0x460] sm:$0xff] %vm277, 0.0
        %419 = vst.msk [vmem:[#allocation2 + $0x468] sm:$0xff] %vm277, 0.0
        %420 = vst.msk [vmem:[#allocation2 + $0x470] sm:$0xff] %vm277, 0.0
        %421 = vst.msk [vmem:[#allocation2 + $0x478] sm:$0xff] %vm277, 0.0
        %422 = vst.msk [vmem:[#allocation2 + $0x480] sm:$0xff] %vm277, 0.0
        %423 = vst.msk [vmem:[#allocation2 + $0x488] sm:$0xff] %vm277, 0.0
        %424 = vst.msk [vmem:[#allocation2 + $0x490] sm:$0xff] %vm277, 0.0
        %425 = vst.msk [vmem:[#allocation2 + $0x498] sm:$0xff] %vm277, 0.0
        %426 = vst.msk [vmem:[#allocation2 + $0x4a0] sm:$0xff] %vm277, 0.0
        %427 = vst.msk [vmem:[#allocation2 + $0x4a8] sm:$0xff] %vm277, 0.0
        %428 = vst.msk [vmem:[#allocation2 + $0x4b0] sm:$0xff] %vm277, 0.0
        %429 = vst.msk [vmem:[#allocation2 + $0x4b8] sm:$0xff] %vm277, 0.0
        %430 = vst.msk [vmem:[#allocation2 + $0x4c0] sm:$0xff] %vm277, 0.0
        %431 = vst.msk [vmem:[#allocation2 + $0x4c8] sm:$0xff] %vm277, 0.0
        %432 = vst.msk [vmem:[#allocation2 + $0x4d0] sm:$0xff] %vm277, 0.0
        %433 = vst.msk [vmem:[#allocation2 + $0x4d8] sm:$0xff] %vm277, 0.0
        %434 = vst.msk [vmem:[#allocation2 + $0x4e0] sm:$0xff] %vm277, 0.0
        %435 = vst.msk [vmem:[#allocation2 + $0x4e8] sm:$0xff] %vm277, 0.0
        %436 = vst.msk [vmem:[#allocation2 + $0x4f0] sm:$0xff] %vm277, 0.0
        %437 = vst.msk [vmem:[#allocation2 + $0x4f8] sm:$0xff] %vm277, 0.0
        %438 = vst.msk [vmem:[#allocation2 + $0x500] sm:$0xff] %vm277, 0.0
        %439 = vst.msk [vmem:[#allocation2 + $0x508] sm:$0xff] %vm277, 0.0
        %440 = vst.msk [vmem:[#allocation2 + $0x510] sm:$0xff] %vm277, 0.0
        %441 = vst.msk [vmem:[#allocation2 + $0x518] sm:$0xff] %vm277, 0.0
        %442 = vst.msk [vmem:[#allocation2 + $0x520] sm:$0xff] %vm277, 0.0
        %443 = vst.msk [vmem:[#allocation2 + $0x528] sm:$0xff] %vm277, 0.0
        %444 = vst.msk [vmem:[#allocation2 + $0x530] sm:$0xff] %vm277, 0.0
        %445 = vst.msk [vmem:[#allocation2 + $0x538] sm:$0xff] %vm277, 0.0
        %446 = vst.msk [vmem:[#allocation2 + $0x540] sm:$0xff] %vm277, 0.0
        %447 = vst.msk [vmem:[#allocation2 + $0x548] sm:$0xff] %vm277, 0.0
        %448 = vst.msk [vmem:[#allocation2 + $0x550] sm:$0xff] %vm277, 0.0
        %449 = vst.msk [vmem:[#allocation2 + $0x558] sm:$0xff] %vm277, 0.0
        %450 = vst.msk [vmem:[#allocation2 + $0x560] sm:$0xff] %vm277, 0.0
        %451 = vst.msk [vmem:[#allocation2 + $0x568] sm:$0xff] %vm277, 0.0
        %452 = vst.msk [vmem:[#allocation2 + $0x570] sm:$0xff] %vm277, 0.0
        %453 = vst.msk [vmem:[#allocation2 + $0x578] sm:$0xff] %vm277, 0.0
        %454 = vst.msk [vmem:[#allocation2 + $0x580] sm:$0xff] %vm277, 0.0
        %455 = vst.msk [vmem:[#allocation2 + $0x588] sm:$0xff] %vm277, 0.0
        %456 = vst.msk [vmem:[#allocation2 + $0x590] sm:$0xff] %vm277, 0.0
        %457 = vst.msk [vmem:[#allocation2 + $0x598] sm:$0xff] %vm277, 0.0
        %458 = vst.msk [vmem:[#allocation2 + $0x5a0] sm:$0xff] %vm277, 0.0
        %459 = vst.msk [vmem:[#allocation2 + $0x5a8] sm:$0xff] %vm277, 0.0
        %460 = vst.msk [vmem:[#allocation2 + $0x5b0] sm:$0xff] %vm277, 0.0
        %461 = vst.msk [vmem:[#allocation2 + $0x5b8] sm:$0xff] %vm277, 0.0
        %462 = vst.msk [vmem:[#allocation2 + $0x5c0] sm:$0xff] %vm277, 0.0
        %463 = vst.msk [vmem:[#allocation2 + $0x5c8] sm:$0xff] %vm277, 0.0
        %464 = vst.msk [vmem:[#allocation2 + $0x5d0] sm:$0xff] %vm277, 0.0
        %465 = vst.msk [vmem:[#allocation2 + $0x5d8] sm:$0xff] %vm277, 0.0
        %466 = vst.msk [vmem:[#allocation2 + $0x5e0] sm:$0xff] %vm277, 0.0
        %467 = vst.msk [vmem:[#allocation2 + $0x5e8] sm:$0xff] %vm277, 0.0
        %468 = vst.msk [vmem:[#allocation2 + $0x5f0] sm:$0xff] %vm277, 0.0
        %469 = vst.msk [vmem:[#allocation2 + $0x5f8] sm:$0xff] %vm277, 0.0
        %470 = vst.msk [vmem:[#allocation2 + $0x600] sm:$0xff] %vm277, 0.0
        %471 = vst.msk [vmem:[#allocation2 + $0x608] sm:$0xff] %vm277, 0.0
        %472 = vst.msk [vmem:[#allocation2 + $0x610] sm:$0xff] %vm277, 0.0
        %473 = vst.msk [vmem:[#allocation2 + $0x618] sm:$0xff] %vm277, 0.0
        %474 = vst.msk [vmem:[#allocation2 + $0x620] sm:$0xff] %vm277, 0.0
        %475 = vst.msk [vmem:[#allocation2 + $0x628] sm:$0xff] %vm277, 0.0
        %476 = vst.msk [vmem:[#allocation2 + $0x630] sm:$0xff] %vm277, 0.0
        %477 = vst.msk [vmem:[#allocation2 + $0x638] sm:$0xff] %vm277, 0.0
        %vm478 = vcmask 31744
        %479 = vst.msk [vmem:[#allocation3] sm:$0xff] %vm478, 0.0
        %480 = vst.msk [vmem:[#allocation3 + $0x8] sm:$0xff] %vm478, 0.0
        %481 = vst.msk [vmem:[#allocation3 + $0x10] sm:$0xff] %vm478, 0.0
        %vm482 = vcmask 27648
        %483 = vst.msk [vmem:[#allocation3 + $0x18] sm:$0xf] %vm482, 0.0
        %484 = vst.msk [vmem:[#allocation3 + $0x20] sm:$0xff] %vm478, 0.0
        %485 = vst.msk [vmem:[#allocation3 + $0x28] sm:$0xff] %vm478, 0.0
        %486 = vst.msk [vmem:[#allocation3 + $0x30] sm:$0xff] %vm478, 0.0
        %487 = vst.msk [vmem:[#allocation3 + $0x38] sm:$0xf] %vm482, 0.0
        %488 = vst.msk [vmem:[#allocation3 + $0x40] sm:$0xff] %vm478, 0.0
        %489 = vst.msk [vmem:[#allocation3 + $0x48] sm:$0xff] %vm478, 0.0
        %490 = vst.msk [vmem:[#allocation3 + $0x50] sm:$0xff] %vm478, 0.0
        %491 = vst.msk [vmem:[#allocation3 + $0x58] sm:$0xf] %vm482, 0.0
        %492 = vst.msk [vmem:[#allocation3 + $0x60] sm:$0xff] %vm478, 0.0
        %493 = vst.msk [vmem:[#allocation3 + $0x68] sm:$0xff] %vm478, 0.0
        %494 = vst.msk [vmem:[#allocation3 + $0x70] sm:$0xff] %vm478, 0.0
        %495 = vst.msk [vmem:[#allocation3 + $0x78] sm:$0xf] %vm482, 0.0
        %496 = vst.msk [vmem:[#allocation3 + $0x80] sm:$0xff] %vm478, 0.0
        %497 = vst.msk [vmem:[#allocation3 + $0x88] sm:$0xff] %vm478, 0.0
        %498 = vst.msk [vmem:[#allocation3 + $0x90] sm:$0xff] %vm478, 0.0
        %499 = vst.msk [vmem:[#allocation3 + $0x98] sm:$0xf] %vm482, 0.0
        %500 = vst.msk [vmem:[#allocation3 + $0xa0] sm:$0xff] %vm478, 0.0
        %501 = vst.msk [vmem:[#allocation3 + $0xa8] sm:$0xff] %vm478, 0.0
        %502 = vst.msk [vmem:[#allocation3 + $0xb0] sm:$0xff] %vm478, 0.0
        %503 = vst.msk [vmem:[#allocation3 + $0xb8] sm:$0xf] %vm482, 0.0
        %504 = vst.msk [vmem:[#allocation3 + $0xc0] sm:$0xff] %vm478, 0.0
        %505 = vst.msk [vmem:[#allocation3 + $0xc8] sm:$0xff] %vm478, 0.0
        %506 = vst.msk [vmem:[#allocation3 + $0xd0] sm:$0xff] %vm478, 0.0
        %507 = vst.msk [vmem:[#allocation3 + $0xd8] sm:$0xf] %vm482, 0.0
        %508 = vst.msk [vmem:[#allocation3 + $0xe0] sm:$0xff] %vm478, 0.0
        %509 = vst.msk [vmem:[#allocation3 + $0xe8] sm:$0xff] %vm478, 0.0
        %510 = vst.msk [vmem:[#allocation3 + $0xf0] sm:$0xff] %vm478, 0.0
        %511 = vst.msk [vmem:[#allocation3 + $0xf8] sm:$0xf] %vm482, 0.0
        %512 = vst.msk [vmem:[#allocation3 + $0x100] sm:$0xff] %vm478, 0.0
        %513 = vst.msk [vmem:[#allocation3 + $0x108] sm:$0xff] %vm478, 0.0
        %514 = vst.msk [vmem:[#allocation3 + $0x110] sm:$0xff] %vm478, 0.0
        %515 = vst.msk [vmem:[#allocation3 + $0x118] sm:$0xf] %vm482, 0.0
        %516 = vst.msk [vmem:[#allocation3 + $0x120] sm:$0xff] %vm478, 0.0
        %517 = vst.msk [vmem:[#allocation3 + $0x128] sm:$0xff] %vm478, 0.0
        %518 = vst.msk [vmem:[#allocation3 + $0x130] sm:$0xff] %vm478, 0.0
        %519 = vst.msk [vmem:[#allocation3 + $0x138] sm:$0xf] %vm482, 0.0
        %520 = vst.msk [vmem:[#allocation3 + $0x140] sm:$0xff] %vm478, 0.0
        %521 = vst.msk [vmem:[#allocation3 + $0x148] sm:$0xff] %vm478, 0.0
        %522 = vst.msk [vmem:[#allocation3 + $0x150] sm:$0xff] %vm478, 0.0
        %523 = vst.msk [vmem:[#allocation3 + $0x158] sm:$0xf] %vm482, 0.0
        %524 = vst.msk [vmem:[#allocation3 + $0x160] sm:$0xff] %vm478, 0.0
        %525 = vst.msk [vmem:[#allocation3 + $0x168] sm:$0xff] %vm478, 0.0
        %526 = vst.msk [vmem:[#allocation3 + $0x170] sm:$0xff] %vm478, 0.0
        %527 = vst.msk [vmem:[#allocation3 + $0x178] sm:$0xf] %vm482, 0.0
        %528 = vst.msk [vmem:[#allocation3 + $0x180] sm:$0xff] %vm478, 0.0
        %529 = vst.msk [vmem:[#allocation3 + $0x188] sm:$0xff] %vm478, 0.0
        %530 = vst.msk [vmem:[#allocation3 + $0x190] sm:$0xff] %vm478, 0.0
        %531 = vst.msk [vmem:[#allocation3 + $0x198] sm:$0xf] %vm482, 0.0
        %532 = vst.msk [vmem:[#allocation3 + $0x1a0] sm:$0xff] %vm478, 0.0
        %533 = vst.msk [vmem:[#allocation3 + $0x1a8] sm:$0xff] %vm478, 0.0
        %534 = vst.msk [vmem:[#allocation3 + $0x1b0] sm:$0xff] %vm478, 0.0
        %535 = vst.msk [vmem:[#allocation3 + $0x1b8] sm:$0xf] %vm482, 0.0
        %536 = vst.msk [vmem:[#allocation3 + $0x1c0] sm:$0xff] %vm478, 0.0
        %537 = vst.msk [vmem:[#allocation3 + $0x1c8] sm:$0xff] %vm478, 0.0
        %538 = vst.msk [vmem:[#allocation3 + $0x1d0] sm:$0xff] %vm478, 0.0
        %539 = vst.msk [vmem:[#allocation3 + $0x1d8] sm:$0xf] %vm482, 0.0
        %540 = vst.msk [vmem:[#allocation3 + $0x1e0] sm:$0xff] %vm478, 0.0
        %541 = vst.msk [vmem:[#allocation3 + $0x1e8] sm:$0xff] %vm478, 0.0
        %542 = vst.msk [vmem:[#allocation3 + $0x1f0] sm:$0xff] %vm478, 0.0
        %543 = vst.msk [vmem:[#allocation3 + $0x1f8] sm:$0xf] %vm482, 0.0
        %544 = vst.msk [vmem:[#allocation3 + $0x200] sm:$0xff] %vm478, 0.0
        %545 = vst.msk [vmem:[#allocation3 + $0x208] sm:$0xff] %vm478, 0.0
        %546 = vst.msk [vmem:[#allocation3 + $0x210] sm:$0xff] %vm478, 0.0
        %547 = vst.msk [vmem:[#allocation3 + $0x218] sm:$0xf] %vm482, 0.0
        %548 = vst.msk [vmem:[#allocation3 + $0x220] sm:$0xff] %vm478, 0.0
        %549 = vst.msk [vmem:[#allocation3 + $0x228] sm:$0xff] %vm478, 0.0
        %550 = vst.msk [vmem:[#allocation3 + $0x230] sm:$0xff] %vm478, 0.0
        %551 = vst.msk [vmem:[#allocation3 + $0x238] sm:$0xf] %vm482, 0.0
        %552 = vst.msk [vmem:[#allocation3 + $0x240] sm:$0xff] %vm478, 0.0
        %553 = vst.msk [vmem:[#allocation3 + $0x248] sm:$0xff] %vm478, 0.0
        %554 = vst.msk [vmem:[#allocation3 + $0x250] sm:$0xff] %vm478, 0.0
        %555 = vst.msk [vmem:[#allocation3 + $0x258] sm:$0xf] %vm482, 0.0
        %556 = vst.msk [vmem:[#allocation3 + $0x260] sm:$0xff] %vm478, 0.0
        %557 = vst.msk [vmem:[#allocation3 + $0x268] sm:$0xff] %vm478, 0.0
        %558 = vst.msk [vmem:[#allocation3 + $0x270] sm:$0xff] %vm478, 0.0
        %559 = vst.msk [vmem:[#allocation3 + $0x278] sm:$0xf] %vm482, 0.0
        %560 = vst.msk [vmem:[#allocation3 + $0x280] sm:$0xff] %vm478, 0.0
        %561 = vst.msk [vmem:[#allocation3 + $0x288] sm:$0xff] %vm478, 0.0
        %562 = vst.msk [vmem:[#allocation3 + $0x290] sm:$0xff] %vm478, 0.0
        %563 = vst.msk [vmem:[#allocation3 + $0x298] sm:$0xf] %vm482, 0.0
        %564 = vst.msk [vmem:[#allocation3 + $0x2a0] sm:$0xff] %vm478, 0.0
        %565 = vst.msk [vmem:[#allocation3 + $0x2a8] sm:$0xff] %vm478, 0.0
        %566 = vst.msk [vmem:[#allocation3 + $0x2b0] sm:$0xff] %vm478, 0.0
        %567 = vst.msk [vmem:[#allocation3 + $0x2b8] sm:$0xf] %vm482, 0.0
        %568 = vst.msk [vmem:[#allocation3 + $0x2c0] sm:$0xff] %vm478, 0.0
        %569 = vst.msk [vmem:[#allocation3 + $0x2c8] sm:$0xff] %vm478, 0.0
        %570 = vst.msk [vmem:[#allocation3 + $0x2d0] sm:$0xff] %vm478, 0.0
        %571 = vst.msk [vmem:[#allocation3 + $0x2d8] sm:$0xf] %vm482, 0.0
        %572 = vst.msk [vmem:[#allocation3 + $0x2e0] sm:$0xff] %vm478, 0.0
        %573 = vst.msk [vmem:[#allocation3 + $0x2e8] sm:$0xff] %vm478, 0.0
        %574 = vst.msk [vmem:[#allocation3 + $0x2f0] sm:$0xff] %vm478, 0.0
        %575 = vst.msk [vmem:[#allocation3 + $0x2f8] sm:$0xf] %vm482, 0.0
        %576 = vst.msk [vmem:[#allocation3 + $0x300] sm:$0xff] %vm478, 0.0
        %577 = vst.msk [vmem:[#allocation3 + $0x308] sm:$0xff] %vm478, 0.0
        %578 = vst.msk [vmem:[#allocation3 + $0x310] sm:$0xff] %vm478, 0.0
        %579 = vst.msk [vmem:[#allocation3 + $0x318] sm:$0xf] %vm482, 0.0
        %580 = vst.msk [vmem:[#allocation3 + $0x320] sm:$0xff] %vm478, 0.0
        %581 = vst.msk [vmem:[#allocation3 + $0x328] sm:$0xff] %vm478, 0.0
        %582 = vst.msk [vmem:[#allocation3 + $0x330] sm:$0xff] %vm478, 0.0
        %583 = vst.msk [vmem:[#allocation3 + $0x338] sm:$0xf] %vm482, 0.0
        %584 = vst.msk [vmem:[#allocation3 + $0x340] sm:$0xff] %vm478, 0.0
        %585 = vst.msk [vmem:[#allocation3 + $0x348] sm:$0xff] %vm478, 0.0
        %586 = vst.msk [vmem:[#allocation3 + $0x350] sm:$0xff] %vm478, 0.0
        %587 = vst.msk [vmem:[#allocation3 + $0x358] sm:$0xf] %vm482, 0.0
        %588 = vst.msk [vmem:[#allocation3 + $0x360] sm:$0xff] %vm478, 0.0
        %589 = vst.msk [vmem:[#allocation3 + $0x368] sm:$0xff] %vm478, 0.0
        %590 = vst.msk [vmem:[#allocation3 + $0x370] sm:$0xff] %vm478, 0.0
        %591 = vst.msk [vmem:[#allocation3 + $0x378] sm:$0xf] %vm482, 0.0
        %592 = vst.msk [vmem:[#allocation4] sm:$0xff] %vm478, 0.0
        %593 = vst.msk [vmem:[#allocation4 + $0x8] sm:$0xff] %vm478, 0.0
        %vm594 = vcmask 29696
        %595 = vst.msk [vmem:[#allocation4 + $0x10] sm:$0x3f] %vm594, 0.0
        %596 = vst.msk [vmem:[#allocation4 + $0x18] sm:$0xff] %vm478, 0.0
        %597 = vst.msk [vmem:[#allocation4 + $0x20] sm:$0xff] %vm478, 0.0
        %598 = vst.msk [vmem:[#allocation4 + $0x28] sm:$0x3f] %vm594, 0.0
        %599 = vst.msk [vmem:[#allocation4 + $0x30] sm:$0xff] %vm478, 0.0
        %600 = vst.msk [vmem:[#allocation4 + $0x38] sm:$0xff] %vm478, 0.0
        %601 = vst.msk [vmem:[#allocation4 + $0x40] sm:$0x3f] %vm594, 0.0
        %602 = vst.msk [vmem:[#allocation4 + $0x48] sm:$0xff] %vm478, 0.0
        %603 = vst.msk [vmem:[#allocation4 + $0x50] sm:$0xff] %vm478, 0.0
        %604 = vst.msk [vmem:[#allocation4 + $0x58] sm:$0x3f] %vm594, 0.0
        %605 = vst.msk [vmem:[#allocation4 + $0x60] sm:$0xff] %vm478, 0.0
        %606 = vst.msk [vmem:[#allocation4 + $0x68] sm:$0xff] %vm478, 0.0
        %607 = vst.msk [vmem:[#allocation4 + $0x70] sm:$0x3f] %vm594, 0.0
        %608 = vst.msk [vmem:[#allocation4 + $0x78] sm:$0xff] %vm478, 0.0
        %609 = vst.msk [vmem:[#allocation4 + $0x80] sm:$0xff] %vm478, 0.0
        %610 = vst.msk [vmem:[#allocation4 + $0x88] sm:$0x3f] %vm594, 0.0
        %611 = vst.msk [vmem:[#allocation4 + $0x90] sm:$0xff] %vm478, 0.0
        %612 = vst.msk [vmem:[#allocation4 + $0x98] sm:$0xff] %vm478, 0.0
        %613 = vst.msk [vmem:[#allocation4 + $0xa0] sm:$0x3f] %vm594, 0.0
        %614 = vst.msk [vmem:[#allocation4 + $0xa8] sm:$0xff] %vm478, 0.0
        %615 = vst.msk [vmem:[#allocation4 + $0xb0] sm:$0xff] %vm478, 0.0
        %616 = vst.msk [vmem:[#allocation4 + $0xb8] sm:$0x3f] %vm594, 0.0
        %617 = vst.msk [vmem:[#allocation4 + $0xc0] sm:$0xff] %vm478, 0.0
        %618 = vst.msk [vmem:[#allocation4 + $0xc8] sm:$0xff] %vm478, 0.0
        %619 = vst.msk [vmem:[#allocation4 + $0xd0] sm:$0x3f] %vm594, 0.0
        %620 = vst.msk [vmem:[#allocation4 + $0xd8] sm:$0xff] %vm478, 0.0
        %621 = vst.msk [vmem:[#allocation4 + $0xe0] sm:$0xff] %vm478, 0.0
        %622 = vst.msk [vmem:[#allocation4 + $0xe8] sm:$0x3f] %vm594, 0.0
        %623 = vst.msk [vmem:[#allocation4 + $0xf0] sm:$0xff] %vm478, 0.0
        %624 = vst.msk [vmem:[#allocation4 + $0xf8] sm:$0xff] %vm478, 0.0
        %625 = vst.msk [vmem:[#allocation4 + $0x100] sm:$0x3f] %vm594, 0.0
        %626 = vst.msk [vmem:[#allocation4 + $0x108] sm:$0xff] %vm478, 0.0
        %627 = vst.msk [vmem:[#allocation4 + $0x110] sm:$0xff] %vm478, 0.0
        %628 = vst.msk [vmem:[#allocation4 + $0x118] sm:$0x3f] %vm594, 0.0
        %629 = vst.msk [vmem:[#allocation4 + $0x120] sm:$0xff] %vm478, 0.0
        %630 = vst.msk [vmem:[#allocation4 + $0x128] sm:$0xff] %vm478, 0.0
        %631 = vst.msk [vmem:[#allocation4 + $0x130] sm:$0x3f] %vm594, 0.0
        %632 = vst.msk [vmem:[#allocation4 + $0x138] sm:$0xff] %vm478, 0.0
        %633 = vst.msk [vmem:[#allocation4 + $0x140] sm:$0xff] %vm478, 0.0
        %634 = vst.msk [vmem:[#allocation4 + $0x148] sm:$0x3f] %vm594, 0.0
        %635 = vst.msk [vmem:[#allocation4 + $0x150] sm:$0xff] %vm478, 0.0
        %636 = vst.msk [vmem:[#allocation4 + $0x158] sm:$0xff] %vm478, 0.0
        %637 = vst.msk [vmem:[#allocation4 + $0x160] sm:$0x3f] %vm594, 0.0
        %638 = vst.msk [vmem:[#allocation4 + $0x168] sm:$0xff] %vm478, 0.0
        %639 = vst.msk [vmem:[#allocation4 + $0x170] sm:$0xff] %vm478, 0.0
        %640 = vst.msk [vmem:[#allocation4 + $0x178] sm:$0x3f] %vm594, 0.0
        %641 = vst.msk [vmem:[#allocation4 + $0x180] sm:$0xff] %vm478, 0.0
        %642 = vst.msk [vmem:[#allocation4 + $0x188] sm:$0xff] %vm478, 0.0
        %643 = vst.msk [vmem:[#allocation4 + $0x190] sm:$0x3f] %vm594, 0.0
        %644 = vst.msk [vmem:[#allocation4 + $0x198] sm:$0xff] %vm478, 0.0
        %645 = vst.msk [vmem:[#allocation4 + $0x1a0] sm:$0xff] %vm478, 0.0
        %646 = vst.msk [vmem:[#allocation4 + $0x1a8] sm:$0x3f] %vm594, 0.0
        %647 = vst.msk [vmem:[#allocation4 + $0x1b0] sm:$0xff] %vm478, 0.0
        %648 = vst.msk [vmem:[#allocation4 + $0x1b8] sm:$0xff] %vm478, 0.0
        %649 = vst.msk [vmem:[#allocation4 + $0x1c0] sm:$0x3f] %vm594, 0.0
        %650 = vst.msk [vmem:[#allocation4 + $0x1c8] sm:$0xff] %vm478, 0.0
        %651 = vst.msk [vmem:[#allocation4 + $0x1d0] sm:$0xff] %vm478, 0.0
        %652 = vst.msk [vmem:[#allocation4 + $0x1d8] sm:$0x3f] %vm594, 0.0
        %653 = vst.msk [vmem:[#allocation4 + $0x1e0] sm:$0xff] %vm478, 0.0
        %654 = vst.msk [vmem:[#allocation4 + $0x1e8] sm:$0xff] %vm478, 0.0
        %655 = vst.msk [vmem:[#allocation4 + $0x1f0] sm:$0x3f] %vm594, 0.0
        %656 = vst.msk [vmem:[#allocation4 + $0x1f8] sm:$0xff] %vm478, 0.0
        %657 = vst.msk [vmem:[#allocation4 + $0x200] sm:$0xff] %vm478, 0.0
        %658 = vst.msk [vmem:[#allocation4 + $0x208] sm:$0x3f] %vm594, 0.0
        %v659 = vld [vmem:[%s276] sm:$0xff]
        %v660 = vld [vmem:[%s276 + $0x8] sm:$0xff]
        %v661 = vld [vmem:[%s276 + $0x10] sm:$0xff]
        %v662 = vld [vmem:[%s276 + $0x18] sm:$0xff]
        %v663 = vld [vmem:[%s276 + $0x20] sm:$0xff]
        %v664 = vld [vmem:[%s276 + $0x28] sm:$0xff]
        %v665 = vld [vmem:[%s276 + $0x30] sm:$0xff]
        %v666 = vld [vmem:[%s276 + $0x38] sm:$0xff]
        %v667 = vld [vmem:[%s276 + $0x40] sm:$0xff]
        %v668 = vld [vmem:[%s276 + $0x48] sm:$0xff]
        %v669 = vld [vmem:[%s276 + $0x50] sm:$0xff]
        %v670 = vld [vmem:[%s276 + $0x58] sm:$0xff]
        %v671 = vld [vmem:[%s276 + $0x60] sm:$0xff]
        %v672 = vld [vmem:[%s276 + $0x68] sm:$0xff]
        %v673 = vld [vmem:[%s276 + $0x70] sm:$0xff]
        %v674 = vld [vmem:[%s276 + $0x78] sm:$0xff]
        %v675 = vld [vmem:[%s276 + $0x80] sm:$0xff]
        %v676 = vld [vmem:[%s276 + $0x88] sm:$0xff]
        %v677 = vld [vmem:[%s276 + $0x90] sm:$0xff]
        %v678 = vld [vmem:[%s276 + $0x98] sm:$0xff]
        %v679 = vld [vmem:[%s276 + $0xa0] sm:$0xff]
        %v680 = vld [vmem:[%s276 + $0xa8] sm:$0xff]
        %v681 = vld [vmem:[%s276 + $0xb0] sm:$0xff]
        %v682 = vld [vmem:[%s276 + $0xb8] sm:$0xff]
        %v683 = vld [vmem:[%s276 + $0xc0] sm:$0xff]
        %v684 = vld [vmem:[%s276 + $0xc8] sm:$0xff]
        %v685 = vld [vmem:[%s276 + $0xd0] sm:$0xff]
        %v686 = vld [vmem:[%s276 + $0xd8] sm:$0xff]
        %v687 = vld [vmem:[%s276 + $0xe0] sm:$0xff]
        %v688 = vld [vmem:[%s276 + $0xe8] sm:$0xff]
        %v689 = vld [vmem:[%s276 + $0xf0] sm:$0xff]
        %v690 = vld [vmem:[%s276 + $0xf8] sm:$0xff]
        %s691 = scalar_lea.vmem [#allocation2], 480
        %692 = vst.msk [vmem:[%s691 + $0xc] sm:$0xff] %vm277, %v659
        %693 = vst.msk [vmem:[%s691 + $0x14] sm:$0xff] %vm277, %v660
        %694 = vst.msk [vmem:[%s691 + $0x34] sm:$0xff] %vm277, %v661
        %695 = vst.msk [vmem:[%s691 + $0x3c] sm:$0xff] %vm277, %v662
        %696 = vst.msk [vmem:[%s691 + $0x5c] sm:$0xff] %vm277, %v663
        %697 = vst.msk [vmem:[%s691 + $0x64] sm:$0xff] %vm277, %v664
        %698 = vst.msk [vmem:[%s691 + $0x84] sm:$0xff] %vm277, %v665
        %699 = vst.msk [vmem:[%s691 + $0x8c] sm:$0xff] %vm277, %v666
        %700 = vst.msk [vmem:[%s691 + $0xac] sm:$0xff] %vm277, %v667
        %701 = vst.msk [vmem:[%s691 + $0xb4] sm:$0xff] %vm277, %v668
        %702 = vst.msk [vmem:[%s691 + $0xd4] sm:$0xff] %vm277, %v669
        %703 = vst.msk [vmem:[%s691 + $0xdc] sm:$0xff] %vm277, %v670
        %704 = vst.msk [vmem:[%s691 + $0xfc] sm:$0xff] %vm277, %v671
        %705 = vst.msk [vmem:[%s691 + $0x104] sm:$0xff] %vm277, %v672
        %706 = vst.msk [vmem:[%s691 + $0x124] sm:$0xff] %vm277, %v673
        %707 = vst.msk [vmem:[%s691 + $0x12c] sm:$0xff] %vm277, %v674
        %708 = vst.msk [vmem:[%s691 + $0x14c] sm:$0xff] %vm277, %v675
        %709 = vst.msk [vmem:[%s691 + $0x154] sm:$0xff] %vm277, %v676
        %710 = vst.msk [vmem:[%s691 + $0x174] sm:$0xff] %vm277, %v677
        %711 = vst.msk [vmem:[%s691 + $0x17c] sm:$0xff] %vm277, %v678
        %712 = vst.msk [vmem:[%s691 + $0x19c] sm:$0xff] %vm277, %v679
        %713 = vst.msk [vmem:[%s691 + $0x1a4] sm:$0xff] %vm277, %v680
        %714 = vst.msk [vmem:[%s691 + $0x1c4] sm:$0xff] %vm277, %v681
        %715 = vst.msk [vmem:[%s691 + $0x1cc] sm:$0xff] %vm277, %v682
        %716 = vst.msk [vmem:[%s691 + $0x1ec] sm:$0xff] %vm277, %v683
        %717 = vst.msk [vmem:[%s691 + $0x1f4] sm:$0xff] %vm277, %v684
        %718 = vst.msk [vmem:[%s691 + $0x214] sm:$0xff] %vm277, %v685
        %719 = vst.msk [vmem:[%s691 + $0x21c] sm:$0xff] %vm277, %v686
        %720 = vst.msk [vmem:[%s691 + $0x23c] sm:$0xff] %vm277, %v687
        %721 = vst.msk [vmem:[%s691 + $0x244] sm:$0xff] %vm277, %v688
        %722 = vst.msk [vmem:[%s691 + $0x264] sm:$0xff] %vm277, %v689
        %723 = vst.msk [vmem:[%s691 + $0x26c] sm:$0xff] %vm277, %v690
        %v724 = vld [vmem:[#allocation2] sm:$0xff]
        %v725 = vld [vmem:[#allocation2 + $0x8] sm:$0xff]
        %v726 = vld [vmem:[#allocation2 + $0x28] sm:$0xff]
        %v727 = vld [vmem:[#allocation2 + $0x30] sm:$0xff]
        %v728 = vld [vmem:[#allocation2 + $0x50] sm:$0xff]
        %v729 = vld [vmem:[#allocation2 + $0x58] sm:$0xff]
        %v730 = vld [vmem:[#allocation2 + $0x78] sm:$0xff]
        %v731 = vld [vmem:[#allocation2 + $0x80] sm:$0xff]
        %v732 = vld [vmem:[#allocation2 + $0xa0] sm:$0xff]
        %v733 = vld [vmem:[#allocation2 + $0xa8] sm:$0xff]
        %v734 = vld [vmem:[#allocation2 + $0xc8] sm:$0xff]
        %v735 = vld [vmem:[#allocation2 + $0xd0] sm:$0xff]
        %v736 = vld [vmem:[#allocation2 + $0xf0] sm:$0xff]
        %v737 = vld [vmem:[#allocation2 + $0xf8] sm:$0xff]
        %v738 = vld [vmem:[#allocation2 + $0x118] sm:$0xff]
        %v739 = vld [vmem:[#allocation2 + $0x120] sm:$0xff]
        %v740 = vld [vmem:[#allocation2 + $0x140] sm:$0xff]
        %v741 = vld [vmem:[#allocation2 + $0x148] sm:$0xff]
        %v742 = vld [vmem:[#allocation2 + $0x168] sm:$0xff]
        %v743 = vld [vmem:[#allocation2 + $0x170] sm:$0xff]
        %v744 = vld [vmem:[#allocation2 + $0x190] sm:$0xff]
        %v745 = vld [vmem:[#allocation2 + $0x198] sm:$0xff]
        %v746 = vld [vmem:[#allocation2 + $0x1b8] sm:$0xff]
        %v747 = vld [vmem:[#allocation2 + $0x1c0] sm:$0xff]
        %v748 = vld [vmem:[#allocation2 + $0x1e0] sm:$0xff]
        %v749 = vld [vmem:[#allocation2 + $0x1e8] sm:$0xff]
        %v750 = vld [vmem:[#allocation2 + $0x208] sm:$0xff]
        %v751 = vld [vmem:[#allocation2 + $0x210] sm:$0xff]
        %v752 = vld [vmem:[#allocation2 + $0x230] sm:$0xff]
        %v753 = vld [vmem:[#allocation2 + $0x238] sm:$0xff]
        %v754 = vld [vmem:[#allocation2 + $0x258] sm:$0xff]
        %v755 = vld [vmem:[#allocation2 + $0x260] sm:$0xff]
        %v756 = vld [vmem:[%s1] sm:$0xff]
        %v757 = vld [vmem:[#allocation2 + $0xc] sm:$0xff]
        %v758 = vld [vmem:[#allocation2 + $0x14] sm:$0xff]
        %v759 = vld [vmem:[#allocation2 + $0x34] sm:$0xff]
        %v760 = vld [vmem:[#allocation2 + $0x3c] sm:$0xff]
        %v761 = vld [vmem:[#allocation2 + $0x5c] sm:$0xff]
        %v762 = vld [vmem:[#allocation2 + $0x64] sm:$0xff]
        %v763 = vld [vmem:[#allocation2 + $0x84] sm:$0xff]
        %v764 = vld [vmem:[#allocation2 + $0x8c] sm:$0xff]
        %v765 = vld [vmem:[#allocation2 + $0xac] sm:$0xff]
        %v766 = vld [vmem:[#allocation2 + $0xb4] sm:$0xff]
        %v767 = vld [vmem:[#allocation2 + $0xd4] sm:$0xff]
        %v768 = vld [vmem:[#allocation2 + $0xdc] sm:$0xff]
        %v769 = vld [vmem:[#allocation2 + $0xfc] sm:$0xff]
        %v770 = vld [vmem:[#allocation2 + $0x104] sm:$0xff]
        %v771 = vld [vmem:[#allocation2 + $0x124] sm:$0xff]
        %v772 = vld [vmem:[#allocation2 + $0x12c] sm:$0xff]
        %v773 = vld [vmem:[#allocation2 + $0x14c] sm:$0xff]
        %v774 = vld [vmem:[#allocation2 + $0x154] sm:$0xff]
        %v775 = vld [vmem:[#allocation2 + $0x174] sm:$0xff]
        %v776 = vld [vmem:[#allocation2 + $0x17c] sm:$0xff]
        %v777 = vld [vmem:[#allocation2 + $0x19c] sm:$0xff]
        %v778 = vld [vmem:[#allocation2 + $0x1a4] sm:$0xff]
        %v779 = vld [vmem:[#allocation2 + $0x1c4] sm:$0xff]
        %v780 = vld [vmem:[#allocation2 + $0x1cc] sm:$0xff]
        %v781 = vld [vmem:[#allocation2 + $0x1ec] sm:$0xff]
        %v782 = vld [vmem:[#allocation2 + $0x1f4] sm:$0xff]
        %v783 = vld [vmem:[#allocation2 + $0x214] sm:$0xff]
        %v784 = vld [vmem:[#allocation2 + $0x21c] sm:$0xff]
        %v785 = vld [vmem:[#allocation2 + $0x23c] sm:$0xff]
        %v786 = vld [vmem:[#allocation2 + $0x244] sm:$0xff]
        %v787 = vld [vmem:[#allocation2 + $0x264] sm:$0xff]
        %v788 = vld [vmem:[#allocation2 + $0x26c] sm:$0xff]
        %s789 = scalar_lea.vmem %s1, 8
        %v790 = vld [vmem:[%s789] sm:$0xff]
        %v792 = vsel %vm277, %v757, 0
        %v795 = vsel %vm277, %v758, 0
        %v798 = vsel %vm277, %v759, 0
        %v801 = vsel %vm277, %v760, 0
        %v804 = vsel %vm277, %v761, 0
        %v807 = vsel %vm277, %v762, 0
        %v810 = vsel %vm277, %v763, 0
        %v813 = vsel %vm277, %v764, 0
        %v816 = vsel %vm277, %v765, 0
        %v819 = vsel %vm277, %v766, 0
        %v822 = vsel %vm277, %v767, 0
        %v825 = vsel %vm277, %v768, 0
        %v828 = vsel %vm277, %v769, 0
        %v831 = vsel %vm277, %v770, 0
        %v834 = vsel %vm277, %v771, 0
        %v837 = vsel %vm277, %v772, 0
        %v840 = vsel %vm277, %v773, 0
        %v843 = vsel %vm277, %v774, 0
        %v846 = vsel %vm277, %v775, 0
        %v849 = vsel %vm277, %v776, 0
        %v852 = vsel %vm277, %v777, 0
        %v855 = vsel %vm277, %v778, 0
        %v858 = vsel %vm277, %v779, 0
        %v861 = vsel %vm277, %v780, 0
        %v864 = vsel %vm277, %v781, 0
        %v867 = vsel %vm277, %v782, 0
        %v870 = vsel %vm277, %v783, 0
        %v873 = vsel %vm277, %v784, 0
        %v876 = vsel %vm277, %v785, 0
        %v879 = vsel %vm277, %v786, 0
        %v882 = vsel %vm277, %v787, 0
        %v885 = vsel %vm277, %v788, 0
        %887 = vmatprep.subr.mxu0 0.0
        %888 = vmatpush1.msra.mxu0 0.0
        %889 = vmatprep.subr.mxu0 0.0
        %890 = vmatpush1.msra.mxu0 0.0
        %891 = vmatprep.subr.mxu0 0.0
        %892 = vmatpush1.msra.mxu0 0.0
        %893 = vmatprep.subr.mxu0 0.0
        %894 = vmatpush1.msra.mxu0 0.0
        %895 = vmatprep.subr.mxu0 0.0
        %896 = vmatpush1.msra.mxu0 0.0
        %897 = vmatprep.subr.mxu0 0.0
        %898 = vmatpush1.msra.mxu0 0.0
        %899 = vmatprep.subr.mxu0 0.0
        %900 = vmatpush1.msra.mxu0 0.0
        %901 = vmatprep.subr.mxu0 0.0
        %902 = vmatpush1.msra.mxu0 0.0
        %903 = vmatprep.subr.mxu0 0.0
        %904 = vmatpush1.msra.mxu0 0.0
        %905 = vmatprep.subr.mxu0 0.0
        %906 = vmatpush1.msra.mxu0 0.0
        %907 = vmatprep.subr.mxu0 0.0
        %908 = vmatpush1.msra.mxu0 0.0
        %909 = vmatprep.subr.mxu0 0.0
        %910 = vmatpush1.msra.mxu0 0.0
        %911 = vmatprep.subr.mxu0 0.0
        %912 = vmatpush1.msra.mxu0 0.0
        %913 = vmatprep.subr.mxu0 0.0
        %914 = vmatpush1.msra.mxu0 0.0
        %915 = vmatprep.subr.mxu0 0.0
        %916 = vmatpush1.msra.mxu0 0.0
        %917 = vmatprep.subr.mxu0 0.0
        %918 = vmatpush1.msra.mxu0 %v790
        %919 = vmatprep.subr.mxu0 0.0
        %920 = vmatpush2.msra.mxu0 0.0
        %921 = vmatprep.subr.mxu0 0.0
        %922 = vmatpush2.msra.mxu0 0.0
        %923 = vmatprep.subr.mxu0 0.0
        %924 = vmatpush2.msra.mxu0 0.0
        %925 = vmatprep.subr.mxu0 0.0
        %926 = vmatpush2.msra.mxu0 0.0
        %927 = vmatprep.subr.mxu0 0.0
        %928 = vmatpush2.msra.mxu0 0.0
        %929 = vmatprep.subr.mxu0 0.0
        %930 = vmatpush2.msra.mxu0 0.0
        %931 = vmatprep.subr.mxu0 0.0
        %932 = vmatpush2.msra.mxu0 0.0
        %933 = vmatprep.subr.mxu0 0.0
        %934 = vmatpush2.msra.mxu0 0.0
        %935 = vmatprep.subr.mxu0 0.0
        %936 = vmatpush2.msra.mxu0 0.0
        %937 = vmatprep.subr.mxu0 0.0
        %938 = vmatpush2.msra.mxu0 0.0
        %939 = vmatprep.subr.mxu0 0.0
        %940 = vmatpush2.msra.mxu0 0.0
        %941 = vmatprep.subr.mxu0 0.0
        %942 = vmatpush2.msra.mxu0 0.0
        %943 = vmatprep.subr.mxu0 0.0
        %944 = vmatpush2.msra.mxu0 0.0
        %945 = vmatprep.subr.mxu0 0.0
        %946 = vmatpush2.msra.mxu0 0.0
        %947 = vmatprep.subr.mxu0 0.0
        %948 = vmatpush2.msra.mxu0 0.0
        %949 = vmatprep.subr.mxu0 0.0
        %950 = vmatpush2.msra.mxu0 0.0
        %951 = vmatprep.mubr.f32.mxu0 0.0
        %952 = vmatmul.mubr.f32.gmra.mxu0 %v792
        %v953 = vpop.f32.mrf.mxu0
        %v954 = vadd.f32 0.0, %v953
        %v955 = vpop.f32.mrf.mxu0
        %956 = vmatprep.mubr.f32.mxu0 0.0
        %957 = vmatmul.mubr.f32.gmra.mxu0 %v795
        %v958 = vpop.f32.mrf.mxu0
        %v959 = vadd.f32 0.0, %v958
        %v960 = vpop.f32.mrf.mxu0
        %961 = vmatprep.mubr.f32.mxu0 0.0
        %962 = vmatmul.mubr.f32.gmra.mxu0 %v798
        %v963 = vpop.f32.mrf.mxu0
        %v964 = vadd.f32 0.0, %v963
        %v965 = vpop.f32.mrf.mxu0
        %966 = vmatprep.mubr.f32.mxu0 0.0
        %967 = vmatmul.mubr.f32.gmra.mxu0 %v801
        %v968 = vpop.f32.mrf.mxu0
        %v969 = vadd.f32 0.0, %v968
        %v970 = vpop.f32.mrf.mxu0
        %971 = vmatprep.mubr.f32.mxu0 0.0
        %972 = vmatmul.mubr.f32.gmra.mxu0 %v804
        %v973 = vpop.f32.mrf.mxu0
        %v974 = vadd.f32 0.0, %v973
        %v975 = vpop.f32.mrf.mxu0
        %976 = vmatprep.mubr.f32.mxu0 0.0
        %977 = vmatmul.mubr.f32.gmra.mxu0 %v807
        %v978 = vpop.f32.mrf.mxu0
        %v979 = vadd.f32 0.0, %v978
        %v980 = vpop.f32.mrf.mxu0
        %981 = vmatprep.mubr.f32.mxu0 0.0
        %982 = vmatmul.mubr.f32.gmra.mxu0 %v810
        %v983 = vpop.f32.mrf.mxu0
        %v984 = vadd.f32 0.0, %v983
        %v985 = vpop.f32.mrf.mxu0
        %986 = vmatprep.mubr.f32.mxu0 0.0
        %987 = vmatmul.mubr.f32.gmra.mxu0 %v813
        %v988 = vpop.f32.mrf.mxu0
        %v989 = vadd.f32 0.0, %v988
        %v990 = vpop.f32.mrf.mxu0
        %991 = vmatprep.mubr.f32.mxu0 0.0
        %992 = vmatmul.mubr.f32.gmra.mxu0 %v816
        %v993 = vpop.f32.mrf.mxu0
        %v994 = vadd.f32 0.0, %v993
        %v995 = vpop.f32.mrf.mxu0
        %996 = vmatprep.mubr.f32.mxu0 0.0
        %997 = vmatmul.mubr.f32.gmra.mxu0 %v819
        %v998 = vpop.f32.mrf.mxu0
        %v999 = vadd.f32 0.0, %v998
        %v1000 = vpop.f32.mrf.mxu0
        %1001 = vmatprep.mubr.f32.mxu0 0.0
        %1002 = vmatmul.mubr.f32.gmra.mxu0 %v822
        %v1003 = vpop.f32.mrf.mxu0
        %v1004 = vadd.f32 0.0, %v1003
        %v1005 = vpop.f32.mrf.mxu0
        %1006 = vmatprep.mubr.f32.mxu0 0.0
        %1007 = vmatmul.mubr.f32.gmra.mxu0 %v825
        %v1008 = vpop.f32.mrf.mxu0
        %v1009 = vadd.f32 0.0, %v1008
        %v1010 = vpop.f32.mrf.mxu0
        %1011 = vmatprep.mubr.f32.mxu0 0.0
        %1012 = vmatmul.mubr.f32.gmra.mxu0 %v828
        %v1013 = vpop.f32.mrf.mxu0
        %v1014 = vadd.f32 0.0, %v1013
        %v1015 = vpop.f32.mrf.mxu0
        %1016 = vmatprep.mubr.f32.mxu0 0.0
        %1017 = vmatmul.mubr.f32.gmra.mxu0 %v831
        %v1018 = vpop.f32.mrf.mxu0
        %v1019 = vadd.f32 0.0, %v1018
        %v1020 = vpop.f32.mrf.mxu0
        %1021 = vmatprep.mubr.f32.mxu0 0.0
        %1022 = vmatmul.mubr.f32.gmra.mxu0 %v834
        %v1023 = vpop.f32.mrf.mxu0
        %v1024 = vadd.f32 0.0, %v1023
        %v1025 = vpop.f32.mrf.mxu0
        %1026 = vmatprep.mubr.f32.mxu0 0.0
        %1027 = vmatmul.mubr.f32.gmra.mxu0 %v837
        %v1028 = vpop.f32.mrf.mxu0
        %v1029 = vadd.f32 0.0, %v1028
        %v1030 = vpop.f32.mrf.mxu0
        %1031 = vmatprep.mubr.f32.mxu0 0.0
        %1032 = vmatmul.mubr.f32.gmra.mxu0 %v840
        %v1033 = vpop.f32.mrf.mxu0
        %v1034 = vadd.f32 0.0, %v1033
        %v1035 = vpop.f32.mrf.mxu0
        %1036 = vmatprep.mubr.f32.mxu0 0.0
        %1037 = vmatmul.mubr.f32.gmra.mxu0 %v843
        %v1038 = vpop.f32.mrf.mxu0
        %v1039 = vadd.f32 0.0, %v1038
        %v1040 = vpop.f32.mrf.mxu0
        %1041 = vmatprep.mubr.f32.mxu0 0.0
        %1042 = vmatmul.mubr.f32.gmra.mxu0 %v846
        %v1043 = vpop.f32.mrf.mxu0
        %v1044 = vadd.f32 0.0, %v1043
        %v1045 = vpop.f32.mrf.mxu0
        %1046 = vmatprep.mubr.f32.mxu0 0.0
        %1047 = vmatmul.mubr.f32.gmra.mxu0 %v849
        %v1048 = vpop.f32.mrf.mxu0
        %v1049 = vadd.f32 0.0, %v1048
        %v1050 = vpop.f32.mrf.mxu0
        %1051 = vmatprep.mubr.f32.mxu0 0.0
        %1052 = vmatmul.mubr.f32.gmra.mxu0 %v852
        %v1053 = vpop.f32.mrf.mxu0
        %v1054 = vadd.f32 0.0, %v1053
        %v1055 = vpop.f32.mrf.mxu0
        %1056 = vmatprep.mubr.f32.mxu0 0.0
        %1057 = vmatmul.mubr.f32.gmra.mxu0 %v855
        %v1058 = vpop.f32.mrf.mxu0
        %v1059 = vadd.f32 0.0, %v1058
        %v1060 = vpop.f32.mrf.mxu0
        %1061 = vmatprep.mubr.f32.mxu0 0.0
        %1062 = vmatmul.mubr.f32.gmra.mxu0 %v858
        %v1063 = vpop.f32.mrf.mxu0
        %v1064 = vadd.f32 0.0, %v1063
        %v1065 = vpop.f32.mrf.mxu0
        %1066 = vmatprep.mubr.f32.mxu0 0.0
        %1067 = vmatmul.mubr.f32.gmra.mxu0 %v861
        %v1068 = vpop.f32.mrf.mxu0
        %v1069 = vadd.f32 0.0, %v1068
        %v1070 = vpop.f32.mrf.mxu0
        %1071 = vmatprep.mubr.f32.mxu0 0.0
        %1072 = vmatmul.mubr.f32.gmra.mxu0 %v864
        %v1073 = vpop.f32.mrf.mxu0
        %v1074 = vadd.f32 0.0, %v1073
        %v1075 = vpop.f32.mrf.mxu0
        %1076 = vmatprep.mubr.f32.mxu0 0.0
        %1077 = vmatmul.mubr.f32.gmra.mxu0 %v867
        %v1078 = vpop.f32.mrf.mxu0
        %v1079 = vadd.f32 0.0, %v1078
        %v1080 = vpop.f32.mrf.mxu0
        %1081 = vmatprep.mubr.f32.mxu0 0.0
        %1082 = vmatmul.mubr.f32.gmra.mxu0 %v870
        %v1083 = vpop.f32.mrf.mxu0
        %v1084 = vadd.f32 0.0, %v1083
        %v1085 = vpop.f32.mrf.mxu0
        %1086 = vmatprep.mubr.f32.mxu0 0.0
        %1087 = vmatmul.mubr.f32.gmra.mxu0 %v873
        %v1088 = vpop.f32.mrf.mxu0
        %v1089 = vadd.f32 0.0, %v1088
        %v1090 = vpop.f32.mrf.mxu0
        %1091 = vmatprep.mubr.f32.mxu0 0.0
        %1092 = vmatmul.mubr.f32.gmra.mxu0 %v876
        %v1093 = vpop.f32.mrf.mxu0
        %v1094 = vadd.f32 0.0, %v1093
        %v1095 = vpop.f32.mrf.mxu0
        %1096 = vmatprep.mubr.f32.mxu0 0.0
        %1097 = vmatmul.mubr.f32.gmra.mxu0 %v879
        %v1098 = vpop.f32.mrf.mxu0
        %v1099 = vadd.f32 0.0, %v1098
        %v1100 = vpop.f32.mrf.mxu0
        %1101 = vmatprep.mubr.f32.mxu0 0.0
        %1102 = vmatmul.mubr.f32.gmra.mxu0 %v882
        %v1103 = vpop.f32.mrf.mxu0
        %v1104 = vadd.f32 0.0, %v1103
        %v1105 = vpop.f32.mrf.mxu0
        %1106 = vmatprep.mubr.f32.mxu0 0.0
        %1107 = vmatmul.mubr.f32.gmra.mxu0 %v885
        %v1108 = vpop.f32.mrf.mxu0
        %v1109 = vadd.f32 0.0, %v1108
        %v1110 = vpop.f32.mrf.mxu0
        %1111 = vdwg.mxu0
        %v1113 = vsel %vm277, %v724, 0
        %v1116 = vsel %vm277, %v725, 0
        %v1119 = vsel %vm277, %v726, 0
        %v1122 = vsel %vm277, %v727, 0
        %v1125 = vsel %vm277, %v728, 0
        %v1128 = vsel %vm277, %v729, 0
        %v1131 = vsel %vm277, %v730, 0
        %v1134 = vsel %vm277, %v731, 0
        %v1137 = vsel %vm277, %v732, 0
        %v1140 = vsel %vm277, %v733, 0
        %v1143 = vsel %vm277, %v734, 0
        %v1146 = vsel %vm277, %v735, 0
        %v1149 = vsel %vm277, %v736, 0
        %v1152 = vsel %vm277, %v737, 0
        %v1155 = vsel %vm277, %v738, 0
        %v1158 = vsel %vm277, %v739, 0
        %v1161 = vsel %vm277, %v740, 0
        %v1164 = vsel %vm277, %v741, 0
        %v1167 = vsel %vm277, %v742, 0
        %v1170 = vsel %vm277, %v743, 0
        %v1173 = vsel %vm277, %v744, 0
        %v1176 = vsel %vm277, %v745, 0
        %v1179 = vsel %vm277, %v746, 0
        %v1182 = vsel %vm277, %v747, 0
        %v1185 = vsel %vm277, %v748, 0
        %v1188 = vsel %vm277, %v749, 0
        %v1191 = vsel %vm277, %v750, 0
        %v1194 = vsel %vm277, %v751, 0
        %v1197 = vsel %vm277, %v752, 0
        %v1200 = vsel %vm277, %v753, 0
        %v1203 = vsel %vm277, %v754, 0
        %v1206 = vsel %vm277, %v755, 0
        %1208 = vmatprep.subr.mxu0 0.0
        %1209 = vmatpush1.msra.mxu0 0.0
        %1210 = vmatprep.subr.mxu0 0.0
        %1211 = vmatpush1.msra.mxu0 0.0
        %1212 = vmatprep.subr.mxu0 0.0
        %1213 = vmatpush1.msra.mxu0 0.0
        %1214 = vmatprep.subr.mxu0 0.0
        %1215 = vmatpush1.msra.mxu0 0.0
        %1216 = vmatprep.subr.mxu0 0.0
        %1217 = vmatpush1.msra.mxu0 0.0
        %1218 = vmatprep.subr.mxu0 0.0
        %1219 = vmatpush1.msra.mxu0 0.0
        %1220 = vmatprep.subr.mxu0 0.0
        %1221 = vmatpush1.msra.mxu0 0.0
        %1222 = vmatprep.subr.mxu0 0.0
        %1223 = vmatpush1.msra.mxu0 0.0
        %1224 = vmatprep.subr.mxu0 0.0
        %1225 = vmatpush1.msra.mxu0 0.0
        %1226 = vmatprep.subr.mxu0 0.0
        %1227 = vmatpush1.msra.mxu0 0.0
        %1228 = vmatprep.subr.mxu0 0.0
        %1229 = vmatpush1.msra.mxu0 0.0
        %1230 = vmatprep.subr.mxu0 0.0
        %1231 = vmatpush1.msra.mxu0 0.0
        %1232 = vmatprep.subr.mxu0 0.0
        %1233 = vmatpush1.msra.mxu0 0.0
        %1234 = vmatprep.subr.mxu0 0.0
        %1235 = vmatpush1.msra.mxu0 0.0
        %1236 = vmatprep.subr.mxu0 0.0
        %1237 = vmatpush1.msra.mxu0 0.0
        %1238 = vmatprep.subr.mxu0 0.0
        %1239 = vmatpush1.msra.mxu0 %v756
        %1240 = vmatprep.subr.mxu0 0.0
        %1241 = vmatpush2.msra.mxu0 0.0
        %1242 = vmatprep.subr.mxu0 0.0
        %1243 = vmatpush2.msra.mxu0 0.0
        %1244 = vmatprep.subr.mxu0 0.0
        %1245 = vmatpush2.msra.mxu0 0.0
        %1246 = vmatprep.subr.mxu0 0.0
        %1247 = vmatpush2.msra.mxu0 0.0
        %1248 = vmatprep.subr.mxu0 0.0
        %1249 = vmatpush2.msra.mxu0 0.0
        %1250 = vmatprep.subr.mxu0 0.0
        %1251 = vmatpush2.msra.mxu0 0.0
        %1252 = vmatprep.subr.mxu0 0.0
        %1253 = vmatpush2.msra.mxu0 0.0
        %1254 = vmatprep.subr.mxu0 0.0
        %1255 = vmatpush2.msra.mxu0 0.0
        %1256 = vmatprep.subr.mxu0 0.0
        %1257 = vmatpush2.msra.mxu0 0.0
        %1258 = vmatprep.subr.mxu0 0.0
        %1259 = vmatpush2.msra.mxu0 0.0
        %1260 = vmatprep.subr.mxu0 0.0
        %1261 = vmatpush2.msra.mxu0 0.0
        %1262 = vmatprep.subr.mxu0 0.0
        %1263 = vmatpush2.msra.mxu0 0.0
        %1264 = vmatprep.subr.mxu0 0.0
        %1265 = vmatpush2.msra.mxu0 0.0
        %1266 = vmatprep.subr.mxu0 0.0
        %1267 = vmatpush2.msra.mxu0 0.0
        %1268 = vmatprep.subr.mxu0 0.0
        %1269 = vmatpush2.msra.mxu0 0.0
        %1270 = vmatprep.subr.mxu0 0.0
        %1271 = vmatpush2.msra.mxu0 0.0
        %1272 = vmatprep.mubr.f32.mxu0 0.0
        %1273 = vmatmul.mubr.f32.gmra.mxu0 %v1113
        %v1274 = vpop.f32.mrf.mxu0
        %v1275 = vadd.f32 %v954, %v1274
        %v1276 = vpop.f32.mrf.mxu0
        %1277 = vmatprep.mubr.f32.mxu0 0.0
        %1278 = vmatmul.mubr.f32.gmra.mxu0 %v1116
        %v1279 = vpop.f32.mrf.mxu0
        %v1280 = vadd.f32 %v959, %v1279
        %v1281 = vpop.f32.mrf.mxu0
        %1282 = vmatprep.mubr.f32.mxu0 0.0
        %1283 = vmatmul.mubr.f32.gmra.mxu0 %v1119
        %v1284 = vpop.f32.mrf.mxu0
        %v1285 = vadd.f32 %v964, %v1284
        %v1286 = vpop.f32.mrf.mxu0
        %1287 = vmatprep.mubr.f32.mxu0 0.0
        %1288 = vmatmul.mubr.f32.gmra.mxu0 %v1122
        %v1289 = vpop.f32.mrf.mxu0
        %v1290 = vadd.f32 %v969, %v1289
        %v1291 = vpop.f32.mrf.mxu0
        %1292 = vmatprep.mubr.f32.mxu0 0.0
        %1293 = vmatmul.mubr.f32.gmra.mxu0 %v1125
        %v1294 = vpop.f32.mrf.mxu0
        %v1295 = vadd.f32 %v974, %v1294
        %v1296 = vpop.f32.mrf.mxu0
        %1297 = vmatprep.mubr.f32.mxu0 0.0
        %1298 = vmatmul.mubr.f32.gmra.mxu0 %v1128
        %v1299 = vpop.f32.mrf.mxu0
        %v1300 = vadd.f32 %v979, %v1299
        %v1301 = vpop.f32.mrf.mxu0
        %1302 = vmatprep.mubr.f32.mxu0 0.0
        %1303 = vmatmul.mubr.f32.gmra.mxu0 %v1131
        %v1304 = vpop.f32.mrf.mxu0
        %v1305 = vadd.f32 %v984, %v1304
        %v1306 = vpop.f32.mrf.mxu0
        %1307 = vmatprep.mubr.f32.mxu0 0.0
        %1308 = vmatmul.mubr.f32.gmra.mxu0 %v1134
        %v1309 = vpop.f32.mrf.mxu0
        %v1310 = vadd.f32 %v989, %v1309
        %v1311 = vpop.f32.mrf.mxu0
        %1312 = vmatprep.mubr.f32.mxu0 0.0
        %1313 = vmatmul.mubr.f32.gmra.mxu0 %v1137
        %v1314 = vpop.f32.mrf.mxu0
        %v1315 = vadd.f32 %v994, %v1314
        %v1316 = vpop.f32.mrf.mxu0
        %1317 = vmatprep.mubr.f32.mxu0 0.0
        %1318 = vmatmul.mubr.f32.gmra.mxu0 %v1140
        %v1319 = vpop.f32.mrf.mxu0
        %v1320 = vadd.f32 %v999, %v1319
        %v1321 = vpop.f32.mrf.mxu0
        %1322 = vmatprep.mubr.f32.mxu0 0.0
        %1323 = vmatmul.mubr.f32.gmra.mxu0 %v1143
        %v1324 = vpop.f32.mrf.mxu0
        %v1325 = vadd.f32 %v1004, %v1324
        %v1326 = vpop.f32.mrf.mxu0
        %1327 = vmatprep.mubr.f32.mxu0 0.0
        %1328 = vmatmul.mubr.f32.gmra.mxu0 %v1146
        %v1329 = vpop.f32.mrf.mxu0
        %v1330 = vadd.f32 %v1009, %v1329
        %v1331 = vpop.f32.mrf.mxu0
        %1332 = vmatprep.mubr.f32.mxu0 0.0
        %1333 = vmatmul.mubr.f32.gmra.mxu0 %v1149
        %v1334 = vpop.f32.mrf.mxu0
        %v1335 = vadd.f32 %v1014, %v1334
        %v1336 = vpop.f32.mrf.mxu0
        %1337 = vmatprep.mubr.f32.mxu0 0.0
        %1338 = vmatmul.mubr.f32.gmra.mxu0 %v1152
        %v1339 = vpop.f32.mrf.mxu0
        %v1340 = vadd.f32 %v1019, %v1339
        %v1341 = vpop.f32.mrf.mxu0
        %1342 = vmatprep.mubr.f32.mxu0 0.0
        %1343 = vmatmul.mubr.f32.gmra.mxu0 %v1155
        %v1344 = vpop.f32.mrf.mxu0
        %v1345 = vadd.f32 %v1024, %v1344
        %v1346 = vpop.f32.mrf.mxu0
        %1347 = vmatprep.mubr.f32.mxu0 0.0
        %1348 = vmatmul.mubr.f32.gmra.mxu0 %v1158
        %v1349 = vpop.f32.mrf.mxu0
        %v1350 = vadd.f32 %v1029, %v1349
        %v1351 = vpop.f32.mrf.mxu0
        %1352 = vmatprep.mubr.f32.mxu0 0.0
        %1353 = vmatmul.mubr.f32.gmra.mxu0 %v1161
        %v1354 = vpop.f32.mrf.mxu0
        %v1355 = vadd.f32 %v1034, %v1354
        %v1356 = vpop.f32.mrf.mxu0
        %1357 = vmatprep.mubr.f32.mxu0 0.0
        %1358 = vmatmul.mubr.f32.gmra.mxu0 %v1164
        %v1359 = vpop.f32.mrf.mxu0
        %v1360 = vadd.f32 %v1039, %v1359
        %v1361 = vpop.f32.mrf.mxu0
        %1362 = vmatprep.mubr.f32.mxu0 0.0
        %1363 = vmatmul.mubr.f32.gmra.mxu0 %v1167
        %v1364 = vpop.f32.mrf.mxu0
        %v1365 = vadd.f32 %v1044, %v1364
        %v1366 = vpop.f32.mrf.mxu0
        %1367 = vmatprep.mubr.f32.mxu0 0.0
        %1368 = vmatmul.mubr.f32.gmra.mxu0 %v1170
        %v1369 = vpop.f32.mrf.mxu0
        %v1370 = vadd.f32 %v1049, %v1369
        %v1371 = vpop.f32.mrf.mxu0
        %1372 = vmatprep.mubr.f32.mxu0 0.0
        %1373 = vmatmul.mubr.f32.gmra.mxu0 %v1173
        %v1374 = vpop.f32.mrf.mxu0
        %v1375 = vadd.f32 %v1054, %v1374
        %v1376 = vpop.f32.mrf.mxu0
        %1377 = vmatprep.mubr.f32.mxu0 0.0
        %1378 = vmatmul.mubr.f32.gmra.mxu0 %v1176
        %v1379 = vpop.f32.mrf.mxu0
        %v1380 = vadd.f32 %v1059, %v1379
        %v1381 = vpop.f32.mrf.mxu0
        %1382 = vmatprep.mubr.f32.mxu0 0.0
        %1383 = vmatmul.mubr.f32.gmra.mxu0 %v1179
        %v1384 = vpop.f32.mrf.mxu0
        %v1385 = vadd.f32 %v1064, %v1384
        %v1386 = vpop.f32.mrf.mxu0
        %1387 = vmatprep.mubr.f32.mxu0 0.0
        %1388 = vmatmul.mubr.f32.gmra.mxu0 %v1182
        %v1389 = vpop.f32.mrf.mxu0
        %v1390 = vadd.f32 %v1069, %v1389
        %v1391 = vpop.f32.mrf.mxu0
        %1392 = vmatprep.mubr.f32.mxu0 0.0
        %1393 = vmatmul.mubr.f32.gmra.mxu0 %v1185
        %v1394 = vpop.f32.mrf.mxu0
        %v1395 = vadd.f32 %v1074, %v1394
        %v1396 = vpop.f32.mrf.mxu0
        %1397 = vmatprep.mubr.f32.mxu0 0.0
        %1398 = vmatmul.mubr.f32.gmra.mxu0 %v1188
        %v1399 = vpop.f32.mrf.mxu0
        %v1400 = vadd.f32 %v1079, %v1399
        %v1401 = vpop.f32.mrf.mxu0
        %1402 = vmatprep.mubr.f32.mxu0 0.0
        %1403 = vmatmul.mubr.f32.gmra.mxu0 %v1191
        %v1404 = vpop.f32.mrf.mxu0
        %v1405 = vadd.f32 %v1084, %v1404
        %v1406 = vpop.f32.mrf.mxu0
        %1407 = vmatprep.mubr.f32.mxu0 0.0
        %1408 = vmatmul.mubr.f32.gmra.mxu0 %v1194
        %v1409 = vpop.f32.mrf.mxu0
        %v1410 = vadd.f32 %v1089, %v1409
        %v1411 = vpop.f32.mrf.mxu0
        %1412 = vmatprep.mubr.f32.mxu0 0.0
        %1413 = vmatmul.mubr.f32.gmra.mxu0 %v1197
        %v1414 = vpop.f32.mrf.mxu0
        %v1415 = vadd.f32 %v1094, %v1414
        %v1416 = vpop.f32.mrf.mxu0
        %1417 = vmatprep.mubr.f32.mxu0 0.0
        %1418 = vmatmul.mubr.f32.gmra.mxu0 %v1200
        %v1419 = vpop.f32.mrf.mxu0
        %v1420 = vadd.f32 %v1099, %v1419
        %v1421 = vpop.f32.mrf.mxu0
        %1422 = vmatprep.mubr.f32.mxu0 0.0
        %1423 = vmatmul.mubr.f32.gmra.mxu0 %v1203
        %v1424 = vpop.f32.mrf.mxu0
        %v1425 = vadd.f32 %v1104, %v1424
        %v1426 = vpop.f32.mrf.mxu0
        %1427 = vmatprep.mubr.f32.mxu0 0.0
        %1428 = vmatmul.mubr.f32.gmra.mxu0 %v1206
        %v1429 = vpop.f32.mrf.mxu0
        %v1430 = vadd.f32 %v1109, %v1429
        %v1431 = vpop.f32.mrf.mxu0
        %1432 = vdwg.mxu0
        %v1433 = vld [vmem:[#allocation2 + $0x18] sm:$0xff]
        %v1434 = vld [vmem:[#allocation2 + $0x20] sm:$0xff]
        %v1435 = vld [vmem:[#allocation2 + $0x40] sm:$0xff]
        %v1436 = vld [vmem:[#allocation2 + $0x48] sm:$0xff]
        %v1437 = vld [vmem:[#allocation2 + $0x68] sm:$0xff]
        %v1438 = vld [vmem:[#allocation2 + $0x70] sm:$0xff]
        %v1439 = vld [vmem:[#allocation2 + $0x90] sm:$0xff]
        %v1440 = vld [vmem:[#allocation2 + $0x98] sm:$0xff]
        %v1441 = vld [vmem:[#allocation2 + $0xb8] sm:$0xff]
        %v1442 = vld [vmem:[#allocation2 + $0xc0] sm:$0xff]
        %v1443 = vld [vmem:[#allocation2 + $0xe0] sm:$0xff]
        %v1444 = vld [vmem:[#allocation2 + $0xe8] sm:$0xff]
        %v1445 = vld [vmem:[#allocation2 + $0x108] sm:$0xff]
        %v1446 = vld [vmem:[#allocation2 + $0x110] sm:$0xff]
        %v1447 = vld [vmem:[#allocation2 + $0x130] sm:$0xff]
        %v1448 = vld [vmem:[#allocation2 + $0x138] sm:$0xff]
        %v1449 = vld [vmem:[#allocation2 + $0x158] sm:$0xff]
        %v1450 = vld [vmem:[#allocation2 + $0x160] sm:$0xff]
        %v1451 = vld [vmem:[#allocation2 + $0x180] sm:$0xff]
        %v1452 = vld [vmem:[#allocation2 + $0x188] sm:$0xff]
        %v1453 = vld [vmem:[#allocation2 + $0x1a8] sm:$0xff]
        %v1454 = vld [vmem:[#allocation2 + $0x1b0] sm:$0xff]
        %v1455 = vld [vmem:[#allocation2 + $0x1d0] sm:$0xff]
        %v1456 = vld [vmem:[#allocation2 + $0x1d8] sm:$0xff]
        %v1457 = vld [vmem:[#allocation2 + $0x1f8] sm:$0xff]
        %v1458 = vld [vmem:[#allocation2 + $0x200] sm:$0xff]
        %v1459 = vld [vmem:[#allocation2 + $0x220] sm:$0xff]
        %v1460 = vld [vmem:[#allocation2 + $0x228] sm:$0xff]
        %v1461 = vld [vmem:[#allocation2 + $0x248] sm:$0xff]
        %v1462 = vld [vmem:[#allocation2 + $0x250] sm:$0xff]
        %v1463 = vld [vmem:[#allocation2 + $0x270] sm:$0xff]
        %v1464 = vld [vmem:[#allocation2 + $0x278] sm:$0xff]
        %s1465 = scalar_lea.vmem %s1, 16
        %v1466 = vld [vmem:[%s1465] sm:$0xff]
        %v1468 = vsel %vm277, %v1433, 0
        %v1471 = vsel %vm277, %v1434, 0
        %v1474 = vsel %vm277, %v1435, 0
        %v1477 = vsel %vm277, %v1436, 0
        %v1480 = vsel %vm277, %v1437, 0
        %v1483 = vsel %vm277, %v1438, 0
        %v1486 = vsel %vm277, %v1439, 0
        %v1489 = vsel %vm277, %v1440, 0
        %v1492 = vsel %vm277, %v1441, 0
        %v1495 = vsel %vm277, %v1442, 0
        %v1498 = vsel %vm277, %v1443, 0
        %v1501 = vsel %vm277, %v1444, 0
        %v1504 = vsel %vm277, %v1445, 0
        %v1507 = vsel %vm277, %v1446, 0
        %v1510 = vsel %vm277, %v1447, 0
        %v1513 = vsel %vm277, %v1448, 0
        %v1516 = vsel %vm277, %v1449, 0
        %v1519 = vsel %vm277, %v1450, 0
        %v1522 = vsel %vm277, %v1451, 0
        %v1525 = vsel %vm277, %v1452, 0
        %v1528 = vsel %vm277, %v1453, 0
        %v1531 = vsel %vm277, %v1454, 0
        %v1534 = vsel %vm277, %v1455, 0
        %v1537 = vsel %vm277, %v1456, 0
        %v1540 = vsel %vm277, %v1457, 0
        %v1543 = vsel %vm277, %v1458, 0
        %v1546 = vsel %vm277, %v1459, 0
        %v1549 = vsel %vm277, %v1460, 0
        %v1552 = vsel %vm277, %v1461, 0
        %v1555 = vsel %vm277, %v1462, 0
        %v1558 = vsel %vm277, %v1463, 0
        %v1561 = vsel %vm277, %v1464, 0
        %1563 = vmatprep.subr.mxu0 0.0
        %1564 = vmatpush1.msra.mxu0 0.0
        %1565 = vmatprep.subr.mxu0 0.0
        %1566 = vmatpush1.msra.mxu0 0.0
        %1567 = vmatprep.subr.mxu0 0.0
        %1568 = vmatpush1.msra.mxu0 0.0
        %1569 = vmatprep.subr.mxu0 0.0
        %1570 = vmatpush1.msra.mxu0 0.0
        %1571 = vmatprep.subr.mxu0 0.0
        %1572 = vmatpush1.msra.mxu0 0.0
        %1573 = vmatprep.subr.mxu0 0.0
        %1574 = vmatpush1.msra.mxu0 0.0
        %1575 = vmatprep.subr.mxu0 0.0
        %1576 = vmatpush1.msra.mxu0 0.0
        %1577 = vmatprep.subr.mxu0 0.0
        %1578 = vmatpush1.msra.mxu0 0.0
        %1579 = vmatprep.subr.mxu0 0.0
        %1580 = vmatpush1.msra.mxu0 0.0
        %1581 = vmatprep.subr.mxu0 0.0
        %1582 = vmatpush1.msra.mxu0 0.0
        %1583 = vmatprep.subr.mxu0 0.0
        %1584 = vmatpush1.msra.mxu0 0.0
        %1585 = vmatprep.subr.mxu0 0.0
        %1586 = vmatpush1.msra.mxu0 0.0
        %1587 = vmatprep.subr.mxu0 0.0
        %1588 = vmatpush1.msra.mxu0 0.0
        %1589 = vmatprep.subr.mxu0 0.0
        %1590 = vmatpush1.msra.mxu0 0.0
        %1591 = vmatprep.subr.mxu0 0.0
        %1592 = vmatpush1.msra.mxu0 0.0
        %1593 = vmatprep.subr.mxu0 0.0
        %1594 = vmatpush1.msra.mxu0 %v1466
        %1595 = vmatprep.subr.mxu0 0.0
        %1596 = vmatpush2.msra.mxu0 0.0
        %1597 = vmatprep.subr.mxu0 0.0
        %1598 = vmatpush2.msra.mxu0 0.0
        %1599 = vmatprep.subr.mxu0 0.0
        %1600 = vmatpush2.msra.mxu0 0.0
        %1601 = vmatprep.subr.mxu0 0.0
        %1602 = vmatpush2.msra.mxu0 0.0
        %1603 = vmatprep.subr.mxu0 0.0
        %1604 = vmatpush2.msra.mxu0 0.0
        %1605 = vmatprep.subr.mxu0 0.0
        %1606 = vmatpush2.msra.mxu0 0.0
        %1607 = vmatprep.subr.mxu0 0.0
        %1608 = vmatpush2.msra.mxu0 0.0
        %1609 = vmatprep.subr.mxu0 0.0
        %1610 = vmatpush2.msra.mxu0 0.0
        %1611 = vmatprep.subr.mxu0 0.0
        %1612 = vmatpush2.msra.mxu0 0.0
        %1613 = vmatprep.subr.mxu0 0.0
        %1614 = vmatpush2.msra.mxu0 0.0
        %1615 = vmatprep.subr.mxu0 0.0
        %1616 = vmatpush2.msra.mxu0 0.0
        %1617 = vmatprep.subr.mxu0 0.0
        %1618 = vmatpush2.msra.mxu0 0.0
        %1619 = vmatprep.subr.mxu0 0.0
        %1620 = vmatpush2.msra.mxu0 0.0
        %1621 = vmatprep.subr.mxu0 0.0
        %1622 = vmatpush2.msra.mxu0 0.0
        %1623 = vmatprep.subr.mxu0 0.0
        %1624 = vmatpush2.msra.mxu0 0.0
        %1625 = vmatprep.subr.mxu0 0.0
        %1626 = vmatpush2.msra.mxu0 0.0
        %1627 = vmatprep.mubr.f32.mxu0 0.0
        %1628 = vmatmul.mubr.f32.gmra.mxu0 %v1468
        %v1629 = vpop.f32.mrf.mxu0
        %v1630 = vadd.f32 0.0, %v1629
        %v1631 = vpop.f32.mrf.mxu0
        %1632 = vmatprep.mubr.f32.mxu0 0.0
        %1633 = vmatmul.mubr.f32.gmra.mxu0 %v1471
        %v1634 = vpop.f32.mrf.mxu0
        %v1635 = vadd.f32 0.0, %v1634
        %v1636 = vpop.f32.mrf.mxu0
        %1637 = vmatprep.mubr.f32.mxu0 0.0
        %1638 = vmatmul.mubr.f32.gmra.mxu0 %v1474
        %v1639 = vpop.f32.mrf.mxu0
        %v1640 = vadd.f32 0.0, %v1639
        %v1641 = vpop.f32.mrf.mxu0
        %1642 = vmatprep.mubr.f32.mxu0 0.0
        %1643 = vmatmul.mubr.f32.gmra.mxu0 %v1477
        %v1644 = vpop.f32.mrf.mxu0
        %v1645 = vadd.f32 0.0, %v1644
        %v1646 = vpop.f32.mrf.mxu0
        %1647 = vmatprep.mubr.f32.mxu0 0.0
        %1648 = vmatmul.mubr.f32.gmra.mxu0 %v1480
        %v1649 = vpop.f32.mrf.mxu0
        %v1650 = vadd.f32 0.0, %v1649
        %v1651 = vpop.f32.mrf.mxu0
        %1652 = vmatprep.mubr.f32.mxu0 0.0
        %1653 = vmatmul.mubr.f32.gmra.mxu0 %v1483
        %v1654 = vpop.f32.mrf.mxu0
        %v1655 = vadd.f32 0.0, %v1654
        %v1656 = vpop.f32.mrf.mxu0
        %1657 = vmatprep.mubr.f32.mxu0 0.0
        %1658 = vmatmul.mubr.f32.gmra.mxu0 %v1486
        %v1659 = vpop.f32.mrf.mxu0
        %v1660 = vadd.f32 0.0, %v1659
        %v1661 = vpop.f32.mrf.mxu0
        %1662 = vmatprep.mubr.f32.mxu0 0.0
        %1663 = vmatmul.mubr.f32.gmra.mxu0 %v1489
        %v1664 = vpop.f32.mrf.mxu0
        %v1665 = vadd.f32 0.0, %v1664
        %v1666 = vpop.f32.mrf.mxu0
        %1667 = vmatprep.mubr.f32.mxu0 0.0
        %1668 = vmatmul.mubr.f32.gmra.mxu0 %v1492
        %v1669 = vpop.f32.mrf.mxu0
        %v1670 = vadd.f32 0.0, %v1669
        %v1671 = vpop.f32.mrf.mxu0
        %1672 = vmatprep.mubr.f32.mxu0 0.0
        %1673 = vmatmul.mubr.f32.gmra.mxu0 %v1495
        %v1674 = vpop.f32.mrf.mxu0
        %v1675 = vadd.f32 0.0, %v1674
        %v1676 = vpop.f32.mrf.mxu0
        %1677 = vmatprep.mubr.f32.mxu0 0.0
        %1678 = vmatmul.mubr.f32.gmra.mxu0 %v1498
        %v1679 = vpop.f32.mrf.mxu0
        %v1680 = vadd.f32 0.0, %v1679
        %v1681 = vpop.f32.mrf.mxu0
        %1682 = vmatprep.mubr.f32.mxu0 0.0
        %1683 = vmatmul.mubr.f32.gmra.mxu0 %v1501
        %v1684 = vpop.f32.mrf.mxu0
        %v1685 = vadd.f32 0.0, %v1684
        %v1686 = vpop.f32.mrf.mxu0
        %1687 = vmatprep.mubr.f32.mxu0 0.0
        %1688 = vmatmul.mubr.f32.gmra.mxu0 %v1504
        %v1689 = vpop.f32.mrf.mxu0
        %v1690 = vadd.f32 0.0, %v1689
        %v1691 = vpop.f32.mrf.mxu0
        %1692 = vmatprep.mubr.f32.mxu0 0.0
        %1693 = vmatmul.mubr.f32.gmra.mxu0 %v1507
        %v1694 = vpop.f32.mrf.mxu0
        %v1695 = vadd.f32 0.0, %v1694
        %v1696 = vpop.f32.mrf.mxu0
        %1697 = vmatprep.mubr.f32.mxu0 0.0
        %1698 = vmatmul.mubr.f32.gmra.mxu0 %v1510
        %v1699 = vpop.f32.mrf.mxu0
        %v1700 = vadd.f32 0.0, %v1699
        %v1701 = vpop.f32.mrf.mxu0
        %1702 = vmatprep.mubr.f32.mxu0 0.0
        %1703 = vmatmul.mubr.f32.gmra.mxu0 %v1513
        %v1704 = vpop.f32.mrf.mxu0
        %v1705 = vadd.f32 0.0, %v1704
        %v1706 = vpop.f32.mrf.mxu0
        %1707 = vmatprep.mubr.f32.mxu0 0.0
        %1708 = vmatmul.mubr.f32.gmra.mxu0 %v1516
        %v1709 = vpop.f32.mrf.mxu0
        %v1710 = vadd.f32 0.0, %v1709
        %v1711 = vpop.f32.mrf.mxu0
        %1712 = vmatprep.mubr.f32.mxu0 0.0
        %1713 = vmatmul.mubr.f32.gmra.mxu0 %v1519
        %v1714 = vpop.f32.mrf.mxu0
        %v1715 = vadd.f32 0.0, %v1714
        %v1716 = vpop.f32.mrf.mxu0
        %1717 = vmatprep.mubr.f32.mxu0 0.0
        %1718 = vmatmul.mubr.f32.gmra.mxu0 %v1522
        %v1719 = vpop.f32.mrf.mxu0
        %v1720 = vadd.f32 0.0, %v1719
        %v1721 = vpop.f32.mrf.mxu0
        %1722 = vmatprep.mubr.f32.mxu0 0.0
        %1723 = vmatmul.mubr.f32.gmra.mxu0 %v1525
        %v1724 = vpop.f32.mrf.mxu0
        %v1725 = vadd.f32 0.0, %v1724
        %v1726 = vpop.f32.mrf.mxu0
        %1727 = vmatprep.mubr.f32.mxu0 0.0
        %1728 = vmatmul.mubr.f32.gmra.mxu0 %v1528
        %v1729 = vpop.f32.mrf.mxu0
        %v1730 = vadd.f32 0.0, %v1729
        %v1731 = vpop.f32.mrf.mxu0
        %1732 = vmatprep.mubr.f32.mxu0 0.0
        %1733 = vmatmul.mubr.f32.gmra.mxu0 %v1531
        %v1734 = vpop.f32.mrf.mxu0
        %v1735 = vadd.f32 0.0, %v1734
        %v1736 = vpop.f32.mrf.mxu0
        %1737 = vmatprep.mubr.f32.mxu0 0.0
        %1738 = vmatmul.mubr.f32.gmra.mxu0 %v1534
        %v1739 = vpop.f32.mrf.mxu0
        %v1740 = vadd.f32 0.0, %v1739
        %v1741 = vpop.f32.mrf.mxu0
        %1742 = vmatprep.mubr.f32.mxu0 0.0
        %1743 = vmatmul.mubr.f32.gmra.mxu0 %v1537
        %v1744 = vpop.f32.mrf.mxu0
        %v1745 = vadd.f32 0.0, %v1744
        %v1746 = vpop.f32.mrf.mxu0
        %1747 = vmatprep.mubr.f32.mxu0 0.0
        %1748 = vmatmul.mubr.f32.gmra.mxu0 %v1540
        %v1749 = vpop.f32.mrf.mxu0
        %v1750 = vadd.f32 0.0, %v1749
        %v1751 = vpop.f32.mrf.mxu0
        %1752 = vmatprep.mubr.f32.mxu0 0.0
        %1753 = vmatmul.mubr.f32.gmra.mxu0 %v1543
        %v1754 = vpop.f32.mrf.mxu0
        %v1755 = vadd.f32 0.0, %v1754
        %v1756 = vpop.f32.mrf.mxu0
        %1757 = vmatprep.mubr.f32.mxu0 0.0
        %1758 = vmatmul.mubr.f32.gmra.mxu0 %v1546
        %v1759 = vpop.f32.mrf.mxu0
        %v1760 = vadd.f32 0.0, %v1759
        %v1761 = vpop.f32.mrf.mxu0
        %1762 = vmatprep.mubr.f32.mxu0 0.0
        %1763 = vmatmul.mubr.f32.gmra.mxu0 %v1549
        %v1764 = vpop.f32.mrf.mxu0
        %v1765 = vadd.f32 0.0, %v1764
        %v1766 = vpop.f32.mrf.mxu0
        %1767 = vmatprep.mubr.f32.mxu0 0.0
        %1768 = vmatmul.mubr.f32.gmra.mxu0 %v1552
        %v1769 = vpop.f32.mrf.mxu0
        %v1770 = vadd.f32 0.0, %v1769
        %v1771 = vpop.f32.mrf.mxu0
        %1772 = vmatprep.mubr.f32.mxu0 0.0
        %1773 = vmatmul.mubr.f32.gmra.mxu0 %v1555
        %v1774 = vpop.f32.mrf.mxu0
        %v1775 = vadd.f32 0.0, %v1774
        %v1776 = vpop.f32.mrf.mxu0
        %1777 = vmatprep.mubr.f32.mxu0 0.0
        %1778 = vmatmul.mubr.f32.gmra.mxu0 %v1558
        %v1779 = vpop.f32.mrf.mxu0
        %v1780 = vadd.f32 0.0, %v1779
        %v1781 = vpop.f32.mrf.mxu0
        %1782 = vmatprep.mubr.f32.mxu0 0.0
        %1783 = vmatmul.mubr.f32.gmra.mxu0 %v1561
        %v1784 = vpop.f32.mrf.mxu0
        %v1785 = vadd.f32 0.0, %v1784
        %v1786 = vpop.f32.mrf.mxu0
        %1787 = vdwg.mxu0
        %v1788 = vadd.f32 %v1275, %v1630
        %v1789 = vadd.f32 %v1280, %v1635
        %v1790 = vadd.f32 %v1285, %v1640
        %v1791 = vadd.f32 %v1290, %v1645
        %v1792 = vadd.f32 %v1295, %v1650
        %v1793 = vadd.f32 %v1300, %v1655
        %v1794 = vadd.f32 %v1305, %v1660
        %v1795 = vadd.f32 %v1310, %v1665
        %v1796 = vadd.f32 %v1315, %v1670
        %v1797 = vadd.f32 %v1320, %v1675
        %v1798 = vadd.f32 %v1325, %v1680
        %v1799 = vadd.f32 %v1330, %v1685
        %v1800 = vadd.f32 %v1335, %v1690
        %v1801 = vadd.f32 %v1340, %v1695
        %v1802 = vadd.f32 %v1345, %v1700
        %v1803 = vadd.f32 %v1350, %v1705
        %v1804 = vadd.f32 %v1355, %v1710
        %v1805 = vadd.f32 %v1360, %v1715
        %v1806 = vadd.f32 %v1365, %v1720
        %v1807 = vadd.f32 %v1370, %v1725
        %v1808 = vadd.f32 %v1375, %v1730
        %v1809 = vadd.f32 %v1380, %v1735
        %v1810 = vadd.f32 %v1385, %v1740
        %v1811 = vadd.f32 %v1390, %v1745
        %v1812 = vadd.f32 %v1395, %v1750
        %v1813 = vadd.f32 %v1400, %v1755
        %v1814 = vadd.f32 %v1405, %v1760
        %v1815 = vadd.f32 %v1410, %v1765
        %v1816 = vadd.f32 %v1415, %v1770
        %v1817 = vadd.f32 %v1420, %v1775
        %v1818 = vadd.f32 %v1425, %v1780
        %v1819 = vadd.f32 %v1430, %v1785
        %v1820 = vld [vmem:[%s691] sm:$0xff]
        %v1821 = vld [vmem:[%s691 + $0x8] sm:$0xff]
        %v1822 = vld [vmem:[%s691 + $0x28] sm:$0xff]
        %v1823 = vld [vmem:[%s691 + $0x30] sm:$0xff]
        %v1824 = vld [vmem:[%s691 + $0x50] sm:$0xff]
        %v1825 = vld [vmem:[%s691 + $0x58] sm:$0xff]
        %v1826 = vld [vmem:[%s691 + $0x78] sm:$0xff]
        %v1827 = vld [vmem:[%s691 + $0x80] sm:$0xff]
        %v1828 = vld [vmem:[%s691 + $0xa0] sm:$0xff]
        %v1829 = vld [vmem:[%s691 + $0xa8] sm:$0xff]
        %v1830 = vld [vmem:[%s691 + $0xc8] sm:$0xff]
        %v1831 = vld [vmem:[%s691 + $0xd0] sm:$0xff]
        %v1832 = vld [vmem:[%s691 + $0xf0] sm:$0xff]
        %v1833 = vld [vmem:[%s691 + $0xf8] sm:$0xff]
        %v1834 = vld [vmem:[%s691 + $0x118] sm:$0xff]
        %v1835 = vld [vmem:[%s691 + $0x120] sm:$0xff]
        %v1836 = vld [vmem:[%s691 + $0x140] sm:$0xff]
        %v1837 = vld [vmem:[%s691 + $0x148] sm:$0xff]
        %v1838 = vld [vmem:[%s691 + $0x168] sm:$0xff]
        %v1839 = vld [vmem:[%s691 + $0x170] sm:$0xff]
        %v1840 = vld [vmem:[%s691 + $0x190] sm:$0xff]
        %v1841 = vld [vmem:[%s691 + $0x198] sm:$0xff]
        %v1842 = vld [vmem:[%s691 + $0x1b8] sm:$0xff]
        %v1843 = vld [vmem:[%s691 + $0x1c0] sm:$0xff]
        %v1844 = vld [vmem:[%s691 + $0x1e0] sm:$0xff]
        %v1845 = vld [vmem:[%s691 + $0x1e8] sm:$0xff]
        %v1846 = vld [vmem:[%s691 + $0x208] sm:$0xff]
        %v1847 = vld [vmem:[%s691 + $0x210] sm:$0xff]
        %v1848 = vld [vmem:[%s691 + $0x230] sm:$0xff]
        %v1849 = vld [vmem:[%s691 + $0x238] sm:$0xff]
        %v1850 = vld [vmem:[%s691 + $0x258] sm:$0xff]
        %v1851 = vld [vmem:[%s691 + $0x260] sm:$0xff]
        %s1852 = scalar_lea.vmem %s1, 24
        %v1853 = vld [vmem:[%s1852] sm:$0xff]
        %v1855 = vsel %vm277, %v1820, 0
        %v1858 = vsel %vm277, %v1821, 0
        %v1861 = vsel %vm277, %v1822, 0
        %v1864 = vsel %vm277, %v1823, 0
        %v1867 = vsel %vm277, %v1824, 0
        %v1870 = vsel %vm277, %v1825, 0
        %v1873 = vsel %vm277, %v1826, 0
        %v1876 = vsel %vm277, %v1827, 0
        %v1879 = vsel %vm277, %v1828, 0
        %v1882 = vsel %vm277, %v1829, 0
        %v1885 = vsel %vm277, %v1830, 0
        %v1888 = vsel %vm277, %v1831, 0
        %v1891 = vsel %vm277, %v1832, 0
        %v1894 = vsel %vm277, %v1833, 0
        %v1897 = vsel %vm277, %v1834, 0
        %v1900 = vsel %vm277, %v1835, 0
        %v1903 = vsel %vm277, %v1836, 0
        %v1906 = vsel %vm277, %v1837, 0
        %v1909 = vsel %vm277, %v1838, 0
        %v1912 = vsel %vm277, %v1839, 0
        %v1915 = vsel %vm277, %v1840, 0
        %v1918 = vsel %vm277, %v1841, 0
        %v1921 = vsel %vm277, %v1842, 0
        %v1924 = vsel %vm277, %v1843, 0
        %v1927 = vsel %vm277, %v1844, 0
        %v1930 = vsel %vm277, %v1845, 0
        %v1933 = vsel %vm277, %v1846, 0
        %v1936 = vsel %vm277, %v1847, 0
        %v1939 = vsel %vm277, %v1848, 0
        %v1942 = vsel %vm277, %v1849, 0
        %v1945 = vsel %vm277, %v1850, 0
        %v1948 = vsel %vm277, %v1851, 0
        %1950 = vmatprep.subr.mxu0 0.0
        %1951 = vmatpush1.msra.mxu0 0.0
        %1952 = vmatprep.subr.mxu0 0.0
        %1953 = vmatpush1.msra.mxu0 0.0
        %1954 = vmatprep.subr.mxu0 0.0
        %1955 = vmatpush1.msra.mxu0 0.0
        %1956 = vmatprep.subr.mxu0 0.0
        %1957 = vmatpush1.msra.mxu0 0.0
        %1958 = vmatprep.subr.mxu0 0.0
        %1959 = vmatpush1.msra.mxu0 0.0
        %1960 = vmatprep.subr.mxu0 0.0
        %1961 = vmatpush1.msra.mxu0 0.0
        %1962 = vmatprep.subr.mxu0 0.0
        %1963 = vmatpush1.msra.mxu0 0.0
        %1964 = vmatprep.subr.mxu0 0.0
        %1965 = vmatpush1.msra.mxu0 0.0
        %1966 = vmatprep.subr.mxu0 0.0
        %1967 = vmatpush1.msra.mxu0 0.0
        %1968 = vmatprep.subr.mxu0 0.0
        %1969 = vmatpush1.msra.mxu0 0.0
        %1970 = vmatprep.subr.mxu0 0.0
        %1971 = vmatpush1.msra.mxu0 0.0
        %1972 = vmatprep.subr.mxu0 0.0
        %1973 = vmatpush1.msra.mxu0 0.0
        %1974 = vmatprep.subr.mxu0 0.0
        %1975 = vmatpush1.msra.mxu0 0.0
        %1976 = vmatprep.subr.mxu0 0.0
        %1977 = vmatpush1.msra.mxu0 0.0
        %1978 = vmatprep.subr.mxu0 0.0
        %1979 = vmatpush1.msra.mxu0 0.0
        %1980 = vmatprep.subr.mxu0 0.0
        %1981 = vmatpush1.msra.mxu0 %v1853
        %1982 = vmatprep.subr.mxu0 0.0
        %1983 = vmatpush2.msra.mxu0 0.0
        %1984 = vmatprep.subr.mxu0 0.0
        %1985 = vmatpush2.msra.mxu0 0.0
        %1986 = vmatprep.subr.mxu0 0.0
        %1987 = vmatpush2.msra.mxu0 0.0
        %1988 = vmatprep.subr.mxu0 0.0
        %1989 = vmatpush2.msra.mxu0 0.0
        %1990 = vmatprep.subr.mxu0 0.0
        %1991 = vmatpush2.msra.mxu0 0.0
        %1992 = vmatprep.subr.mxu0 0.0
        %1993 = vmatpush2.msra.mxu0 0.0
        %1994 = vmatprep.subr.mxu0 0.0
        %1995 = vmatpush2.msra.mxu0 0.0
        %1996 = vmatprep.subr.mxu0 0.0
        %1997 = vmatpush2.msra.mxu0 0.0
        %1998 = vmatprep.subr.mxu0 0.0
        %1999 = vmatpush2.msra.mxu0 0.0
        %2000 = vmatprep.subr.mxu0 0.0
        %2001 = vmatpush2.msra.mxu0 0.0
        %2002 = vmatprep.subr.mxu0 0.0
        %2003 = vmatpush2.msra.mxu0 0.0
        %2004 = vmatprep.subr.mxu0 0.0
        %2005 = vmatpush2.msra.mxu0 0.0
        %2006 = vmatprep.subr.mxu0 0.0
        %2007 = vmatpush2.msra.mxu0 0.0
        %2008 = vmatprep.subr.mxu0 0.0
        %2009 = vmatpush2.msra.mxu0 0.0
        %2010 = vmatprep.subr.mxu0 0.0
        %2011 = vmatpush2.msra.mxu0 0.0
        %2012 = vmatprep.subr.mxu0 0.0
        %2013 = vmatpush2.msra.mxu0 0.0
        %2014 = vmatprep.mubr.f32.mxu0 0.0
        %2015 = vmatmul.mubr.f32.gmra.mxu0 %v1855
        %v2016 = vpop.f32.mrf.mxu0
        %v2017 = vadd.f32 0.0, %v2016
        %v2018 = vpop.f32.mrf.mxu0
        %2019 = vmatprep.mubr.f32.mxu0 0.0
        %2020 = vmatmul.mubr.f32.gmra.mxu0 %v1858
        %v2021 = vpop.f32.mrf.mxu0
        %v2022 = vadd.f32 0.0, %v2021
        %v2023 = vpop.f32.mrf.mxu0
        %2024 = vmatprep.mubr.f32.mxu0 0.0
        %2025 = vmatmul.mubr.f32.gmra.mxu0 %v1861
        %v2026 = vpop.f32.mrf.mxu0
        %v2027 = vadd.f32 0.0, %v2026
        %v2028 = vpop.f32.mrf.mxu0
        %2029 = vmatprep.mubr.f32.mxu0 0.0
        %2030 = vmatmul.mubr.f32.gmra.mxu0 %v1864
        %v2031 = vpop.f32.mrf.mxu0
        %v2032 = vadd.f32 0.0, %v2031
        %v2033 = vpop.f32.mrf.mxu0
        %2034 = vmatprep.mubr.f32.mxu0 0.0
        %2035 = vmatmul.mubr.f32.gmra.mxu0 %v1867
        %v2036 = vpop.f32.mrf.mxu0
        %v2037 = vadd.f32 0.0, %v2036
        %v2038 = vpop.f32.mrf.mxu0
        %2039 = vmatprep.mubr.f32.mxu0 0.0
        %2040 = vmatmul.mubr.f32.gmra.mxu0 %v1870
        %v2041 = vpop.f32.mrf.mxu0
        %v2042 = vadd.f32 0.0, %v2041
        %v2043 = vpop.f32.mrf.mxu0
        %2044 = vmatprep.mubr.f32.mxu0 0.0
        %2045 = vmatmul.mubr.f32.gmra.mxu0 %v1873
        %v2046 = vpop.f32.mrf.mxu0
        %v2047 = vadd.f32 0.0, %v2046
        %v2048 = vpop.f32.mrf.mxu0
        %2049 = vmatprep.mubr.f32.mxu0 0.0
        %2050 = vmatmul.mubr.f32.gmra.mxu0 %v1876
        %v2051 = vpop.f32.mrf.mxu0
        %v2052 = vadd.f32 0.0, %v2051
        %v2053 = vpop.f32.mrf.mxu0
        %2054 = vmatprep.mubr.f32.mxu0 0.0
        %2055 = vmatmul.mubr.f32.gmra.mxu0 %v1879
        %v2056 = vpop.f32.mrf.mxu0
        %v2057 = vadd.f32 0.0, %v2056
        %v2058 = vpop.f32.mrf.mxu0
        %2059 = vmatprep.mubr.f32.mxu0 0.0
        %2060 = vmatmul.mubr.f32.gmra.mxu0 %v1882
        %v2061 = vpop.f32.mrf.mxu0
        %v2062 = vadd.f32 0.0, %v2061
        %v2063 = vpop.f32.mrf.mxu0
        %2064 = vmatprep.mubr.f32.mxu0 0.0
        %2065 = vmatmul.mubr.f32.gmra.mxu0 %v1885
        %v2066 = vpop.f32.mrf.mxu0
        %v2067 = vadd.f32 0.0, %v2066
        %v2068 = vpop.f32.mrf.mxu0
        %2069 = vmatprep.mubr.f32.mxu0 0.0
        %2070 = vmatmul.mubr.f32.gmra.mxu0 %v1888
        %v2071 = vpop.f32.mrf.mxu0
        %v2072 = vadd.f32 0.0, %v2071
        %v2073 = vpop.f32.mrf.mxu0
        %2074 = vmatprep.mubr.f32.mxu0 0.0
        %2075 = vmatmul.mubr.f32.gmra.mxu0 %v1891
        %v2076 = vpop.f32.mrf.mxu0
        %v2077 = vadd.f32 0.0, %v2076
        %v2078 = vpop.f32.mrf.mxu0
        %2079 = vmatprep.mubr.f32.mxu0 0.0
        %2080 = vmatmul.mubr.f32.gmra.mxu0 %v1894
        %v2081 = vpop.f32.mrf.mxu0
        %v2082 = vadd.f32 0.0, %v2081
        %v2083 = vpop.f32.mrf.mxu0
        %2084 = vmatprep.mubr.f32.mxu0 0.0
        %2085 = vmatmul.mubr.f32.gmra.mxu0 %v1897
        %v2086 = vpop.f32.mrf.mxu0
        %v2087 = vadd.f32 0.0, %v2086
        %v2088 = vpop.f32.mrf.mxu0
        %2089 = vmatprep.mubr.f32.mxu0 0.0
        %2090 = vmatmul.mubr.f32.gmra.mxu0 %v1900
        %v2091 = vpop.f32.mrf.mxu0
        %v2092 = vadd.f32 0.0, %v2091
        %v2093 = vpop.f32.mrf.mxu0
        %2094 = vmatprep.mubr.f32.mxu0 0.0
        %2095 = vmatmul.mubr.f32.gmra.mxu0 %v1903
        %v2096 = vpop.f32.mrf.mxu0
        %v2097 = vadd.f32 0.0, %v2096
        %v2098 = vpop.f32.mrf.mxu0
        %2099 = vmatprep.mubr.f32.mxu0 0.0
        %2100 = vmatmul.mubr.f32.gmra.mxu0 %v1906
        %v2101 = vpop.f32.mrf.mxu0
        %v2102 = vadd.f32 0.0, %v2101
        %v2103 = vpop.f32.mrf.mxu0
        %2104 = vmatprep.mubr.f32.mxu0 0.0
        %2105 = vmatmul.mubr.f32.gmra.mxu0 %v1909
        %v2106 = vpop.f32.mrf.mxu0
        %v2107 = vadd.f32 0.0, %v2106
        %v2108 = vpop.f32.mrf.mxu0
        %2109 = vmatprep.mubr.f32.mxu0 0.0
        %2110 = vmatmul.mubr.f32.gmra.mxu0 %v1912
        %v2111 = vpop.f32.mrf.mxu0
        %v2112 = vadd.f32 0.0, %v2111
        %v2113 = vpop.f32.mrf.mxu0
        %2114 = vmatprep.mubr.f32.mxu0 0.0
        %2115 = vmatmul.mubr.f32.gmra.mxu0 %v1915
        %v2116 = vpop.f32.mrf.mxu0
        %v2117 = vadd.f32 0.0, %v2116
        %v2118 = vpop.f32.mrf.mxu0
        %2119 = vmatprep.mubr.f32.mxu0 0.0
        %2120 = vmatmul.mubr.f32.gmra.mxu0 %v1918
        %v2121 = vpop.f32.mrf.mxu0
        %v2122 = vadd.f32 0.0, %v2121
        %v2123 = vpop.f32.mrf.mxu0
        %2124 = vmatprep.mubr.f32.mxu0 0.0
        %2125 = vmatmul.mubr.f32.gmra.mxu0 %v1921
        %v2126 = vpop.f32.mrf.mxu0
        %v2127 = vadd.f32 0.0, %v2126
        %v2128 = vpop.f32.mrf.mxu0
        %2129 = vmatprep.mubr.f32.mxu0 0.0
        %2130 = vmatmul.mubr.f32.gmra.mxu0 %v1924
        %v2131 = vpop.f32.mrf.mxu0
        %v2132 = vadd.f32 0.0, %v2131
        %v2133 = vpop.f32.mrf.mxu0
        %2134 = vmatprep.mubr.f32.mxu0 0.0
        %2135 = vmatmul.mubr.f32.gmra.mxu0 %v1927
        %v2136 = vpop.f32.mrf.mxu0
        %v2137 = vadd.f32 0.0, %v2136
        %v2138 = vpop.f32.mrf.mxu0
        %2139 = vmatprep.mubr.f32.mxu0 0.0
        %2140 = vmatmul.mubr.f32.gmra.mxu0 %v1930
        %v2141 = vpop.f32.mrf.mxu0
        %v2142 = vadd.f32 0.0, %v2141
        %v2143 = vpop.f32.mrf.mxu0
        %2144 = vmatprep.mubr.f32.mxu0 0.0
        %2145 = vmatmul.mubr.f32.gmra.mxu0 %v1933
        %v2146 = vpop.f32.mrf.mxu0
        %v2147 = vadd.f32 0.0, %v2146
        %v2148 = vpop.f32.mrf.mxu0
        %2149 = vmatprep.mubr.f32.mxu0 0.0
        %2150 = vmatmul.mubr.f32.gmra.mxu0 %v1936
        %v2151 = vpop.f32.mrf.mxu0
        %v2152 = vadd.f32 0.0, %v2151
        %v2153 = vpop.f32.mrf.mxu0
        %2154 = vmatprep.mubr.f32.mxu0 0.0
        %2155 = vmatmul.mubr.f32.gmra.mxu0 %v1939
        %v2156 = vpop.f32.mrf.mxu0
        %v2157 = vadd.f32 0.0, %v2156
        %v2158 = vpop.f32.mrf.mxu0
        %2159 = vmatprep.mubr.f32.mxu0 0.0
        %2160 = vmatmul.mubr.f32.gmra.mxu0 %v1942
        %v2161 = vpop.f32.mrf.mxu0
        %v2162 = vadd.f32 0.0, %v2161
        %v2163 = vpop.f32.mrf.mxu0
        %2164 = vmatprep.mubr.f32.mxu0 0.0
        %2165 = vmatmul.mubr.f32.gmra.mxu0 %v1945
        %v2166 = vpop.f32.mrf.mxu0
        %v2167 = vadd.f32 0.0, %v2166
        %v2168 = vpop.f32.mrf.mxu0
        %2169 = vmatprep.mubr.f32.mxu0 0.0
        %2170 = vmatmul.mubr.f32.gmra.mxu0 %v1948
        %v2171 = vpop.f32.mrf.mxu0
        %v2172 = vadd.f32 0.0, %v2171
        %v2173 = vpop.f32.mrf.mxu0
        %2174 = vdwg.mxu0
        %v2175 = vadd.f32 %v1788, %v2017
        %v2176 = vadd.f32 %v1789, %v2022
        %v2177 = vadd.f32 %v1790, %v2027
        %v2178 = vadd.f32 %v1791, %v2032
        %v2179 = vadd.f32 %v1792, %v2037
        %v2180 = vadd.f32 %v1793, %v2042
        %v2181 = vadd.f32 %v1794, %v2047
        %v2182 = vadd.f32 %v1795, %v2052
        %v2183 = vadd.f32 %v1796, %v2057
        %v2184 = vadd.f32 %v1797, %v2062
        %v2185 = vadd.f32 %v1798, %v2067
        %v2186 = vadd.f32 %v1799, %v2072
        %v2187 = vadd.f32 %v1800, %v2077
        %v2188 = vadd.f32 %v1801, %v2082
        %v2189 = vadd.f32 %v1802, %v2087
        %v2190 = vadd.f32 %v1803, %v2092
        %v2191 = vadd.f32 %v1804, %v2097
        %v2192 = vadd.f32 %v1805, %v2102
        %v2193 = vadd.f32 %v1806, %v2107
        %v2194 = vadd.f32 %v1807, %v2112
        %v2195 = vadd.f32 %v1808, %v2117
        %v2196 = vadd.f32 %v1809, %v2122
        %v2197 = vadd.f32 %v1810, %v2127
        %v2198 = vadd.f32 %v1811, %v2132
        %v2199 = vadd.f32 %v1812, %v2137
        %v2200 = vadd.f32 %v1813, %v2142
        %v2201 = vadd.f32 %v1814, %v2147
        %v2202 = vadd.f32 %v1815, %v2152
        %v2203 = vadd.f32 %v1816, %v2157
        %v2204 = vadd.f32 %v1817, %v2162
        %v2205 = vadd.f32 %v1818, %v2167
        %v2206 = vadd.f32 %v1819, %v2172
        %v2207 = vld [vmem:[%s691 + $0xc] sm:$0xff]
        %v2208 = vld [vmem:[%s691 + $0x14] sm:$0xff]
        %v2209 = vld [vmem:[%s691 + $0x34] sm:$0xff]
        %v2210 = vld [vmem:[%s691 + $0x3c] sm:$0xff]
        %v2211 = vld [vmem:[%s691 + $0x5c] sm:$0xff]
        %v2212 = vld [vmem:[%s691 + $0x64] sm:$0xff]
        %v2213 = vld [vmem:[%s691 + $0x84] sm:$0xff]
        %v2214 = vld [vmem:[%s691 + $0x8c] sm:$0xff]
        %v2215 = vld [vmem:[%s691 + $0xac] sm:$0xff]
        %v2216 = vld [vmem:[%s691 + $0xb4] sm:$0xff]
        %v2217 = vld [vmem:[%s691 + $0xd4] sm:$0xff]
        %v2218 = vld [vmem:[%s691 + $0xdc] sm:$0xff]
        %v2219 = vld [vmem:[%s691 + $0xfc] sm:$0xff]
        %v2220 = vld [vmem:[%s691 + $0x104] sm:$0xff]
        %v2221 = vld [vmem:[%s691 + $0x124] sm:$0xff]
        %v2222 = vld [vmem:[%s691 + $0x12c] sm:$0xff]
        %v2223 = vld [vmem:[%s691 + $0x14c] sm:$0xff]
        %v2224 = vld [vmem:[%s691 + $0x154] sm:$0xff]
        %v2225 = vld [vmem:[%s691 + $0x174] sm:$0xff]
        %v2226 = vld [vmem:[%s691 + $0x17c] sm:$0xff]
        %v2227 = vld [vmem:[%s691 + $0x19c] sm:$0xff]
        %v2228 = vld [vmem:[%s691 + $0x1a4] sm:$0xff]
        %v2229 = vld [vmem:[%s691 + $0x1c4] sm:$0xff]
        %v2230 = vld [vmem:[%s691 + $0x1cc] sm:$0xff]
        %v2231 = vld [vmem:[%s691 + $0x1ec] sm:$0xff]
        %v2232 = vld [vmem:[%s691 + $0x1f4] sm:$0xff]
        %v2233 = vld [vmem:[%s691 + $0x214] sm:$0xff]
        %v2234 = vld [vmem:[%s691 + $0x21c] sm:$0xff]
        %v2235 = vld [vmem:[%s691 + $0x23c] sm:$0xff]
        %v2236 = vld [vmem:[%s691 + $0x244] sm:$0xff]
        %v2237 = vld [vmem:[%s691 + $0x264] sm:$0xff]
        %v2238 = vld [vmem:[%s691 + $0x26c] sm:$0xff]
        %s2239 = scalar_lea.vmem %s1, 32
        %v2240 = vld [vmem:[%s2239] sm:$0xff]
        %v2242 = vsel %vm277, %v2207, 0
        %v2245 = vsel %vm277, %v2208, 0
        %v2248 = vsel %vm277, %v2209, 0
        %v2251 = vsel %vm277, %v2210, 0
        %v2254 = vsel %vm277, %v2211, 0
        %v2257 = vsel %vm277, %v2212, 0
        %v2260 = vsel %vm277, %v2213, 0
        %v2263 = vsel %vm277, %v2214, 0
        %v2266 = vsel %vm277, %v2215, 0
        %v2269 = vsel %vm277, %v2216, 0
        %v2272 = vsel %vm277, %v2217, 0
        %v2275 = vsel %vm277, %v2218, 0
        %v2278 = vsel %vm277, %v2219, 0
        %v2281 = vsel %vm277, %v2220, 0
        %v2284 = vsel %vm277, %v2221, 0
        %v2287 = vsel %vm277, %v2222, 0
        %v2290 = vsel %vm277, %v2223, 0
        %v2293 = vsel %vm277, %v2224, 0
        %v2296 = vsel %vm277, %v2225, 0
        %v2299 = vsel %vm277, %v2226, 0
        %v2302 = vsel %vm277, %v2227, 0
        %v2305 = vsel %vm277, %v2228, 0
        %v2308 = vsel %vm277, %v2229, 0
        %v2311 = vsel %vm277, %v2230, 0
        %v2314 = vsel %vm277, %v2231, 0
        %v2317 = vsel %vm277, %v2232, 0
        %v2320 = vsel %vm277, %v2233, 0
        %v2323 = vsel %vm277, %v2234, 0
        %v2326 = vsel %vm277, %v2235, 0
        %v2329 = vsel %vm277, %v2236, 0
        %v2332 = vsel %vm277, %v2237, 0
        %v2335 = vsel %vm277, %v2238, 0
        %2337 = vmatprep.subr.mxu0 0.0
        %2338 = vmatpush1.msra.mxu0 0.0
        %2339 = vmatprep.subr.mxu0 0.0
        %2340 = vmatpush1.msra.mxu0 0.0
        %2341 = vmatprep.subr.mxu0 0.0
        %2342 = vmatpush1.msra.mxu0 0.0
        %2343 = vmatprep.subr.mxu0 0.0
        %2344 = vmatpush1.msra.mxu0 0.0
        %2345 = vmatprep.subr.mxu0 0.0
        %2346 = vmatpush1.msra.mxu0 0.0
        %2347 = vmatprep.subr.mxu0 0.0
        %2348 = vmatpush1.msra.mxu0 0.0
        %2349 = vmatprep.subr.mxu0 0.0
        %2350 = vmatpush1.msra.mxu0 0.0
        %2351 = vmatprep.subr.mxu0 0.0
        %2352 = vmatpush1.msra.mxu0 0.0
        %2353 = vmatprep.subr.mxu0 0.0
        %2354 = vmatpush1.msra.mxu0 0.0
        %2355 = vmatprep.subr.mxu0 0.0
        %2356 = vmatpush1.msra.mxu0 0.0
        %2357 = vmatprep.subr.mxu0 0.0
        %2358 = vmatpush1.msra.mxu0 0.0
        %2359 = vmatprep.subr.mxu0 0.0
        %2360 = vmatpush1.msra.mxu0 0.0
        %2361 = vmatprep.subr.mxu0 0.0
        %2362 = vmatpush1.msra.mxu0 0.0
        %2363 = vmatprep.subr.mxu0 0.0
        %2364 = vmatpush1.msra.mxu0 0.0
        %2365 = vmatprep.subr.mxu0 0.0
        %2366 = vmatpush1.msra.mxu0 0.0
        %2367 = vmatprep.subr.mxu0 0.0
        %2368 = vmatpush1.msra.mxu0 %v2240
        %2369 = vmatprep.subr.mxu0 0.0
        %2370 = vmatpush2.msra.mxu0 0.0
        %2371 = vmatprep.subr.mxu0 0.0
        %2372 = vmatpush2.msra.mxu0 0.0
        %2373 = vmatprep.subr.mxu0 0.0
        %2374 = vmatpush2.msra.mxu0 0.0
        %2375 = vmatprep.subr.mxu0 0.0
        %2376 = vmatpush2.msra.mxu0 0.0
        %2377 = vmatprep.subr.mxu0 0.0
        %2378 = vmatpush2.msra.mxu0 0.0
        %2379 = vmatprep.subr.mxu0 0.0
        %2380 = vmatpush2.msra.mxu0 0.0
        %2381 = vmatprep.subr.mxu0 0.0
        %2382 = vmatpush2.msra.mxu0 0.0
        %2383 = vmatprep.subr.mxu0 0.0
        %2384 = vmatpush2.msra.mxu0 0.0
        %2385 = vmatprep.subr.mxu0 0.0
        %2386 = vmatpush2.msra.mxu0 0.0
        %2387 = vmatprep.subr.mxu0 0.0
        %2388 = vmatpush2.msra.mxu0 0.0
        %2389 = vmatprep.subr.mxu0 0.0
        %2390 = vmatpush2.msra.mxu0 0.0
        %2391 = vmatprep.subr.mxu0 0.0
        %2392 = vmatpush2.msra.mxu0 0.0
        %2393 = vmatprep.subr.mxu0 0.0
        %2394 = vmatpush2.msra.mxu0 0.0
        %2395 = vmatprep.subr.mxu0 0.0
        %2396 = vmatpush2.msra.mxu0 0.0
        %2397 = vmatprep.subr.mxu0 0.0
        %2398 = vmatpush2.msra.mxu0 0.0
        %2399 = vmatprep.subr.mxu0 0.0
        %2400 = vmatpush2.msra.mxu0 0.0
        %2401 = vmatprep.mubr.f32.mxu0 0.0
        %2402 = vmatmul.mubr.f32.gmra.mxu0 %v2242
        %v2403 = vpop.f32.mrf.mxu0
        %v2404 = vadd.f32 0.0, %v2403
        %v2405 = vpop.f32.mrf.mxu0
        %2406 = vmatprep.mubr.f32.mxu0 0.0
        %2407 = vmatmul.mubr.f32.gmra.mxu0 %v2245
        %v2408 = vpop.f32.mrf.mxu0
        %v2409 = vadd.f32 0.0, %v2408
        %v2410 = vpop.f32.mrf.mxu0
        %2411 = vmatprep.mubr.f32.mxu0 0.0
        %2412 = vmatmul.mubr.f32.gmra.mxu0 %v2248
        %v2413 = vpop.f32.mrf.mxu0
        %v2414 = vadd.f32 0.0, %v2413
        %v2415 = vpop.f32.mrf.mxu0
        %2416 = vmatprep.mubr.f32.mxu0 0.0
        %2417 = vmatmul.mubr.f32.gmra.mxu0 %v2251
        %v2418 = vpop.f32.mrf.mxu0
        %v2419 = vadd.f32 0.0, %v2418
        %v2420 = vpop.f32.mrf.mxu0
        %2421 = vmatprep.mubr.f32.mxu0 0.0
        %2422 = vmatmul.mubr.f32.gmra.mxu0 %v2254
        %v2423 = vpop.f32.mrf.mxu0
        %v2424 = vadd.f32 0.0, %v2423
        %v2425 = vpop.f32.mrf.mxu0
        %2426 = vmatprep.mubr.f32.mxu0 0.0
        %2427 = vmatmul.mubr.f32.gmra.mxu0 %v2257
        %v2428 = vpop.f32.mrf.mxu0
        %v2429 = vadd.f32 0.0, %v2428
        %v2430 = vpop.f32.mrf.mxu0
        %2431 = vmatprep.mubr.f32.mxu0 0.0
        %2432 = vmatmul.mubr.f32.gmra.mxu0 %v2260
        %v2433 = vpop.f32.mrf.mxu0
        %v2434 = vadd.f32 0.0, %v2433
        %v2435 = vpop.f32.mrf.mxu0
        %2436 = vmatprep.mubr.f32.mxu0 0.0
        %2437 = vmatmul.mubr.f32.gmra.mxu0 %v2263
        %v2438 = vpop.f32.mrf.mxu0
        %v2439 = vadd.f32 0.0, %v2438
        %v2440 = vpop.f32.mrf.mxu0
        %2441 = vmatprep.mubr.f32.mxu0 0.0
        %2442 = vmatmul.mubr.f32.gmra.mxu0 %v2266
        %v2443 = vpop.f32.mrf.mxu0
        %v2444 = vadd.f32 0.0, %v2443
        %v2445 = vpop.f32.mrf.mxu0
        %2446 = vmatprep.mubr.f32.mxu0 0.0
        %2447 = vmatmul.mubr.f32.gmra.mxu0 %v2269
        %v2448 = vpop.f32.mrf.mxu0
        %v2449 = vadd.f32 0.0, %v2448
        %v2450 = vpop.f32.mrf.mxu0
        %2451 = vmatprep.mubr.f32.mxu0 0.0
        %2452 = vmatmul.mubr.f32.gmra.mxu0 %v2272
        %v2453 = vpop.f32.mrf.mxu0
        %v2454 = vadd.f32 0.0, %v2453
        %v2455 = vpop.f32.mrf.mxu0
        %2456 = vmatprep.mubr.f32.mxu0 0.0
        %2457 = vmatmul.mubr.f32.gmra.mxu0 %v2275
        %v2458 = vpop.f32.mrf.mxu0
        %v2459 = vadd.f32 0.0, %v2458
        %v2460 = vpop.f32.mrf.mxu0
        %2461 = vmatprep.mubr.f32.mxu0 0.0
        %2462 = vmatmul.mubr.f32.gmra.mxu0 %v2278
        %v2463 = vpop.f32.mrf.mxu0
        %v2464 = vadd.f32 0.0, %v2463
        %v2465 = vpop.f32.mrf.mxu0
        %2466 = vmatprep.mubr.f32.mxu0 0.0
        %2467 = vmatmul.mubr.f32.gmra.mxu0 %v2281
        %v2468 = vpop.f32.mrf.mxu0
        %v2469 = vadd.f32 0.0, %v2468
        %v2470 = vpop.f32.mrf.mxu0
        %2471 = vmatprep.mubr.f32.mxu0 0.0
        %2472 = vmatmul.mubr.f32.gmra.mxu0 %v2284
        %v2473 = vpop.f32.mrf.mxu0
        %v2474 = vadd.f32 0.0, %v2473
        %v2475 = vpop.f32.mrf.mxu0
        %2476 = vmatprep.mubr.f32.mxu0 0.0
        %2477 = vmatmul.mubr.f32.gmra.mxu0 %v2287
        %v2478 = vpop.f32.mrf.mxu0
        %v2479 = vadd.f32 0.0, %v2478
        %v2480 = vpop.f32.mrf.mxu0
        %2481 = vmatprep.mubr.f32.mxu0 0.0
        %2482 = vmatmul.mubr.f32.gmra.mxu0 %v2290
        %v2483 = vpop.f32.mrf.mxu0
        %v2484 = vadd.f32 0.0, %v2483
        %v2485 = vpop.f32.mrf.mxu0
        %2486 = vmatprep.mubr.f32.mxu0 0.0
        %2487 = vmatmul.mubr.f32.gmra.mxu0 %v2293
        %v2488 = vpop.f32.mrf.mxu0
        %v2489 = vadd.f32 0.0, %v2488
        %v2490 = vpop.f32.mrf.mxu0
        %2491 = vmatprep.mubr.f32.mxu0 0.0
        %2492 = vmatmul.mubr.f32.gmra.mxu0 %v2296
        %v2493 = vpop.f32.mrf.mxu0
        %v2494 = vadd.f32 0.0, %v2493
        %v2495 = vpop.f32.mrf.mxu0
        %2496 = vmatprep.mubr.f32.mxu0 0.0
        %2497 = vmatmul.mubr.f32.gmra.mxu0 %v2299
        %v2498 = vpop.f32.mrf.mxu0
        %v2499 = vadd.f32 0.0, %v2498
        %v2500 = vpop.f32.mrf.mxu0
        %2501 = vmatprep.mubr.f32.mxu0 0.0
        %2502 = vmatmul.mubr.f32.gmra.mxu0 %v2302
        %v2503 = vpop.f32.mrf.mxu0
        %v2504 = vadd.f32 0.0, %v2503
        %v2505 = vpop.f32.mrf.mxu0
        %2506 = vmatprep.mubr.f32.mxu0 0.0
        %2507 = vmatmul.mubr.f32.gmra.mxu0 %v2305
        %v2508 = vpop.f32.mrf.mxu0
        %v2509 = vadd.f32 0.0, %v2508
        %v2510 = vpop.f32.mrf.mxu0
        %2511 = vmatprep.mubr.f32.mxu0 0.0
        %2512 = vmatmul.mubr.f32.gmra.mxu0 %v2308
        %v2513 = vpop.f32.mrf.mxu0
        %v2514 = vadd.f32 0.0, %v2513
        %v2515 = vpop.f32.mrf.mxu0
        %2516 = vmatprep.mubr.f32.mxu0 0.0
        %2517 = vmatmul.mubr.f32.gmra.mxu0 %v2311
        %v2518 = vpop.f32.mrf.mxu0
        %v2519 = vadd.f32 0.0, %v2518
        %v2520 = vpop.f32.mrf.mxu0
        %2521 = vmatprep.mubr.f32.mxu0 0.0
        %2522 = vmatmul.mubr.f32.gmra.mxu0 %v2314
        %v2523 = vpop.f32.mrf.mxu0
        %v2524 = vadd.f32 0.0, %v2523
        %v2525 = vpop.f32.mrf.mxu0
        %2526 = vmatprep.mubr.f32.mxu0 0.0
        %2527 = vmatmul.mubr.f32.gmra.mxu0 %v2317
        %v2528 = vpop.f32.mrf.mxu0
        %v2529 = vadd.f32 0.0, %v2528
        %v2530 = vpop.f32.mrf.mxu0
        %2531 = vmatprep.mubr.f32.mxu0 0.0
        %2532 = vmatmul.mubr.f32.gmra.mxu0 %v2320
        %v2533 = vpop.f32.mrf.mxu0
        %v2534 = vadd.f32 0.0, %v2533
        %v2535 = vpop.f32.mrf.mxu0
        %2536 = vmatprep.mubr.f32.mxu0 0.0
        %2537 = vmatmul.mubr.f32.gmra.mxu0 %v2323
        %v2538 = vpop.f32.mrf.mxu0
        %v2539 = vadd.f32 0.0, %v2538
        %v2540 = vpop.f32.mrf.mxu0
        %2541 = vmatprep.mubr.f32.mxu0 0.0
        %2542 = vmatmul.mubr.f32.gmra.mxu0 %v2326
        %v2543 = vpop.f32.mrf.mxu0
        %v2544 = vadd.f32 0.0, %v2543
        %v2545 = vpop.f32.mrf.mxu0
        %2546 = vmatprep.mubr.f32.mxu0 0.0
        %2547 = vmatmul.mubr.f32.gmra.mxu0 %v2329
        %v2548 = vpop.f32.mrf.mxu0
        %v2549 = vadd.f32 0.0, %v2548
        %v2550 = vpop.f32.mrf.mxu0
        %2551 = vmatprep.mubr.f32.mxu0 0.0
        %2552 = vmatmul.mubr.f32.gmra.mxu0 %v2332
        %v2553 = vpop.f32.mrf.mxu0
        %v2554 = vadd.f32 0.0, %v2553
        %v2555 = vpop.f32.mrf.mxu0
        %2556 = vmatprep.mubr.f32.mxu0 0.0
        %2557 = vmatmul.mubr.f32.gmra.mxu0 %v2335
        %v2558 = vpop.f32.mrf.mxu0
        %v2559 = vadd.f32 0.0, %v2558
        %v2560 = vpop.f32.mrf.mxu0
        %2561 = vdwg.mxu0
        %v2562 = vadd.f32 %v2175, %v2404
        %v2563 = vadd.f32 %v2176, %v2409
        %v2564 = vadd.f32 %v2177, %v2414
        %v2565 = vadd.f32 %v2178, %v2419
        %v2566 = vadd.f32 %v2179, %v2424
        %v2567 = vadd.f32 %v2180, %v2429
        %v2568 = vadd.f32 %v2181, %v2434
        %v2569 = vadd.f32 %v2182, %v2439
        %v2570 = vadd.f32 %v2183, %v2444
        %v2571 = vadd.f32 %v2184, %v2449
        %v2572 = vadd.f32 %v2185, %v2454
        %v2573 = vadd.f32 %v2186, %v2459
        %v2574 = vadd.f32 %v2187, %v2464
        %v2575 = vadd.f32 %v2188, %v2469
        %v2576 = vadd.f32 %v2189, %v2474
        %v2577 = vadd.f32 %v2190, %v2479
        %v2578 = vadd.f32 %v2191, %v2484
        %v2579 = vadd.f32 %v2192, %v2489
        %v2580 = vadd.f32 %v2193, %v2494
        %v2581 = vadd.f32 %v2194, %v2499
        %v2582 = vadd.f32 %v2195, %v2504
        %v2583 = vadd.f32 %v2196, %v2509
        %v2584 = vadd.f32 %v2197, %v2514
        %v2585 = vadd.f32 %v2198, %v2519
        %v2586 = vadd.f32 %v2199, %v2524
        %v2587 = vadd.f32 %v2200, %v2529
        %v2588 = vadd.f32 %v2201, %v2534
        %v2589 = vadd.f32 %v2202, %v2539
        %v2590 = vadd.f32 %v2203, %v2544
        %v2591 = vadd.f32 %v2204, %v2549
        %v2592 = vadd.f32 %v2205, %v2554
        %v2593 = vadd.f32 %v2206, %v2559
        %v2594 = vld [vmem:[%s691 + $0x18] sm:$0xff]
        %v2595 = vld [vmem:[%s691 + $0x20] sm:$0xff]
        %v2596 = vld [vmem:[%s691 + $0x40] sm:$0xff]
        %v2597 = vld [vmem:[%s691 + $0x48] sm:$0xff]
        %v2598 = vld [vmem:[%s691 + $0x68] sm:$0xff]
        %v2599 = vld [vmem:[%s691 + $0x70] sm:$0xff]
        %v2600 = vld [vmem:[%s691 + $0x90] sm:$0xff]
        %v2601 = vld [vmem:[%s691 + $0x98] sm:$0xff]
        %v2602 = vld [vmem:[%s691 + $0xb8] sm:$0xff]
        %v2603 = vld [vmem:[%s691 + $0xc0] sm:$0xff]
        %v2604 = vld [vmem:[%s691 + $0xe0] sm:$0xff]
        %v2605 = vld [vmem:[%s691 + $0xe8] sm:$0xff]
        %v2606 = vld [vmem:[%s691 + $0x108] sm:$0xff]
        %v2607 = vld [vmem:[%s691 + $0x110] sm:$0xff]
        %v2608 = vld [vmem:[%s691 + $0x130] sm:$0xff]
        %v2609 = vld [vmem:[%s691 + $0x138] sm:$0xff]
        %v2610 = vld [vmem:[%s691 + $0x158] sm:$0xff]
        %v2611 = vld [vmem:[%s691 + $0x160] sm:$0xff]
        %v2612 = vld [vmem:[%s691 + $0x180] sm:$0xff]
        %v2613 = vld [vmem:[%s691 + $0x188] sm:$0xff]
        %v2614 = vld [vmem:[%s691 + $0x1a8] sm:$0xff]
        %v2615 = vld [vmem:[%s691 + $0x1b0] sm:$0xff]
        %v2616 = vld [vmem:[%s691 + $0x1d0] sm:$0xff]
        %v2617 = vld [vmem:[%s691 + $0x1d8] sm:$0xff]
        %v2618 = vld [vmem:[%s691 + $0x1f8] sm:$0xff]
        %v2619 = vld [vmem:[%s691 + $0x200] sm:$0xff]
        %v2620 = vld [vmem:[%s691 + $0x220] sm:$0xff]
        %v2621 = vld [vmem:[%s691 + $0x228] sm:$0xff]
        %v2622 = vld [vmem:[%s691 + $0x248] sm:$0xff]
        %v2623 = vld [vmem:[%s691 + $0x250] sm:$0xff]
        %v2624 = vld [vmem:[%s691 + $0x270] sm:$0xff]
        %v2625 = vld [vmem:[%s691 + $0x278] sm:$0xff]
        %s2626 = scalar_lea.vmem %s1, 40
        %v2627 = vld [vmem:[%s2626] sm:$0xff]
        %v2629 = vsel %vm277, %v2594, 0
        %v2632 = vsel %vm277, %v2595, 0
        %v2635 = vsel %vm277, %v2596, 0
        %v2638 = vsel %vm277, %v2597, 0
        %v2641 = vsel %vm277, %v2598, 0
        %v2644 = vsel %vm277, %v2599, 0
        %v2647 = vsel %vm277, %v2600, 0
        %v2650 = vsel %vm277, %v2601, 0
        %v2653 = vsel %vm277, %v2602, 0
        %v2656 = vsel %vm277, %v2603, 0
        %v2659 = vsel %vm277, %v2604, 0
        %v2662 = vsel %vm277, %v2605, 0
        %v2665 = vsel %vm277, %v2606, 0
        %v2668 = vsel %vm277, %v2607, 0
        %v2671 = vsel %vm277, %v2608, 0
        %v2674 = vsel %vm277, %v2609, 0
        %v2677 = vsel %vm277, %v2610, 0
        %v2680 = vsel %vm277, %v2611, 0
        %v2683 = vsel %vm277, %v2612, 0
        %v2686 = vsel %vm277, %v2613, 0
        %v2689 = vsel %vm277, %v2614, 0
        %v2692 = vsel %vm277, %v2615, 0
        %v2695 = vsel %vm277, %v2616, 0
        %v2698 = vsel %vm277, %v2617, 0
        %v2701 = vsel %vm277, %v2618, 0
        %v2704 = vsel %vm277, %v2619, 0
        %v2707 = vsel %vm277, %v2620, 0
        %v2710 = vsel %vm277, %v2621, 0
        %v2713 = vsel %vm277, %v2622, 0
        %v2716 = vsel %vm277, %v2623, 0
        %v2719 = vsel %vm277, %v2624, 0
        %v2722 = vsel %vm277, %v2625, 0
        %2724 = vmatprep.subr.mxu0 0.0
        %2725 = vmatpush1.msra.mxu0 0.0
        %2726 = vmatprep.subr.mxu0 0.0
        %2727 = vmatpush1.msra.mxu0 0.0
        %2728 = vmatprep.subr.mxu0 0.0
        %2729 = vmatpush1.msra.mxu0 0.0
        %2730 = vmatprep.subr.mxu0 0.0
        %2731 = vmatpush1.msra.mxu0 0.0
        %2732 = vmatprep.subr.mxu0 0.0
        %2733 = vmatpush1.msra.mxu0 0.0
        %2734 = vmatprep.subr.mxu0 0.0
        %2735 = vmatpush1.msra.mxu0 0.0
        %2736 = vmatprep.subr.mxu0 0.0
        %2737 = vmatpush1.msra.mxu0 0.0
        %2738 = vmatprep.subr.mxu0 0.0
        %2739 = vmatpush1.msra.mxu0 0.0
        %2740 = vmatprep.subr.mxu0 0.0
        %2741 = vmatpush1.msra.mxu0 0.0
        %2742 = vmatprep.subr.mxu0 0.0
        %2743 = vmatpush1.msra.mxu0 0.0
        %2744 = vmatprep.subr.mxu0 0.0
        %2745 = vmatpush1.msra.mxu0 0.0
        %2746 = vmatprep.subr.mxu0 0.0
        %2747 = vmatpush1.msra.mxu0 0.0
        %2748 = vmatprep.subr.mxu0 0.0
        %2749 = vmatpush1.msra.mxu0 0.0
        %2750 = vmatprep.subr.mxu0 0.0
        %2751 = vmatpush1.msra.mxu0 0.0
        %2752 = vmatprep.subr.mxu0 0.0
        %2753 = vmatpush1.msra.mxu0 0.0
        %2754 = vmatprep.subr.mxu0 0.0
        %2755 = vmatpush1.msra.mxu0 %v2627
        %2756 = vmatprep.subr.mxu0 0.0
        %2757 = vmatpush2.msra.mxu0 0.0
        %2758 = vmatprep.subr.mxu0 0.0
        %2759 = vmatpush2.msra.mxu0 0.0
        %2760 = vmatprep.subr.mxu0 0.0
        %2761 = vmatpush2.msra.mxu0 0.0
        %2762 = vmatprep.subr.mxu0 0.0
        %2763 = vmatpush2.msra.mxu0 0.0
        %2764 = vmatprep.subr.mxu0 0.0
        %2765 = vmatpush2.msra.mxu0 0.0
        %2766 = vmatprep.subr.mxu0 0.0
        %2767 = vmatpush2.msra.mxu0 0.0
        %2768 = vmatprep.subr.mxu0 0.0
        %2769 = vmatpush2.msra.mxu0 0.0
        %2770 = vmatprep.subr.mxu0 0.0
        %2771 = vmatpush2.msra.mxu0 0.0
        %2772 = vmatprep.subr.mxu0 0.0
        %2773 = vmatpush2.msra.mxu0 0.0
        %2774 = vmatprep.subr.mxu0 0.0
        %2775 = vmatpush2.msra.mxu0 0.0
        %2776 = vmatprep.subr.mxu0 0.0
        %2777 = vmatpush2.msra.mxu0 0.0
        %2778 = vmatprep.subr.mxu0 0.0
        %2779 = vmatpush2.msra.mxu0 0.0
        %2780 = vmatprep.subr.mxu0 0.0
        %2781 = vmatpush2.msra.mxu0 0.0
        %2782 = vmatprep.subr.mxu0 0.0
        %2783 = vmatpush2.msra.mxu0 0.0
        %2784 = vmatprep.subr.mxu0 0.0
        %2785 = vmatpush2.msra.mxu0 0.0
        %2786 = vmatprep.subr.mxu0 0.0
        %2787 = vmatpush2.msra.mxu0 0.0
        %2788 = vmatprep.mubr.f32.mxu0 0.0
        %2789 = vmatmul.mubr.f32.gmra.mxu0 %v2629
        %v2790 = vpop.f32.mrf.mxu0
        %v2791 = vadd.f32 0.0, %v2790
        %v2792 = vpop.f32.mrf.mxu0
        %2793 = vmatprep.mubr.f32.mxu0 0.0
        %2794 = vmatmul.mubr.f32.gmra.mxu0 %v2632
        %v2795 = vpop.f32.mrf.mxu0
        %v2796 = vadd.f32 0.0, %v2795
        %v2797 = vpop.f32.mrf.mxu0
        %2798 = vmatprep.mubr.f32.mxu0 0.0
        %2799 = vmatmul.mubr.f32.gmra.mxu0 %v2635
        %v2800 = vpop.f32.mrf.mxu0
        %v2801 = vadd.f32 0.0, %v2800
        %v2802 = vpop.f32.mrf.mxu0
        %2803 = vmatprep.mubr.f32.mxu0 0.0
        %2804 = vmatmul.mubr.f32.gmra.mxu0 %v2638
        %v2805 = vpop.f32.mrf.mxu0
        %v2806 = vadd.f32 0.0, %v2805
        %v2807 = vpop.f32.mrf.mxu0
        %2808 = vmatprep.mubr.f32.mxu0 0.0
        %2809 = vmatmul.mubr.f32.gmra.mxu0 %v2641
        %v2810 = vpop.f32.mrf.mxu0
        %v2811 = vadd.f32 0.0, %v2810
        %v2812 = vpop.f32.mrf.mxu0
        %2813 = vmatprep.mubr.f32.mxu0 0.0
        %2814 = vmatmul.mubr.f32.gmra.mxu0 %v2644
        %v2815 = vpop.f32.mrf.mxu0
        %v2816 = vadd.f32 0.0, %v2815
        %v2817 = vpop.f32.mrf.mxu0
        %2818 = vmatprep.mubr.f32.mxu0 0.0
        %2819 = vmatmul.mubr.f32.gmra.mxu0 %v2647
        %v2820 = vpop.f32.mrf.mxu0
        %v2821 = vadd.f32 0.0, %v2820
        %v2822 = vpop.f32.mrf.mxu0
        %2823 = vmatprep.mubr.f32.mxu0 0.0
        %2824 = vmatmul.mubr.f32.gmra.mxu0 %v2650
        %v2825 = vpop.f32.mrf.mxu0
        %v2826 = vadd.f32 0.0, %v2825
        %v2827 = vpop.f32.mrf.mxu0
        %2828 = vmatprep.mubr.f32.mxu0 0.0
        %2829 = vmatmul.mubr.f32.gmra.mxu0 %v2653
        %v2830 = vpop.f32.mrf.mxu0
        %v2831 = vadd.f32 0.0, %v2830
        %v2832 = vpop.f32.mrf.mxu0
        %2833 = vmatprep.mubr.f32.mxu0 0.0
        %2834 = vmatmul.mubr.f32.gmra.mxu0 %v2656
        %v2835 = vpop.f32.mrf.mxu0
        %v2836 = vadd.f32 0.0, %v2835
        %v2837 = vpop.f32.mrf.mxu0
        %2838 = vmatprep.mubr.f32.mxu0 0.0
        %2839 = vmatmul.mubr.f32.gmra.mxu0 %v2659
        %v2840 = vpop.f32.mrf.mxu0
        %v2841 = vadd.f32 0.0, %v2840
        %v2842 = vpop.f32.mrf.mxu0
        %2843 = vmatprep.mubr.f32.mxu0 0.0
        %2844 = vmatmul.mubr.f32.gmra.mxu0 %v2662
        %v2845 = vpop.f32.mrf.mxu0
        %v2846 = vadd.f32 0.0, %v2845
        %v2847 = vpop.f32.mrf.mxu0
        %2848 = vmatprep.mubr.f32.mxu0 0.0
        %2849 = vmatmul.mubr.f32.gmra.mxu0 %v2665
        %v2850 = vpop.f32.mrf.mxu0
        %v2851 = vadd.f32 0.0, %v2850
        %v2852 = vpop.f32.mrf.mxu0
        %2853 = vmatprep.mubr.f32.mxu0 0.0
        %2854 = vmatmul.mubr.f32.gmra.mxu0 %v2668
        %v2855 = vpop.f32.mrf.mxu0
        %v2856 = vadd.f32 0.0, %v2855
        %v2857 = vpop.f32.mrf.mxu0
        %2858 = vmatprep.mubr.f32.mxu0 0.0
        %2859 = vmatmul.mubr.f32.gmra.mxu0 %v2671
        %v2860 = vpop.f32.mrf.mxu0
        %v2861 = vadd.f32 0.0, %v2860
        %v2862 = vpop.f32.mrf.mxu0
        %2863 = vmatprep.mubr.f32.mxu0 0.0
        %2864 = vmatmul.mubr.f32.gmra.mxu0 %v2674
        %v2865 = vpop.f32.mrf.mxu0
        %v2866 = vadd.f32 0.0, %v2865
        %v2867 = vpop.f32.mrf.mxu0
        %2868 = vmatprep.mubr.f32.mxu0 0.0
        %2869 = vmatmul.mubr.f32.gmra.mxu0 %v2677
        %v2870 = vpop.f32.mrf.mxu0
        %v2871 = vadd.f32 0.0, %v2870
        %v2872 = vpop.f32.mrf.mxu0
        %2873 = vmatprep.mubr.f32.mxu0 0.0
        %2874 = vmatmul.mubr.f32.gmra.mxu0 %v2680
        %v2875 = vpop.f32.mrf.mxu0
        %v2876 = vadd.f32 0.0, %v2875
        %v2877 = vpop.f32.mrf.mxu0
        %2878 = vmatprep.mubr.f32.mxu0 0.0
        %2879 = vmatmul.mubr.f32.gmra.mxu0 %v2683
        %v2880 = vpop.f32.mrf.mxu0
        %v2881 = vadd.f32 0.0, %v2880
        %v2882 = vpop.f32.mrf.mxu0
        %2883 = vmatprep.mubr.f32.mxu0 0.0
        %2884 = vmatmul.mubr.f32.gmra.mxu0 %v2686
        %v2885 = vpop.f32.mrf.mxu0
        %v2886 = vadd.f32 0.0, %v2885
        %v2887 = vpop.f32.mrf.mxu0
        %2888 = vmatprep.mubr.f32.mxu0 0.0
        %2889 = vmatmul.mubr.f32.gmra.mxu0 %v2689
        %v2890 = vpop.f32.mrf.mxu0
        %v2891 = vadd.f32 0.0, %v2890
        %v2892 = vpop.f32.mrf.mxu0
        %2893 = vmatprep.mubr.f32.mxu0 0.0
        %2894 = vmatmul.mubr.f32.gmra.mxu0 %v2692
        %v2895 = vpop.f32.mrf.mxu0
        %v2896 = vadd.f32 0.0, %v2895
        %v2897 = vpop.f32.mrf.mxu0
        %2898 = vmatprep.mubr.f32.mxu0 0.0
        %2899 = vmatmul.mubr.f32.gmra.mxu0 %v2695
        %v2900 = vpop.f32.mrf.mxu0
        %v2901 = vadd.f32 0.0, %v2900
        %v2902 = vpop.f32.mrf.mxu0
        %2903 = vmatprep.mubr.f32.mxu0 0.0
        %2904 = vmatmul.mubr.f32.gmra.mxu0 %v2698
        %v2905 = vpop.f32.mrf.mxu0
        %v2906 = vadd.f32 0.0, %v2905
        %v2907 = vpop.f32.mrf.mxu0
        %2908 = vmatprep.mubr.f32.mxu0 0.0
        %2909 = vmatmul.mubr.f32.gmra.mxu0 %v2701
        %v2910 = vpop.f32.mrf.mxu0
        %v2911 = vadd.f32 0.0, %v2910
        %v2912 = vpop.f32.mrf.mxu0
        %2913 = vmatprep.mubr.f32.mxu0 0.0
        %2914 = vmatmul.mubr.f32.gmra.mxu0 %v2704
        %v2915 = vpop.f32.mrf.mxu0
        %v2916 = vadd.f32 0.0, %v2915
        %v2917 = vpop.f32.mrf.mxu0
        %2918 = vmatprep.mubr.f32.mxu0 0.0
        %2919 = vmatmul.mubr.f32.gmra.mxu0 %v2707
        %v2920 = vpop.f32.mrf.mxu0
        %v2921 = vadd.f32 0.0, %v2920
        %v2922 = vpop.f32.mrf.mxu0
        %2923 = vmatprep.mubr.f32.mxu0 0.0
        %2924 = vmatmul.mubr.f32.gmra.mxu0 %v2710
        %v2925 = vpop.f32.mrf.mxu0
        %v2926 = vadd.f32 0.0, %v2925
        %v2927 = vpop.f32.mrf.mxu0
        %2928 = vmatprep.mubr.f32.mxu0 0.0
        %2929 = vmatmul.mubr.f32.gmra.mxu0 %v2713
        %v2930 = vpop.f32.mrf.mxu0
        %v2931 = vadd.f32 0.0, %v2930
        %v2932 = vpop.f32.mrf.mxu0
        %2933 = vmatprep.mubr.f32.mxu0 0.0
        %2934 = vmatmul.mubr.f32.gmra.mxu0 %v2716
        %v2935 = vpop.f32.mrf.mxu0
        %v2936 = vadd.f32 0.0, %v2935
        %v2937 = vpop.f32.mrf.mxu0
        %2938 = vmatprep.mubr.f32.mxu0 0.0
        %2939 = vmatmul.mubr.f32.gmra.mxu0 %v2719
        %v2940 = vpop.f32.mrf.mxu0
        %v2941 = vadd.f32 0.0, %v2940
        %v2942 = vpop.f32.mrf.mxu0
        %2943 = vmatprep.mubr.f32.mxu0 0.0
        %2944 = vmatmul.mubr.f32.gmra.mxu0 %v2722
        %v2945 = vpop.f32.mrf.mxu0
        %v2946 = vadd.f32 0.0, %v2945
        %v2947 = vpop.f32.mrf.mxu0
        %2948 = vdwg.mxu0
        %v2949 = vadd.f32 %v2562, %v2791
        %v2950 = vadd.f32 %v2563, %v2796
        %v2951 = vadd.f32 %v2564, %v2801
        %v2952 = vadd.f32 %v2565, %v2806
        %v2953 = vadd.f32 %v2566, %v2811
        %v2954 = vadd.f32 %v2567, %v2816
        %v2955 = vadd.f32 %v2568, %v2821
        %v2956 = vadd.f32 %v2569, %v2826
        %v2957 = vadd.f32 %v2570, %v2831
        %v2958 = vadd.f32 %v2571, %v2836
        %v2959 = vadd.f32 %v2572, %v2841
        %v2960 = vadd.f32 %v2573, %v2846
        %v2961 = vadd.f32 %v2574, %v2851
        %v2962 = vadd.f32 %v2575, %v2856
        %v2963 = vadd.f32 %v2576, %v2861
        %v2964 = vadd.f32 %v2577, %v2866
        %v2965 = vadd.f32 %v2578, %v2871
        %v2966 = vadd.f32 %v2579, %v2876
        %v2967 = vadd.f32 %v2580, %v2881
        %v2968 = vadd.f32 %v2581, %v2886
        %v2969 = vadd.f32 %v2582, %v2891
        %v2970 = vadd.f32 %v2583, %v2896
        %v2971 = vadd.f32 %v2584, %v2901
        %v2972 = vadd.f32 %v2585, %v2906
        %v2973 = vadd.f32 %v2586, %v2911
        %v2974 = vadd.f32 %v2587, %v2916
        %v2975 = vadd.f32 %v2588, %v2921
        %v2976 = vadd.f32 %v2589, %v2926
        %v2977 = vadd.f32 %v2590, %v2931
        %v2978 = vadd.f32 %v2591, %v2936
        %v2979 = vadd.f32 %v2592, %v2941
        %v2980 = vadd.f32 %v2593, %v2946
        %s2981 = scalar_lea.vmem [#allocation2], 960
        %v2982 = vld [vmem:[%s2981] sm:$0xff]
        %v2983 = vld [vmem:[%s2981 + $0x8] sm:$0xff]
        %v2984 = vld [vmem:[%s2981 + $0x28] sm:$0xff]
        %v2985 = vld [vmem:[%s2981 + $0x30] sm:$0xff]
        %v2986 = vld [vmem:[%s2981 + $0x50] sm:$0xff]
        %v2987 = vld [vmem:[%s2981 + $0x58] sm:$0xff]
        %v2988 = vld [vmem:[%s2981 + $0x78] sm:$0xff]
        %v2989 = vld [vmem:[%s2981 + $0x80] sm:$0xff]
        %v2990 = vld [vmem:[%s2981 + $0xa0] sm:$0xff]
        %v2991 = vld [vmem:[%s2981 + $0xa8] sm:$0xff]
        %v2992 = vld [vmem:[%s2981 + $0xc8] sm:$0xff]
        %v2993 = vld [vmem:[%s2981 + $0xd0] sm:$0xff]
        %v2994 = vld [vmem:[%s2981 + $0xf0] sm:$0xff]
        %v2995 = vld [vmem:[%s2981 + $0xf8] sm:$0xff]
        %v2996 = vld [vmem:[%s2981 + $0x118] sm:$0xff]
        %v2997 = vld [vmem:[%s2981 + $0x120] sm:$0xff]
        %v2998 = vld [vmem:[%s2981 + $0x140] sm:$0xff]
        %v2999 = vld [vmem:[%s2981 + $0x148] sm:$0xff]
        %v3000 = vld [vmem:[%s2981 + $0x168] sm:$0xff]
        %v3001 = vld [vmem:[%s2981 + $0x170] sm:$0xff]
        %v3002 = vld [vmem:[%s2981 + $0x190] sm:$0xff]
        %v3003 = vld [vmem:[%s2981 + $0x198] sm:$0xff]
        %v3004 = vld [vmem:[%s2981 + $0x1b8] sm:$0xff]
        %v3005 = vld [vmem:[%s2981 + $0x1c0] sm:$0xff]
        %v3006 = vld [vmem:[%s2981 + $0x1e0] sm:$0xff]
        %v3007 = vld [vmem:[%s2981 + $0x1e8] sm:$0xff]
        %v3008 = vld [vmem:[%s2981 + $0x208] sm:$0xff]
        %v3009 = vld [vmem:[%s2981 + $0x210] sm:$0xff]
        %v3010 = vld [vmem:[%s2981 + $0x230] sm:$0xff]
        %v3011 = vld [vmem:[%s2981 + $0x238] sm:$0xff]
        %v3012 = vld [vmem:[%s2981 + $0x258] sm:$0xff]
        %v3013 = vld [vmem:[%s2981 + $0x260] sm:$0xff]
        %s3014 = scalar_lea.vmem %s1, 48
        %v3015 = vld [vmem:[%s3014] sm:$0xff]
        %v3017 = vsel %vm277, %v2982, 0
        %v3020 = vsel %vm277, %v2983, 0
        %v3023 = vsel %vm277, %v2984, 0
        %v3026 = vsel %vm277, %v2985, 0
        %v3029 = vsel %vm277, %v2986, 0
        %v3032 = vsel %vm277, %v2987, 0
        %v3035 = vsel %vm277, %v2988, 0
        %v3038 = vsel %vm277, %v2989, 0
        %v3041 = vsel %vm277, %v2990, 0
        %v3044 = vsel %vm277, %v2991, 0
        %v3047 = vsel %vm277, %v2992, 0
        %v3050 = vsel %vm277, %v2993, 0
        %v3053 = vsel %vm277, %v2994, 0
        %v3056 = vsel %vm277, %v2995, 0
        %v3059 = vsel %vm277, %v2996, 0
        %v3062 = vsel %vm277, %v2997, 0
        %v3065 = vsel %vm277, %v2998, 0
        %v3068 = vsel %vm277, %v2999, 0
        %v3071 = vsel %vm277, %v3000, 0
        %v3074 = vsel %vm277, %v3001, 0
        %v3077 = vsel %vm277, %v3002, 0
        %v3080 = vsel %vm277, %v3003, 0
        %v3083 = vsel %vm277, %v3004, 0
        %v3086 = vsel %vm277, %v3005, 0
        %v3089 = vsel %vm277, %v3006, 0
        %v3092 = vsel %vm277, %v3007, 0
        %v3095 = vsel %vm277, %v3008, 0
        %v3098 = vsel %vm277, %v3009, 0
        %v3101 = vsel %vm277, %v3010, 0
        %v3104 = vsel %vm277, %v3011, 0
        %v3107 = vsel %vm277, %v3012, 0
        %v3110 = vsel %vm277, %v3013, 0
        %3112 = vmatprep.subr.mxu0 0.0
        %3113 = vmatpush1.msra.mxu0 0.0
        %3114 = vmatprep.subr.mxu0 0.0
        %3115 = vmatpush1.msra.mxu0 0.0
        %3116 = vmatprep.subr.mxu0 0.0
        %3117 = vmatpush1.msra.mxu0 0.0
        %3118 = vmatprep.subr.mxu0 0.0
        %3119 = vmatpush1.msra.mxu0 0.0
        %3120 = vmatprep.subr.mxu0 0.0
        %3121 = vmatpush1.msra.mxu0 0.0
        %3122 = vmatprep.subr.mxu0 0.0
        %3123 = vmatpush1.msra.mxu0 0.0
        %3124 = vmatprep.subr.mxu0 0.0
        %3125 = vmatpush1.msra.mxu0 0.0
        %3126 = vmatprep.subr.mxu0 0.0
        %3127 = vmatpush1.msra.mxu0 0.0
        %3128 = vmatprep.subr.mxu0 0.0
        %3129 = vmatpush1.msra.mxu0 0.0
        %3130 = vmatprep.subr.mxu0 0.0
        %3131 = vmatpush1.msra.mxu0 0.0
        %3132 = vmatprep.subr.mxu0 0.0
        %3133 = vmatpush1.msra.mxu0 0.0
        %3134 = vmatprep.subr.mxu0 0.0
        %3135 = vmatpush1.msra.mxu0 0.0
        %3136 = vmatprep.subr.mxu0 0.0
        %3137 = vmatpush1.msra.mxu0 0.0
        %3138 = vmatprep.subr.mxu0 0.0
        %3139 = vmatpush1.msra.mxu0 0.0
        %3140 = vmatprep.subr.mxu0 0.0
        %3141 = vmatpush1.msra.mxu0 0.0
        %3142 = vmatprep.subr.mxu0 0.0
        %3143 = vmatpush1.msra.mxu0 %v3015
        %3144 = vmatprep.subr.mxu0 0.0
        %3145 = vmatpush2.msra.mxu0 0.0
        %3146 = vmatprep.subr.mxu0 0.0
        %3147 = vmatpush2.msra.mxu0 0.0
        %3148 = vmatprep.subr.mxu0 0.0
        %3149 = vmatpush2.msra.mxu0 0.0
        %3150 = vmatprep.subr.mxu0 0.0
        %3151 = vmatpush2.msra.mxu0 0.0
        %3152 = vmatprep.subr.mxu0 0.0
        %3153 = vmatpush2.msra.mxu0 0.0
        %3154 = vmatprep.subr.mxu0 0.0
        %3155 = vmatpush2.msra.mxu0 0.0
        %3156 = vmatprep.subr.mxu0 0.0
        %3157 = vmatpush2.msra.mxu0 0.0
        %3158 = vmatprep.subr.mxu0 0.0
        %3159 = vmatpush2.msra.mxu0 0.0
        %3160 = vmatprep.subr.mxu0 0.0
        %3161 = vmatpush2.msra.mxu0 0.0
        %3162 = vmatprep.subr.mxu0 0.0
        %3163 = vmatpush2.msra.mxu0 0.0
        %3164 = vmatprep.subr.mxu0 0.0
        %3165 = vmatpush2.msra.mxu0 0.0
        %3166 = vmatprep.subr.mxu0 0.0
        %3167 = vmatpush2.msra.mxu0 0.0
        %3168 = vmatprep.subr.mxu0 0.0
        %3169 = vmatpush2.msra.mxu0 0.0
        %3170 = vmatprep.subr.mxu0 0.0
        %3171 = vmatpush2.msra.mxu0 0.0
        %3172 = vmatprep.subr.mxu0 0.0
        %3173 = vmatpush2.msra.mxu0 0.0
        %3174 = vmatprep.subr.mxu0 0.0
        %3175 = vmatpush2.msra.mxu0 0.0
        %3176 = vmatprep.mubr.f32.mxu0 0.0
        %3177 = vmatmul.mubr.f32.gmra.mxu0 %v3017
        %v3178 = vpop.f32.mrf.mxu0
        %v3179 = vadd.f32 0.0, %v3178
        %v3180 = vpop.f32.mrf.mxu0
        %3181 = vmatprep.mubr.f32.mxu0 0.0
        %3182 = vmatmul.mubr.f32.gmra.mxu0 %v3020
        %v3183 = vpop.f32.mrf.mxu0
        %v3184 = vadd.f32 0.0, %v3183
        %v3185 = vpop.f32.mrf.mxu0
        %3186 = vmatprep.mubr.f32.mxu0 0.0
        %3187 = vmatmul.mubr.f32.gmra.mxu0 %v3023
        %v3188 = vpop.f32.mrf.mxu0
        %v3189 = vadd.f32 0.0, %v3188
        %v3190 = vpop.f32.mrf.mxu0
        %3191 = vmatprep.mubr.f32.mxu0 0.0
        %3192 = vmatmul.mubr.f32.gmra.mxu0 %v3026
        %v3193 = vpop.f32.mrf.mxu0
        %v3194 = vadd.f32 0.0, %v3193
        %v3195 = vpop.f32.mrf.mxu0
        %3196 = vmatprep.mubr.f32.mxu0 0.0
        %3197 = vmatmul.mubr.f32.gmra.mxu0 %v3029
        %v3198 = vpop.f32.mrf.mxu0
        %v3199 = vadd.f32 0.0, %v3198
        %v3200 = vpop.f32.mrf.mxu0
        %3201 = vmatprep.mubr.f32.mxu0 0.0
        %3202 = vmatmul.mubr.f32.gmra.mxu0 %v3032
        %v3203 = vpop.f32.mrf.mxu0
        %v3204 = vadd.f32 0.0, %v3203
        %v3205 = vpop.f32.mrf.mxu0
        %3206 = vmatprep.mubr.f32.mxu0 0.0
        %3207 = vmatmul.mubr.f32.gmra.mxu0 %v3035
        %v3208 = vpop.f32.mrf.mxu0
        %v3209 = vadd.f32 0.0, %v3208
        %v3210 = vpop.f32.mrf.mxu0
        %3211 = vmatprep.mubr.f32.mxu0 0.0
        %3212 = vmatmul.mubr.f32.gmra.mxu0 %v3038
        %v3213 = vpop.f32.mrf.mxu0
        %v3214 = vadd.f32 0.0, %v3213
        %v3215 = vpop.f32.mrf.mxu0
        %3216 = vmatprep.mubr.f32.mxu0 0.0
        %3217 = vmatmul.mubr.f32.gmra.mxu0 %v3041
        %v3218 = vpop.f32.mrf.mxu0
        %v3219 = vadd.f32 0.0, %v3218
        %v3220 = vpop.f32.mrf.mxu0
        %3221 = vmatprep.mubr.f32.mxu0 0.0
        %3222 = vmatmul.mubr.f32.gmra.mxu0 %v3044
        %v3223 = vpop.f32.mrf.mxu0
        %v3224 = vadd.f32 0.0, %v3223
        %v3225 = vpop.f32.mrf.mxu0
        %3226 = vmatprep.mubr.f32.mxu0 0.0
        %3227 = vmatmul.mubr.f32.gmra.mxu0 %v3047
        %v3228 = vpop.f32.mrf.mxu0
        %v3229 = vadd.f32 0.0, %v3228
        %v3230 = vpop.f32.mrf.mxu0
        %3231 = vmatprep.mubr.f32.mxu0 0.0
        %3232 = vmatmul.mubr.f32.gmra.mxu0 %v3050
        %v3233 = vpop.f32.mrf.mxu0
        %v3234 = vadd.f32 0.0, %v3233
        %v3235 = vpop.f32.mrf.mxu0
        %3236 = vmatprep.mubr.f32.mxu0 0.0
        %3237 = vmatmul.mubr.f32.gmra.mxu0 %v3053
        %v3238 = vpop.f32.mrf.mxu0
        %v3239 = vadd.f32 0.0, %v3238
        %v3240 = vpop.f32.mrf.mxu0
        %3241 = vmatprep.mubr.f32.mxu0 0.0
        %3242 = vmatmul.mubr.f32.gmra.mxu0 %v3056
        %v3243 = vpop.f32.mrf.mxu0
        %v3244 = vadd.f32 0.0, %v3243
        %v3245 = vpop.f32.mrf.mxu0
        %3246 = vmatprep.mubr.f32.mxu0 0.0
        %3247 = vmatmul.mubr.f32.gmra.mxu0 %v3059
        %v3248 = vpop.f32.mrf.mxu0
        %v3249 = vadd.f32 0.0, %v3248
        %v3250 = vpop.f32.mrf.mxu0
        %3251 = vmatprep.mubr.f32.mxu0 0.0
        %3252 = vmatmul.mubr.f32.gmra.mxu0 %v3062
        %v3253 = vpop.f32.mrf.mxu0
        %v3254 = vadd.f32 0.0, %v3253
        %v3255 = vpop.f32.mrf.mxu0
        %3256 = vmatprep.mubr.f32.mxu0 0.0
        %3257 = vmatmul.mubr.f32.gmra.mxu0 %v3065
        %v3258 = vpop.f32.mrf.mxu0
        %v3259 = vadd.f32 0.0, %v3258
        %v3260 = vpop.f32.mrf.mxu0
        %3261 = vmatprep.mubr.f32.mxu0 0.0
        %3262 = vmatmul.mubr.f32.gmra.mxu0 %v3068
        %v3263 = vpop.f32.mrf.mxu0
        %v3264 = vadd.f32 0.0, %v3263
        %v3265 = vpop.f32.mrf.mxu0
        %3266 = vmatprep.mubr.f32.mxu0 0.0
        %3267 = vmatmul.mubr.f32.gmra.mxu0 %v3071
        %v3268 = vpop.f32.mrf.mxu0
        %v3269 = vadd.f32 0.0, %v3268
        %v3270 = vpop.f32.mrf.mxu0
        %3271 = vmatprep.mubr.f32.mxu0 0.0
        %3272 = vmatmul.mubr.f32.gmra.mxu0 %v3074
        %v3273 = vpop.f32.mrf.mxu0
        %v3274 = vadd.f32 0.0, %v3273
        %v3275 = vpop.f32.mrf.mxu0
        %3276 = vmatprep.mubr.f32.mxu0 0.0
        %3277 = vmatmul.mubr.f32.gmra.mxu0 %v3077
        %v3278 = vpop.f32.mrf.mxu0
        %v3279 = vadd.f32 0.0, %v3278
        %v3280 = vpop.f32.mrf.mxu0
        %3281 = vmatprep.mubr.f32.mxu0 0.0
        %3282 = vmatmul.mubr.f32.gmra.mxu0 %v3080
        %v3283 = vpop.f32.mrf.mxu0
        %v3284 = vadd.f32 0.0, %v3283
        %v3285 = vpop.f32.mrf.mxu0
        %3286 = vmatprep.mubr.f32.mxu0 0.0
        %3287 = vmatmul.mubr.f32.gmra.mxu0 %v3083
        %v3288 = vpop.f32.mrf.mxu0
        %v3289 = vadd.f32 0.0, %v3288
        %v3290 = vpop.f32.mrf.mxu0
        %3291 = vmatprep.mubr.f32.mxu0 0.0
        %3292 = vmatmul.mubr.f32.gmra.mxu0 %v3086
        %v3293 = vpop.f32.mrf.mxu0
        %v3294 = vadd.f32 0.0, %v3293
        %v3295 = vpop.f32.mrf.mxu0
        %3296 = vmatprep.mubr.f32.mxu0 0.0
        %3297 = vmatmul.mubr.f32.gmra.mxu0 %v3089
        %v3298 = vpop.f32.mrf.mxu0
        %v3299 = vadd.f32 0.0, %v3298
        %v3300 = vpop.f32.mrf.mxu0
        %3301 = vmatprep.mubr.f32.mxu0 0.0
        %3302 = vmatmul.mubr.f32.gmra.mxu0 %v3092
        %v3303 = vpop.f32.mrf.mxu0
        %v3304 = vadd.f32 0.0, %v3303
        %v3305 = vpop.f32.mrf.mxu0
        %3306 = vmatprep.mubr.f32.mxu0 0.0
        %3307 = vmatmul.mubr.f32.gmra.mxu0 %v3095
        %v3308 = vpop.f32.mrf.mxu0
        %v3309 = vadd.f32 0.0, %v3308
        %v3310 = vpop.f32.mrf.mxu0
        %3311 = vmatprep.mubr.f32.mxu0 0.0
        %3312 = vmatmul.mubr.f32.gmra.mxu0 %v3098
        %v3313 = vpop.f32.mrf.mxu0
        %v3314 = vadd.f32 0.0, %v3313
        %v3315 = vpop.f32.mrf.mxu0
        %3316 = vmatprep.mubr.f32.mxu0 0.0
        %3317 = vmatmul.mubr.f32.gmra.mxu0 %v3101
        %v3318 = vpop.f32.mrf.mxu0
        %v3319 = vadd.f32 0.0, %v3318
        %v3320 = vpop.f32.mrf.mxu0
        %3321 = vmatprep.mubr.f32.mxu0 0.0
        %3322 = vmatmul.mubr.f32.gmra.mxu0 %v3104
        %v3323 = vpop.f32.mrf.mxu0
        %v3324 = vadd.f32 0.0, %v3323
        %v3325 = vpop.f32.mrf.mxu0
        %3326 = vmatprep.mubr.f32.mxu0 0.0
        %3327 = vmatmul.mubr.f32.gmra.mxu0 %v3107
        %v3328 = vpop.f32.mrf.mxu0
        %v3329 = vadd.f32 0.0, %v3328
        %v3330 = vpop.f32.mrf.mxu0
        %3331 = vmatprep.mubr.f32.mxu0 0.0
        %3332 = vmatmul.mubr.f32.gmra.mxu0 %v3110
        %v3333 = vpop.f32.mrf.mxu0
        %v3334 = vadd.f32 0.0, %v3333
        %v3335 = vpop.f32.mrf.mxu0
        %3336 = vdwg.mxu0
        %v3337 = vadd.f32 %v2949, %v3179
        %v3338 = vadd.f32 %v2950, %v3184
        %v3339 = vadd.f32 %v2951, %v3189
        %v3340 = vadd.f32 %v2952, %v3194
        %v3341 = vadd.f32 %v2953, %v3199
        %v3342 = vadd.f32 %v2954, %v3204
        %v3343 = vadd.f32 %v2955, %v3209
        %v3344 = vadd.f32 %v2956, %v3214
        %v3345 = vadd.f32 %v2957, %v3219
        %v3346 = vadd.f32 %v2958, %v3224
        %v3347 = vadd.f32 %v2959, %v3229
        %v3348 = vadd.f32 %v2960, %v3234
        %v3349 = vadd.f32 %v2961, %v3239
        %v3350 = vadd.f32 %v2962, %v3244
        %v3351 = vadd.f32 %v2963, %v3249
        %v3352 = vadd.f32 %v2964, %v3254
        %v3353 = vadd.f32 %v2965, %v3259
        %v3354 = vadd.f32 %v2966, %v3264
        %v3355 = vadd.f32 %v2967, %v3269
        %v3356 = vadd.f32 %v2968, %v3274
        %v3357 = vadd.f32 %v2969, %v3279
        %v3358 = vadd.f32 %v2970, %v3284
        %v3359 = vadd.f32 %v2971, %v3289
        %v3360 = vadd.f32 %v2972, %v3294
        %v3361 = vadd.f32 %v2973, %v3299
        %v3362 = vadd.f32 %v2974, %v3304
        %v3363 = vadd.f32 %v2975, %v3309
        %v3364 = vadd.f32 %v2976, %v3314
        %v3365 = vadd.f32 %v2977, %v3319
        %v3366 = vadd.f32 %v2978, %v3324
        %v3367 = vadd.f32 %v2979, %v3329
        %v3368 = vadd.f32 %v2980, %v3334
        %v3369 = vld [vmem:[%s2981 + $0xc] sm:$0xff]
        %v3370 = vld [vmem:[%s2981 + $0x14] sm:$0xff]
        %v3371 = vld [vmem:[%s2981 + $0x34] sm:$0xff]
        %v3372 = vld [vmem:[%s2981 + $0x3c] sm:$0xff]
        %v3373 = vld [vmem:[%s2981 + $0x5c] sm:$0xff]
        %v3374 = vld [vmem:[%s2981 + $0x64] sm:$0xff]
        %v3375 = vld [vmem:[%s2981 + $0x84] sm:$0xff]
        %v3376 = vld [vmem:[%s2981 + $0x8c] sm:$0xff]
        %v3377 = vld [vmem:[%s2981 + $0xac] sm:$0xff]
        %v3378 = vld [vmem:[%s2981 + $0xb4] sm:$0xff]
        %v3379 = vld [vmem:[%s2981 + $0xd4] sm:$0xff]
        %v3380 = vld [vmem:[%s2981 + $0xdc] sm:$0xff]
        %v3381 = vld [vmem:[%s2981 + $0xfc] sm:$0xff]
        %v3382 = vld [vmem:[%s2981 + $0x104] sm:$0xff]
        %v3383 = vld [vmem:[%s2981 + $0x124] sm:$0xff]
        %v3384 = vld [vmem:[%s2981 + $0x12c] sm:$0xff]
        %v3385 = vld [vmem:[%s2981 + $0x14c] sm:$0xff]
        %v3386 = vld [vmem:[%s2981 + $0x154] sm:$0xff]
        %v3387 = vld [vmem:[%s2981 + $0x174] sm:$0xff]
        %v3388 = vld [vmem:[%s2981 + $0x17c] sm:$0xff]
        %v3389 = vld [vmem:[%s2981 + $0x19c] sm:$0xff]
        %v3390 = vld [vmem:[%s2981 + $0x1a4] sm:$0xff]
        %v3391 = vld [vmem:[%s2981 + $0x1c4] sm:$0xff]
        %v3392 = vld [vmem:[%s2981 + $0x1cc] sm:$0xff]
        %v3393 = vld [vmem:[%s2981 + $0x1ec] sm:$0xff]
        %v3394 = vld [vmem:[%s2981 + $0x1f4] sm:$0xff]
        %v3395 = vld [vmem:[%s2981 + $0x214] sm:$0xff]
        %v3396 = vld [vmem:[%s2981 + $0x21c] sm:$0xff]
        %v3397 = vld [vmem:[%s2981 + $0x23c] sm:$0xff]
        %v3398 = vld [vmem:[%s2981 + $0x244] sm:$0xff]
        %v3399 = vld [vmem:[%s2981 + $0x264] sm:$0xff]
        %v3400 = vld [vmem:[%s2981 + $0x26c] sm:$0xff]
        %s3401 = scalar_lea.vmem %s1, 56
        %v3402 = vld [vmem:[%s3401] sm:$0xff]
        %v3404 = vsel %vm277, %v3369, 0
        %v3407 = vsel %vm277, %v3370, 0
        %v3410 = vsel %vm277, %v3371, 0
        %v3413 = vsel %vm277, %v3372, 0
        %v3416 = vsel %vm277, %v3373, 0
        %v3419 = vsel %vm277, %v3374, 0
        %v3422 = vsel %vm277, %v3375, 0
        %v3425 = vsel %vm277, %v3376, 0
        %v3428 = vsel %vm277, %v3377, 0
        %v3431 = vsel %vm277, %v3378, 0
        %v3434 = vsel %vm277, %v3379, 0
        %v3437 = vsel %vm277, %v3380, 0
        %v3440 = vsel %vm277, %v3381, 0
        %v3443 = vsel %vm277, %v3382, 0
        %v3446 = vsel %vm277, %v3383, 0
        %v3449 = vsel %vm277, %v3384, 0
        %v3452 = vsel %vm277, %v3385, 0
        %v3455 = vsel %vm277, %v3386, 0
        %v3458 = vsel %vm277, %v3387, 0
        %v3461 = vsel %vm277, %v3388, 0
        %v3464 = vsel %vm277, %v3389, 0
        %v3467 = vsel %vm277, %v3390, 0
        %v3470 = vsel %vm277, %v3391, 0
        %v3473 = vsel %vm277, %v3392, 0
        %v3476 = vsel %vm277, %v3393, 0
        %v3479 = vsel %vm277, %v3394, 0
        %v3482 = vsel %vm277, %v3395, 0
        %v3485 = vsel %vm277, %v3396, 0
        %v3488 = vsel %vm277, %v3397, 0
        %v3491 = vsel %vm277, %v3398, 0
        %v3494 = vsel %vm277, %v3399, 0
        %v3497 = vsel %vm277, %v3400, 0
        %3499 = vmatprep.subr.mxu0 0.0
        %3500 = vmatpush1.msra.mxu0 0.0
        %3501 = vmatprep.subr.mxu0 0.0
        %3502 = vmatpush1.msra.mxu0 0.0
        %3503 = vmatprep.subr.mxu0 0.0
        %3504 = vmatpush1.msra.mxu0 0.0
        %3505 = vmatprep.subr.mxu0 0.0
        %3506 = vmatpush1.msra.mxu0 0.0
        %3507 = vmatprep.subr.mxu0 0.0
        %3508 = vmatpush1.msra.mxu0 0.0
        %3509 = vmatprep.subr.mxu0 0.0
        %3510 = vmatpush1.msra.mxu0 0.0
        %3511 = vmatprep.subr.mxu0 0.0
        %3512 = vmatpush1.msra.mxu0 0.0
        %3513 = vmatprep.subr.mxu0 0.0
        %3514 = vmatpush1.msra.mxu0 0.0
        %3515 = vmatprep.subr.mxu0 0.0
        %3516 = vmatpush1.msra.mxu0 0.0
        %3517 = vmatprep.subr.mxu0 0.0
        %3518 = vmatpush1.msra.mxu0 0.0
        %3519 = vmatprep.subr.mxu0 0.0
        %3520 = vmatpush1.msra.mxu0 0.0
        %3521 = vmatprep.subr.mxu0 0.0
        %3522 = vmatpush1.msra.mxu0 0.0
        %3523 = vmatprep.subr.mxu0 0.0
        %3524 = vmatpush1.msra.mxu0 0.0
        %3525 = vmatprep.subr.mxu0 0.0
        %3526 = vmatpush1.msra.mxu0 0.0
        %3527 = vmatprep.subr.mxu0 0.0
        %3528 = vmatpush1.msra.mxu0 0.0
        %3529 = vmatprep.subr.mxu0 0.0
        %3530 = vmatpush1.msra.mxu0 %v3402
        %3531 = vmatprep.subr.mxu0 0.0
        %3532 = vmatpush2.msra.mxu0 0.0
        %3533 = vmatprep.subr.mxu0 0.0
        %3534 = vmatpush2.msra.mxu0 0.0
        %3535 = vmatprep.subr.mxu0 0.0
        %3536 = vmatpush2.msra.mxu0 0.0
        %3537 = vmatprep.subr.mxu0 0.0
        %3538 = vmatpush2.msra.mxu0 0.0
        %3539 = vmatprep.subr.mxu0 0.0
        %3540 = vmatpush2.msra.mxu0 0.0
        %3541 = vmatprep.subr.mxu0 0.0
        %3542 = vmatpush2.msra.mxu0 0.0
        %3543 = vmatprep.subr.mxu0 0.0
        %3544 = vmatpush2.msra.mxu0 0.0
        %3545 = vmatprep.subr.mxu0 0.0
        %3546 = vmatpush2.msra.mxu0 0.0
        %3547 = vmatprep.subr.mxu0 0.0
        %3548 = vmatpush2.msra.mxu0 0.0
        %3549 = vmatprep.subr.mxu0 0.0
        %3550 = vmatpush2.msra.mxu0 0.0
        %3551 = vmatprep.subr.mxu0 0.0
        %3552 = vmatpush2.msra.mxu0 0.0
        %3553 = vmatprep.subr.mxu0 0.0
        %3554 = vmatpush2.msra.mxu0 0.0
        %3555 = vmatprep.subr.mxu0 0.0
        %3556 = vmatpush2.msra.mxu0 0.0
        %3557 = vmatprep.subr.mxu0 0.0
        %3558 = vmatpush2.msra.mxu0 0.0
        %3559 = vmatprep.subr.mxu0 0.0
        %3560 = vmatpush2.msra.mxu0 0.0
        %3561 = vmatprep.subr.mxu0 0.0
        %3562 = vmatpush2.msra.mxu0 0.0
        %3563 = vmatprep.mubr.f32.mxu0 0.0
        %3564 = vmatmul.mubr.f32.gmra.mxu0 %v3404
        %v3565 = vpop.f32.mrf.mxu0
        %v3566 = vadd.f32 0.0, %v3565
        %v3567 = vpop.f32.mrf.mxu0
        %3568 = vmatprep.mubr.f32.mxu0 0.0
        %3569 = vmatmul.mubr.f32.gmra.mxu0 %v3407
        %v3570 = vpop.f32.mrf.mxu0
        %v3571 = vadd.f32 0.0, %v3570
        %v3572 = vpop.f32.mrf.mxu0
        %3573 = vmatprep.mubr.f32.mxu0 0.0
        %3574 = vmatmul.mubr.f32.gmra.mxu0 %v3410
        %v3575 = vpop.f32.mrf.mxu0
        %v3576 = vadd.f32 0.0, %v3575
        %v3577 = vpop.f32.mrf.mxu0
        %3578 = vmatprep.mubr.f32.mxu0 0.0
        %3579 = vmatmul.mubr.f32.gmra.mxu0 %v3413
        %v3580 = vpop.f32.mrf.mxu0
        %v3581 = vadd.f32 0.0, %v3580
        %v3582 = vpop.f32.mrf.mxu0
        %3583 = vmatprep.mubr.f32.mxu0 0.0
        %3584 = vmatmul.mubr.f32.gmra.mxu0 %v3416
        %v3585 = vpop.f32.mrf.mxu0
        %v3586 = vadd.f32 0.0, %v3585
        %v3587 = vpop.f32.mrf.mxu0
        %3588 = vmatprep.mubr.f32.mxu0 0.0
        %3589 = vmatmul.mubr.f32.gmra.mxu0 %v3419
        %v3590 = vpop.f32.mrf.mxu0
        %v3591 = vadd.f32 0.0, %v3590
        %v3592 = vpop.f32.mrf.mxu0
        %3593 = vmatprep.mubr.f32.mxu0 0.0
        %3594 = vmatmul.mubr.f32.gmra.mxu0 %v3422
        %v3595 = vpop.f32.mrf.mxu0
        %v3596 = vadd.f32 0.0, %v3595
        %v3597 = vpop.f32.mrf.mxu0
        %3598 = vmatprep.mubr.f32.mxu0 0.0
        %3599 = vmatmul.mubr.f32.gmra.mxu0 %v3425
        %v3600 = vpop.f32.mrf.mxu0
        %v3601 = vadd.f32 0.0, %v3600
        %v3602 = vpop.f32.mrf.mxu0
        %3603 = vmatprep.mubr.f32.mxu0 0.0
        %3604 = vmatmul.mubr.f32.gmra.mxu0 %v3428
        %v3605 = vpop.f32.mrf.mxu0
        %v3606 = vadd.f32 0.0, %v3605
        %v3607 = vpop.f32.mrf.mxu0
        %3608 = vmatprep.mubr.f32.mxu0 0.0
        %3609 = vmatmul.mubr.f32.gmra.mxu0 %v3431
        %v3610 = vpop.f32.mrf.mxu0
        %v3611 = vadd.f32 0.0, %v3610
        %v3612 = vpop.f32.mrf.mxu0
        %3613 = vmatprep.mubr.f32.mxu0 0.0
        %3614 = vmatmul.mubr.f32.gmra.mxu0 %v3434
        %v3615 = vpop.f32.mrf.mxu0
        %v3616 = vadd.f32 0.0, %v3615
        %v3617 = vpop.f32.mrf.mxu0
        %3618 = vmatprep.mubr.f32.mxu0 0.0
        %3619 = vmatmul.mubr.f32.gmra.mxu0 %v3437
        %v3620 = vpop.f32.mrf.mxu0
        %v3621 = vadd.f32 0.0, %v3620
        %v3622 = vpop.f32.mrf.mxu0
        %3623 = vmatprep.mubr.f32.mxu0 0.0
        %3624 = vmatmul.mubr.f32.gmra.mxu0 %v3440
        %v3625 = vpop.f32.mrf.mxu0
        %v3626 = vadd.f32 0.0, %v3625
        %v3627 = vpop.f32.mrf.mxu0
        %3628 = vmatprep.mubr.f32.mxu0 0.0
        %3629 = vmatmul.mubr.f32.gmra.mxu0 %v3443
        %v3630 = vpop.f32.mrf.mxu0
        %v3631 = vadd.f32 0.0, %v3630
        %v3632 = vpop.f32.mrf.mxu0
        %3633 = vmatprep.mubr.f32.mxu0 0.0
        %3634 = vmatmul.mubr.f32.gmra.mxu0 %v3446
        %v3635 = vpop.f32.mrf.mxu0
        %v3636 = vadd.f32 0.0, %v3635
        %v3637 = vpop.f32.mrf.mxu0
        %3638 = vmatprep.mubr.f32.mxu0 0.0
        %3639 = vmatmul.mubr.f32.gmra.mxu0 %v3449
        %v3640 = vpop.f32.mrf.mxu0
        %v3641 = vadd.f32 0.0, %v3640
        %v3642 = vpop.f32.mrf.mxu0
        %3643 = vmatprep.mubr.f32.mxu0 0.0
        %3644 = vmatmul.mubr.f32.gmra.mxu0 %v3452
        %v3645 = vpop.f32.mrf.mxu0
        %v3646 = vadd.f32 0.0, %v3645
        %v3647 = vpop.f32.mrf.mxu0
        %3648 = vmatprep.mubr.f32.mxu0 0.0
        %3649 = vmatmul.mubr.f32.gmra.mxu0 %v3455
        %v3650 = vpop.f32.mrf.mxu0
        %v3651 = vadd.f32 0.0, %v3650
        %v3652 = vpop.f32.mrf.mxu0
        %3653 = vmatprep.mubr.f32.mxu0 0.0
        %3654 = vmatmul.mubr.f32.gmra.mxu0 %v3458
        %v3655 = vpop.f32.mrf.mxu0
        %v3656 = vadd.f32 0.0, %v3655
        %v3657 = vpop.f32.mrf.mxu0
        %3658 = vmatprep.mubr.f32.mxu0 0.0
        %3659 = vmatmul.mubr.f32.gmra.mxu0 %v3461
        %v3660 = vpop.f32.mrf.mxu0
        %v3661 = vadd.f32 0.0, %v3660
        %v3662 = vpop.f32.mrf.mxu0
        %3663 = vmatprep.mubr.f32.mxu0 0.0
        %3664 = vmatmul.mubr.f32.gmra.mxu0 %v3464
        %v3665 = vpop.f32.mrf.mxu0
        %v3666 = vadd.f32 0.0, %v3665
        %v3667 = vpop.f32.mrf.mxu0
        %3668 = vmatprep.mubr.f32.mxu0 0.0
        %3669 = vmatmul.mubr.f32.gmra.mxu0 %v3467
        %v3670 = vpop.f32.mrf.mxu0
        %v3671 = vadd.f32 0.0, %v3670
        %v3672 = vpop.f32.mrf.mxu0
        %3673 = vmatprep.mubr.f32.mxu0 0.0
        %3674 = vmatmul.mubr.f32.gmra.mxu0 %v3470
        %v3675 = vpop.f32.mrf.mxu0
        %v3676 = vadd.f32 0.0, %v3675
        %v3677 = vpop.f32.mrf.mxu0
        %3678 = vmatprep.mubr.f32.mxu0 0.0
        %3679 = vmatmul.mubr.f32.gmra.mxu0 %v3473
        %v3680 = vpop.f32.mrf.mxu0
        %v3681 = vadd.f32 0.0, %v3680
        %v3682 = vpop.f32.mrf.mxu0
        %3683 = vmatprep.mubr.f32.mxu0 0.0
        %3684 = vmatmul.mubr.f32.gmra.mxu0 %v3476
        %v3685 = vpop.f32.mrf.mxu0
        %v3686 = vadd.f32 0.0, %v3685
        %v3687 = vpop.f32.mrf.mxu0
        %3688 = vmatprep.mubr.f32.mxu0 0.0
        %3689 = vmatmul.mubr.f32.gmra.mxu0 %v3479
        %v3690 = vpop.f32.mrf.mxu0
        %v3691 = vadd.f32 0.0, %v3690
        %v3692 = vpop.f32.mrf.mxu0
        %3693 = vmatprep.mubr.f32.mxu0 0.0
        %3694 = vmatmul.mubr.f32.gmra.mxu0 %v3482
        %v3695 = vpop.f32.mrf.mxu0
        %v3696 = vadd.f32 0.0, %v3695
        %v3697 = vpop.f32.mrf.mxu0
        %3698 = vmatprep.mubr.f32.mxu0 0.0
        %3699 = vmatmul.mubr.f32.gmra.mxu0 %v3485
        %v3700 = vpop.f32.mrf.mxu0
        %v3701 = vadd.f32 0.0, %v3700
        %v3702 = vpop.f32.mrf.mxu0
        %3703 = vmatprep.mubr.f32.mxu0 0.0
        %3704 = vmatmul.mubr.f32.gmra.mxu0 %v3488
        %v3705 = vpop.f32.mrf.mxu0
        %v3706 = vadd.f32 0.0, %v3705
        %v3707 = vpop.f32.mrf.mxu0
        %3708 = vmatprep.mubr.f32.mxu0 0.0
        %3709 = vmatmul.mubr.f32.gmra.mxu0 %v3491
        %v3710 = vpop.f32.mrf.mxu0
        %v3711 = vadd.f32 0.0, %v3710
        %v3712 = vpop.f32.mrf.mxu0
        %3713 = vmatprep.mubr.f32.mxu0 0.0
        %3714 = vmatmul.mubr.f32.gmra.mxu0 %v3494
        %v3715 = vpop.f32.mrf.mxu0
        %v3716 = vadd.f32 0.0, %v3715
        %v3717 = vpop.f32.mrf.mxu0
        %3718 = vmatprep.mubr.f32.mxu0 0.0
        %3719 = vmatmul.mubr.f32.gmra.mxu0 %v3497
        %v3720 = vpop.f32.mrf.mxu0
        %v3721 = vadd.f32 0.0, %v3720
        %v3722 = vpop.f32.mrf.mxu0
        %3723 = vdwg.mxu0
        %v3724 = vadd.f32 %v3337, %v3566
        %v3725 = vadd.f32 %v3338, %v3571
        %v3726 = vadd.f32 %v3339, %v3576
        %v3727 = vadd.f32 %v3340, %v3581
        %v3728 = vadd.f32 %v3341, %v3586
        %v3729 = vadd.f32 %v3342, %v3591
        %v3730 = vadd.f32 %v3343, %v3596
        %v3731 = vadd.f32 %v3344, %v3601
        %v3732 = vadd.f32 %v3345, %v3606
        %v3733 = vadd.f32 %v3346, %v3611
        %v3734 = vadd.f32 %v3347, %v3616
        %v3735 = vadd.f32 %v3348, %v3621
        %v3736 = vadd.f32 %v3349, %v3626
        %v3737 = vadd.f32 %v3350, %v3631
        %v3738 = vadd.f32 %v3351, %v3636
        %v3739 = vadd.f32 %v3352, %v3641
        %v3740 = vadd.f32 %v3353, %v3646
        %v3741 = vadd.f32 %v3354, %v3651
        %v3742 = vadd.f32 %v3355, %v3656
        %v3743 = vadd.f32 %v3356, %v3661
        %v3744 = vadd.f32 %v3357, %v3666
        %v3745 = vadd.f32 %v3358, %v3671
        %v3746 = vadd.f32 %v3359, %v3676
        %v3747 = vadd.f32 %v3360, %v3681
        %v3748 = vadd.f32 %v3361, %v3686
        %v3749 = vadd.f32 %v3362, %v3691
        %v3750 = vadd.f32 %v3363, %v3696
        %v3751 = vadd.f32 %v3364, %v3701
        %v3752 = vadd.f32 %v3365, %v3706
        %v3753 = vadd.f32 %v3366, %v3711
        %v3754 = vadd.f32 %v3367, %v3716
        %v3755 = vadd.f32 %v3368, %v3721
        %v3756 = vld [vmem:[%s2981 + $0x18] sm:$0xff]
        %v3757 = vld [vmem:[%s2981 + $0x20] sm:$0xff]
        %v3758 = vld [vmem:[%s2981 + $0x40] sm:$0xff]
        %v3759 = vld [vmem:[%s2981 + $0x48] sm:$0xff]
        %v3760 = vld [vmem:[%s2981 + $0x68] sm:$0xff]
        %v3761 = vld [vmem:[%s2981 + $0x70] sm:$0xff]
        %v3762 = vld [vmem:[%s2981 + $0x90] sm:$0xff]
        %v3763 = vld [vmem:[%s2981 + $0x98] sm:$0xff]
        %v3764 = vld [vmem:[%s2981 + $0xb8] sm:$0xff]
        %v3765 = vld [vmem:[%s2981 + $0xc0] sm:$0xff]
        %v3766 = vld [vmem:[%s2981 + $0xe0] sm:$0xff]
        %v3767 = vld [vmem:[%s2981 + $0xe8] sm:$0xff]
        %v3768 = vld [vmem:[%s2981 + $0x108] sm:$0xff]
        %v3769 = vld [vmem:[%s2981 + $0x110] sm:$0xff]
        %v3770 = vld [vmem:[%s2981 + $0x130] sm:$0xff]
        %v3771 = vld [vmem:[%s2981 + $0x138] sm:$0xff]
        %v3772 = vld [vmem:[%s2981 + $0x158] sm:$0xff]
        %v3773 = vld [vmem:[%s2981 + $0x160] sm:$0xff]
        %v3774 = vld [vmem:[%s2981 + $0x180] sm:$0xff]
        %v3775 = vld [vmem:[%s2981 + $0x188] sm:$0xff]
        %v3776 = vld [vmem:[%s2981 + $0x1a8] sm:$0xff]
        %v3777 = vld [vmem:[%s2981 + $0x1b0] sm:$0xff]
        %v3778 = vld [vmem:[%s2981 + $0x1d0] sm:$0xff]
        %v3779 = vld [vmem:[%s2981 + $0x1d8] sm:$0xff]
        %v3780 = vld [vmem:[%s2981 + $0x1f8] sm:$0xff]
        %v3781 = vld [vmem:[%s2981 + $0x200] sm:$0xff]
        %v3782 = vld [vmem:[%s2981 + $0x220] sm:$0xff]
        %v3783 = vld [vmem:[%s2981 + $0x228] sm:$0xff]
        %v3784 = vld [vmem:[%s2981 + $0x248] sm:$0xff]
        %v3785 = vld [vmem:[%s2981 + $0x250] sm:$0xff]
        %v3786 = vld [vmem:[%s2981 + $0x270] sm:$0xff]
        %v3787 = vld [vmem:[%s2981 + $0x278] sm:$0xff]
        %s3788 = scalar_lea.vmem %s1, 64
        %v3789 = vld [vmem:[%s3788] sm:$0xff]
        %v3791 = vsel %vm277, %v3756, 0
        %v3794 = vsel %vm277, %v3757, 0
        %v3797 = vsel %vm277, %v3758, 0
        %v3800 = vsel %vm277, %v3759, 0
        %v3803 = vsel %vm277, %v3760, 0
        %v3806 = vsel %vm277, %v3761, 0
        %v3809 = vsel %vm277, %v3762, 0
        %v3812 = vsel %vm277, %v3763, 0
        %v3815 = vsel %vm277, %v3764, 0
        %v3818 = vsel %vm277, %v3765, 0
        %v3821 = vsel %vm277, %v3766, 0
        %v3824 = vsel %vm277, %v3767, 0
        %v3827 = vsel %vm277, %v3768, 0
        %v3830 = vsel %vm277, %v3769, 0
        %v3833 = vsel %vm277, %v3770, 0
        %v3836 = vsel %vm277, %v3771, 0
        %v3839 = vsel %vm277, %v3772, 0
        %v3842 = vsel %vm277, %v3773, 0
        %v3845 = vsel %vm277, %v3774, 0
        %v3848 = vsel %vm277, %v3775, 0
        %v3851 = vsel %vm277, %v3776, 0
        %v3854 = vsel %vm277, %v3777, 0
        %v3857 = vsel %vm277, %v3778, 0
        %v3860 = vsel %vm277, %v3779, 0
        %v3863 = vsel %vm277, %v3780, 0
        %v3866 = vsel %vm277, %v3781, 0
        %v3869 = vsel %vm277, %v3782, 0
        %v3872 = vsel %vm277, %v3783, 0
        %v3875 = vsel %vm277, %v3784, 0
        %v3878 = vsel %vm277, %v3785, 0
        %v3881 = vsel %vm277, %v3786, 0
        %v3884 = vsel %vm277, %v3787, 0
        %3886 = vmatprep.subr.mxu0 0.0
        %3887 = vmatpush1.msra.mxu0 0.0
        %3888 = vmatprep.subr.mxu0 0.0
        %3889 = vmatpush1.msra.mxu0 0.0
        %3890 = vmatprep.subr.mxu0 0.0
        %3891 = vmatpush1.msra.mxu0 0.0
        %3892 = vmatprep.subr.mxu0 0.0
        %3893 = vmatpush1.msra.mxu0 0.0
        %3894 = vmatprep.subr.mxu0 0.0
        %3895 = vmatpush1.msra.mxu0 0.0
        %3896 = vmatprep.subr.mxu0 0.0
        %3897 = vmatpush1.msra.mxu0 0.0
        %3898 = vmatprep.subr.mxu0 0.0
        %3899 = vmatpush1.msra.mxu0 0.0
        %3900 = vmatprep.subr.mxu0 0.0
        %3901 = vmatpush1.msra.mxu0 0.0
        %3902 = vmatprep.subr.mxu0 0.0
        %3903 = vmatpush1.msra.mxu0 0.0
        %3904 = vmatprep.subr.mxu0 0.0
        %3905 = vmatpush1.msra.mxu0 0.0
        %3906 = vmatprep.subr.mxu0 0.0
        %3907 = vmatpush1.msra.mxu0 0.0
        %3908 = vmatprep.subr.mxu0 0.0
        %3909 = vmatpush1.msra.mxu0 0.0
        %3910 = vmatprep.subr.mxu0 0.0
        %3911 = vmatpush1.msra.mxu0 0.0
        %3912 = vmatprep.subr.mxu0 0.0
        %3913 = vmatpush1.msra.mxu0 0.0
        %3914 = vmatprep.subr.mxu0 0.0
        %3915 = vmatpush1.msra.mxu0 0.0
        %3916 = vmatprep.subr.mxu0 0.0
        %3917 = vmatpush1.msra.mxu0 %v3789
        %3918 = vmatprep.subr.mxu0 0.0
        %3919 = vmatpush2.msra.mxu0 0.0
        %3920 = vmatprep.subr.mxu0 0.0
        %3921 = vmatpush2.msra.mxu0 0.0
        %3922 = vmatprep.subr.mxu0 0.0
        %3923 = vmatpush2.msra.mxu0 0.0
        %3924 = vmatprep.subr.mxu0 0.0
        %3925 = vmatpush2.msra.mxu0 0.0
        %3926 = vmatprep.subr.mxu0 0.0
        %3927 = vmatpush2.msra.mxu0 0.0
        %3928 = vmatprep.subr.mxu0 0.0
        %3929 = vmatpush2.msra.mxu0 0.0
        %3930 = vmatprep.subr.mxu0 0.0
        %3931 = vmatpush2.msra.mxu0 0.0
        %3932 = vmatprep.subr.mxu0 0.0
        %3933 = vmatpush2.msra.mxu0 0.0
        %3934 = vmatprep.subr.mxu0 0.0
        %3935 = vmatpush2.msra.mxu0 0.0
        %3936 = vmatprep.subr.mxu0 0.0
        %3937 = vmatpush2.msra.mxu0 0.0
        %3938 = vmatprep.subr.mxu0 0.0
        %3939 = vmatpush2.msra.mxu0 0.0
        %3940 = vmatprep.subr.mxu0 0.0
        %3941 = vmatpush2.msra.mxu0 0.0
        %3942 = vmatprep.subr.mxu0 0.0
        %3943 = vmatpush2.msra.mxu0 0.0
        %3944 = vmatprep.subr.mxu0 0.0
        %3945 = vmatpush2.msra.mxu0 0.0
        %3946 = vmatprep.subr.mxu0 0.0
        %3947 = vmatpush2.msra.mxu0 0.0
        %3948 = vmatprep.subr.mxu0 0.0
        %3949 = vmatpush2.msra.mxu0 0.0
        %3950 = vmatprep.mubr.f32.mxu0 0.0
        %3951 = vmatmul.mubr.f32.gmra.mxu0 %v3791
        %v3952 = vpop.f32.mrf.mxu0
        %v3953 = vadd.f32 0.0, %v3952
        %v3954 = vpop.f32.mrf.mxu0
        %3955 = vmatprep.mubr.f32.mxu0 0.0
        %3956 = vmatmul.mubr.f32.gmra.mxu0 %v3794
        %v3957 = vpop.f32.mrf.mxu0
        %v3958 = vadd.f32 0.0, %v3957
        %v3959 = vpop.f32.mrf.mxu0
        %3960 = vmatprep.mubr.f32.mxu0 0.0
        %3961 = vmatmul.mubr.f32.gmra.mxu0 %v3797
        %v3962 = vpop.f32.mrf.mxu0
        %v3963 = vadd.f32 0.0, %v3962
        %v3964 = vpop.f32.mrf.mxu0
        %3965 = vmatprep.mubr.f32.mxu0 0.0
        %3966 = vmatmul.mubr.f32.gmra.mxu0 %v3800
        %v3967 = vpop.f32.mrf.mxu0
        %v3968 = vadd.f32 0.0, %v3967
        %v3969 = vpop.f32.mrf.mxu0
        %3970 = vmatprep.mubr.f32.mxu0 0.0
        %3971 = vmatmul.mubr.f32.gmra.mxu0 %v3803
        %v3972 = vpop.f32.mrf.mxu0
        %v3973 = vadd.f32 0.0, %v3972
        %v3974 = vpop.f32.mrf.mxu0
        %3975 = vmatprep.mubr.f32.mxu0 0.0
        %3976 = vmatmul.mubr.f32.gmra.mxu0 %v3806
        %v3977 = vpop.f32.mrf.mxu0
        %v3978 = vadd.f32 0.0, %v3977
        %v3979 = vpop.f32.mrf.mxu0
        %3980 = vmatprep.mubr.f32.mxu0 0.0
        %3981 = vmatmul.mubr.f32.gmra.mxu0 %v3809
        %v3982 = vpop.f32.mrf.mxu0
        %v3983 = vadd.f32 0.0, %v3982
        %v3984 = vpop.f32.mrf.mxu0
        %3985 = vmatprep.mubr.f32.mxu0 0.0
        %3986 = vmatmul.mubr.f32.gmra.mxu0 %v3812
        %v3987 = vpop.f32.mrf.mxu0
        %v3988 = vadd.f32 0.0, %v3987
        %v3989 = vpop.f32.mrf.mxu0
        %3990 = vmatprep.mubr.f32.mxu0 0.0
        %3991 = vmatmul.mubr.f32.gmra.mxu0 %v3815
        %v3992 = vpop.f32.mrf.mxu0
        %v3993 = vadd.f32 0.0, %v3992
        %v3994 = vpop.f32.mrf.mxu0
        %3995 = vmatprep.mubr.f32.mxu0 0.0
        %3996 = vmatmul.mubr.f32.gmra.mxu0 %v3818
        %v3997 = vpop.f32.mrf.mxu0
        %v3998 = vadd.f32 0.0, %v3997
        %v3999 = vpop.f32.mrf.mxu0
        %4000 = vmatprep.mubr.f32.mxu0 0.0
        %4001 = vmatmul.mubr.f32.gmra.mxu0 %v3821
        %v4002 = vpop.f32.mrf.mxu0
        %v4003 = vadd.f32 0.0, %v4002
        %v4004 = vpop.f32.mrf.mxu0
        %4005 = vmatprep.mubr.f32.mxu0 0.0
        %4006 = vmatmul.mubr.f32.gmra.mxu0 %v3824
        %v4007 = vpop.f32.mrf.mxu0
        %v4008 = vadd.f32 0.0, %v4007
        %v4009 = vpop.f32.mrf.mxu0
        %4010 = vmatprep.mubr.f32.mxu0 0.0
        %4011 = vmatmul.mubr.f32.gmra.mxu0 %v3827
        %v4012 = vpop.f32.mrf.mxu0
        %v4013 = vadd.f32 0.0, %v4012
        %v4014 = vpop.f32.mrf.mxu0
        %4015 = vmatprep.mubr.f32.mxu0 0.0
        %4016 = vmatmul.mubr.f32.gmra.mxu0 %v3830
        %v4017 = vpop.f32.mrf.mxu0
        %v4018 = vadd.f32 0.0, %v4017
        %v4019 = vpop.f32.mrf.mxu0
        %4020 = vmatprep.mubr.f32.mxu0 0.0
        %4021 = vmatmul.mubr.f32.gmra.mxu0 %v3833
        %v4022 = vpop.f32.mrf.mxu0
        %v4023 = vadd.f32 0.0, %v4022
        %v4024 = vpop.f32.mrf.mxu0
        %4025 = vmatprep.mubr.f32.mxu0 0.0
        %4026 = vmatmul.mubr.f32.gmra.mxu0 %v3836
        %v4027 = vpop.f32.mrf.mxu0
        %v4028 = vadd.f32 0.0, %v4027
        %v4029 = vpop.f32.mrf.mxu0
        %4030 = vmatprep.mubr.f32.mxu0 0.0
        %4031 = vmatmul.mubr.f32.gmra.mxu0 %v3839
        %v4032 = vpop.f32.mrf.mxu0
        %v4033 = vadd.f32 0.0, %v4032
        %v4034 = vpop.f32.mrf.mxu0
        %4035 = vmatprep.mubr.f32.mxu0 0.0
        %4036 = vmatmul.mubr.f32.gmra.mxu0 %v3842
        %v4037 = vpop.f32.mrf.mxu0
        %v4038 = vadd.f32 0.0, %v4037
        %v4039 = vpop.f32.mrf.mxu0
        %4040 = vmatprep.mubr.f32.mxu0 0.0
        %4041 = vmatmul.mubr.f32.gmra.mxu0 %v3845
        %v4042 = vpop.f32.mrf.mxu0
        %v4043 = vadd.f32 0.0, %v4042
        %v4044 = vpop.f32.mrf.mxu0
        %4045 = vmatprep.mubr.f32.mxu0 0.0
        %4046 = vmatmul.mubr.f32.gmra.mxu0 %v3848
        %v4047 = vpop.f32.mrf.mxu0
        %v4048 = vadd.f32 0.0, %v4047
        %v4049 = vpop.f32.mrf.mxu0
        %4050 = vmatprep.mubr.f32.mxu0 0.0
        %4051 = vmatmul.mubr.f32.gmra.mxu0 %v3851
        %v4052 = vpop.f32.mrf.mxu0
        %v4053 = vadd.f32 0.0, %v4052
        %v4054 = vpop.f32.mrf.mxu0
        %4055 = vmatprep.mubr.f32.mxu0 0.0
        %4056 = vmatmul.mubr.f32.gmra.mxu0 %v3854
        %v4057 = vpop.f32.mrf.mxu0
        %v4058 = vadd.f32 0.0, %v4057
        %v4059 = vpop.f32.mrf.mxu0
        %4060 = vmatprep.mubr.f32.mxu0 0.0
        %4061 = vmatmul.mubr.f32.gmra.mxu0 %v3857
        %v4062 = vpop.f32.mrf.mxu0
        %v4063 = vadd.f32 0.0, %v4062
        %v4064 = vpop.f32.mrf.mxu0
        %4065 = vmatprep.mubr.f32.mxu0 0.0
        %4066 = vmatmul.mubr.f32.gmra.mxu0 %v3860
        %v4067 = vpop.f32.mrf.mxu0
        %v4068 = vadd.f32 0.0, %v4067
        %v4069 = vpop.f32.mrf.mxu0
        %4070 = vmatprep.mubr.f32.mxu0 0.0
        %4071 = vmatmul.mubr.f32.gmra.mxu0 %v3863
        %v4072 = vpop.f32.mrf.mxu0
        %v4073 = vadd.f32 0.0, %v4072
        %v4074 = vpop.f32.mrf.mxu0
        %4075 = vmatprep.mubr.f32.mxu0 0.0
        %4076 = vmatmul.mubr.f32.gmra.mxu0 %v3866
        %v4077 = vpop.f32.mrf.mxu0
        %v4078 = vadd.f32 0.0, %v4077
        %v4079 = vpop.f32.mrf.mxu0
        %4080 = vmatprep.mubr.f32.mxu0 0.0
        %4081 = vmatmul.mubr.f32.gmra.mxu0 %v3869
        %v4082 = vpop.f32.mrf.mxu0
        %v4083 = vadd.f32 0.0, %v4082
        %v4084 = vpop.f32.mrf.mxu0
        %4085 = vmatprep.mubr.f32.mxu0 0.0
        %4086 = vmatmul.mubr.f32.gmra.mxu0 %v3872
        %v4087 = vpop.f32.mrf.mxu0
        %v4088 = vadd.f32 0.0, %v4087
        %v4089 = vpop.f32.mrf.mxu0
        %4090 = vmatprep.mubr.f32.mxu0 0.0
        %4091 = vmatmul.mubr.f32.gmra.mxu0 %v3875
        %v4092 = vpop.f32.mrf.mxu0
        %v4093 = vadd.f32 0.0, %v4092
        %v4094 = vpop.f32.mrf.mxu0
        %4095 = vmatprep.mubr.f32.mxu0 0.0
        %4096 = vmatmul.mubr.f32.gmra.mxu0 %v3878
        %v4097 = vpop.f32.mrf.mxu0
        %v4098 = vadd.f32 0.0, %v4097
        %v4099 = vpop.f32.mrf.mxu0
        %4100 = vmatprep.mubr.f32.mxu0 0.0
        %4101 = vmatmul.mubr.f32.gmra.mxu0 %v3881
        %v4102 = vpop.f32.mrf.mxu0
        %v4103 = vadd.f32 0.0, %v4102
        %v4104 = vpop.f32.mrf.mxu0
        %4105 = vmatprep.mubr.f32.mxu0 0.0
        %4106 = vmatmul.mubr.f32.gmra.mxu0 %v3884
        %v4107 = vpop.f32.mrf.mxu0
        %v4108 = vadd.f32 0.0, %v4107
        %v4109 = vpop.f32.mrf.mxu0
        %4110 = vdwg.mxu0
        %v4111 = vadd.f32 %v3724, %v3953
        %v4112 = vadd.f32 %v3725, %v3958
        %v4113 = vadd.f32 %v3726, %v3963
        %v4114 = vadd.f32 %v3727, %v3968
        %v4115 = vadd.f32 %v3728, %v3973
        %v4116 = vadd.f32 %v3729, %v3978
        %v4117 = vadd.f32 %v3730, %v3983
        %v4118 = vadd.f32 %v3731, %v3988
        %v4119 = vadd.f32 %v3732, %v3993
        %v4120 = vadd.f32 %v3733, %v3998
        %v4121 = vadd.f32 %v3734, %v4003
        %v4122 = vadd.f32 %v3735, %v4008
        %v4123 = vadd.f32 %v3736, %v4013
        %v4124 = vadd.f32 %v3737, %v4018
        %v4125 = vadd.f32 %v3738, %v4023
        %v4126 = vadd.f32 %v3739, %v4028
        %v4127 = vadd.f32 %v3740, %v4033
        %v4128 = vadd.f32 %v3741, %v4038
        %v4129 = vadd.f32 %v3742, %v4043
        %v4130 = vadd.f32 %v3743, %v4048
        %v4131 = vadd.f32 %v3744, %v4053
        %v4132 = vadd.f32 %v3745, %v4058
        %v4133 = vadd.f32 %v3746, %v4063
        %v4134 = vadd.f32 %v3747, %v4068
        %v4135 = vadd.f32 %v3748, %v4073
        %v4136 = vadd.f32 %v3749, %v4078
        %v4137 = vadd.f32 %v3750, %v4083
        %v4138 = vadd.f32 %v3751, %v4088
        %v4139 = vadd.f32 %v3752, %v4093
        %v4140 = vadd.f32 %v3753, %v4098
        %v4141 = vadd.f32 %v3754, %v4103
        %v4142 = vadd.f32 %v3755, %v4108
        %v4143 = vld [vmem:[%s2] sm:$0x1]
        %v4145 = vlaneseq
        %v4146 = vshrl.u32 %v4145, 7
        %v4147 = vsub.s32 0, %v4146
        %v4148 = vrot.slane %v4143, %v4147
        %v4150 = vadd.f32 %v4111, %v4148
        %v4151 = vadd.f32 %v4112, %v4148
        %v4152 = vadd.f32 %v4113, %v4148
        %v4153 = vadd.f32 %v4114, %v4148
        %v4154 = vadd.f32 %v4115, %v4148
        %v4155 = vadd.f32 %v4116, %v4148
        %v4156 = vadd.f32 %v4117, %v4148
        %v4157 = vadd.f32 %v4118, %v4148
        %v4158 = vadd.f32 %v4119, %v4148
        %v4159 = vadd.f32 %v4120, %v4148
        %v4160 = vadd.f32 %v4121, %v4148
        %v4161 = vadd.f32 %v4122, %v4148
        %v4162 = vadd.f32 %v4123, %v4148
        %v4163 = vadd.f32 %v4124, %v4148
        %v4164 = vadd.f32 %v4125, %v4148
        %v4165 = vadd.f32 %v4126, %v4148
        %v4166 = vadd.f32 %v4127, %v4148
        %v4167 = vadd.f32 %v4128, %v4148
        %v4168 = vadd.f32 %v4129, %v4148
        %v4169 = vadd.f32 %v4130, %v4148
        %v4170 = vadd.f32 %v4131, %v4148
        %v4171 = vadd.f32 %v4132, %v4148
        %v4172 = vadd.f32 %v4133, %v4148
        %v4173 = vadd.f32 %v4134, %v4148
        %v4174 = vadd.f32 %v4135, %v4148
        %v4175 = vadd.f32 %v4136, %v4148
        %v4176 = vadd.f32 %v4137, %v4148
        %v4177 = vadd.f32 %v4138, %v4148
        %v4178 = vadd.f32 %v4139, %v4148
        %v4179 = vadd.f32 %v4140, %v4148
        %v4180 = vadd.f32 %v4141, %v4148
        %v4181 = vadd.f32 %v4142, %v4148
        %v4182 = vmax.f32 %v4150, 0.0
        %v4183 = vmax.f32 %v4151, 0.0
        %v4184 = vmax.f32 %v4152, 0.0
        %v4185 = vmax.f32 %v4153, 0.0
        %v4186 = vmax.f32 %v4154, 0.0
        %v4187 = vmax.f32 %v4155, 0.0
        %v4188 = vmax.f32 %v4156, 0.0
        %v4189 = vmax.f32 %v4157, 0.0
        %v4190 = vmax.f32 %v4158, 0.0
        %v4191 = vmax.f32 %v4159, 0.0
        %v4192 = vmax.f32 %v4160, 0.0
        %v4193 = vmax.f32 %v4161, 0.0
        %v4194 = vmax.f32 %v4162, 0.0
        %v4195 = vmax.f32 %v4163, 0.0
        %v4196 = vmax.f32 %v4164, 0.0
        %v4197 = vmax.f32 %v4165, 0.0
        %v4198 = vmax.f32 %v4166, 0.0
        %v4199 = vmax.f32 %v4167, 0.0
        %v4200 = vmax.f32 %v4168, 0.0
        %v4201 = vmax.f32 %v4169, 0.0
        %v4202 = vmax.f32 %v4170, 0.0
        %v4203 = vmax.f32 %v4171, 0.0
        %v4204 = vmax.f32 %v4172, 0.0
        %v4205 = vmax.f32 %v4173, 0.0
        %v4206 = vmax.f32 %v4174, 0.0
        %v4207 = vmax.f32 %v4175, 0.0
        %v4208 = vmax.f32 %v4176, 0.0
        %v4209 = vmax.f32 %v4177, 0.0
        %v4210 = vmax.f32 %v4178, 0.0
        %v4211 = vmax.f32 %v4179, 0.0
        %v4212 = vmax.f32 %v4180, 0.0
        %v4213 = vmax.f32 %v4181, 0.0
        %s4214 = scalar_lea.vmem [#allocation3], 192
        %4215 = vst.msk [vmem:[%s4214 + $0x6] sm:$0xff] %vm478, %v4182
        %4216 = vst.msk [vmem:[%s4214 + $0xe] sm:$0xff] %vm478, %v4183
        %4217 = vst.msk [vmem:[%s4214 + $0x26] sm:$0xff] %vm478, %v4184
        %4218 = vst.msk [vmem:[%s4214 + $0x2e] sm:$0xff] %vm478, %v4185
        %4219 = vst.msk [vmem:[%s4214 + $0x46] sm:$0xff] %vm478, %v4186
        %4220 = vst.msk [vmem:[%s4214 + $0x4e] sm:$0xff] %vm478, %v4187
        %4221 = vst.msk [vmem:[%s4214 + $0x66] sm:$0xff] %vm478, %v4188
        %4222 = vst.msk [vmem:[%s4214 + $0x6e] sm:$0xff] %vm478, %v4189
        %4223 = vst.msk [vmem:[%s4214 + $0x86] sm:$0xff] %vm478, %v4190
        %4224 = vst.msk [vmem:[%s4214 + $0x8e] sm:$0xff] %vm478, %v4191
        %4225 = vst.msk [vmem:[%s4214 + $0xa6] sm:$0xff] %vm478, %v4192
        %4226 = vst.msk [vmem:[%s4214 + $0xae] sm:$0xff] %vm478, %v4193
        %4227 = vst.msk [vmem:[%s4214 + $0xc6] sm:$0xff] %vm478, %v4194
        %4228 = vst.msk [vmem:[%s4214 + $0xce] sm:$0xff] %vm478, %v4195
        %4229 = vst.msk [vmem:[%s4214 + $0xe6] sm:$0xff] %vm478, %v4196
        %4230 = vst.msk [vmem:[%s4214 + $0xee] sm:$0xff] %vm478, %v4197
        %4231 = vst.msk [vmem:[%s4214 + $0x106] sm:$0xff] %vm478, %v4198
        %4232 = vst.msk [vmem:[%s4214 + $0x10e] sm:$0xff] %vm478, %v4199
        %4233 = vst.msk [vmem:[%s4214 + $0x126] sm:$0xff] %vm478, %v4200
        %4234 = vst.msk [vmem:[%s4214 + $0x12e] sm:$0xff] %vm478, %v4201
        %4235 = vst.msk [vmem:[%s4214 + $0x146] sm:$0xff] %vm478, %v4202
        %4236 = vst.msk [vmem:[%s4214 + $0x14e] sm:$0xff] %vm478, %v4203
        %4237 = vst.msk [vmem:[%s4214 + $0x166] sm:$0xff] %vm478, %v4204
        %4238 = vst.msk [vmem:[%s4214 + $0x16e] sm:$0xff] %vm478, %v4205
        %4239 = vst.msk [vmem:[%s4214 + $0x186] sm:$0xff] %vm478, %v4206
        %4240 = vst.msk [vmem:[%s4214 + $0x18e] sm:$0xff] %vm478, %v4207
        %4241 = vst.msk [vmem:[%s4214 + $0x1a6] sm:$0xff] %vm478, %v4208
        %4242 = vst.msk [vmem:[%s4214 + $0x1ae] sm:$0xff] %vm478, %v4209
        %4243 = vst.msk [vmem:[%s4214 + $0x1c6] sm:$0xff] %vm478, %v4210
        %4244 = vst.msk [vmem:[%s4214 + $0x1ce] sm:$0xff] %vm478, %v4211
        %4245 = vst.msk [vmem:[%s4214 + $0x1e6] sm:$0xff] %vm478, %v4212
        %4246 = vst.msk [vmem:[%s4214 + $0x1ee] sm:$0xff] %vm478, %v4213
        %v4247 = vld [vmem:[#allocation3] sm:$0xff]
        %v4248 = vld [vmem:[#allocation3 + $0x8] sm:$0xff]
        %v4249 = vld [vmem:[#allocation3 + $0x20] sm:$0xff]
        %v4250 = vld [vmem:[#allocation3 + $0x28] sm:$0xff]
        %v4251 = vld [vmem:[#allocation3 + $0x40] sm:$0xff]
        %v4252 = vld [vmem:[#allocation3 + $0x48] sm:$0xff]
        %v4253 = vld [vmem:[#allocation3 + $0x60] sm:$0xff]
        %v4254 = vld [vmem:[#allocation3 + $0x68] sm:$0xff]
        %v4255 = vld [vmem:[#allocation3 + $0x80] sm:$0xff]
        %v4256 = vld [vmem:[#allocation3 + $0x88] sm:$0xff]
        %v4257 = vld [vmem:[#allocation3 + $0xa0] sm:$0xff]
        %v4258 = vld [vmem:[#allocation3 + $0xa8] sm:$0xff]
        %v4259 = vld [vmem:[#allocation3 + $0xc0] sm:$0xff]
        %v4260 = vld [vmem:[#allocation3 + $0xc8] sm:$0xff]
        %v4261 = vld [vmem:[#allocation3 + $0xe0] sm:$0xff]
        %v4262 = vld [vmem:[#allocation3 + $0xe8] sm:$0xff]
        %v4263 = vld [vmem:[#allocation3 + $0x100] sm:$0xff]
        %v4264 = vld [vmem:[#allocation3 + $0x108] sm:$0xff]
        %v4265 = vld [vmem:[#allocation3 + $0x120] sm:$0xff]
        %v4266 = vld [vmem:[#allocation3 + $0x128] sm:$0xff]
        %v4267 = vld [vmem:[#allocation3 + $0x140] sm:$0xff]
        %v4268 = vld [vmem:[#allocation3 + $0x148] sm:$0xff]
        %v4269 = vld [vmem:[#allocation3 + $0x160] sm:$0xff]
        %v4270 = vld [vmem:[#allocation3 + $0x168] sm:$0xff]
        %v4271 = vld [vmem:[#allocation3 + $0x180] sm:$0xff]
        %v4272 = vld [vmem:[#allocation3 + $0x188] sm:$0xff]
        %v4273 = vld [vmem:[#allocation3 + $0x1a0] sm:$0xff]
        %v4274 = vld [vmem:[#allocation3 + $0x1a8] sm:$0xff]
        %v4275 = vld [vmem:[#allocation3 + $0x1c0] sm:$0xff]
        %v4276 = vld [vmem:[#allocation3 + $0x1c8] sm:$0xff]
        %v4277 = vld [vmem:[#allocation3 + $0x1e0] sm:$0xff]
        %v4278 = vld [vmem:[#allocation3 + $0x1e8] sm:$0xff]
        %v4279 = vld [vmem:[%s3] sm:$0xf]
        %v4280 = vld [vmem:[#allocation3 + $0x6] sm:$0xff]
        %v4281 = vld [vmem:[#allocation3 + $0xe] sm:$0xff]
        %v4282 = vld [vmem:[#allocation3 + $0x26] sm:$0xff]
        %v4283 = vld [vmem:[#allocation3 + $0x2e] sm:$0xff]
        %v4284 = vld [vmem:[#allocation3 + $0x46] sm:$0xff]
        %v4285 = vld [vmem:[#allocation3 + $0x4e] sm:$0xff]
        %v4286 = vld [vmem:[#allocation3 + $0x66] sm:$0xff]
        %v4287 = vld [vmem:[#allocation3 + $0x6e] sm:$0xff]
        %v4288 = vld [vmem:[#allocation3 + $0x86] sm:$0xff]
        %v4289 = vld [vmem:[#allocation3 + $0x8e] sm:$0xff]
        %v4290 = vld [vmem:[#allocation3 + $0xa6] sm:$0xff]
        %v4291 = vld [vmem:[#allocation3 + $0xae] sm:$0xff]
        %v4292 = vld [vmem:[#allocation3 + $0xc6] sm:$0xff]
        %v4293 = vld [vmem:[#allocation3 + $0xce] sm:$0xff]
        %v4294 = vld [vmem:[#allocation3 + $0xe6] sm:$0xff]
        %v4295 = vld [vmem:[#allocation3 + $0xee] sm:$0xff]
        %v4296 = vld [vmem:[#allocation3 + $0x106] sm:$0xff]
        %v4297 = vld [vmem:[#allocation3 + $0x10e] sm:$0xff]
        %v4298 = vld [vmem:[#allocation3 + $0x126] sm:$0xff]
        %v4299 = vld [vmem:[#allocation3 + $0x12e] sm:$0xff]
        %v4300 = vld [vmem:[#allocation3 + $0x146] sm:$0xff]
        %v4301 = vld [vmem:[#allocation3 + $0x14e] sm:$0xff]
        %v4302 = vld [vmem:[#allocation3 + $0x166] sm:$0xff]
        %v4303 = vld [vmem:[#allocation3 + $0x16e] sm:$0xff]
        %v4304 = vld [vmem:[#allocation3 + $0x186] sm:$0xff]
        %v4305 = vld [vmem:[#allocation3 + $0x18e] sm:$0xff]
        %v4306 = vld [vmem:[#allocation3 + $0x1a6] sm:$0xff]
        %v4307 = vld [vmem:[#allocation3 + $0x1ae] sm:$0xff]
        %v4308 = vld [vmem:[#allocation3 + $0x1c6] sm:$0xff]
        %v4309 = vld [vmem:[#allocation3 + $0x1ce] sm:$0xff]
        %v4310 = vld [vmem:[#allocation3 + $0x1e6] sm:$0xff]
        %v4311 = vld [vmem:[#allocation3 + $0x1ee] sm:$0xff]
        %s4312 = scalar_lea.vmem %s3, 4
        %v4313 = vld [vmem:[%s4312] sm:$0xf]
        %v4315 = vsel %vm478, %v4280, 0
        %v4318 = vsel %vm478, %v4281, 0
        %v4321 = vsel %vm478, %v4282, 0
        %v4324 = vsel %vm478, %v4283, 0
        %v4327 = vsel %vm478, %v4284, 0
        %v4330 = vsel %vm478, %v4285, 0
        %v4333 = vsel %vm478, %v4286, 0
        %v4336 = vsel %vm478, %v4287, 0
        %v4339 = vsel %vm478, %v4288, 0
        %v4342 = vsel %vm478, %v4289, 0
        %v4345 = vsel %vm478, %v4290, 0
        %v4348 = vsel %vm478, %v4291, 0
        %v4351 = vsel %vm478, %v4292, 0
        %v4354 = vsel %vm478, %v4293, 0
        %v4357 = vsel %vm478, %v4294, 0
        %v4360 = vsel %vm478, %v4295, 0
        %v4363 = vsel %vm478, %v4296, 0
        %v4366 = vsel %vm478, %v4297, 0
        %v4369 = vsel %vm478, %v4298, 0
        %v4372 = vsel %vm478, %v4299, 0
        %v4375 = vsel %vm478, %v4300, 0
        %v4378 = vsel %vm478, %v4301, 0
        %v4381 = vsel %vm478, %v4302, 0
        %v4384 = vsel %vm478, %v4303, 0
        %v4387 = vsel %vm478, %v4304, 0
        %v4390 = vsel %vm478, %v4305, 0
        %v4393 = vsel %vm478, %v4306, 0
        %v4396 = vsel %vm478, %v4307, 0
        %v4399 = vsel %vm478, %v4308, 0
        %v4402 = vsel %vm478, %v4309, 0
        %v4405 = vsel %vm478, %v4310, 0
        %v4408 = vsel %vm478, %v4311, 0
        %vm4410 = vcmask 1043456
        %v4412 = vsel %vm4410, %v4313, 0
        %4414 = vmatprep.subr.mxu0 0.0
        %4415 = vmatpush1.msra.mxu0 0.0
        %4416 = vmatprep.subr.mxu0 0.0
        %4417 = vmatpush1.msra.mxu0 0.0
        %4418 = vmatprep.subr.mxu0 0.0
        %4419 = vmatpush1.msra.mxu0 0.0
        %4420 = vmatprep.subr.mxu0 0.0
        %4421 = vmatpush1.msra.mxu0 0.0
        %4422 = vmatprep.subr.mxu0 0.0
        %4423 = vmatpush1.msra.mxu0 0.0
        %4424 = vmatprep.subr.mxu0 0.0
        %4425 = vmatpush1.msra.mxu0 0.0
        %4426 = vmatprep.subr.mxu0 0.0
        %4427 = vmatpush1.msra.mxu0 0.0
        %4428 = vmatprep.subr.mxu0 0.0
        %4429 = vmatpush1.msra.mxu0 0.0
        %4430 = vmatprep.subr.mxu0 0.0
        %4431 = vmatpush1.msra.mxu0 0.0
        %4432 = vmatprep.subr.mxu0 0.0
        %4433 = vmatpush1.msra.mxu0 0.0
        %4434 = vmatprep.subr.mxu0 0.0
        %4435 = vmatpush1.msra.mxu0 0.0
        %4436 = vmatprep.subr.mxu0 0.0
        %4437 = vmatpush1.msra.mxu0 0.0
        %4438 = vmatprep.subr.mxu0 0.0
        %4439 = vmatpush1.msra.mxu0 0.0
        %4440 = vmatprep.subr.mxu0 0.0
        %4441 = vmatpush1.msra.mxu0 0.0
        %4442 = vmatprep.subr.mxu0 0.0
        %4443 = vmatpush1.msra.mxu0 0.0
        %4444 = vmatprep.subr.mxu0 0.0
        %4445 = vmatpush1.msra.mxu0 %v4412
        %4446 = vmatprep.subr.mxu0 0.0
        %4447 = vmatpush2.msra.mxu0 0.0
        %4448 = vmatprep.subr.mxu0 0.0
        %4449 = vmatpush2.msra.mxu0 0.0
        %4450 = vmatprep.subr.mxu0 0.0
        %4451 = vmatpush2.msra.mxu0 0.0
        %4452 = vmatprep.subr.mxu0 0.0
        %4453 = vmatpush2.msra.mxu0 0.0
        %4454 = vmatprep.subr.mxu0 0.0
        %4455 = vmatpush2.msra.mxu0 0.0
        %4456 = vmatprep.subr.mxu0 0.0
        %4457 = vmatpush2.msra.mxu0 0.0
        %4458 = vmatprep.subr.mxu0 0.0
        %4459 = vmatpush2.msra.mxu0 0.0
        %4460 = vmatprep.subr.mxu0 0.0
        %4461 = vmatpush2.msra.mxu0 0.0
        %4462 = vmatprep.subr.mxu0 0.0
        %4463 = vmatpush2.msra.mxu0 0.0
        %4464 = vmatprep.subr.mxu0 0.0
        %4465 = vmatpush2.msra.mxu0 0.0
        %4466 = vmatprep.subr.mxu0 0.0
        %4467 = vmatpush2.msra.mxu0 0.0
        %4468 = vmatprep.subr.mxu0 0.0
        %4469 = vmatpush2.msra.mxu0 0.0
        %4470 = vmatprep.subr.mxu0 0.0
        %4471 = vmatpush2.msra.mxu0 0.0
        %4472 = vmatprep.subr.mxu0 0.0
        %4473 = vmatpush2.msra.mxu0 0.0
        %4474 = vmatprep.subr.mxu0 0.0
        %4475 = vmatpush2.msra.mxu0 0.0
        %4476 = vmatprep.subr.mxu0 0.0
        %4477 = vmatpush2.msra.mxu0 0.0
        %4478 = vmatprep.mubr.f32.mxu0 0.0
        %4479 = vmatmul.mubr.f32.gmra.mxu0 %v4315
        %v4480 = vpop.f32.mrf.mxu0
        %v4481 = vadd.f32 0.0, %v4480
        %v4482 = vpop.f32.mrf.mxu0
        %4483 = vmatprep.mubr.f32.mxu0 0.0
        %4484 = vmatmul.mubr.f32.gmra.mxu0 %v4318
        %v4485 = vpop.f32.mrf.mxu0
        %v4486 = vadd.f32 0.0, %v4485
        %v4487 = vpop.f32.mrf.mxu0
        %4488 = vmatprep.mubr.f32.mxu0 0.0
        %4489 = vmatmul.mubr.f32.gmra.mxu0 %v4321
        %v4490 = vpop.f32.mrf.mxu0
        %v4491 = vadd.f32 0.0, %v4490
        %v4492 = vpop.f32.mrf.mxu0
        %4493 = vmatprep.mubr.f32.mxu0 0.0
        %4494 = vmatmul.mubr.f32.gmra.mxu0 %v4324
        %v4495 = vpop.f32.mrf.mxu0
        %v4496 = vadd.f32 0.0, %v4495
        %v4497 = vpop.f32.mrf.mxu0
        %4498 = vmatprep.mubr.f32.mxu0 0.0
        %4499 = vmatmul.mubr.f32.gmra.mxu0 %v4327
        %v4500 = vpop.f32.mrf.mxu0
        %v4501 = vadd.f32 0.0, %v4500
        %v4502 = vpop.f32.mrf.mxu0
        %4503 = vmatprep.mubr.f32.mxu0 0.0
        %4504 = vmatmul.mubr.f32.gmra.mxu0 %v4330
        %v4505 = vpop.f32.mrf.mxu0
        %v4506 = vadd.f32 0.0, %v4505
        %v4507 = vpop.f32.mrf.mxu0
        %4508 = vmatprep.mubr.f32.mxu0 0.0
        %4509 = vmatmul.mubr.f32.gmra.mxu0 %v4333
        %v4510 = vpop.f32.mrf.mxu0
        %v4511 = vadd.f32 0.0, %v4510
        %v4512 = vpop.f32.mrf.mxu0
        %4513 = vmatprep.mubr.f32.mxu0 0.0
        %4514 = vmatmul.mubr.f32.gmra.mxu0 %v4336
        %v4515 = vpop.f32.mrf.mxu0
        %v4516 = vadd.f32 0.0, %v4515
        %v4517 = vpop.f32.mrf.mxu0
        %4518 = vmatprep.mubr.f32.mxu0 0.0
        %4519 = vmatmul.mubr.f32.gmra.mxu0 %v4339
        %v4520 = vpop.f32.mrf.mxu0
        %v4521 = vadd.f32 0.0, %v4520
        %v4522 = vpop.f32.mrf.mxu0
        %4523 = vmatprep.mubr.f32.mxu0 0.0
        %4524 = vmatmul.mubr.f32.gmra.mxu0 %v4342
        %v4525 = vpop.f32.mrf.mxu0
        %v4526 = vadd.f32 0.0, %v4525
        %v4527 = vpop.f32.mrf.mxu0
        %4528 = vmatprep.mubr.f32.mxu0 0.0
        %4529 = vmatmul.mubr.f32.gmra.mxu0 %v4345
        %v4530 = vpop.f32.mrf.mxu0
        %v4531 = vadd.f32 0.0, %v4530
        %v4532 = vpop.f32.mrf.mxu0
        %4533 = vmatprep.mubr.f32.mxu0 0.0
        %4534 = vmatmul.mubr.f32.gmra.mxu0 %v4348
        %v4535 = vpop.f32.mrf.mxu0
        %v4536 = vadd.f32 0.0, %v4535
        %v4537 = vpop.f32.mrf.mxu0
        %4538 = vmatprep.mubr.f32.mxu0 0.0
        %4539 = vmatmul.mubr.f32.gmra.mxu0 %v4351
        %v4540 = vpop.f32.mrf.mxu0
        %v4541 = vadd.f32 0.0, %v4540
        %v4542 = vpop.f32.mrf.mxu0
        %4543 = vmatprep.mubr.f32.mxu0 0.0
        %4544 = vmatmul.mubr.f32.gmra.mxu0 %v4354
        %v4545 = vpop.f32.mrf.mxu0
        %v4546 = vadd.f32 0.0, %v4545
        %v4547 = vpop.f32.mrf.mxu0
        %4548 = vmatprep.mubr.f32.mxu0 0.0
        %4549 = vmatmul.mubr.f32.gmra.mxu0 %v4357
        %v4550 = vpop.f32.mrf.mxu0
        %v4551 = vadd.f32 0.0, %v4550
        %v4552 = vpop.f32.mrf.mxu0
        %4553 = vmatprep.mubr.f32.mxu0 0.0
        %4554 = vmatmul.mubr.f32.gmra.mxu0 %v4360
        %v4555 = vpop.f32.mrf.mxu0
        %v4556 = vadd.f32 0.0, %v4555
        %v4557 = vpop.f32.mrf.mxu0
        %4558 = vmatprep.mubr.f32.mxu0 0.0
        %4559 = vmatmul.mubr.f32.gmra.mxu0 %v4363
        %v4560 = vpop.f32.mrf.mxu0
        %v4561 = vadd.f32 0.0, %v4560
        %v4562 = vpop.f32.mrf.mxu0
        %4563 = vmatprep.mubr.f32.mxu0 0.0
        %4564 = vmatmul.mubr.f32.gmra.mxu0 %v4366
        %v4565 = vpop.f32.mrf.mxu0
        %v4566 = vadd.f32 0.0, %v4565
        %v4567 = vpop.f32.mrf.mxu0
        %4568 = vmatprep.mubr.f32.mxu0 0.0
        %4569 = vmatmul.mubr.f32.gmra.mxu0 %v4369
        %v4570 = vpop.f32.mrf.mxu0
        %v4571 = vadd.f32 0.0, %v4570
        %v4572 = vpop.f32.mrf.mxu0
        %4573 = vmatprep.mubr.f32.mxu0 0.0
        %4574 = vmatmul.mubr.f32.gmra.mxu0 %v4372
        %v4575 = vpop.f32.mrf.mxu0
        %v4576 = vadd.f32 0.0, %v4575
        %v4577 = vpop.f32.mrf.mxu0
        %4578 = vmatprep.mubr.f32.mxu0 0.0
        %4579 = vmatmul.mubr.f32.gmra.mxu0 %v4375
        %v4580 = vpop.f32.mrf.mxu0
        %v4581 = vadd.f32 0.0, %v4580
        %v4582 = vpop.f32.mrf.mxu0
        %4583 = vmatprep.mubr.f32.mxu0 0.0
        %4584 = vmatmul.mubr.f32.gmra.mxu0 %v4378
        %v4585 = vpop.f32.mrf.mxu0
        %v4586 = vadd.f32 0.0, %v4585
        %v4587 = vpop.f32.mrf.mxu0
        %4588 = vmatprep.mubr.f32.mxu0 0.0
        %4589 = vmatmul.mubr.f32.gmra.mxu0 %v4381
        %v4590 = vpop.f32.mrf.mxu0
        %v4591 = vadd.f32 0.0, %v4590
        %v4592 = vpop.f32.mrf.mxu0
        %4593 = vmatprep.mubr.f32.mxu0 0.0
        %4594 = vmatmul.mubr.f32.gmra.mxu0 %v4384
        %v4595 = vpop.f32.mrf.mxu0
        %v4596 = vadd.f32 0.0, %v4595
        %v4597 = vpop.f32.mrf.mxu0
        %4598 = vmatprep.mubr.f32.mxu0 0.0
        %4599 = vmatmul.mubr.f32.gmra.mxu0 %v4387
        %v4600 = vpop.f32.mrf.mxu0
        %v4601 = vadd.f32 0.0, %v4600
        %v4602 = vpop.f32.mrf.mxu0
        %4603 = vmatprep.mubr.f32.mxu0 0.0
        %4604 = vmatmul.mubr.f32.gmra.mxu0 %v4390
        %v4605 = vpop.f32.mrf.mxu0
        %v4606 = vadd.f32 0.0, %v4605
        %v4607 = vpop.f32.mrf.mxu0
        %4608 = vmatprep.mubr.f32.mxu0 0.0
        %4609 = vmatmul.mubr.f32.gmra.mxu0 %v4393
        %v4610 = vpop.f32.mrf.mxu0
        %v4611 = vadd.f32 0.0, %v4610
        %v4612 = vpop.f32.mrf.mxu0
        %4613 = vmatprep.mubr.f32.mxu0 0.0
        %4614 = vmatmul.mubr.f32.gmra.mxu0 %v4396
        %v4615 = vpop.f32.mrf.mxu0
        %v4616 = vadd.f32 0.0, %v4615
        %v4617 = vpop.f32.mrf.mxu0
        %4618 = vmatprep.mubr.f32.mxu0 0.0
        %4619 = vmatmul.mubr.f32.gmra.mxu0 %v4399
        %v4620 = vpop.f32.mrf.mxu0
        %v4621 = vadd.f32 0.0, %v4620
        %v4622 = vpop.f32.mrf.mxu0
        %4623 = vmatprep.mubr.f32.mxu0 0.0
        %4624 = vmatmul.mubr.f32.gmra.mxu0 %v4402
        %v4625 = vpop.f32.mrf.mxu0
        %v4626 = vadd.f32 0.0, %v4625
        %v4627 = vpop.f32.mrf.mxu0
        %4628 = vmatprep.mubr.f32.mxu0 0.0
        %4629 = vmatmul.mubr.f32.gmra.mxu0 %v4405
        %v4630 = vpop.f32.mrf.mxu0
        %v4631 = vadd.f32 0.0, %v4630
        %v4632 = vpop.f32.mrf.mxu0
        %4633 = vmatprep.mubr.f32.mxu0 0.0
        %4634 = vmatmul.mubr.f32.gmra.mxu0 %v4408
        %v4635 = vpop.f32.mrf.mxu0
        %v4636 = vadd.f32 0.0, %v4635
        %v4637 = vpop.f32.mrf.mxu0
        %4638 = vdwg.mxu0
        %v4640 = vsel %vm478, %v4247, 0
        %v4643 = vsel %vm478, %v4248, 0
        %v4646 = vsel %vm478, %v4249, 0
        %v4649 = vsel %vm478, %v4250, 0
        %v4652 = vsel %vm478, %v4251, 0
        %v4655 = vsel %vm478, %v4252, 0
        %v4658 = vsel %vm478, %v4253, 0
        %v4661 = vsel %vm478, %v4254, 0
        %v4664 = vsel %vm478, %v4255, 0
        %v4667 = vsel %vm478, %v4256, 0
        %v4670 = vsel %vm478, %v4257, 0
        %v4673 = vsel %vm478, %v4258, 0
        %v4676 = vsel %vm478, %v4259, 0
        %v4679 = vsel %vm478, %v4260, 0
        %v4682 = vsel %vm478, %v4261, 0
        %v4685 = vsel %vm478, %v4262, 0
        %v4688 = vsel %vm478, %v4263, 0
        %v4691 = vsel %vm478, %v4264, 0
        %v4694 = vsel %vm478, %v4265, 0
        %v4697 = vsel %vm478, %v4266, 0
        %v4700 = vsel %vm478, %v4267, 0
        %v4703 = vsel %vm478, %v4268, 0
        %v4706 = vsel %vm478, %v4269, 0
        %v4709 = vsel %vm478, %v4270, 0
        %v4712 = vsel %vm478, %v4271, 0
        %v4715 = vsel %vm478, %v4272, 0
        %v4718 = vsel %vm478, %v4273, 0
        %v4721 = vsel %vm478, %v4274, 0
        %v4724 = vsel %vm478, %v4275, 0
        %v4727 = vsel %vm478, %v4276, 0
        %v4730 = vsel %vm478, %v4277, 0
        %v4733 = vsel %vm478, %v4278, 0
        %v4736 = vsel %vm4410, %v4279, 0
        %4738 = vmatprep.subr.mxu0 0.0
        %4739 = vmatpush1.msra.mxu0 0.0
        %4740 = vmatprep.subr.mxu0 0.0
        %4741 = vmatpush1.msra.mxu0 0.0
        %4742 = vmatprep.subr.mxu0 0.0
        %4743 = vmatpush1.msra.mxu0 0.0
        %4744 = vmatprep.subr.mxu0 0.0
        %4745 = vmatpush1.msra.mxu0 0.0
        %4746 = vmatprep.subr.mxu0 0.0
        %4747 = vmatpush1.msra.mxu0 0.0
        %4748 = vmatprep.subr.mxu0 0.0
        %4749 = vmatpush1.msra.mxu0 0.0
        %4750 = vmatprep.subr.mxu0 0.0
        %4751 = vmatpush1.msra.mxu0 0.0
        %4752 = vmatprep.subr.mxu0 0.0
        %4753 = vmatpush1.msra.mxu0 0.0
        %4754 = vmatprep.subr.mxu0 0.0
        %4755 = vmatpush1.msra.mxu0 0.0
        %4756 = vmatprep.subr.mxu0 0.0
        %4757 = vmatpush1.msra.mxu0 0.0
        %4758 = vmatprep.subr.mxu0 0.0
        %4759 = vmatpush1.msra.mxu0 0.0
        %4760 = vmatprep.subr.mxu0 0.0
        %4761 = vmatpush1.msra.mxu0 0.0
        %4762 = vmatprep.subr.mxu0 0.0
        %4763 = vmatpush1.msra.mxu0 0.0
        %4764 = vmatprep.subr.mxu0 0.0
        %4765 = vmatpush1.msra.mxu0 0.0
        %4766 = vmatprep.subr.mxu0 0.0
        %4767 = vmatpush1.msra.mxu0 0.0
        %4768 = vmatprep.subr.mxu0 0.0
        %4769 = vmatpush1.msra.mxu0 %v4736
        %4770 = vmatprep.subr.mxu0 0.0
        %4771 = vmatpush2.msra.mxu0 0.0
        %4772 = vmatprep.subr.mxu0 0.0
        %4773 = vmatpush2.msra.mxu0 0.0
        %4774 = vmatprep.subr.mxu0 0.0
        %4775 = vmatpush2.msra.mxu0 0.0
        %4776 = vmatprep.subr.mxu0 0.0
        %4777 = vmatpush2.msra.mxu0 0.0
        %4778 = vmatprep.subr.mxu0 0.0
        %4779 = vmatpush2.msra.mxu0 0.0
        %4780 = vmatprep.subr.mxu0 0.0
        %4781 = vmatpush2.msra.mxu0 0.0
        %4782 = vmatprep.subr.mxu0 0.0
        %4783 = vmatpush2.msra.mxu0 0.0
        %4784 = vmatprep.subr.mxu0 0.0
        %4785 = vmatpush2.msra.mxu0 0.0
        %4786 = vmatprep.subr.mxu0 0.0
        %4787 = vmatpush2.msra.mxu0 0.0
        %4788 = vmatprep.subr.mxu0 0.0
        %4789 = vmatpush2.msra.mxu0 0.0
        %4790 = vmatprep.subr.mxu0 0.0
        %4791 = vmatpush2.msra.mxu0 0.0
        %4792 = vmatprep.subr.mxu0 0.0
        %4793 = vmatpush2.msra.mxu0 0.0
        %4794 = vmatprep.subr.mxu0 0.0
        %4795 = vmatpush2.msra.mxu0 0.0
        %4796 = vmatprep.subr.mxu0 0.0
        %4797 = vmatpush2.msra.mxu0 0.0
        %4798 = vmatprep.subr.mxu0 0.0
        %4799 = vmatpush2.msra.mxu0 0.0
        %4800 = vmatprep.subr.mxu0 0.0
        %4801 = vmatpush2.msra.mxu0 0.0
        %4802 = vmatprep.mubr.f32.mxu0 0.0
        %4803 = vmatmul.mubr.f32.gmra.mxu0 %v4640
        %v4804 = vpop.f32.mrf.mxu0
        %v4805 = vadd.f32 %v4481, %v4804
        %v4806 = vpop.f32.mrf.mxu0
        %4807 = vmatprep.mubr.f32.mxu0 0.0
        %4808 = vmatmul.mubr.f32.gmra.mxu0 %v4643
        %v4809 = vpop.f32.mrf.mxu0
        %v4810 = vadd.f32 %v4486, %v4809
        %v4811 = vpop.f32.mrf.mxu0
        %4812 = vmatprep.mubr.f32.mxu0 0.0
        %4813 = vmatmul.mubr.f32.gmra.mxu0 %v4646
        %v4814 = vpop.f32.mrf.mxu0
        %v4815 = vadd.f32 %v4491, %v4814
        %v4816 = vpop.f32.mrf.mxu0
        %4817 = vmatprep.mubr.f32.mxu0 0.0
        %4818 = vmatmul.mubr.f32.gmra.mxu0 %v4649
        %v4819 = vpop.f32.mrf.mxu0
        %v4820 = vadd.f32 %v4496, %v4819
        %v4821 = vpop.f32.mrf.mxu0
        %4822 = vmatprep.mubr.f32.mxu0 0.0
        %4823 = vmatmul.mubr.f32.gmra.mxu0 %v4652
        %v4824 = vpop.f32.mrf.mxu0
        %v4825 = vadd.f32 %v4501, %v4824
        %v4826 = vpop.f32.mrf.mxu0
        %4827 = vmatprep.mubr.f32.mxu0 0.0
        %4828 = vmatmul.mubr.f32.gmra.mxu0 %v4655
        %v4829 = vpop.f32.mrf.mxu0
        %v4830 = vadd.f32 %v4506, %v4829
        %v4831 = vpop.f32.mrf.mxu0
        %4832 = vmatprep.mubr.f32.mxu0 0.0
        %4833 = vmatmul.mubr.f32.gmra.mxu0 %v4658
        %v4834 = vpop.f32.mrf.mxu0
        %v4835 = vadd.f32 %v4511, %v4834
        %v4836 = vpop.f32.mrf.mxu0
        %4837 = vmatprep.mubr.f32.mxu0 0.0
        %4838 = vmatmul.mubr.f32.gmra.mxu0 %v4661
        %v4839 = vpop.f32.mrf.mxu0
        %v4840 = vadd.f32 %v4516, %v4839
        %v4841 = vpop.f32.mrf.mxu0
        %4842 = vmatprep.mubr.f32.mxu0 0.0
        %4843 = vmatmul.mubr.f32.gmra.mxu0 %v4664
        %v4844 = vpop.f32.mrf.mxu0
        %v4845 = vadd.f32 %v4521, %v4844
        %v4846 = vpop.f32.mrf.mxu0
        %4847 = vmatprep.mubr.f32.mxu0 0.0
        %4848 = vmatmul.mubr.f32.gmra.mxu0 %v4667
        %v4849 = vpop.f32.mrf.mxu0
        %v4850 = vadd.f32 %v4526, %v4849
        %v4851 = vpop.f32.mrf.mxu0
        %4852 = vmatprep.mubr.f32.mxu0 0.0
        %4853 = vmatmul.mubr.f32.gmra.mxu0 %v4670
        %v4854 = vpop.f32.mrf.mxu0
        %v4855 = vadd.f32 %v4531, %v4854
        %v4856 = vpop.f32.mrf.mxu0
        %4857 = vmatprep.mubr.f32.mxu0 0.0
        %4858 = vmatmul.mubr.f32.gmra.mxu0 %v4673
        %v4859 = vpop.f32.mrf.mxu0
        %v4860 = vadd.f32 %v4536, %v4859
        %v4861 = vpop.f32.mrf.mxu0
        %4862 = vmatprep.mubr.f32.mxu0 0.0
        %4863 = vmatmul.mubr.f32.gmra.mxu0 %v4676
        %v4864 = vpop.f32.mrf.mxu0
        %v4865 = vadd.f32 %v4541, %v4864
        %v4866 = vpop.f32.mrf.mxu0
        %4867 = vmatprep.mubr.f32.mxu0 0.0
        %4868 = vmatmul.mubr.f32.gmra.mxu0 %v4679
        %v4869 = vpop.f32.mrf.mxu0
        %v4870 = vadd.f32 %v4546, %v4869
        %v4871 = vpop.f32.mrf.mxu0
        %4872 = vmatprep.mubr.f32.mxu0 0.0
        %4873 = vmatmul.mubr.f32.gmra.mxu0 %v4682
        %v4874 = vpop.f32.mrf.mxu0
        %v4875 = vadd.f32 %v4551, %v4874
        %v4876 = vpop.f32.mrf.mxu0
        %4877 = vmatprep.mubr.f32.mxu0 0.0
        %4878 = vmatmul.mubr.f32.gmra.mxu0 %v4685
        %v4879 = vpop.f32.mrf.mxu0
        %v4880 = vadd.f32 %v4556, %v4879
        %v4881 = vpop.f32.mrf.mxu0
        %4882 = vmatprep.mubr.f32.mxu0 0.0
        %4883 = vmatmul.mubr.f32.gmra.mxu0 %v4688
        %v4884 = vpop.f32.mrf.mxu0
        %v4885 = vadd.f32 %v4561, %v4884
        %v4886 = vpop.f32.mrf.mxu0
        %4887 = vmatprep.mubr.f32.mxu0 0.0
        %4888 = vmatmul.mubr.f32.gmra.mxu0 %v4691
        %v4889 = vpop.f32.mrf.mxu0
        %v4890 = vadd.f32 %v4566, %v4889
        %v4891 = vpop.f32.mrf.mxu0
        %4892 = vmatprep.mubr.f32.mxu0 0.0
        %4893 = vmatmul.mubr.f32.gmra.mxu0 %v4694
        %v4894 = vpop.f32.mrf.mxu0
        %v4895 = vadd.f32 %v4571, %v4894
        %v4896 = vpop.f32.mrf.mxu0
        %4897 = vmatprep.mubr.f32.mxu0 0.0
        %4898 = vmatmul.mubr.f32.gmra.mxu0 %v4697
        %v4899 = vpop.f32.mrf.mxu0
        %v4900 = vadd.f32 %v4576, %v4899
        %v4901 = vpop.f32.mrf.mxu0
        %4902 = vmatprep.mubr.f32.mxu0 0.0
        %4903 = vmatmul.mubr.f32.gmra.mxu0 %v4700
        %v4904 = vpop.f32.mrf.mxu0
        %v4905 = vadd.f32 %v4581, %v4904
        %v4906 = vpop.f32.mrf.mxu0
        %4907 = vmatprep.mubr.f32.mxu0 0.0
        %4908 = vmatmul.mubr.f32.gmra.mxu0 %v4703
        %v4909 = vpop.f32.mrf.mxu0
        %v4910 = vadd.f32 %v4586, %v4909
        %v4911 = vpop.f32.mrf.mxu0
        %4912 = vmatprep.mubr.f32.mxu0 0.0
        %4913 = vmatmul.mubr.f32.gmra.mxu0 %v4706
        %v4914 = vpop.f32.mrf.mxu0
        %v4915 = vadd.f32 %v4591, %v4914
        %v4916 = vpop.f32.mrf.mxu0
        %4917 = vmatprep.mubr.f32.mxu0 0.0
        %4918 = vmatmul.mubr.f32.gmra.mxu0 %v4709
        %v4919 = vpop.f32.mrf.mxu0
        %v4920 = vadd.f32 %v4596, %v4919
        %v4921 = vpop.f32.mrf.mxu0
        %4922 = vmatprep.mubr.f32.mxu0 0.0
        %4923 = vmatmul.mubr.f32.gmra.mxu0 %v4712
        %v4924 = vpop.f32.mrf.mxu0
        %v4925 = vadd.f32 %v4601, %v4924
        %v4926 = vpop.f32.mrf.mxu0
        %4927 = vmatprep.mubr.f32.mxu0 0.0
        %4928 = vmatmul.mubr.f32.gmra.mxu0 %v4715
        %v4929 = vpop.f32.mrf.mxu0
        %v4930 = vadd.f32 %v4606, %v4929
        %v4931 = vpop.f32.mrf.mxu0
        %4932 = vmatprep.mubr.f32.mxu0 0.0
        %4933 = vmatmul.mubr.f32.gmra.mxu0 %v4718
        %v4934 = vpop.f32.mrf.mxu0
        %v4935 = vadd.f32 %v4611, %v4934
        %v4936 = vpop.f32.mrf.mxu0
        %4937 = vmatprep.mubr.f32.mxu0 0.0
        %4938 = vmatmul.mubr.f32.gmra.mxu0 %v4721
        %v4939 = vpop.f32.mrf.mxu0
        %v4940 = vadd.f32 %v4616, %v4939
        %v4941 = vpop.f32.mrf.mxu0
        %4942 = vmatprep.mubr.f32.mxu0 0.0
        %4943 = vmatmul.mubr.f32.gmra.mxu0 %v4724
        %v4944 = vpop.f32.mrf.mxu0
        %v4945 = vadd.f32 %v4621, %v4944
        %v4946 = vpop.f32.mrf.mxu0
        %4947 = vmatprep.mubr.f32.mxu0 0.0
        %4948 = vmatmul.mubr.f32.gmra.mxu0 %v4727
        %v4949 = vpop.f32.mrf.mxu0
        %v4950 = vadd.f32 %v4626, %v4949
        %v4951 = vpop.f32.mrf.mxu0
        %4952 = vmatprep.mubr.f32.mxu0 0.0
        %4953 = vmatmul.mubr.f32.gmra.mxu0 %v4730
        %v4954 = vpop.f32.mrf.mxu0
        %v4955 = vadd.f32 %v4631, %v4954
        %v4956 = vpop.f32.mrf.mxu0
        %4957 = vmatprep.mubr.f32.mxu0 0.0
        %4958 = vmatmul.mubr.f32.gmra.mxu0 %v4733
        %v4959 = vpop.f32.mrf.mxu0
        %v4960 = vadd.f32 %v4636, %v4959
        %v4961 = vpop.f32.mrf.mxu0
        %4962 = vdwg.mxu0
        %v4963 = vld [vmem:[#allocation3 + $0xc] sm:$0xff]
        %v4964 = vld [vmem:[#allocation3 + $0x14] sm:$0xff]
        %v4965 = vld [vmem:[#allocation3 + $0x2c] sm:$0xff]
        %v4966 = vld [vmem:[#allocation3 + $0x34] sm:$0xff]
        %v4967 = vld [vmem:[#allocation3 + $0x4c] sm:$0xff]
        %v4968 = vld [vmem:[#allocation3 + $0x54] sm:$0xff]
        %v4969 = vld [vmem:[#allocation3 + $0x6c] sm:$0xff]
        %v4970 = vld [vmem:[#allocation3 + $0x74] sm:$0xff]
        %v4971 = vld [vmem:[#allocation3 + $0x8c] sm:$0xff]
        %v4972 = vld [vmem:[#allocation3 + $0x94] sm:$0xff]
        %v4973 = vld [vmem:[#allocation3 + $0xac] sm:$0xff]
        %v4974 = vld [vmem:[#allocation3 + $0xb4] sm:$0xff]
        %v4975 = vld [vmem:[#allocation3 + $0xcc] sm:$0xff]
        %v4976 = vld [vmem:[#allocation3 + $0xd4] sm:$0xff]
        %v4977 = vld [vmem:[#allocation3 + $0xec] sm:$0xff]
        %v4978 = vld [vmem:[#allocation3 + $0xf4] sm:$0xff]
        %v4979 = vld [vmem:[#allocation3 + $0x10c] sm:$0xff]
        %v4980 = vld [vmem:[#allocation3 + $0x114] sm:$0xff]
        %v4981 = vld [vmem:[#allocation3 + $0x12c] sm:$0xff]
        %v4982 = vld [vmem:[#allocation3 + $0x134] sm:$0xff]
        %v4983 = vld [vmem:[#allocation3 + $0x14c] sm:$0xff]
        %v4984 = vld [vmem:[#allocation3 + $0x154] sm:$0xff]
        %v4985 = vld [vmem:[#allocation3 + $0x16c] sm:$0xff]
        %v4986 = vld [vmem:[#allocation3 + $0x174] sm:$0xff]
        %v4987 = vld [vmem:[#allocation3 + $0x18c] sm:$0xff]
        %v4988 = vld [vmem:[#allocation3 + $0x194] sm:$0xff]
        %v4989 = vld [vmem:[#allocation3 + $0x1ac] sm:$0xff]
        %v4990 = vld [vmem:[#allocation3 + $0x1b4] sm:$0xff]
        %v4991 = vld [vmem:[#allocation3 + $0x1cc] sm:$0xff]
        %v4992 = vld [vmem:[#allocation3 + $0x1d4] sm:$0xff]
        %v4993 = vld [vmem:[#allocation3 + $0x1ec] sm:$0xff]
        %v4994 = vld [vmem:[#allocation3 + $0x1f4] sm:$0xff]
        %s4995 = scalar_lea.vmem %s3, 8
        %v4996 = vld [vmem:[%s4995] sm:$0xf]
        %v4998 = vsel %vm478, %v4963, 0
        %v5001 = vsel %vm478, %v4964, 0
        %v5004 = vsel %vm478, %v4965, 0
        %v5007 = vsel %vm478, %v4966, 0
        %v5010 = vsel %vm478, %v4967, 0
        %v5013 = vsel %vm478, %v4968, 0
        %v5016 = vsel %vm478, %v4969, 0
        %v5019 = vsel %vm478, %v4970, 0
        %v5022 = vsel %vm478, %v4971, 0
        %v5025 = vsel %vm478, %v4972, 0
        %v5028 = vsel %vm478, %v4973, 0
        %v5031 = vsel %vm478, %v4974, 0
        %v5034 = vsel %vm478, %v4975, 0
        %v5037 = vsel %vm478, %v4976, 0
        %v5040 = vsel %vm478, %v4977, 0
        %v5043 = vsel %vm478, %v4978, 0
        %v5046 = vsel %vm478, %v4979, 0
        %v5049 = vsel %vm478, %v4980, 0
        %v5052 = vsel %vm478, %v4981, 0
        %v5055 = vsel %vm478, %v4982, 0
        %v5058 = vsel %vm478, %v4983, 0
        %v5061 = vsel %vm478, %v4984, 0
        %v5064 = vsel %vm478, %v4985, 0
        %v5067 = vsel %vm478, %v4986, 0
        %v5070 = vsel %vm478, %v4987, 0
        %v5073 = vsel %vm478, %v4988, 0
        %v5076 = vsel %vm478, %v4989, 0
        %v5079 = vsel %vm478, %v4990, 0
        %v5082 = vsel %vm478, %v4991, 0
        %v5085 = vsel %vm478, %v4992, 0
        %v5088 = vsel %vm478, %v4993, 0
        %v5091 = vsel %vm478, %v4994, 0
        %v5094 = vsel %vm4410, %v4996, 0
        %5096 = vmatprep.subr.mxu0 0.0
        %5097 = vmatpush1.msra.mxu0 0.0
        %5098 = vmatprep.subr.mxu0 0.0
        %5099 = vmatpush1.msra.mxu0 0.0
        %5100 = vmatprep.subr.mxu0 0.0
        %5101 = vmatpush1.msra.mxu0 0.0
        %5102 = vmatprep.subr.mxu0 0.0
        %5103 = vmatpush1.msra.mxu0 0.0
        %5104 = vmatprep.subr.mxu0 0.0
        %5105 = vmatpush1.msra.mxu0 0.0
        %5106 = vmatprep.subr.mxu0 0.0
        %5107 = vmatpush1.msra.mxu0 0.0
        %5108 = vmatprep.subr.mxu0 0.0
        %5109 = vmatpush1.msra.mxu0 0.0
        %5110 = vmatprep.subr.mxu0 0.0
        %5111 = vmatpush1.msra.mxu0 0.0
        %5112 = vmatprep.subr.mxu0 0.0
        %5113 = vmatpush1.msra.mxu0 0.0
        %5114 = vmatprep.subr.mxu0 0.0
        %5115 = vmatpush1.msra.mxu0 0.0
        %5116 = vmatprep.subr.mxu0 0.0
        %5117 = vmatpush1.msra.mxu0 0.0
        %5118 = vmatprep.subr.mxu0 0.0
        %5119 = vmatpush1.msra.mxu0 0.0
        %5120 = vmatprep.subr.mxu0 0.0
        %5121 = vmatpush1.msra.mxu0 0.0
        %5122 = vmatprep.subr.mxu0 0.0
        %5123 = vmatpush1.msra.mxu0 0.0
        %5124 = vmatprep.subr.mxu0 0.0
        %5125 = vmatpush1.msra.mxu0 0.0
        %5126 = vmatprep.subr.mxu0 0.0
        %5127 = vmatpush1.msra.mxu0 %v5094
        %5128 = vmatprep.subr.mxu0 0.0
        %5129 = vmatpush2.msra.mxu0 0.0
        %5130 = vmatprep.subr.mxu0 0.0
        %5131 = vmatpush2.msra.mxu0 0.0
        %5132 = vmatprep.subr.mxu0 0.0
        %5133 = vmatpush2.msra.mxu0 0.0
        %5134 = vmatprep.subr.mxu0 0.0
        %5135 = vmatpush2.msra.mxu0 0.0
        %5136 = vmatprep.subr.mxu0 0.0
        %5137 = vmatpush2.msra.mxu0 0.0
        %5138 = vmatprep.subr.mxu0 0.0
        %5139 = vmatpush2.msra.mxu0 0.0
        %5140 = vmatprep.subr.mxu0 0.0
        %5141 = vmatpush2.msra.mxu0 0.0
        %5142 = vmatprep.subr.mxu0 0.0
        %5143 = vmatpush2.msra.mxu0 0.0
        %5144 = vmatprep.subr.mxu0 0.0
        %5145 = vmatpush2.msra.mxu0 0.0
        %5146 = vmatprep.subr.mxu0 0.0
        %5147 = vmatpush2.msra.mxu0 0.0
        %5148 = vmatprep.subr.mxu0 0.0
        %5149 = vmatpush2.msra.mxu0 0.0
        %5150 = vmatprep.subr.mxu0 0.0
        %5151 = vmatpush2.msra.mxu0 0.0
        %5152 = vmatprep.subr.mxu0 0.0
        %5153 = vmatpush2.msra.mxu0 0.0
        %5154 = vmatprep.subr.mxu0 0.0
        %5155 = vmatpush2.msra.mxu0 0.0
        %5156 = vmatprep.subr.mxu0 0.0
        %5157 = vmatpush2.msra.mxu0 0.0
        %5158 = vmatprep.subr.mxu0 0.0
        %5159 = vmatpush2.msra.mxu0 0.0
        %5160 = vmatprep.mubr.f32.mxu0 0.0
        %5161 = vmatmul.mubr.f32.gmra.mxu0 %v4998
        %v5162 = vpop.f32.mrf.mxu0
        %v5163 = vadd.f32 0.0, %v5162
        %v5164 = vpop.f32.mrf.mxu0
        %5165 = vmatprep.mubr.f32.mxu0 0.0
        %5166 = vmatmul.mubr.f32.gmra.mxu0 %v5001
        %v5167 = vpop.f32.mrf.mxu0
        %v5168 = vadd.f32 0.0, %v5167
        %v5169 = vpop.f32.mrf.mxu0
        %5170 = vmatprep.mubr.f32.mxu0 0.0
        %5171 = vmatmul.mubr.f32.gmra.mxu0 %v5004
        %v5172 = vpop.f32.mrf.mxu0
        %v5173 = vadd.f32 0.0, %v5172
        %v5174 = vpop.f32.mrf.mxu0
        %5175 = vmatprep.mubr.f32.mxu0 0.0
        %5176 = vmatmul.mubr.f32.gmra.mxu0 %v5007
        %v5177 = vpop.f32.mrf.mxu0
        %v5178 = vadd.f32 0.0, %v5177
        %v5179 = vpop.f32.mrf.mxu0
        %5180 = vmatprep.mubr.f32.mxu0 0.0
        %5181 = vmatmul.mubr.f32.gmra.mxu0 %v5010
        %v5182 = vpop.f32.mrf.mxu0
        %v5183 = vadd.f32 0.0, %v5182
        %v5184 = vpop.f32.mrf.mxu0
        %5185 = vmatprep.mubr.f32.mxu0 0.0
        %5186 = vmatmul.mubr.f32.gmra.mxu0 %v5013
        %v5187 = vpop.f32.mrf.mxu0
        %v5188 = vadd.f32 0.0, %v5187
        %v5189 = vpop.f32.mrf.mxu0
        %5190 = vmatprep.mubr.f32.mxu0 0.0
        %5191 = vmatmul.mubr.f32.gmra.mxu0 %v5016
        %v5192 = vpop.f32.mrf.mxu0
        %v5193 = vadd.f32 0.0, %v5192
        %v5194 = vpop.f32.mrf.mxu0
        %5195 = vmatprep.mubr.f32.mxu0 0.0
        %5196 = vmatmul.mubr.f32.gmra.mxu0 %v5019
        %v5197 = vpop.f32.mrf.mxu0
        %v5198 = vadd.f32 0.0, %v5197
        %v5199 = vpop.f32.mrf.mxu0
        %5200 = vmatprep.mubr.f32.mxu0 0.0
        %5201 = vmatmul.mubr.f32.gmra.mxu0 %v5022
        %v5202 = vpop.f32.mrf.mxu0
        %v5203 = vadd.f32 0.0, %v5202
        %v5204 = vpop.f32.mrf.mxu0
        %5205 = vmatprep.mubr.f32.mxu0 0.0
        %5206 = vmatmul.mubr.f32.gmra.mxu0 %v5025
        %v5207 = vpop.f32.mrf.mxu0
        %v5208 = vadd.f32 0.0, %v5207
        %v5209 = vpop.f32.mrf.mxu0
        %5210 = vmatprep.mubr.f32.mxu0 0.0
        %5211 = vmatmul.mubr.f32.gmra.mxu0 %v5028
        %v5212 = vpop.f32.mrf.mxu0
        %v5213 = vadd.f32 0.0, %v5212
        %v5214 = vpop.f32.mrf.mxu0
        %5215 = vmatprep.mubr.f32.mxu0 0.0
        %5216 = vmatmul.mubr.f32.gmra.mxu0 %v5031
        %v5217 = vpop.f32.mrf.mxu0
        %v5218 = vadd.f32 0.0, %v5217
        %v5219 = vpop.f32.mrf.mxu0
        %5220 = vmatprep.mubr.f32.mxu0 0.0
        %5221 = vmatmul.mubr.f32.gmra.mxu0 %v5034
        %v5222 = vpop.f32.mrf.mxu0
        %v5223 = vadd.f32 0.0, %v5222
        %v5224 = vpop.f32.mrf.mxu0
        %5225 = vmatprep.mubr.f32.mxu0 0.0
        %5226 = vmatmul.mubr.f32.gmra.mxu0 %v5037
        %v5227 = vpop.f32.mrf.mxu0
        %v5228 = vadd.f32 0.0, %v5227
        %v5229 = vpop.f32.mrf.mxu0
        %5230 = vmatprep.mubr.f32.mxu0 0.0
        %5231 = vmatmul.mubr.f32.gmra.mxu0 %v5040
        %v5232 = vpop.f32.mrf.mxu0
        %v5233 = vadd.f32 0.0, %v5232
        %v5234 = vpop.f32.mrf.mxu0
        %5235 = vmatprep.mubr.f32.mxu0 0.0
        %5236 = vmatmul.mubr.f32.gmra.mxu0 %v5043
        %v5237 = vpop.f32.mrf.mxu0
        %v5238 = vadd.f32 0.0, %v5237
        %v5239 = vpop.f32.mrf.mxu0
        %5240 = vmatprep.mubr.f32.mxu0 0.0
        %5241 = vmatmul.mubr.f32.gmra.mxu0 %v5046
        %v5242 = vpop.f32.mrf.mxu0
        %v5243 = vadd.f32 0.0, %v5242
        %v5244 = vpop.f32.mrf.mxu0
        %5245 = vmatprep.mubr.f32.mxu0 0.0
        %5246 = vmatmul.mubr.f32.gmra.mxu0 %v5049
        %v5247 = vpop.f32.mrf.mxu0
        %v5248 = vadd.f32 0.0, %v5247
        %v5249 = vpop.f32.mrf.mxu0
        %5250 = vmatprep.mubr.f32.mxu0 0.0
        %5251 = vmatmul.mubr.f32.gmra.mxu0 %v5052
        %v5252 = vpop.f32.mrf.mxu0
        %v5253 = vadd.f32 0.0, %v5252
        %v5254 = vpop.f32.mrf.mxu0
        %5255 = vmatprep.mubr.f32.mxu0 0.0
        %5256 = vmatmul.mubr.f32.gmra.mxu0 %v5055
        %v5257 = vpop.f32.mrf.mxu0
        %v5258 = vadd.f32 0.0, %v5257
        %v5259 = vpop.f32.mrf.mxu0
        %5260 = vmatprep.mubr.f32.mxu0 0.0
        %5261 = vmatmul.mubr.f32.gmra.mxu0 %v5058
        %v5262 = vpop.f32.mrf.mxu0
        %v5263 = vadd.f32 0.0, %v5262
        %v5264 = vpop.f32.mrf.mxu0
        %5265 = vmatprep.mubr.f32.mxu0 0.0
        %5266 = vmatmul.mubr.f32.gmra.mxu0 %v5061
        %v5267 = vpop.f32.mrf.mxu0
        %v5268 = vadd.f32 0.0, %v5267
        %v5269 = vpop.f32.mrf.mxu0
        %5270 = vmatprep.mubr.f32.mxu0 0.0
        %5271 = vmatmul.mubr.f32.gmra.mxu0 %v5064
        %v5272 = vpop.f32.mrf.mxu0
        %v5273 = vadd.f32 0.0, %v5272
        %v5274 = vpop.f32.mrf.mxu0
        %5275 = vmatprep.mubr.f32.mxu0 0.0
        %5276 = vmatmul.mubr.f32.gmra.mxu0 %v5067
        %v5277 = vpop.f32.mrf.mxu0
        %v5278 = vadd.f32 0.0, %v5277
        %v5279 = vpop.f32.mrf.mxu0
        %5280 = vmatprep.mubr.f32.mxu0 0.0
        %5281 = vmatmul.mubr.f32.gmra.mxu0 %v5070
        %v5282 = vpop.f32.mrf.mxu0
        %v5283 = vadd.f32 0.0, %v5282
        %v5284 = vpop.f32.mrf.mxu0
        %5285 = vmatprep.mubr.f32.mxu0 0.0
        %5286 = vmatmul.mubr.f32.gmra.mxu0 %v5073
        %v5287 = vpop.f32.mrf.mxu0
        %v5288 = vadd.f32 0.0, %v5287
        %v5289 = vpop.f32.mrf.mxu0
        %5290 = vmatprep.mubr.f32.mxu0 0.0
        %5291 = vmatmul.mubr.f32.gmra.mxu0 %v5076
        %v5292 = vpop.f32.mrf.mxu0
        %v5293 = vadd.f32 0.0, %v5292
        %v5294 = vpop.f32.mrf.mxu0
        %5295 = vmatprep.mubr.f32.mxu0 0.0
        %5296 = vmatmul.mubr.f32.gmra.mxu0 %v5079
        %v5297 = vpop.f32.mrf.mxu0
        %v5298 = vadd.f32 0.0, %v5297
        %v5299 = vpop.f32.mrf.mxu0
        %5300 = vmatprep.mubr.f32.mxu0 0.0
        %5301 = vmatmul.mubr.f32.gmra.mxu0 %v5082
        %v5302 = vpop.f32.mrf.mxu0
        %v5303 = vadd.f32 0.0, %v5302
        %v5304 = vpop.f32.mrf.mxu0
        %5305 = vmatprep.mubr.f32.mxu0 0.0
        %5306 = vmatmul.mubr.f32.gmra.mxu0 %v5085
        %v5307 = vpop.f32.mrf.mxu0
        %v5308 = vadd.f32 0.0, %v5307
        %v5309 = vpop.f32.mrf.mxu0
        %5310 = vmatprep.mubr.f32.mxu0 0.0
        %5311 = vmatmul.mubr.f32.gmra.mxu0 %v5088
        %v5312 = vpop.f32.mrf.mxu0
        %v5313 = vadd.f32 0.0, %v5312
        %v5314 = vpop.f32.mrf.mxu0
        %5315 = vmatprep.mubr.f32.mxu0 0.0
        %5316 = vmatmul.mubr.f32.gmra.mxu0 %v5091
        %v5317 = vpop.f32.mrf.mxu0
        %v5318 = vadd.f32 0.0, %v5317
        %v5319 = vpop.f32.mrf.mxu0
        %5320 = vdwg.mxu0
        %v5321 = vadd.f32 %v4805, %v5163
        %v5322 = vadd.f32 %v4810, %v5168
        %v5323 = vadd.f32 %v4815, %v5173
        %v5324 = vadd.f32 %v4820, %v5178
        %v5325 = vadd.f32 %v4825, %v5183
        %v5326 = vadd.f32 %v4830, %v5188
        %v5327 = vadd.f32 %v4835, %v5193
        %v5328 = vadd.f32 %v4840, %v5198
        %v5329 = vadd.f32 %v4845, %v5203
        %v5330 = vadd.f32 %v4850, %v5208
        %v5331 = vadd.f32 %v4855, %v5213
        %v5332 = vadd.f32 %v4860, %v5218
        %v5333 = vadd.f32 %v4865, %v5223
        %v5334 = vadd.f32 %v4870, %v5228
        %v5335 = vadd.f32 %v4875, %v5233
        %v5336 = vadd.f32 %v4880, %v5238
        %v5337 = vadd.f32 %v4885, %v5243
        %v5338 = vadd.f32 %v4890, %v5248
        %v5339 = vadd.f32 %v4895, %v5253
        %v5340 = vadd.f32 %v4900, %v5258
        %v5341 = vadd.f32 %v4905, %v5263
        %v5342 = vadd.f32 %v4910, %v5268
        %v5343 = vadd.f32 %v4915, %v5273
        %v5344 = vadd.f32 %v4920, %v5278
        %v5345 = vadd.f32 %v4925, %v5283
        %v5346 = vadd.f32 %v4930, %v5288
        %v5347 = vadd.f32 %v4935, %v5293
        %v5348 = vadd.f32 %v4940, %v5298
        %v5349 = vadd.f32 %v4945, %v5303
        %v5350 = vadd.f32 %v4950, %v5308
        %v5351 = vadd.f32 %v4955, %v5313
        %v5352 = vadd.f32 %v4960, %v5318
        %v5353 = vld [vmem:[%s4214] sm:$0xff]
        %v5354 = vld [vmem:[%s4214 + $0x8] sm:$0xff]
        %v5355 = vld [vmem:[%s4214 + $0x20] sm:$0xff]
        %v5356 = vld [vmem:[%s4214 + $0x28] sm:$0xff]
        %v5357 = vld [vmem:[%s4214 + $0x40] sm:$0xff]
        %v5358 = vld [vmem:[%s4214 + $0x48] sm:$0xff]
        %v5359 = vld [vmem:[%s4214 + $0x60] sm:$0xff]
        %v5360 = vld [vmem:[%s4214 + $0x68] sm:$0xff]
        %v5361 = vld [vmem:[%s4214 + $0x80] sm:$0xff]
        %v5362 = vld [vmem:[%s4214 + $0x88] sm:$0xff]
        %v5363 = vld [vmem:[%s4214 + $0xa0] sm:$0xff]
        %v5364 = vld [vmem:[%s4214 + $0xa8] sm:$0xff]
        %v5365 = vld [vmem:[%s4214 + $0xc0] sm:$0xff]
        %v5366 = vld [vmem:[%s4214 + $0xc8] sm:$0xff]
        %v5367 = vld [vmem:[%s4214 + $0xe0] sm:$0xff]
        %v5368 = vld [vmem:[%s4214 + $0xe8] sm:$0xff]
        %v5369 = vld [vmem:[%s4214 + $0x100] sm:$0xff]
        %v5370 = vld [vmem:[%s4214 + $0x108] sm:$0xff]
        %v5371 = vld [vmem:[%s4214 + $0x120] sm:$0xff]
        %v5372 = vld [vmem:[%s4214 + $0x128] sm:$0xff]
        %v5373 = vld [vmem:[%s4214 + $0x140] sm:$0xff]
        %v5374 = vld [vmem:[%s4214 + $0x148] sm:$0xff]
        %v5375 = vld [vmem:[%s4214 + $0x160] sm:$0xff]
        %v5376 = vld [vmem:[%s4214 + $0x168] sm:$0xff]
        %v5377 = vld [vmem:[%s4214 + $0x180] sm:$0xff]
        %v5378 = vld [vmem:[%s4214 + $0x188] sm:$0xff]
        %v5379 = vld [vmem:[%s4214 + $0x1a0] sm:$0xff]
        %v5380 = vld [vmem:[%s4214 + $0x1a8] sm:$0xff]
        %v5381 = vld [vmem:[%s4214 + $0x1c0] sm:$0xff]
        %v5382 = vld [vmem:[%s4214 + $0x1c8] sm:$0xff]
        %v5383 = vld [vmem:[%s4214 + $0x1e0] sm:$0xff]
        %v5384 = vld [vmem:[%s4214 + $0x1e8] sm:$0xff]
        %s5385 = scalar_lea.vmem %s3, 12
        %v5386 = vld [vmem:[%s5385] sm:$0xf]
        %v5388 = vsel %vm478, %v5353, 0
        %v5391 = vsel %vm478, %v5354, 0
        %v5394 = vsel %vm478, %v5355, 0
        %v5397 = vsel %vm478, %v5356, 0
        %v5400 = vsel %vm478, %v5357, 0
        %v5403 = vsel %vm478, %v5358, 0
        %v5406 = vsel %vm478, %v5359, 0
        %v5409 = vsel %vm478, %v5360, 0
        %v5412 = vsel %vm478, %v5361, 0
        %v5415 = vsel %vm478, %v5362, 0
        %v5418 = vsel %vm478, %v5363, 0
        %v5421 = vsel %vm478, %v5364, 0
        %v5424 = vsel %vm478, %v5365, 0
        %v5427 = vsel %vm478, %v5366, 0
        %v5430 = vsel %vm478, %v5367, 0
        %v5433 = vsel %vm478, %v5368, 0
        %v5436 = vsel %vm478, %v5369, 0
        %v5439 = vsel %vm478, %v5370, 0
        %v5442 = vsel %vm478, %v5371, 0
        %v5445 = vsel %vm478, %v5372, 0
        %v5448 = vsel %vm478, %v5373, 0
        %v5451 = vsel %vm478, %v5374, 0
        %v5454 = vsel %vm478, %v5375, 0
        %v5457 = vsel %vm478, %v5376, 0
        %v5460 = vsel %vm478, %v5377, 0
        %v5463 = vsel %vm478, %v5378, 0
        %v5466 = vsel %vm478, %v5379, 0
        %v5469 = vsel %vm478, %v5380, 0
        %v5472 = vsel %vm478, %v5381, 0
        %v5475 = vsel %vm478, %v5382, 0
        %v5478 = vsel %vm478, %v5383, 0
        %v5481 = vsel %vm478, %v5384, 0
        %v5484 = vsel %vm4410, %v5386, 0
        %5486 = vmatprep.subr.mxu0 0.0
        %5487 = vmatpush1.msra.mxu0 0.0
        %5488 = vmatprep.subr.mxu0 0.0
        %5489 = vmatpush1.msra.mxu0 0.0
        %5490 = vmatprep.subr.mxu0 0.0
        %5491 = vmatpush1.msra.mxu0 0.0
        %5492 = vmatprep.subr.mxu0 0.0
        %5493 = vmatpush1.msra.mxu0 0.0
        %5494 = vmatprep.subr.mxu0 0.0
        %5495 = vmatpush1.msra.mxu0 0.0
        %5496 = vmatprep.subr.mxu0 0.0
        %5497 = vmatpush1.msra.mxu0 0.0
        %5498 = vmatprep.subr.mxu0 0.0
        %5499 = vmatpush1.msra.mxu0 0.0
        %5500 = vmatprep.subr.mxu0 0.0
        %5501 = vmatpush1.msra.mxu0 0.0
        %5502 = vmatprep.subr.mxu0 0.0
        %5503 = vmatpush1.msra.mxu0 0.0
        %5504 = vmatprep.subr.mxu0 0.0
        %5505 = vmatpush1.msra.mxu0 0.0
        %5506 = vmatprep.subr.mxu0 0.0
        %5507 = vmatpush1.msra.mxu0 0.0
        %5508 = vmatprep.subr.mxu0 0.0
        %5509 = vmatpush1.msra.mxu0 0.0
        %5510 = vmatprep.subr.mxu0 0.0
        %5511 = vmatpush1.msra.mxu0 0.0
        %5512 = vmatprep.subr.mxu0 0.0
        %5513 = vmatpush1.msra.mxu0 0.0
        %5514 = vmatprep.subr.mxu0 0.0
        %5515 = vmatpush1.msra.mxu0 0.0
        %5516 = vmatprep.subr.mxu0 0.0
        %5517 = vmatpush1.msra.mxu0 %v5484
        %5518 = vmatprep.subr.mxu0 0.0
        %5519 = vmatpush2.msra.mxu0 0.0
        %5520 = vmatprep.subr.mxu0 0.0
        %5521 = vmatpush2.msra.mxu0 0.0
        %5522 = vmatprep.subr.mxu0 0.0
        %5523 = vmatpush2.msra.mxu0 0.0
        %5524 = vmatprep.subr.mxu0 0.0
        %5525 = vmatpush2.msra.mxu0 0.0
        %5526 = vmatprep.subr.mxu0 0.0
        %5527 = vmatpush2.msra.mxu0 0.0
        %5528 = vmatprep.subr.mxu0 0.0
        %5529 = vmatpush2.msra.mxu0 0.0
        %5530 = vmatprep.subr.mxu0 0.0
        %5531 = vmatpush2.msra.mxu0 0.0
        %5532 = vmatprep.subr.mxu0 0.0
        %5533 = vmatpush2.msra.mxu0 0.0
        %5534 = vmatprep.subr.mxu0 0.0
        %5535 = vmatpush2.msra.mxu0 0.0
        %5536 = vmatprep.subr.mxu0 0.0
        %5537 = vmatpush2.msra.mxu0 0.0
        %5538 = vmatprep.subr.mxu0 0.0
        %5539 = vmatpush2.msra.mxu0 0.0
        %5540 = vmatprep.subr.mxu0 0.0
        %5541 = vmatpush2.msra.mxu0 0.0
        %5542 = vmatprep.subr.mxu0 0.0
        %5543 = vmatpush2.msra.mxu0 0.0
        %5544 = vmatprep.subr.mxu0 0.0
        %5545 = vmatpush2.msra.mxu0 0.0
        %5546 = vmatprep.subr.mxu0 0.0
        %5547 = vmatpush2.msra.mxu0 0.0
        %5548 = vmatprep.subr.mxu0 0.0
        %5549 = vmatpush2.msra.mxu0 0.0
        %5550 = vmatprep.mubr.f32.mxu0 0.0
        %5551 = vmatmul.mubr.f32.gmra.mxu0 %v5388
        %v5552 = vpop.f32.mrf.mxu0
        %v5553 = vadd.f32 0.0, %v5552
        %v5554 = vpop.f32.mrf.mxu0
        %5555 = vmatprep.mubr.f32.mxu0 0.0
        %5556 = vmatmul.mubr.f32.gmra.mxu0 %v5391
        %v5557 = vpop.f32.mrf.mxu0
        %v5558 = vadd.f32 0.0, %v5557
        %v5559 = vpop.f32.mrf.mxu0
        %5560 = vmatprep.mubr.f32.mxu0 0.0
        %5561 = vmatmul.mubr.f32.gmra.mxu0 %v5394
        %v5562 = vpop.f32.mrf.mxu0
        %v5563 = vadd.f32 0.0, %v5562
        %v5564 = vpop.f32.mrf.mxu0
        %5565 = vmatprep.mubr.f32.mxu0 0.0
        %5566 = vmatmul.mubr.f32.gmra.mxu0 %v5397
        %v5567 = vpop.f32.mrf.mxu0
        %v5568 = vadd.f32 0.0, %v5567
        %v5569 = vpop.f32.mrf.mxu0
        %5570 = vmatprep.mubr.f32.mxu0 0.0
        %5571 = vmatmul.mubr.f32.gmra.mxu0 %v5400
        %v5572 = vpop.f32.mrf.mxu0
        %v5573 = vadd.f32 0.0, %v5572
        %v5574 = vpop.f32.mrf.mxu0
        %5575 = vmatprep.mubr.f32.mxu0 0.0
        %5576 = vmatmul.mubr.f32.gmra.mxu0 %v5403
        %v5577 = vpop.f32.mrf.mxu0
        %v5578 = vadd.f32 0.0, %v5577
        %v5579 = vpop.f32.mrf.mxu0
        %5580 = vmatprep.mubr.f32.mxu0 0.0
        %5581 = vmatmul.mubr.f32.gmra.mxu0 %v5406
        %v5582 = vpop.f32.mrf.mxu0
        %v5583 = vadd.f32 0.0, %v5582
        %v5584 = vpop.f32.mrf.mxu0
        %5585 = vmatprep.mubr.f32.mxu0 0.0
        %5586 = vmatmul.mubr.f32.gmra.mxu0 %v5409
        %v5587 = vpop.f32.mrf.mxu0
        %v5588 = vadd.f32 0.0, %v5587
        %v5589 = vpop.f32.mrf.mxu0
        %5590 = vmatprep.mubr.f32.mxu0 0.0
        %5591 = vmatmul.mubr.f32.gmra.mxu0 %v5412
        %v5592 = vpop.f32.mrf.mxu0
        %v5593 = vadd.f32 0.0, %v5592
        %v5594 = vpop.f32.mrf.mxu0
        %5595 = vmatprep.mubr.f32.mxu0 0.0
        %5596 = vmatmul.mubr.f32.gmra.mxu0 %v5415
        %v5597 = vpop.f32.mrf.mxu0
        %v5598 = vadd.f32 0.0, %v5597
        %v5599 = vpop.f32.mrf.mxu0
        %5600 = vmatprep.mubr.f32.mxu0 0.0
        %5601 = vmatmul.mubr.f32.gmra.mxu0 %v5418
        %v5602 = vpop.f32.mrf.mxu0
        %v5603 = vadd.f32 0.0, %v5602
        %v5604 = vpop.f32.mrf.mxu0
        %5605 = vmatprep.mubr.f32.mxu0 0.0
        %5606 = vmatmul.mubr.f32.gmra.mxu0 %v5421
        %v5607 = vpop.f32.mrf.mxu0
        %v5608 = vadd.f32 0.0, %v5607
        %v5609 = vpop.f32.mrf.mxu0
        %5610 = vmatprep.mubr.f32.mxu0 0.0
        %5611 = vmatmul.mubr.f32.gmra.mxu0 %v5424
        %v5612 = vpop.f32.mrf.mxu0
        %v5613 = vadd.f32 0.0, %v5612
        %v5614 = vpop.f32.mrf.mxu0
        %5615 = vmatprep.mubr.f32.mxu0 0.0
        %5616 = vmatmul.mubr.f32.gmra.mxu0 %v5427
        %v5617 = vpop.f32.mrf.mxu0
        %v5618 = vadd.f32 0.0, %v5617
        %v5619 = vpop.f32.mrf.mxu0
        %5620 = vmatprep.mubr.f32.mxu0 0.0
        %5621 = vmatmul.mubr.f32.gmra.mxu0 %v5430
        %v5622 = vpop.f32.mrf.mxu0
        %v5623 = vadd.f32 0.0, %v5622
        %v5624 = vpop.f32.mrf.mxu0
        %5625 = vmatprep.mubr.f32.mxu0 0.0
        %5626 = vmatmul.mubr.f32.gmra.mxu0 %v5433
        %v5627 = vpop.f32.mrf.mxu0
        %v5628 = vadd.f32 0.0, %v5627
        %v5629 = vpop.f32.mrf.mxu0
        %5630 = vmatprep.mubr.f32.mxu0 0.0
        %5631 = vmatmul.mubr.f32.gmra.mxu0 %v5436
        %v5632 = vpop.f32.mrf.mxu0
        %v5633 = vadd.f32 0.0, %v5632
        %v5634 = vpop.f32.mrf.mxu0
        %5635 = vmatprep.mubr.f32.mxu0 0.0
        %5636 = vmatmul.mubr.f32.gmra.mxu0 %v5439
        %v5637 = vpop.f32.mrf.mxu0
        %v5638 = vadd.f32 0.0, %v5637
        %v5639 = vpop.f32.mrf.mxu0
        %5640 = vmatprep.mubr.f32.mxu0 0.0
        %5641 = vmatmul.mubr.f32.gmra.mxu0 %v5442
        %v5642 = vpop.f32.mrf.mxu0
        %v5643 = vadd.f32 0.0, %v5642
        %v5644 = vpop.f32.mrf.mxu0
        %5645 = vmatprep.mubr.f32.mxu0 0.0
        %5646 = vmatmul.mubr.f32.gmra.mxu0 %v5445
        %v5647 = vpop.f32.mrf.mxu0
        %v5648 = vadd.f32 0.0, %v5647
        %v5649 = vpop.f32.mrf.mxu0
        %5650 = vmatprep.mubr.f32.mxu0 0.0
        %5651 = vmatmul.mubr.f32.gmra.mxu0 %v5448
        %v5652 = vpop.f32.mrf.mxu0
        %v5653 = vadd.f32 0.0, %v5652
        %v5654 = vpop.f32.mrf.mxu0
        %5655 = vmatprep.mubr.f32.mxu0 0.0
        %5656 = vmatmul.mubr.f32.gmra.mxu0 %v5451
        %v5657 = vpop.f32.mrf.mxu0
        %v5658 = vadd.f32 0.0, %v5657
        %v5659 = vpop.f32.mrf.mxu0
        %5660 = vmatprep.mubr.f32.mxu0 0.0
        %5661 = vmatmul.mubr.f32.gmra.mxu0 %v5454
        %v5662 = vpop.f32.mrf.mxu0
        %v5663 = vadd.f32 0.0, %v5662
        %v5664 = vpop.f32.mrf.mxu0
        %5665 = vmatprep.mubr.f32.mxu0 0.0
        %5666 = vmatmul.mubr.f32.gmra.mxu0 %v5457
        %v5667 = vpop.f32.mrf.mxu0
        %v5668 = vadd.f32 0.0, %v5667
        %v5669 = vpop.f32.mrf.mxu0
        %5670 = vmatprep.mubr.f32.mxu0 0.0
        %5671 = vmatmul.mubr.f32.gmra.mxu0 %v5460
        %v5672 = vpop.f32.mrf.mxu0
        %v5673 = vadd.f32 0.0, %v5672
        %v5674 = vpop.f32.mrf.mxu0
        %5675 = vmatprep.mubr.f32.mxu0 0.0
        %5676 = vmatmul.mubr.f32.gmra.mxu0 %v5463
        %v5677 = vpop.f32.mrf.mxu0
        %v5678 = vadd.f32 0.0, %v5677
        %v5679 = vpop.f32.mrf.mxu0
        %5680 = vmatprep.mubr.f32.mxu0 0.0
        %5681 = vmatmul.mubr.f32.gmra.mxu0 %v5466
        %v5682 = vpop.f32.mrf.mxu0
        %v5683 = vadd.f32 0.0, %v5682
        %v5684 = vpop.f32.mrf.mxu0
        %5685 = vmatprep.mubr.f32.mxu0 0.0
        %5686 = vmatmul.mubr.f32.gmra.mxu0 %v5469
        %v5687 = vpop.f32.mrf.mxu0
        %v5688 = vadd.f32 0.0, %v5687
        %v5689 = vpop.f32.mrf.mxu0
        %5690 = vmatprep.mubr.f32.mxu0 0.0
        %5691 = vmatmul.mubr.f32.gmra.mxu0 %v5472
        %v5692 = vpop.f32.mrf.mxu0
        %v5693 = vadd.f32 0.0, %v5692
        %v5694 = vpop.f32.mrf.mxu0
        %5695 = vmatprep.mubr.f32.mxu0 0.0
        %5696 = vmatmul.mubr.f32.gmra.mxu0 %v5475
        %v5697 = vpop.f32.mrf.mxu0
        %v5698 = vadd.f32 0.0, %v5697
        %v5699 = vpop.f32.mrf.mxu0
        %5700 = vmatprep.mubr.f32.mxu0 0.0
        %5701 = vmatmul.mubr.f32.gmra.mxu0 %v5478
        %v5702 = vpop.f32.mrf.mxu0
        %v5703 = vadd.f32 0.0, %v5702
        %v5704 = vpop.f32.mrf.mxu0
        %5705 = vmatprep.mubr.f32.mxu0 0.0
        %5706 = vmatmul.mubr.f32.gmra.mxu0 %v5481
        %v5707 = vpop.f32.mrf.mxu0
        %v5708 = vadd.f32 0.0, %v5707
        %v5709 = vpop.f32.mrf.mxu0
        %5710 = vdwg.mxu0
        %v5711 = vadd.f32 %v5321, %v5553
        %v5712 = vadd.f32 %v5322, %v5558
        %v5713 = vadd.f32 %v5323, %v5563
        %v5714 = vadd.f32 %v5324, %v5568
        %v5715 = vadd.f32 %v5325, %v5573
        %v5716 = vadd.f32 %v5326, %v5578
        %v5717 = vadd.f32 %v5327, %v5583
        %v5718 = vadd.f32 %v5328, %v5588
        %v5719 = vadd.f32 %v5329, %v5593
        %v5720 = vadd.f32 %v5330, %v5598
        %v5721 = vadd.f32 %v5331, %v5603
        %v5722 = vadd.f32 %v5332, %v5608
        %v5723 = vadd.f32 %v5333, %v5613
        %v5724 = vadd.f32 %v5334, %v5618
        %v5725 = vadd.f32 %v5335, %v5623
        %v5726 = vadd.f32 %v5336, %v5628
        %v5727 = vadd.f32 %v5337, %v5633
        %v5728 = vadd.f32 %v5338, %v5638
        %v5729 = vadd.f32 %v5339, %v5643
        %v5730 = vadd.f32 %v5340, %v5648
        %v5731 = vadd.f32 %v5341, %v5653
        %v5732 = vadd.f32 %v5342, %v5658
        %v5733 = vadd.f32 %v5343, %v5663
        %v5734 = vadd.f32 %v5344, %v5668
        %v5735 = vadd.f32 %v5345, %v5673
        %v5736 = vadd.f32 %v5346, %v5678
        %v5737 = vadd.f32 %v5347, %v5683
        %v5738 = vadd.f32 %v5348, %v5688
        %v5739 = vadd.f32 %v5349, %v5693
        %v5740 = vadd.f32 %v5350, %v5698
        %v5741 = vadd.f32 %v5351, %v5703
        %v5742 = vadd.f32 %v5352, %v5708
        %v5743 = vld [vmem:[%s4214 + $0x6] sm:$0xff]
        %v5744 = vld [vmem:[%s4214 + $0xe] sm:$0xff]
        %v5745 = vld [vmem:[%s4214 + $0x26] sm:$0xff]
        %v5746 = vld [vmem:[%s4214 + $0x2e] sm:$0xff]
        %v5747 = vld [vmem:[%s4214 + $0x46] sm:$0xff]
        %v5748 = vld [vmem:[%s4214 + $0x4e] sm:$0xff]
        %v5749 = vld [vmem:[%s4214 + $0x66] sm:$0xff]
        %v5750 = vld [vmem:[%s4214 + $0x6e] sm:$0xff]
        %v5751 = vld [vmem:[%s4214 + $0x86] sm:$0xff]
        %v5752 = vld [vmem:[%s4214 + $0x8e] sm:$0xff]
        %v5753 = vld [vmem:[%s4214 + $0xa6] sm:$0xff]
        %v5754 = vld [vmem:[%s4214 + $0xae] sm:$0xff]
        %v5755 = vld [vmem:[%s4214 + $0xc6] sm:$0xff]
        %v5756 = vld [vmem:[%s4214 + $0xce] sm:$0xff]
        %v5757 = vld [vmem:[%s4214 + $0xe6] sm:$0xff]
        %v5758 = vld [vmem:[%s4214 + $0xee] sm:$0xff]
        %v5759 = vld [vmem:[%s4214 + $0x106] sm:$0xff]
        %v5760 = vld [vmem:[%s4214 + $0x10e] sm:$0xff]
        %v5761 = vld [vmem:[%s4214 + $0x126] sm:$0xff]
        %v5762 = vld [vmem:[%s4214 + $0x12e] sm:$0xff]
        %v5763 = vld [vmem:[%s4214 + $0x146] sm:$0xff]
        %v5764 = vld [vmem:[%s4214 + $0x14e] sm:$0xff]
        %v5765 = vld [vmem:[%s4214 + $0x166] sm:$0xff]
        %v5766 = vld [vmem:[%s4214 + $0x16e] sm:$0xff]
        %v5767 = vld [vmem:[%s4214 + $0x186] sm:$0xff]
        %v5768 = vld [vmem:[%s4214 + $0x18e] sm:$0xff]
        %v5769 = vld [vmem:[%s4214 + $0x1a6] sm:$0xff]
        %v5770 = vld [vmem:[%s4214 + $0x1ae] sm:$0xff]
        %v5771 = vld [vmem:[%s4214 + $0x1c6] sm:$0xff]
        %v5772 = vld [vmem:[%s4214 + $0x1ce] sm:$0xff]
        %v5773 = vld [vmem:[%s4214 + $0x1e6] sm:$0xff]
        %v5774 = vld [vmem:[%s4214 + $0x1ee] sm:$0xff]
        %s5775 = scalar_lea.vmem %s3, 16
        %v5776 = vld [vmem:[%s5775] sm:$0xf]
        %v5778 = vsel %vm478, %v5743, 0
        %v5781 = vsel %vm478, %v5744, 0
        %v5784 = vsel %vm478, %v5745, 0
        %v5787 = vsel %vm478, %v5746, 0
        %v5790 = vsel %vm478, %v5747, 0
        %v5793 = vsel %vm478, %v5748, 0
        %v5796 = vsel %vm478, %v5749, 0
        %v5799 = vsel %vm478, %v5750, 0
        %v5802 = vsel %vm478, %v5751, 0
        %v5805 = vsel %vm478, %v5752, 0
        %v5808 = vsel %vm478, %v5753, 0
        %v5811 = vsel %vm478, %v5754, 0
        %v5814 = vsel %vm478, %v5755, 0
        %v5817 = vsel %vm478, %v5756, 0
        %v5820 = vsel %vm478, %v5757, 0
        %v5823 = vsel %vm478, %v5758, 0
        %v5826 = vsel %vm478, %v5759, 0
        %v5829 = vsel %vm478, %v5760, 0
        %v5832 = vsel %vm478, %v5761, 0
        %v5835 = vsel %vm478, %v5762, 0
        %v5838 = vsel %vm478, %v5763, 0
        %v5841 = vsel %vm478, %v5764, 0
        %v5844 = vsel %vm478, %v5765, 0
        %v5847 = vsel %vm478, %v5766, 0
        %v5850 = vsel %vm478, %v5767, 0
        %v5853 = vsel %vm478, %v5768, 0
        %v5856 = vsel %vm478, %v5769, 0
        %v5859 = vsel %vm478, %v5770, 0
        %v5862 = vsel %vm478, %v5771, 0
        %v5865 = vsel %vm478, %v5772, 0
        %v5868 = vsel %vm478, %v5773, 0
        %v5871 = vsel %vm478, %v5774, 0
        %v5874 = vsel %vm4410, %v5776, 0
        %5876 = vmatprep.subr.mxu0 0.0
        %5877 = vmatpush1.msra.mxu0 0.0
        %5878 = vmatprep.subr.mxu0 0.0
        %5879 = vmatpush1.msra.mxu0 0.0
        %5880 = vmatprep.subr.mxu0 0.0
        %5881 = vmatpush1.msra.mxu0 0.0
        %5882 = vmatprep.subr.mxu0 0.0
        %5883 = vmatpush1.msra.mxu0 0.0
        %5884 = vmatprep.subr.mxu0 0.0
        %5885 = vmatpush1.msra.mxu0 0.0
        %5886 = vmatprep.subr.mxu0 0.0
        %5887 = vmatpush1.msra.mxu0 0.0
        %5888 = vmatprep.subr.mxu0 0.0
        %5889 = vmatpush1.msra.mxu0 0.0
        %5890 = vmatprep.subr.mxu0 0.0
        %5891 = vmatpush1.msra.mxu0 0.0
        %5892 = vmatprep.subr.mxu0 0.0
        %5893 = vmatpush1.msra.mxu0 0.0
        %5894 = vmatprep.subr.mxu0 0.0
        %5895 = vmatpush1.msra.mxu0 0.0
        %5896 = vmatprep.subr.mxu0 0.0
        %5897 = vmatpush1.msra.mxu0 0.0
        %5898 = vmatprep.subr.mxu0 0.0
        %5899 = vmatpush1.msra.mxu0 0.0
        %5900 = vmatprep.subr.mxu0 0.0
        %5901 = vmatpush1.msra.mxu0 0.0
        %5902 = vmatprep.subr.mxu0 0.0
        %5903 = vmatpush1.msra.mxu0 0.0
        %5904 = vmatprep.subr.mxu0 0.0
        %5905 = vmatpush1.msra.mxu0 0.0
        %5906 = vmatprep.subr.mxu0 0.0
        %5907 = vmatpush1.msra.mxu0 %v5874
        %5908 = vmatprep.subr.mxu0 0.0
        %5909 = vmatpush2.msra.mxu0 0.0
        %5910 = vmatprep.subr.mxu0 0.0
        %5911 = vmatpush2.msra.mxu0 0.0
        %5912 = vmatprep.subr.mxu0 0.0
        %5913 = vmatpush2.msra.mxu0 0.0
        %5914 = vmatprep.subr.mxu0 0.0
        %5915 = vmatpush2.msra.mxu0 0.0
        %5916 = vmatprep.subr.mxu0 0.0
        %5917 = vmatpush2.msra.mxu0 0.0
        %5918 = vmatprep.subr.mxu0 0.0
        %5919 = vmatpush2.msra.mxu0 0.0
        %5920 = vmatprep.subr.mxu0 0.0
        %5921 = vmatpush2.msra.mxu0 0.0
        %5922 = vmatprep.subr.mxu0 0.0
        %5923 = vmatpush2.msra.mxu0 0.0
        %5924 = vmatprep.subr.mxu0 0.0
        %5925 = vmatpush2.msra.mxu0 0.0
        %5926 = vmatprep.subr.mxu0 0.0
        %5927 = vmatpush2.msra.mxu0 0.0
        %5928 = vmatprep.subr.mxu0 0.0
        %5929 = vmatpush2.msra.mxu0 0.0
        %5930 = vmatprep.subr.mxu0 0.0
        %5931 = vmatpush2.msra.mxu0 0.0
        %5932 = vmatprep.subr.mxu0 0.0
        %5933 = vmatpush2.msra.mxu0 0.0
        %5934 = vmatprep.subr.mxu0 0.0
        %5935 = vmatpush2.msra.mxu0 0.0
        %5936 = vmatprep.subr.mxu0 0.0
        %5937 = vmatpush2.msra.mxu0 0.0
        %5938 = vmatprep.subr.mxu0 0.0
        %5939 = vmatpush2.msra.mxu0 0.0
        %5940 = vmatprep.mubr.f32.mxu0 0.0
        %5941 = vmatmul.mubr.f32.gmra.mxu0 %v5778
        %v5942 = vpop.f32.mrf.mxu0
        %v5943 = vadd.f32 0.0, %v5942
        %v5944 = vpop.f32.mrf.mxu0
        %5945 = vmatprep.mubr.f32.mxu0 0.0
        %5946 = vmatmul.mubr.f32.gmra.mxu0 %v5781
        %v5947 = vpop.f32.mrf.mxu0
        %v5948 = vadd.f32 0.0, %v5947
        %v5949 = vpop.f32.mrf.mxu0
        %5950 = vmatprep.mubr.f32.mxu0 0.0
        %5951 = vmatmul.mubr.f32.gmra.mxu0 %v5784
        %v5952 = vpop.f32.mrf.mxu0
        %v5953 = vadd.f32 0.0, %v5952
        %v5954 = vpop.f32.mrf.mxu0
        %5955 = vmatprep.mubr.f32.mxu0 0.0
        %5956 = vmatmul.mubr.f32.gmra.mxu0 %v5787
        %v5957 = vpop.f32.mrf.mxu0
        %v5958 = vadd.f32 0.0, %v5957
        %v5959 = vpop.f32.mrf.mxu0
        %5960 = vmatprep.mubr.f32.mxu0 0.0
        %5961 = vmatmul.mubr.f32.gmra.mxu0 %v5790
        %v5962 = vpop.f32.mrf.mxu0
        %v5963 = vadd.f32 0.0, %v5962
        %v5964 = vpop.f32.mrf.mxu0
        %5965 = vmatprep.mubr.f32.mxu0 0.0
        %5966 = vmatmul.mubr.f32.gmra.mxu0 %v5793
        %v5967 = vpop.f32.mrf.mxu0
        %v5968 = vadd.f32 0.0, %v5967
        %v5969 = vpop.f32.mrf.mxu0
        %5970 = vmatprep.mubr.f32.mxu0 0.0
        %5971 = vmatmul.mubr.f32.gmra.mxu0 %v5796
        %v5972 = vpop.f32.mrf.mxu0
        %v5973 = vadd.f32 0.0, %v5972
        %v5974 = vpop.f32.mrf.mxu0
        %5975 = vmatprep.mubr.f32.mxu0 0.0
        %5976 = vmatmul.mubr.f32.gmra.mxu0 %v5799
        %v5977 = vpop.f32.mrf.mxu0
        %v5978 = vadd.f32 0.0, %v5977
        %v5979 = vpop.f32.mrf.mxu0
        %5980 = vmatprep.mubr.f32.mxu0 0.0
        %5981 = vmatmul.mubr.f32.gmra.mxu0 %v5802
        %v5982 = vpop.f32.mrf.mxu0
        %v5983 = vadd.f32 0.0, %v5982
        %v5984 = vpop.f32.mrf.mxu0
        %5985 = vmatprep.mubr.f32.mxu0 0.0
        %5986 = vmatmul.mubr.f32.gmra.mxu0 %v5805
        %v5987 = vpop.f32.mrf.mxu0
        %v5988 = vadd.f32 0.0, %v5987
        %v5989 = vpop.f32.mrf.mxu0
        %5990 = vmatprep.mubr.f32.mxu0 0.0
        %5991 = vmatmul.mubr.f32.gmra.mxu0 %v5808
        %v5992 = vpop.f32.mrf.mxu0
        %v5993 = vadd.f32 0.0, %v5992
        %v5994 = vpop.f32.mrf.mxu0
        %5995 = vmatprep.mubr.f32.mxu0 0.0
        %5996 = vmatmul.mubr.f32.gmra.mxu0 %v5811
        %v5997 = vpop.f32.mrf.mxu0
        %v5998 = vadd.f32 0.0, %v5997
        %v5999 = vpop.f32.mrf.mxu0
        %6000 = vmatprep.mubr.f32.mxu0 0.0
        %6001 = vmatmul.mubr.f32.gmra.mxu0 %v5814
        %v6002 = vpop.f32.mrf.mxu0
        %v6003 = vadd.f32 0.0, %v6002
        %v6004 = vpop.f32.mrf.mxu0
        %6005 = vmatprep.mubr.f32.mxu0 0.0
        %6006 = vmatmul.mubr.f32.gmra.mxu0 %v5817
        %v6007 = vpop.f32.mrf.mxu0
        %v6008 = vadd.f32 0.0, %v6007
        %v6009 = vpop.f32.mrf.mxu0
        %6010 = vmatprep.mubr.f32.mxu0 0.0
        %6011 = vmatmul.mubr.f32.gmra.mxu0 %v5820
        %v6012 = vpop.f32.mrf.mxu0
        %v6013 = vadd.f32 0.0, %v6012
        %v6014 = vpop.f32.mrf.mxu0
        %6015 = vmatprep.mubr.f32.mxu0 0.0
        %6016 = vmatmul.mubr.f32.gmra.mxu0 %v5823
        %v6017 = vpop.f32.mrf.mxu0
        %v6018 = vadd.f32 0.0, %v6017
        %v6019 = vpop.f32.mrf.mxu0
        %6020 = vmatprep.mubr.f32.mxu0 0.0
        %6021 = vmatmul.mubr.f32.gmra.mxu0 %v5826
        %v6022 = vpop.f32.mrf.mxu0
        %v6023 = vadd.f32 0.0, %v6022
        %v6024 = vpop.f32.mrf.mxu0
        %6025 = vmatprep.mubr.f32.mxu0 0.0
        %6026 = vmatmul.mubr.f32.gmra.mxu0 %v5829
        %v6027 = vpop.f32.mrf.mxu0
        %v6028 = vadd.f32 0.0, %v6027
        %v6029 = vpop.f32.mrf.mxu0
        %6030 = vmatprep.mubr.f32.mxu0 0.0
        %6031 = vmatmul.mubr.f32.gmra.mxu0 %v5832
        %v6032 = vpop.f32.mrf.mxu0
        %v6033 = vadd.f32 0.0, %v6032
        %v6034 = vpop.f32.mrf.mxu0
        %6035 = vmatprep.mubr.f32.mxu0 0.0
        %6036 = vmatmul.mubr.f32.gmra.mxu0 %v5835
        %v6037 = vpop.f32.mrf.mxu0
        %v6038 = vadd.f32 0.0, %v6037
        %v6039 = vpop.f32.mrf.mxu0
        %6040 = vmatprep.mubr.f32.mxu0 0.0
        %6041 = vmatmul.mubr.f32.gmra.mxu0 %v5838
        %v6042 = vpop.f32.mrf.mxu0
        %v6043 = vadd.f32 0.0, %v6042
        %v6044 = vpop.f32.mrf.mxu0
        %6045 = vmatprep.mubr.f32.mxu0 0.0
        %6046 = vmatmul.mubr.f32.gmra.mxu0 %v5841
        %v6047 = vpop.f32.mrf.mxu0
        %v6048 = vadd.f32 0.0, %v6047
        %v6049 = vpop.f32.mrf.mxu0
        %6050 = vmatprep.mubr.f32.mxu0 0.0
        %6051 = vmatmul.mubr.f32.gmra.mxu0 %v5844
        %v6052 = vpop.f32.mrf.mxu0
        %v6053 = vadd.f32 0.0, %v6052
        %v6054 = vpop.f32.mrf.mxu0
        %6055 = vmatprep.mubr.f32.mxu0 0.0
        %6056 = vmatmul.mubr.f32.gmra.mxu0 %v5847
        %v6057 = vpop.f32.mrf.mxu0
        %v6058 = vadd.f32 0.0, %v6057
        %v6059 = vpop.f32.mrf.mxu0
        %6060 = vmatprep.mubr.f32.mxu0 0.0
        %6061 = vmatmul.mubr.f32.gmra.mxu0 %v5850
        %v6062 = vpop.f32.mrf.mxu0
        %v6063 = vadd.f32 0.0, %v6062
        %v6064 = vpop.f32.mrf.mxu0
        %6065 = vmatprep.mubr.f32.mxu0 0.0
        %6066 = vmatmul.mubr.f32.gmra.mxu0 %v5853
        %v6067 = vpop.f32.mrf.mxu0
        %v6068 = vadd.f32 0.0, %v6067
        %v6069 = vpop.f32.mrf.mxu0
        %6070 = vmatprep.mubr.f32.mxu0 0.0
        %6071 = vmatmul.mubr.f32.gmra.mxu0 %v5856
        %v6072 = vpop.f32.mrf.mxu0
        %v6073 = vadd.f32 0.0, %v6072
        %v6074 = vpop.f32.mrf.mxu0
        %6075 = vmatprep.mubr.f32.mxu0 0.0
        %6076 = vmatmul.mubr.f32.gmra.mxu0 %v5859
        %v6077 = vpop.f32.mrf.mxu0
        %v6078 = vadd.f32 0.0, %v6077
        %v6079 = vpop.f32.mrf.mxu0
        %6080 = vmatprep.mubr.f32.mxu0 0.0
        %6081 = vmatmul.mubr.f32.gmra.mxu0 %v5862
        %v6082 = vpop.f32.mrf.mxu0
        %v6083 = vadd.f32 0.0, %v6082
        %v6084 = vpop.f32.mrf.mxu0
        %6085 = vmatprep.mubr.f32.mxu0 0.0
        %6086 = vmatmul.mubr.f32.gmra.mxu0 %v5865
        %v6087 = vpop.f32.mrf.mxu0
        %v6088 = vadd.f32 0.0, %v6087
        %v6089 = vpop.f32.mrf.mxu0
        %6090 = vmatprep.mubr.f32.mxu0 0.0
        %6091 = vmatmul.mubr.f32.gmra.mxu0 %v5868
        %v6092 = vpop.f32.mrf.mxu0
        %v6093 = vadd.f32 0.0, %v6092
        %v6094 = vpop.f32.mrf.mxu0
        %6095 = vmatprep.mubr.f32.mxu0 0.0
        %6096 = vmatmul.mubr.f32.gmra.mxu0 %v5871
        %v6097 = vpop.f32.mrf.mxu0
        %v6098 = vadd.f32 0.0, %v6097
        %v6099 = vpop.f32.mrf.mxu0
        %6100 = vdwg.mxu0
        %v6101 = vadd.f32 %v5711, %v5943
        %v6102 = vadd.f32 %v5712, %v5948
        %v6103 = vadd.f32 %v5713, %v5953
        %v6104 = vadd.f32 %v5714, %v5958
        %v6105 = vadd.f32 %v5715, %v5963
        %v6106 = vadd.f32 %v5716, %v5968
        %v6107 = vadd.f32 %v5717, %v5973
        %v6108 = vadd.f32 %v5718, %v5978
        %v6109 = vadd.f32 %v5719, %v5983
        %v6110 = vadd.f32 %v5720, %v5988
        %v6111 = vadd.f32 %v5721, %v5993
        %v6112 = vadd.f32 %v5722, %v5998
        %v6113 = vadd.f32 %v5723, %v6003
        %v6114 = vadd.f32 %v5724, %v6008
        %v6115 = vadd.f32 %v5725, %v6013
        %v6116 = vadd.f32 %v5726, %v6018
        %v6117 = vadd.f32 %v5727, %v6023
        %v6118 = vadd.f32 %v5728, %v6028
        %v6119 = vadd.f32 %v5729, %v6033
        %v6120 = vadd.f32 %v5730, %v6038
        %v6121 = vadd.f32 %v5731, %v6043
        %v6122 = vadd.f32 %v5732, %v6048
        %v6123 = vadd.f32 %v5733, %v6053
        %v6124 = vadd.f32 %v5734, %v6058
        %v6125 = vadd.f32 %v5735, %v6063
        %v6126 = vadd.f32 %v5736, %v6068
        %v6127 = vadd.f32 %v5737, %v6073
        %v6128 = vadd.f32 %v5738, %v6078
        %v6129 = vadd.f32 %v5739, %v6083
        %v6130 = vadd.f32 %v5740, %v6088
        %v6131 = vadd.f32 %v5741, %v6093
        %v6132 = vadd.f32 %v5742, %v6098
        %v6133 = vld [vmem:[%s4214 + $0xc] sm:$0xff]
        %v6134 = vld [vmem:[%s4214 + $0x14] sm:$0xff]
        %v6135 = vld [vmem:[%s4214 + $0x2c] sm:$0xff]
        %v6136 = vld [vmem:[%s4214 + $0x34] sm:$0xff]
        %v6137 = vld [vmem:[%s4214 + $0x4c] sm:$0xff]
        %v6138 = vld [vmem:[%s4214 + $0x54] sm:$0xff]
        %v6139 = vld [vmem:[%s4214 + $0x6c] sm:$0xff]
        %v6140 = vld [vmem:[%s4214 + $0x74] sm:$0xff]
        %v6141 = vld [vmem:[%s4214 + $0x8c] sm:$0xff]
        %v6142 = vld [vmem:[%s4214 + $0x94] sm:$0xff]
        %v6143 = vld [vmem:[%s4214 + $0xac] sm:$0xff]
        %v6144 = vld [vmem:[%s4214 + $0xb4] sm:$0xff]
        %v6145 = vld [vmem:[%s4214 + $0xcc] sm:$0xff]
        %v6146 = vld [vmem:[%s4214 + $0xd4] sm:$0xff]
        %v6147 = vld [vmem:[%s4214 + $0xec] sm:$0xff]
        %v6148 = vld [vmem:[%s4214 + $0xf4] sm:$0xff]
        %v6149 = vld [vmem:[%s4214 + $0x10c] sm:$0xff]
        %v6150 = vld [vmem:[%s4214 + $0x114] sm:$0xff]
        %v6151 = vld [vmem:[%s4214 + $0x12c] sm:$0xff]
        %v6152 = vld [vmem:[%s4214 + $0x134] sm:$0xff]
        %v6153 = vld [vmem:[%s4214 + $0x14c] sm:$0xff]
        %v6154 = vld [vmem:[%s4214 + $0x154] sm:$0xff]
        %v6155 = vld [vmem:[%s4214 + $0x16c] sm:$0xff]
        %v6156 = vld [vmem:[%s4214 + $0x174] sm:$0xff]
        %v6157 = vld [vmem:[%s4214 + $0x18c] sm:$0xff]
        %v6158 = vld [vmem:[%s4214 + $0x194] sm:$0xff]
        %v6159 = vld [vmem:[%s4214 + $0x1ac] sm:$0xff]
        %v6160 = vld [vmem:[%s4214 + $0x1b4] sm:$0xff]
        %v6161 = vld [vmem:[%s4214 + $0x1cc] sm:$0xff]
        %v6162 = vld [vmem:[%s4214 + $0x1d4] sm:$0xff]
        %v6163 = vld [vmem:[%s4214 + $0x1ec] sm:$0xff]
        %v6164 = vld [vmem:[%s4214 + $0x1f4] sm:$0xff]
        %s6165 = scalar_lea.vmem %s3, 20
        %v6166 = vld [vmem:[%s6165] sm:$0xf]
        %v6168 = vsel %vm478, %v6133, 0
        %v6171 = vsel %vm478, %v6134, 0
        %v6174 = vsel %vm478, %v6135, 0
        %v6177 = vsel %vm478, %v6136, 0
        %v6180 = vsel %vm478, %v6137, 0
        %v6183 = vsel %vm478, %v6138, 0
        %v6186 = vsel %vm478, %v6139, 0
        %v6189 = vsel %vm478, %v6140, 0
        %v6192 = vsel %vm478, %v6141, 0
        %v6195 = vsel %vm478, %v6142, 0
        %v6198 = vsel %vm478, %v6143, 0
        %v6201 = vsel %vm478, %v6144, 0
        %v6204 = vsel %vm478, %v6145, 0
        %v6207 = vsel %vm478, %v6146, 0
        %v6210 = vsel %vm478, %v6147, 0
        %v6213 = vsel %vm478, %v6148, 0
        %v6216 = vsel %vm478, %v6149, 0
        %v6219 = vsel %vm478, %v6150, 0
        %v6222 = vsel %vm478, %v6151, 0
        %v6225 = vsel %vm478, %v6152, 0
        %v6228 = vsel %vm478, %v6153, 0
        %v6231 = vsel %vm478, %v6154, 0
        %v6234 = vsel %vm478, %v6155, 0
        %v6237 = vsel %vm478, %v6156, 0
        %v6240 = vsel %vm478, %v6157, 0
        %v6243 = vsel %vm478, %v6158, 0
        %v6246 = vsel %vm478, %v6159, 0
        %v6249 = vsel %vm478, %v6160, 0
        %v6252 = vsel %vm478, %v6161, 0
        %v6255 = vsel %vm478, %v6162, 0
        %v6258 = vsel %vm478, %v6163, 0
        %v6261 = vsel %vm478, %v6164, 0
        %v6264 = vsel %vm4410, %v6166, 0
        %6266 = vmatprep.subr.mxu0 0.0
        %6267 = vmatpush1.msra.mxu0 0.0
        %6268 = vmatprep.subr.mxu0 0.0
        %6269 = vmatpush1.msra.mxu0 0.0
        %6270 = vmatprep.subr.mxu0 0.0
        %6271 = vmatpush1.msra.mxu0 0.0
        %6272 = vmatprep.subr.mxu0 0.0
        %6273 = vmatpush1.msra.mxu0 0.0
        %6274 = vmatprep.subr.mxu0 0.0
        %6275 = vmatpush1.msra.mxu0 0.0
        %6276 = vmatprep.subr.mxu0 0.0
        %6277 = vmatpush1.msra.mxu0 0.0
        %6278 = vmatprep.subr.mxu0 0.0
        %6279 = vmatpush1.msra.mxu0 0.0
        %6280 = vmatprep.subr.mxu0 0.0
        %6281 = vmatpush1.msra.mxu0 0.0
        %6282 = vmatprep.subr.mxu0 0.0
        %6283 = vmatpush1.msra.mxu0 0.0
        %6284 = vmatprep.subr.mxu0 0.0
        %6285 = vmatpush1.msra.mxu0 0.0
        %6286 = vmatprep.subr.mxu0 0.0
        %6287 = vmatpush1.msra.mxu0 0.0
        %6288 = vmatprep.subr.mxu0 0.0
        %6289 = vmatpush1.msra.mxu0 0.0
        %6290 = vmatprep.subr.mxu0 0.0
        %6291 = vmatpush1.msra.mxu0 0.0
        %6292 = vmatprep.subr.mxu0 0.0
        %6293 = vmatpush1.msra.mxu0 0.0
        %6294 = vmatprep.subr.mxu0 0.0
        %6295 = vmatpush1.msra.mxu0 0.0
        %6296 = vmatprep.subr.mxu0 0.0
        %6297 = vmatpush1.msra.mxu0 %v6264
        %6298 = vmatprep.subr.mxu0 0.0
        %6299 = vmatpush2.msra.mxu0 0.0
        %6300 = vmatprep.subr.mxu0 0.0
        %6301 = vmatpush2.msra.mxu0 0.0
        %6302 = vmatprep.subr.mxu0 0.0
        %6303 = vmatpush2.msra.mxu0 0.0
        %6304 = vmatprep.subr.mxu0 0.0
        %6305 = vmatpush2.msra.mxu0 0.0
        %6306 = vmatprep.subr.mxu0 0.0
        %6307 = vmatpush2.msra.mxu0 0.0
        %6308 = vmatprep.subr.mxu0 0.0
        %6309 = vmatpush2.msra.mxu0 0.0
        %6310 = vmatprep.subr.mxu0 0.0
        %6311 = vmatpush2.msra.mxu0 0.0
        %6312 = vmatprep.subr.mxu0 0.0
        %6313 = vmatpush2.msra.mxu0 0.0
        %6314 = vmatprep.subr.mxu0 0.0
        %6315 = vmatpush2.msra.mxu0 0.0
        %6316 = vmatprep.subr.mxu0 0.0
        %6317 = vmatpush2.msra.mxu0 0.0
        %6318 = vmatprep.subr.mxu0 0.0
        %6319 = vmatpush2.msra.mxu0 0.0
        %6320 = vmatprep.subr.mxu0 0.0
        %6321 = vmatpush2.msra.mxu0 0.0
        %6322 = vmatprep.subr.mxu0 0.0
        %6323 = vmatpush2.msra.mxu0 0.0
        %6324 = vmatprep.subr.mxu0 0.0
        %6325 = vmatpush2.msra.mxu0 0.0
        %6326 = vmatprep.subr.mxu0 0.0
        %6327 = vmatpush2.msra.mxu0 0.0
        %6328 = vmatprep.subr.mxu0 0.0
        %6329 = vmatpush2.msra.mxu0 0.0
        %6330 = vmatprep.mubr.f32.mxu0 0.0
        %6331 = vmatmul.mubr.f32.gmra.mxu0 %v6168
        %v6332 = vpop.f32.mrf.mxu0
        %v6333 = vadd.f32 0.0, %v6332
        %v6334 = vpop.f32.mrf.mxu0
        %6335 = vmatprep.mubr.f32.mxu0 0.0
        %6336 = vmatmul.mubr.f32.gmra.mxu0 %v6171
        %v6337 = vpop.f32.mrf.mxu0
        %v6338 = vadd.f32 0.0, %v6337
        %v6339 = vpop.f32.mrf.mxu0
        %6340 = vmatprep.mubr.f32.mxu0 0.0
        %6341 = vmatmul.mubr.f32.gmra.mxu0 %v6174
        %v6342 = vpop.f32.mrf.mxu0
        %v6343 = vadd.f32 0.0, %v6342
        %v6344 = vpop.f32.mrf.mxu0
        %6345 = vmatprep.mubr.f32.mxu0 0.0
        %6346 = vmatmul.mubr.f32.gmra.mxu0 %v6177
        %v6347 = vpop.f32.mrf.mxu0
        %v6348 = vadd.f32 0.0, %v6347
        %v6349 = vpop.f32.mrf.mxu0
        %6350 = vmatprep.mubr.f32.mxu0 0.0
        %6351 = vmatmul.mubr.f32.gmra.mxu0 %v6180
        %v6352 = vpop.f32.mrf.mxu0
        %v6353 = vadd.f32 0.0, %v6352
        %v6354 = vpop.f32.mrf.mxu0
        %6355 = vmatprep.mubr.f32.mxu0 0.0
        %6356 = vmatmul.mubr.f32.gmra.mxu0 %v6183
        %v6357 = vpop.f32.mrf.mxu0
        %v6358 = vadd.f32 0.0, %v6357
        %v6359 = vpop.f32.mrf.mxu0
        %6360 = vmatprep.mubr.f32.mxu0 0.0
        %6361 = vmatmul.mubr.f32.gmra.mxu0 %v6186
        %v6362 = vpop.f32.mrf.mxu0
        %v6363 = vadd.f32 0.0, %v6362
        %v6364 = vpop.f32.mrf.mxu0
        %6365 = vmatprep.mubr.f32.mxu0 0.0
        %6366 = vmatmul.mubr.f32.gmra.mxu0 %v6189
        %v6367 = vpop.f32.mrf.mxu0
        %v6368 = vadd.f32 0.0, %v6367
        %v6369 = vpop.f32.mrf.mxu0
        %6370 = vmatprep.mubr.f32.mxu0 0.0
        %6371 = vmatmul.mubr.f32.gmra.mxu0 %v6192
        %v6372 = vpop.f32.mrf.mxu0
        %v6373 = vadd.f32 0.0, %v6372
        %v6374 = vpop.f32.mrf.mxu0
        %6375 = vmatprep.mubr.f32.mxu0 0.0
        %6376 = vmatmul.mubr.f32.gmra.mxu0 %v6195
        %v6377 = vpop.f32.mrf.mxu0
        %v6378 = vadd.f32 0.0, %v6377
        %v6379 = vpop.f32.mrf.mxu0
        %6380 = vmatprep.mubr.f32.mxu0 0.0
        %6381 = vmatmul.mubr.f32.gmra.mxu0 %v6198
        %v6382 = vpop.f32.mrf.mxu0
        %v6383 = vadd.f32 0.0, %v6382
        %v6384 = vpop.f32.mrf.mxu0
        %6385 = vmatprep.mubr.f32.mxu0 0.0
        %6386 = vmatmul.mubr.f32.gmra.mxu0 %v6201
        %v6387 = vpop.f32.mrf.mxu0
        %v6388 = vadd.f32 0.0, %v6387
        %v6389 = vpop.f32.mrf.mxu0
        %6390 = vmatprep.mubr.f32.mxu0 0.0
        %6391 = vmatmul.mubr.f32.gmra.mxu0 %v6204
        %v6392 = vpop.f32.mrf.mxu0
        %v6393 = vadd.f32 0.0, %v6392
        %v6394 = vpop.f32.mrf.mxu0
        %6395 = vmatprep.mubr.f32.mxu0 0.0
        %6396 = vmatmul.mubr.f32.gmra.mxu0 %v6207
        %v6397 = vpop.f32.mrf.mxu0
        %v6398 = vadd.f32 0.0, %v6397
        %v6399 = vpop.f32.mrf.mxu0
        %6400 = vmatprep.mubr.f32.mxu0 0.0
        %6401 = vmatmul.mubr.f32.gmra.mxu0 %v6210
        %v6402 = vpop.f32.mrf.mxu0
        %v6403 = vadd.f32 0.0, %v6402
        %v6404 = vpop.f32.mrf.mxu0
        %6405 = vmatprep.mubr.f32.mxu0 0.0
        %6406 = vmatmul.mubr.f32.gmra.mxu0 %v6213
        %v6407 = vpop.f32.mrf.mxu0
        %v6408 = vadd.f32 0.0, %v6407
        %v6409 = vpop.f32.mrf.mxu0
        %6410 = vmatprep.mubr.f32.mxu0 0.0
        %6411 = vmatmul.mubr.f32.gmra.mxu0 %v6216
        %v6412 = vpop.f32.mrf.mxu0
        %v6413 = vadd.f32 0.0, %v6412
        %v6414 = vpop.f32.mrf.mxu0
        %6415 = vmatprep.mubr.f32.mxu0 0.0
        %6416 = vmatmul.mubr.f32.gmra.mxu0 %v6219
        %v6417 = vpop.f32.mrf.mxu0
        %v6418 = vadd.f32 0.0, %v6417
        %v6419 = vpop.f32.mrf.mxu0
        %6420 = vmatprep.mubr.f32.mxu0 0.0
        %6421 = vmatmul.mubr.f32.gmra.mxu0 %v6222
        %v6422 = vpop.f32.mrf.mxu0
        %v6423 = vadd.f32 0.0, %v6422
        %v6424 = vpop.f32.mrf.mxu0
        %6425 = vmatprep.mubr.f32.mxu0 0.0
        %6426 = vmatmul.mubr.f32.gmra.mxu0 %v6225
        %v6427 = vpop.f32.mrf.mxu0
        %v6428 = vadd.f32 0.0, %v6427
        %v6429 = vpop.f32.mrf.mxu0
        %6430 = vmatprep.mubr.f32.mxu0 0.0
        %6431 = vmatmul.mubr.f32.gmra.mxu0 %v6228
        %v6432 = vpop.f32.mrf.mxu0
        %v6433 = vadd.f32 0.0, %v6432
        %v6434 = vpop.f32.mrf.mxu0
        %6435 = vmatprep.mubr.f32.mxu0 0.0
        %6436 = vmatmul.mubr.f32.gmra.mxu0 %v6231
        %v6437 = vpop.f32.mrf.mxu0
        %v6438 = vadd.f32 0.0, %v6437
        %v6439 = vpop.f32.mrf.mxu0
        %6440 = vmatprep.mubr.f32.mxu0 0.0
        %6441 = vmatmul.mubr.f32.gmra.mxu0 %v6234
        %v6442 = vpop.f32.mrf.mxu0
        %v6443 = vadd.f32 0.0, %v6442
        %v6444 = vpop.f32.mrf.mxu0
        %6445 = vmatprep.mubr.f32.mxu0 0.0
        %6446 = vmatmul.mubr.f32.gmra.mxu0 %v6237
        %v6447 = vpop.f32.mrf.mxu0
        %v6448 = vadd.f32 0.0, %v6447
        %v6449 = vpop.f32.mrf.mxu0
        %6450 = vmatprep.mubr.f32.mxu0 0.0
        %6451 = vmatmul.mubr.f32.gmra.mxu0 %v6240
        %v6452 = vpop.f32.mrf.mxu0
        %v6453 = vadd.f32 0.0, %v6452
        %v6454 = vpop.f32.mrf.mxu0
        %6455 = vmatprep.mubr.f32.mxu0 0.0
        %6456 = vmatmul.mubr.f32.gmra.mxu0 %v6243
        %v6457 = vpop.f32.mrf.mxu0
        %v6458 = vadd.f32 0.0, %v6457
        %v6459 = vpop.f32.mrf.mxu0
        %6460 = vmatprep.mubr.f32.mxu0 0.0
        %6461 = vmatmul.mubr.f32.gmra.mxu0 %v6246
        %v6462 = vpop.f32.mrf.mxu0
        %v6463 = vadd.f32 0.0, %v6462
        %v6464 = vpop.f32.mrf.mxu0
        %6465 = vmatprep.mubr.f32.mxu0 0.0
        %6466 = vmatmul.mubr.f32.gmra.mxu0 %v6249
        %v6467 = vpop.f32.mrf.mxu0
        %v6468 = vadd.f32 0.0, %v6467
        %v6469 = vpop.f32.mrf.mxu0
        %6470 = vmatprep.mubr.f32.mxu0 0.0
        %6471 = vmatmul.mubr.f32.gmra.mxu0 %v6252
        %v6472 = vpop.f32.mrf.mxu0
        %v6473 = vadd.f32 0.0, %v6472
        %v6474 = vpop.f32.mrf.mxu0
        %6475 = vmatprep.mubr.f32.mxu0 0.0
        %6476 = vmatmul.mubr.f32.gmra.mxu0 %v6255
        %v6477 = vpop.f32.mrf.mxu0
        %v6478 = vadd.f32 0.0, %v6477
        %v6479 = vpop.f32.mrf.mxu0
        %6480 = vmatprep.mubr.f32.mxu0 0.0
        %6481 = vmatmul.mubr.f32.gmra.mxu0 %v6258
        %v6482 = vpop.f32.mrf.mxu0
        %v6483 = vadd.f32 0.0, %v6482
        %v6484 = vpop.f32.mrf.mxu0
        %6485 = vmatprep.mubr.f32.mxu0 0.0
        %6486 = vmatmul.mubr.f32.gmra.mxu0 %v6261
        %v6487 = vpop.f32.mrf.mxu0
        %v6488 = vadd.f32 0.0, %v6487
        %v6489 = vpop.f32.mrf.mxu0
        %6490 = vdwg.mxu0
        %v6491 = vadd.f32 %v6101, %v6333
        %v6492 = vadd.f32 %v6102, %v6338
        %v6493 = vadd.f32 %v6103, %v6343
        %v6494 = vadd.f32 %v6104, %v6348
        %v6495 = vadd.f32 %v6105, %v6353
        %v6496 = vadd.f32 %v6106, %v6358
        %v6497 = vadd.f32 %v6107, %v6363
        %v6498 = vadd.f32 %v6108, %v6368
        %v6499 = vadd.f32 %v6109, %v6373
        %v6500 = vadd.f32 %v6110, %v6378
        %v6501 = vadd.f32 %v6111, %v6383
        %v6502 = vadd.f32 %v6112, %v6388
        %v6503 = vadd.f32 %v6113, %v6393
        %v6504 = vadd.f32 %v6114, %v6398
        %v6505 = vadd.f32 %v6115, %v6403
        %v6506 = vadd.f32 %v6116, %v6408
        %v6507 = vadd.f32 %v6117, %v6413
        %v6508 = vadd.f32 %v6118, %v6418
        %v6509 = vadd.f32 %v6119, %v6423
        %v6510 = vadd.f32 %v6120, %v6428
        %v6511 = vadd.f32 %v6121, %v6433
        %v6512 = vadd.f32 %v6122, %v6438
        %v6513 = vadd.f32 %v6123, %v6443
        %v6514 = vadd.f32 %v6124, %v6448
        %v6515 = vadd.f32 %v6125, %v6453
        %v6516 = vadd.f32 %v6126, %v6458
        %v6517 = vadd.f32 %v6127, %v6463
        %v6518 = vadd.f32 %v6128, %v6468
        %v6519 = vadd.f32 %v6129, %v6473
        %v6520 = vadd.f32 %v6130, %v6478
        %v6521 = vadd.f32 %v6131, %v6483
        %v6522 = vadd.f32 %v6132, %v6488
        %s6523 = scalar_lea.vmem [#allocation3], 384
        %v6524 = vld [vmem:[%s6523] sm:$0xff]
        %v6525 = vld [vmem:[%s6523 + $0x8] sm:$0xff]
        %v6526 = vld [vmem:[%s6523 + $0x20] sm:$0xff]
        %v6527 = vld [vmem:[%s6523 + $0x28] sm:$0xff]
        %v6528 = vld [vmem:[%s6523 + $0x40] sm:$0xff]
        %v6529 = vld [vmem:[%s6523 + $0x48] sm:$0xff]
        %v6530 = vld [vmem:[%s6523 + $0x60] sm:$0xff]
        %v6531 = vld [vmem:[%s6523 + $0x68] sm:$0xff]
        %v6532 = vld [vmem:[%s6523 + $0x80] sm:$0xff]
        %v6533 = vld [vmem:[%s6523 + $0x88] sm:$0xff]
        %v6534 = vld [vmem:[%s6523 + $0xa0] sm:$0xff]
        %v6535 = vld [vmem:[%s6523 + $0xa8] sm:$0xff]
        %v6536 = vld [vmem:[%s6523 + $0xc0] sm:$0xff]
        %v6537 = vld [vmem:[%s6523 + $0xc8] sm:$0xff]
        %v6538 = vld [vmem:[%s6523 + $0xe0] sm:$0xff]
        %v6539 = vld [vmem:[%s6523 + $0xe8] sm:$0xff]
        %v6540 = vld [vmem:[%s6523 + $0x100] sm:$0xff]
        %v6541 = vld [vmem:[%s6523 + $0x108] sm:$0xff]
        %v6542 = vld [vmem:[%s6523 + $0x120] sm:$0xff]
        %v6543 = vld [vmem:[%s6523 + $0x128] sm:$0xff]
        %v6544 = vld [vmem:[%s6523 + $0x140] sm:$0xff]
        %v6545 = vld [vmem:[%s6523 + $0x148] sm:$0xff]
        %v6546 = vld [vmem:[%s6523 + $0x160] sm:$0xff]
        %v6547 = vld [vmem:[%s6523 + $0x168] sm:$0xff]
        %v6548 = vld [vmem:[%s6523 + $0x180] sm:$0xff]
        %v6549 = vld [vmem:[%s6523 + $0x188] sm:$0xff]
        %v6550 = vld [vmem:[%s6523 + $0x1a0] sm:$0xff]
        %v6551 = vld [vmem:[%s6523 + $0x1a8] sm:$0xff]
        %v6552 = vld [vmem:[%s6523 + $0x1c0] sm:$0xff]
        %v6553 = vld [vmem:[%s6523 + $0x1c8] sm:$0xff]
        %v6554 = vld [vmem:[%s6523 + $0x1e0] sm:$0xff]
        %v6555 = vld [vmem:[%s6523 + $0x1e8] sm:$0xff]
        %s6556 = scalar_lea.vmem %s3, 24
        %v6557 = vld [vmem:[%s6556] sm:$0xf]
        %v6559 = vsel %vm478, %v6524, 0
        %v6562 = vsel %vm478, %v6525, 0
        %v6565 = vsel %vm478, %v6526, 0
        %v6568 = vsel %vm478, %v6527, 0
        %v6571 = vsel %vm478, %v6528, 0
        %v6574 = vsel %vm478, %v6529, 0
        %v6577 = vsel %vm478, %v6530, 0
        %v6580 = vsel %vm478, %v6531, 0
        %v6583 = vsel %vm478, %v6532, 0
        %v6586 = vsel %vm478, %v6533, 0
        %v6589 = vsel %vm478, %v6534, 0
        %v6592 = vsel %vm478, %v6535, 0
        %v6595 = vsel %vm478, %v6536, 0
        %v6598 = vsel %vm478, %v6537, 0
        %v6601 = vsel %vm478, %v6538, 0
        %v6604 = vsel %vm478, %v6539, 0
        %v6607 = vsel %vm478, %v6540, 0
        %v6610 = vsel %vm478, %v6541, 0
        %v6613 = vsel %vm478, %v6542, 0
        %v6616 = vsel %vm478, %v6543, 0
        %v6619 = vsel %vm478, %v6544, 0
        %v6622 = vsel %vm478, %v6545, 0
        %v6625 = vsel %vm478, %v6546, 0
        %v6628 = vsel %vm478, %v6547, 0
        %v6631 = vsel %vm478, %v6548, 0
        %v6634 = vsel %vm478, %v6549, 0
        %v6637 = vsel %vm478, %v6550, 0
        %v6640 = vsel %vm478, %v6551, 0
        %v6643 = vsel %vm478, %v6552, 0
        %v6646 = vsel %vm478, %v6553, 0
        %v6649 = vsel %vm478, %v6554, 0
        %v6652 = vsel %vm478, %v6555, 0
        %v6655 = vsel %vm4410, %v6557, 0
        %6657 = vmatprep.subr.mxu0 0.0
        %6658 = vmatpush1.msra.mxu0 0.0
        %6659 = vmatprep.subr.mxu0 0.0
        %6660 = vmatpush1.msra.mxu0 0.0
        %6661 = vmatprep.subr.mxu0 0.0
        %6662 = vmatpush1.msra.mxu0 0.0
        %6663 = vmatprep.subr.mxu0 0.0
        %6664 = vmatpush1.msra.mxu0 0.0
        %6665 = vmatprep.subr.mxu0 0.0
        %6666 = vmatpush1.msra.mxu0 0.0
        %6667 = vmatprep.subr.mxu0 0.0
        %6668 = vmatpush1.msra.mxu0 0.0
        %6669 = vmatprep.subr.mxu0 0.0
        %6670 = vmatpush1.msra.mxu0 0.0
        %6671 = vmatprep.subr.mxu0 0.0
        %6672 = vmatpush1.msra.mxu0 0.0
        %6673 = vmatprep.subr.mxu0 0.0
        %6674 = vmatpush1.msra.mxu0 0.0
        %6675 = vmatprep.subr.mxu0 0.0
        %6676 = vmatpush1.msra.mxu0 0.0
        %6677 = vmatprep.subr.mxu0 0.0
        %6678 = vmatpush1.msra.mxu0 0.0
        %6679 = vmatprep.subr.mxu0 0.0
        %6680 = vmatpush1.msra.mxu0 0.0
        %6681 = vmatprep.subr.mxu0 0.0
        %6682 = vmatpush1.msra.mxu0 0.0
        %6683 = vmatprep.subr.mxu0 0.0
        %6684 = vmatpush1.msra.mxu0 0.0
        %6685 = vmatprep.subr.mxu0 0.0
        %6686 = vmatpush1.msra.mxu0 0.0
        %6687 = vmatprep.subr.mxu0 0.0
        %6688 = vmatpush1.msra.mxu0 %v6655
        %6689 = vmatprep.subr.mxu0 0.0
        %6690 = vmatpush2.msra.mxu0 0.0
        %6691 = vmatprep.subr.mxu0 0.0
        %6692 = vmatpush2.msra.mxu0 0.0
        %6693 = vmatprep.subr.mxu0 0.0
        %6694 = vmatpush2.msra.mxu0 0.0
        %6695 = vmatprep.subr.mxu0 0.0
        %6696 = vmatpush2.msra.mxu0 0.0
        %6697 = vmatprep.subr.mxu0 0.0
        %6698 = vmatpush2.msra.mxu0 0.0
        %6699 = vmatprep.subr.mxu0 0.0
        %6700 = vmatpush2.msra.mxu0 0.0
        %6701 = vmatprep.subr.mxu0 0.0
        %6702 = vmatpush2.msra.mxu0 0.0
        %6703 = vmatprep.subr.mxu0 0.0
        %6704 = vmatpush2.msra.mxu0 0.0
        %6705 = vmatprep.subr.mxu0 0.0
        %6706 = vmatpush2.msra.mxu0 0.0
        %6707 = vmatprep.subr.mxu0 0.0
        %6708 = vmatpush2.msra.mxu0 0.0
        %6709 = vmatprep.subr.mxu0 0.0
        %6710 = vmatpush2.msra.mxu0 0.0
        %6711 = vmatprep.subr.mxu0 0.0
        %6712 = vmatpush2.msra.mxu0 0.0
        %6713 = vmatprep.subr.mxu0 0.0
        %6714 = vmatpush2.msra.mxu0 0.0
        %6715 = vmatprep.subr.mxu0 0.0
        %6716 = vmatpush2.msra.mxu0 0.0
        %6717 = vmatprep.subr.mxu0 0.0
        %6718 = vmatpush2.msra.mxu0 0.0
        %6719 = vmatprep.subr.mxu0 0.0
        %6720 = vmatpush2.msra.mxu0 0.0
        %6721 = vmatprep.mubr.f32.mxu0 0.0
        %6722 = vmatmul.mubr.f32.gmra.mxu0 %v6559
        %v6723 = vpop.f32.mrf.mxu0
        %v6724 = vadd.f32 0.0, %v6723
        %v6725 = vpop.f32.mrf.mxu0
        %6726 = vmatprep.mubr.f32.mxu0 0.0
        %6727 = vmatmul.mubr.f32.gmra.mxu0 %v6562
        %v6728 = vpop.f32.mrf.mxu0
        %v6729 = vadd.f32 0.0, %v6728
        %v6730 = vpop.f32.mrf.mxu0
        %6731 = vmatprep.mubr.f32.mxu0 0.0
        %6732 = vmatmul.mubr.f32.gmra.mxu0 %v6565
        %v6733 = vpop.f32.mrf.mxu0
        %v6734 = vadd.f32 0.0, %v6733
        %v6735 = vpop.f32.mrf.mxu0
        %6736 = vmatprep.mubr.f32.mxu0 0.0
        %6737 = vmatmul.mubr.f32.gmra.mxu0 %v6568
        %v6738 = vpop.f32.mrf.mxu0
        %v6739 = vadd.f32 0.0, %v6738
        %v6740 = vpop.f32.mrf.mxu0
        %6741 = vmatprep.mubr.f32.mxu0 0.0
        %6742 = vmatmul.mubr.f32.gmra.mxu0 %v6571
        %v6743 = vpop.f32.mrf.mxu0
        %v6744 = vadd.f32 0.0, %v6743
        %v6745 = vpop.f32.mrf.mxu0
        %6746 = vmatprep.mubr.f32.mxu0 0.0
        %6747 = vmatmul.mubr.f32.gmra.mxu0 %v6574
        %v6748 = vpop.f32.mrf.mxu0
        %v6749 = vadd.f32 0.0, %v6748
        %v6750 = vpop.f32.mrf.mxu0
        %6751 = vmatprep.mubr.f32.mxu0 0.0
        %6752 = vmatmul.mubr.f32.gmra.mxu0 %v6577
        %v6753 = vpop.f32.mrf.mxu0
        %v6754 = vadd.f32 0.0, %v6753
        %v6755 = vpop.f32.mrf.mxu0
        %6756 = vmatprep.mubr.f32.mxu0 0.0
        %6757 = vmatmul.mubr.f32.gmra.mxu0 %v6580
        %v6758 = vpop.f32.mrf.mxu0
        %v6759 = vadd.f32 0.0, %v6758
        %v6760 = vpop.f32.mrf.mxu0
        %6761 = vmatprep.mubr.f32.mxu0 0.0
        %6762 = vmatmul.mubr.f32.gmra.mxu0 %v6583
        %v6763 = vpop.f32.mrf.mxu0
        %v6764 = vadd.f32 0.0, %v6763
        %v6765 = vpop.f32.mrf.mxu0
        %6766 = vmatprep.mubr.f32.mxu0 0.0
        %6767 = vmatmul.mubr.f32.gmra.mxu0 %v6586
        %v6768 = vpop.f32.mrf.mxu0
        %v6769 = vadd.f32 0.0, %v6768
        %v6770 = vpop.f32.mrf.mxu0
        %6771 = vmatprep.mubr.f32.mxu0 0.0
        %6772 = vmatmul.mubr.f32.gmra.mxu0 %v6589
        %v6773 = vpop.f32.mrf.mxu0
        %v6774 = vadd.f32 0.0, %v6773
        %v6775 = vpop.f32.mrf.mxu0
        %6776 = vmatprep.mubr.f32.mxu0 0.0
        %6777 = vmatmul.mubr.f32.gmra.mxu0 %v6592
        %v6778 = vpop.f32.mrf.mxu0
        %v6779 = vadd.f32 0.0, %v6778
        %v6780 = vpop.f32.mrf.mxu0
        %6781 = vmatprep.mubr.f32.mxu0 0.0
        %6782 = vmatmul.mubr.f32.gmra.mxu0 %v6595
        %v6783 = vpop.f32.mrf.mxu0
        %v6784 = vadd.f32 0.0, %v6783
        %v6785 = vpop.f32.mrf.mxu0
        %6786 = vmatprep.mubr.f32.mxu0 0.0
        %6787 = vmatmul.mubr.f32.gmra.mxu0 %v6598
        %v6788 = vpop.f32.mrf.mxu0
        %v6789 = vadd.f32 0.0, %v6788
        %v6790 = vpop.f32.mrf.mxu0
        %6791 = vmatprep.mubr.f32.mxu0 0.0
        %6792 = vmatmul.mubr.f32.gmra.mxu0 %v6601
        %v6793 = vpop.f32.mrf.mxu0
        %v6794 = vadd.f32 0.0, %v6793
        %v6795 = vpop.f32.mrf.mxu0
        %6796 = vmatprep.mubr.f32.mxu0 0.0
        %6797 = vmatmul.mubr.f32.gmra.mxu0 %v6604
        %v6798 = vpop.f32.mrf.mxu0
        %v6799 = vadd.f32 0.0, %v6798
        %v6800 = vpop.f32.mrf.mxu0
        %6801 = vmatprep.mubr.f32.mxu0 0.0
        %6802 = vmatmul.mubr.f32.gmra.mxu0 %v6607
        %v6803 = vpop.f32.mrf.mxu0
        %v6804 = vadd.f32 0.0, %v6803
        %v6805 = vpop.f32.mrf.mxu0
        %6806 = vmatprep.mubr.f32.mxu0 0.0
        %6807 = vmatmul.mubr.f32.gmra.mxu0 %v6610
        %v6808 = vpop.f32.mrf.mxu0
        %v6809 = vadd.f32 0.0, %v6808
        %v6810 = vpop.f32.mrf.mxu0
        %6811 = vmatprep.mubr.f32.mxu0 0.0
        %6812 = vmatmul.mubr.f32.gmra.mxu0 %v6613
        %v6813 = vpop.f32.mrf.mxu0
        %v6814 = vadd.f32 0.0, %v6813
        %v6815 = vpop.f32.mrf.mxu0
        %6816 = vmatprep.mubr.f32.mxu0 0.0
        %6817 = vmatmul.mubr.f32.gmra.mxu0 %v6616
        %v6818 = vpop.f32.mrf.mxu0
        %v6819 = vadd.f32 0.0, %v6818
        %v6820 = vpop.f32.mrf.mxu0
        %6821 = vmatprep.mubr.f32.mxu0 0.0
        %6822 = vmatmul.mubr.f32.gmra.mxu0 %v6619
        %v6823 = vpop.f32.mrf.mxu0
        %v6824 = vadd.f32 0.0, %v6823
        %v6825 = vpop.f32.mrf.mxu0
        %6826 = vmatprep.mubr.f32.mxu0 0.0
        %6827 = vmatmul.mubr.f32.gmra.mxu0 %v6622
        %v6828 = vpop.f32.mrf.mxu0
        %v6829 = vadd.f32 0.0, %v6828
        %v6830 = vpop.f32.mrf.mxu0
        %6831 = vmatprep.mubr.f32.mxu0 0.0
        %6832 = vmatmul.mubr.f32.gmra.mxu0 %v6625
        %v6833 = vpop.f32.mrf.mxu0
        %v6834 = vadd.f32 0.0, %v6833
        %v6835 = vpop.f32.mrf.mxu0
        %6836 = vmatprep.mubr.f32.mxu0 0.0
        %6837 = vmatmul.mubr.f32.gmra.mxu0 %v6628
        %v6838 = vpop.f32.mrf.mxu0
        %v6839 = vadd.f32 0.0, %v6838
        %v6840 = vpop.f32.mrf.mxu0
        %6841 = vmatprep.mubr.f32.mxu0 0.0
        %6842 = vmatmul.mubr.f32.gmra.mxu0 %v6631
        %v6843 = vpop.f32.mrf.mxu0
        %v6844 = vadd.f32 0.0, %v6843
        %v6845 = vpop.f32.mrf.mxu0
        %6846 = vmatprep.mubr.f32.mxu0 0.0
        %6847 = vmatmul.mubr.f32.gmra.mxu0 %v6634
        %v6848 = vpop.f32.mrf.mxu0
        %v6849 = vadd.f32 0.0, %v6848
        %v6850 = vpop.f32.mrf.mxu0
        %6851 = vmatprep.mubr.f32.mxu0 0.0
        %6852 = vmatmul.mubr.f32.gmra.mxu0 %v6637
        %v6853 = vpop.f32.mrf.mxu0
        %v6854 = vadd.f32 0.0, %v6853
        %v6855 = vpop.f32.mrf.mxu0
        %6856 = vmatprep.mubr.f32.mxu0 0.0
        %6857 = vmatmul.mubr.f32.gmra.mxu0 %v6640
        %v6858 = vpop.f32.mrf.mxu0
        %v6859 = vadd.f32 0.0, %v6858
        %v6860 = vpop.f32.mrf.mxu0
        %6861 = vmatprep.mubr.f32.mxu0 0.0
        %6862 = vmatmul.mubr.f32.gmra.mxu0 %v6643
        %v6863 = vpop.f32.mrf.mxu0
        %v6864 = vadd.f32 0.0, %v6863
        %v6865 = vpop.f32.mrf.mxu0
        %6866 = vmatprep.mubr.f32.mxu0 0.0
        %6867 = vmatmul.mubr.f32.gmra.mxu0 %v6646
        %v6868 = vpop.f32.mrf.mxu0
        %v6869 = vadd.f32 0.0, %v6868
        %v6870 = vpop.f32.mrf.mxu0
        %6871 = vmatprep.mubr.f32.mxu0 0.0
        %6872 = vmatmul.mubr.f32.gmra.mxu0 %v6649
        %v6873 = vpop.f32.mrf.mxu0
        %v6874 = vadd.f32 0.0, %v6873
        %v6875 = vpop.f32.mrf.mxu0
        %6876 = vmatprep.mubr.f32.mxu0 0.0
        %6877 = vmatmul.mubr.f32.gmra.mxu0 %v6652
        %v6878 = vpop.f32.mrf.mxu0
        %v6879 = vadd.f32 0.0, %v6878
        %v6880 = vpop.f32.mrf.mxu0
        %6881 = vdwg.mxu0
        %v6882 = vadd.f32 %v6491, %v6724
        %v6883 = vadd.f32 %v6492, %v6729
        %v6884 = vadd.f32 %v6493, %v6734
        %v6885 = vadd.f32 %v6494, %v6739
        %v6886 = vadd.f32 %v6495, %v6744
        %v6887 = vadd.f32 %v6496, %v6749
        %v6888 = vadd.f32 %v6497, %v6754
        %v6889 = vadd.f32 %v6498, %v6759
        %v6890 = vadd.f32 %v6499, %v6764
        %v6891 = vadd.f32 %v6500, %v6769
        %v6892 = vadd.f32 %v6501, %v6774
        %v6893 = vadd.f32 %v6502, %v6779
        %v6894 = vadd.f32 %v6503, %v6784
        %v6895 = vadd.f32 %v6504, %v6789
        %v6896 = vadd.f32 %v6505, %v6794
        %v6897 = vadd.f32 %v6506, %v6799
        %v6898 = vadd.f32 %v6507, %v6804
        %v6899 = vadd.f32 %v6508, %v6809
        %v6900 = vadd.f32 %v6509, %v6814
        %v6901 = vadd.f32 %v6510, %v6819
        %v6902 = vadd.f32 %v6511, %v6824
        %v6903 = vadd.f32 %v6512, %v6829
        %v6904 = vadd.f32 %v6513, %v6834
        %v6905 = vadd.f32 %v6514, %v6839
        %v6906 = vadd.f32 %v6515, %v6844
        %v6907 = vadd.f32 %v6516, %v6849
        %v6908 = vadd.f32 %v6517, %v6854
        %v6909 = vadd.f32 %v6518, %v6859
        %v6910 = vadd.f32 %v6519, %v6864
        %v6911 = vadd.f32 %v6520, %v6869
        %v6912 = vadd.f32 %v6521, %v6874
        %v6913 = vadd.f32 %v6522, %v6879
        %v6914 = vld [vmem:[%s6523 + $0x6] sm:$0xff]
        %v6915 = vld [vmem:[%s6523 + $0xe] sm:$0xff]
        %v6916 = vld [vmem:[%s6523 + $0x26] sm:$0xff]
        %v6917 = vld [vmem:[%s6523 + $0x2e] sm:$0xff]
        %v6918 = vld [vmem:[%s6523 + $0x46] sm:$0xff]
        %v6919 = vld [vmem:[%s6523 + $0x4e] sm:$0xff]
        %v6920 = vld [vmem:[%s6523 + $0x66] sm:$0xff]
        %v6921 = vld [vmem:[%s6523 + $0x6e] sm:$0xff]
        %v6922 = vld [vmem:[%s6523 + $0x86] sm:$0xff]
        %v6923 = vld [vmem:[%s6523 + $0x8e] sm:$0xff]
        %v6924 = vld [vmem:[%s6523 + $0xa6] sm:$0xff]
        %v6925 = vld [vmem:[%s6523 + $0xae] sm:$0xff]
        %v6926 = vld [vmem:[%s6523 + $0xc6] sm:$0xff]
        %v6927 = vld [vmem:[%s6523 + $0xce] sm:$0xff]
        %v6928 = vld [vmem:[%s6523 + $0xe6] sm:$0xff]
        %v6929 = vld [vmem:[%s6523 + $0xee] sm:$0xff]
        %v6930 = vld [vmem:[%s6523 + $0x106] sm:$0xff]
        %v6931 = vld [vmem:[%s6523 + $0x10e] sm:$0xff]
        %v6932 = vld [vmem:[%s6523 + $0x126] sm:$0xff]
        %v6933 = vld [vmem:[%s6523 + $0x12e] sm:$0xff]
        %v6934 = vld [vmem:[%s6523 + $0x146] sm:$0xff]
        %v6935 = vld [vmem:[%s6523 + $0x14e] sm:$0xff]
        %v6936 = vld [vmem:[%s6523 + $0x166] sm:$0xff]
        %v6937 = vld [vmem:[%s6523 + $0x16e] sm:$0xff]
        %v6938 = vld [vmem:[%s6523 + $0x186] sm:$0xff]
        %v6939 = vld [vmem:[%s6523 + $0x18e] sm:$0xff]
        %v6940 = vld [vmem:[%s6523 + $0x1a6] sm:$0xff]
        %v6941 = vld [vmem:[%s6523 + $0x1ae] sm:$0xff]
        %v6942 = vld [vmem:[%s6523 + $0x1c6] sm:$0xff]
        %v6943 = vld [vmem:[%s6523 + $0x1ce] sm:$0xff]
        %v6944 = vld [vmem:[%s6523 + $0x1e6] sm:$0xff]
        %v6945 = vld [vmem:[%s6523 + $0x1ee] sm:$0xff]
        %s6946 = scalar_lea.vmem %s3, 28
        %v6947 = vld [vmem:[%s6946] sm:$0xf]
        %v6949 = vsel %vm478, %v6914, 0
        %v6952 = vsel %vm478, %v6915, 0
        %v6955 = vsel %vm478, %v6916, 0
        %v6958 = vsel %vm478, %v6917, 0
        %v6961 = vsel %vm478, %v6918, 0
        %v6964 = vsel %vm478, %v6919, 0
        %v6967 = vsel %vm478, %v6920, 0
        %v6970 = vsel %vm478, %v6921, 0
        %v6973 = vsel %vm478, %v6922, 0
        %v6976 = vsel %vm478, %v6923, 0
        %v6979 = vsel %vm478, %v6924, 0
        %v6982 = vsel %vm478, %v6925, 0
        %v6985 = vsel %vm478, %v6926, 0
        %v6988 = vsel %vm478, %v6927, 0
        %v6991 = vsel %vm478, %v6928, 0
        %v6994 = vsel %vm478, %v6929, 0
        %v6997 = vsel %vm478, %v6930, 0
        %v7000 = vsel %vm478, %v6931, 0
        %v7003 = vsel %vm478, %v6932, 0
        %v7006 = vsel %vm478, %v6933, 0
        %v7009 = vsel %vm478, %v6934, 0
        %v7012 = vsel %vm478, %v6935, 0
        %v7015 = vsel %vm478, %v6936, 0
        %v7018 = vsel %vm478, %v6937, 0
        %v7021 = vsel %vm478, %v6938, 0
        %v7024 = vsel %vm478, %v6939, 0
        %v7027 = vsel %vm478, %v6940, 0
        %v7030 = vsel %vm478, %v6941, 0
        %v7033 = vsel %vm478, %v6942, 0
        %v7036 = vsel %vm478, %v6943, 0
        %v7039 = vsel %vm478, %v6944, 0
        %v7042 = vsel %vm478, %v6945, 0
        %v7045 = vsel %vm4410, %v6947, 0
        %7047 = vmatprep.subr.mxu0 0.0
        %7048 = vmatpush1.msra.mxu0 0.0
        %7049 = vmatprep.subr.mxu0 0.0
        %7050 = vmatpush1.msra.mxu0 0.0
        %7051 = vmatprep.subr.mxu0 0.0
        %7052 = vmatpush1.msra.mxu0 0.0
        %7053 = vmatprep.subr.mxu0 0.0
        %7054 = vmatpush1.msra.mxu0 0.0
        %7055 = vmatprep.subr.mxu0 0.0
        %7056 = vmatpush1.msra.mxu0 0.0
        %7057 = vmatprep.subr.mxu0 0.0
        %7058 = vmatpush1.msra.mxu0 0.0
        %7059 = vmatprep.subr.mxu0 0.0
        %7060 = vmatpush1.msra.mxu0 0.0
        %7061 = vmatprep.subr.mxu0 0.0
        %7062 = vmatpush1.msra.mxu0 0.0
        %7063 = vmatprep.subr.mxu0 0.0
        %7064 = vmatpush1.msra.mxu0 0.0
        %7065 = vmatprep.subr.mxu0 0.0
        %7066 = vmatpush1.msra.mxu0 0.0
        %7067 = vmatprep.subr.mxu0 0.0
        %7068 = vmatpush1.msra.mxu0 0.0
        %7069 = vmatprep.subr.mxu0 0.0
        %7070 = vmatpush1.msra.mxu0 0.0
        %7071 = vmatprep.subr.mxu0 0.0
        %7072 = vmatpush1.msra.mxu0 0.0
        %7073 = vmatprep.subr.mxu0 0.0
        %7074 = vmatpush1.msra.mxu0 0.0
        %7075 = vmatprep.subr.mxu0 0.0
        %7076 = vmatpush1.msra.mxu0 0.0
        %7077 = vmatprep.subr.mxu0 0.0
        %7078 = vmatpush1.msra.mxu0 %v7045
        %7079 = vmatprep.subr.mxu0 0.0
        %7080 = vmatpush2.msra.mxu0 0.0
        %7081 = vmatprep.subr.mxu0 0.0
        %7082 = vmatpush2.msra.mxu0 0.0
        %7083 = vmatprep.subr.mxu0 0.0
        %7084 = vmatpush2.msra.mxu0 0.0
        %7085 = vmatprep.subr.mxu0 0.0
        %7086 = vmatpush2.msra.mxu0 0.0
        %7087 = vmatprep.subr.mxu0 0.0
        %7088 = vmatpush2.msra.mxu0 0.0
        %7089 = vmatprep.subr.mxu0 0.0
        %7090 = vmatpush2.msra.mxu0 0.0
        %7091 = vmatprep.subr.mxu0 0.0
        %7092 = vmatpush2.msra.mxu0 0.0
        %7093 = vmatprep.subr.mxu0 0.0
        %7094 = vmatpush2.msra.mxu0 0.0
        %7095 = vmatprep.subr.mxu0 0.0
        %7096 = vmatpush2.msra.mxu0 0.0
        %7097 = vmatprep.subr.mxu0 0.0
        %7098 = vmatpush2.msra.mxu0 0.0
        %7099 = vmatprep.subr.mxu0 0.0
        %7100 = vmatpush2.msra.mxu0 0.0
        %7101 = vmatprep.subr.mxu0 0.0
        %7102 = vmatpush2.msra.mxu0 0.0
        %7103 = vmatprep.subr.mxu0 0.0
        %7104 = vmatpush2.msra.mxu0 0.0
        %7105 = vmatprep.subr.mxu0 0.0
        %7106 = vmatpush2.msra.mxu0 0.0
        %7107 = vmatprep.subr.mxu0 0.0
        %7108 = vmatpush2.msra.mxu0 0.0
        %7109 = vmatprep.subr.mxu0 0.0
        %7110 = vmatpush2.msra.mxu0 0.0
        %7111 = vmatprep.mubr.f32.mxu0 0.0
        %7112 = vmatmul.mubr.f32.gmra.mxu0 %v6949
        %v7113 = vpop.f32.mrf.mxu0
        %v7114 = vadd.f32 0.0, %v7113
        %v7115 = vpop.f32.mrf.mxu0
        %7116 = vmatprep.mubr.f32.mxu0 0.0
        %7117 = vmatmul.mubr.f32.gmra.mxu0 %v6952
        %v7118 = vpop.f32.mrf.mxu0
        %v7119 = vadd.f32 0.0, %v7118
        %v7120 = vpop.f32.mrf.mxu0
        %7121 = vmatprep.mubr.f32.mxu0 0.0
        %7122 = vmatmul.mubr.f32.gmra.mxu0 %v6955
        %v7123 = vpop.f32.mrf.mxu0
        %v7124 = vadd.f32 0.0, %v7123
        %v7125 = vpop.f32.mrf.mxu0
        %7126 = vmatprep.mubr.f32.mxu0 0.0
        %7127 = vmatmul.mubr.f32.gmra.mxu0 %v6958
        %v7128 = vpop.f32.mrf.mxu0
        %v7129 = vadd.f32 0.0, %v7128
        %v7130 = vpop.f32.mrf.mxu0
        %7131 = vmatprep.mubr.f32.mxu0 0.0
        %7132 = vmatmul.mubr.f32.gmra.mxu0 %v6961
        %v7133 = vpop.f32.mrf.mxu0
        %v7134 = vadd.f32 0.0, %v7133
        %v7135 = vpop.f32.mrf.mxu0
        %7136 = vmatprep.mubr.f32.mxu0 0.0
        %7137 = vmatmul.mubr.f32.gmra.mxu0 %v6964
        %v7138 = vpop.f32.mrf.mxu0
        %v7139 = vadd.f32 0.0, %v7138
        %v7140 = vpop.f32.mrf.mxu0
        %7141 = vmatprep.mubr.f32.mxu0 0.0
        %7142 = vmatmul.mubr.f32.gmra.mxu0 %v6967
        %v7143 = vpop.f32.mrf.mxu0
        %v7144 = vadd.f32 0.0, %v7143
        %v7145 = vpop.f32.mrf.mxu0
        %7146 = vmatprep.mubr.f32.mxu0 0.0
        %7147 = vmatmul.mubr.f32.gmra.mxu0 %v6970
        %v7148 = vpop.f32.mrf.mxu0
        %v7149 = vadd.f32 0.0, %v7148
        %v7150 = vpop.f32.mrf.mxu0
        %7151 = vmatprep.mubr.f32.mxu0 0.0
        %7152 = vmatmul.mubr.f32.gmra.mxu0 %v6973
        %v7153 = vpop.f32.mrf.mxu0
        %v7154 = vadd.f32 0.0, %v7153
        %v7155 = vpop.f32.mrf.mxu0
        %7156 = vmatprep.mubr.f32.mxu0 0.0
        %7157 = vmatmul.mubr.f32.gmra.mxu0 %v6976
        %v7158 = vpop.f32.mrf.mxu0
        %v7159 = vadd.f32 0.0, %v7158
        %v7160 = vpop.f32.mrf.mxu0
        %7161 = vmatprep.mubr.f32.mxu0 0.0
        %7162 = vmatmul.mubr.f32.gmra.mxu0 %v6979
        %v7163 = vpop.f32.mrf.mxu0
        %v7164 = vadd.f32 0.0, %v7163
        %v7165 = vpop.f32.mrf.mxu0
        %7166 = vmatprep.mubr.f32.mxu0 0.0
        %7167 = vmatmul.mubr.f32.gmra.mxu0 %v6982
        %v7168 = vpop.f32.mrf.mxu0
        %v7169 = vadd.f32 0.0, %v7168
        %v7170 = vpop.f32.mrf.mxu0
        %7171 = vmatprep.mubr.f32.mxu0 0.0
        %7172 = vmatmul.mubr.f32.gmra.mxu0 %v6985
        %v7173 = vpop.f32.mrf.mxu0
        %v7174 = vadd.f32 0.0, %v7173
        %v7175 = vpop.f32.mrf.mxu0
        %7176 = vmatprep.mubr.f32.mxu0 0.0
        %7177 = vmatmul.mubr.f32.gmra.mxu0 %v6988
        %v7178 = vpop.f32.mrf.mxu0
        %v7179 = vadd.f32 0.0, %v7178
        %v7180 = vpop.f32.mrf.mxu0
        %7181 = vmatprep.mubr.f32.mxu0 0.0
        %7182 = vmatmul.mubr.f32.gmra.mxu0 %v6991
        %v7183 = vpop.f32.mrf.mxu0
        %v7184 = vadd.f32 0.0, %v7183
        %v7185 = vpop.f32.mrf.mxu0
        %7186 = vmatprep.mubr.f32.mxu0 0.0
        %7187 = vmatmul.mubr.f32.gmra.mxu0 %v6994
        %v7188 = vpop.f32.mrf.mxu0
        %v7189 = vadd.f32 0.0, %v7188
        %v7190 = vpop.f32.mrf.mxu0
        %7191 = vmatprep.mubr.f32.mxu0 0.0
        %7192 = vmatmul.mubr.f32.gmra.mxu0 %v6997
        %v7193 = vpop.f32.mrf.mxu0
        %v7194 = vadd.f32 0.0, %v7193
        %v7195 = vpop.f32.mrf.mxu0
        %7196 = vmatprep.mubr.f32.mxu0 0.0
        %7197 = vmatmul.mubr.f32.gmra.mxu0 %v7000
        %v7198 = vpop.f32.mrf.mxu0
        %v7199 = vadd.f32 0.0, %v7198
        %v7200 = vpop.f32.mrf.mxu0
        %7201 = vmatprep.mubr.f32.mxu0 0.0
        %7202 = vmatmul.mubr.f32.gmra.mxu0 %v7003
        %v7203 = vpop.f32.mrf.mxu0
        %v7204 = vadd.f32 0.0, %v7203
        %v7205 = vpop.f32.mrf.mxu0
        %7206 = vmatprep.mubr.f32.mxu0 0.0
        %7207 = vmatmul.mubr.f32.gmra.mxu0 %v7006
        %v7208 = vpop.f32.mrf.mxu0
        %v7209 = vadd.f32 0.0, %v7208
        %v7210 = vpop.f32.mrf.mxu0
        %7211 = vmatprep.mubr.f32.mxu0 0.0
        %7212 = vmatmul.mubr.f32.gmra.mxu0 %v7009
        %v7213 = vpop.f32.mrf.mxu0
        %v7214 = vadd.f32 0.0, %v7213
        %v7215 = vpop.f32.mrf.mxu0
        %7216 = vmatprep.mubr.f32.mxu0 0.0
        %7217 = vmatmul.mubr.f32.gmra.mxu0 %v7012
        %v7218 = vpop.f32.mrf.mxu0
        %v7219 = vadd.f32 0.0, %v7218
        %v7220 = vpop.f32.mrf.mxu0
        %7221 = vmatprep.mubr.f32.mxu0 0.0
        %7222 = vmatmul.mubr.f32.gmra.mxu0 %v7015
        %v7223 = vpop.f32.mrf.mxu0
        %v7224 = vadd.f32 0.0, %v7223
        %v7225 = vpop.f32.mrf.mxu0
        %7226 = vmatprep.mubr.f32.mxu0 0.0
        %7227 = vmatmul.mubr.f32.gmra.mxu0 %v7018
        %v7228 = vpop.f32.mrf.mxu0
        %v7229 = vadd.f32 0.0, %v7228
        %v7230 = vpop.f32.mrf.mxu0
        %7231 = vmatprep.mubr.f32.mxu0 0.0
        %7232 = vmatmul.mubr.f32.gmra.mxu0 %v7021
        %v7233 = vpop.f32.mrf.mxu0
        %v7234 = vadd.f32 0.0, %v7233
        %v7235 = vpop.f32.mrf.mxu0
        %7236 = vmatprep.mubr.f32.mxu0 0.0
        %7237 = vmatmul.mubr.f32.gmra.mxu0 %v7024
        %v7238 = vpop.f32.mrf.mxu0
        %v7239 = vadd.f32 0.0, %v7238
        %v7240 = vpop.f32.mrf.mxu0
        %7241 = vmatprep.mubr.f32.mxu0 0.0
        %7242 = vmatmul.mubr.f32.gmra.mxu0 %v7027
        %v7243 = vpop.f32.mrf.mxu0
        %v7244 = vadd.f32 0.0, %v7243
        %v7245 = vpop.f32.mrf.mxu0
        %7246 = vmatprep.mubr.f32.mxu0 0.0
        %7247 = vmatmul.mubr.f32.gmra.mxu0 %v7030
        %v7248 = vpop.f32.mrf.mxu0
        %v7249 = vadd.f32 0.0, %v7248
        %v7250 = vpop.f32.mrf.mxu0
        %7251 = vmatprep.mubr.f32.mxu0 0.0
        %7252 = vmatmul.mubr.f32.gmra.mxu0 %v7033
        %v7253 = vpop.f32.mrf.mxu0
        %v7254 = vadd.f32 0.0, %v7253
        %v7255 = vpop.f32.mrf.mxu0
        %7256 = vmatprep.mubr.f32.mxu0 0.0
        %7257 = vmatmul.mubr.f32.gmra.mxu0 %v7036
        %v7258 = vpop.f32.mrf.mxu0
        %v7259 = vadd.f32 0.0, %v7258
        %v7260 = vpop.f32.mrf.mxu0
        %7261 = vmatprep.mubr.f32.mxu0 0.0
        %7262 = vmatmul.mubr.f32.gmra.mxu0 %v7039
        %v7263 = vpop.f32.mrf.mxu0
        %v7264 = vadd.f32 0.0, %v7263
        %v7265 = vpop.f32.mrf.mxu0
        %7266 = vmatprep.mubr.f32.mxu0 0.0
        %7267 = vmatmul.mubr.f32.gmra.mxu0 %v7042
        %v7268 = vpop.f32.mrf.mxu0
        %v7269 = vadd.f32 0.0, %v7268
        %v7270 = vpop.f32.mrf.mxu0
        %7271 = vdwg.mxu0
        %v7272 = vadd.f32 %v6882, %v7114
        %v7273 = vadd.f32 %v6883, %v7119
        %v7274 = vadd.f32 %v6884, %v7124
        %v7275 = vadd.f32 %v6885, %v7129
        %v7276 = vadd.f32 %v6886, %v7134
        %v7277 = vadd.f32 %v6887, %v7139
        %v7278 = vadd.f32 %v6888, %v7144
        %v7279 = vadd.f32 %v6889, %v7149
        %v7280 = vadd.f32 %v6890, %v7154
        %v7281 = vadd.f32 %v6891, %v7159
        %v7282 = vadd.f32 %v6892, %v7164
        %v7283 = vadd.f32 %v6893, %v7169
        %v7284 = vadd.f32 %v6894, %v7174
        %v7285 = vadd.f32 %v6895, %v7179
        %v7286 = vadd.f32 %v6896, %v7184
        %v7287 = vadd.f32 %v6897, %v7189
        %v7288 = vadd.f32 %v6898, %v7194
        %v7289 = vadd.f32 %v6899, %v7199
        %v7290 = vadd.f32 %v6900, %v7204
        %v7291 = vadd.f32 %v6901, %v7209
        %v7292 = vadd.f32 %v6902, %v7214
        %v7293 = vadd.f32 %v6903, %v7219
        %v7294 = vadd.f32 %v6904, %v7224
        %v7295 = vadd.f32 %v6905, %v7229
        %v7296 = vadd.f32 %v6906, %v7234
        %v7297 = vadd.f32 %v6907, %v7239
        %v7298 = vadd.f32 %v6908, %v7244
        %v7299 = vadd.f32 %v6909, %v7249
        %v7300 = vadd.f32 %v6910, %v7254
        %v7301 = vadd.f32 %v6911, %v7259
        %v7302 = vadd.f32 %v6912, %v7264
        %v7303 = vadd.f32 %v6913, %v7269
        %v7304 = vld [vmem:[%s6523 + $0xc] sm:$0xff]
        %v7305 = vld [vmem:[%s6523 + $0x14] sm:$0xff]
        %v7306 = vld [vmem:[%s6523 + $0x2c] sm:$0xff]
        %v7307 = vld [vmem:[%s6523 + $0x34] sm:$0xff]
        %v7308 = vld [vmem:[%s6523 + $0x4c] sm:$0xff]
        %v7309 = vld [vmem:[%s6523 + $0x54] sm:$0xff]
        %v7310 = vld [vmem:[%s6523 + $0x6c] sm:$0xff]
        %v7311 = vld [vmem:[%s6523 + $0x74] sm:$0xff]
        %v7312 = vld [vmem:[%s6523 + $0x8c] sm:$0xff]
        %v7313 = vld [vmem:[%s6523 + $0x94] sm:$0xff]
        %v7314 = vld [vmem:[%s6523 + $0xac] sm:$0xff]
        %v7315 = vld [vmem:[%s6523 + $0xb4] sm:$0xff]
        %v7316 = vld [vmem:[%s6523 + $0xcc] sm:$0xff]
        %v7317 = vld [vmem:[%s6523 + $0xd4] sm:$0xff]
        %v7318 = vld [vmem:[%s6523 + $0xec] sm:$0xff]
        %v7319 = vld [vmem:[%s6523 + $0xf4] sm:$0xff]
        %v7320 = vld [vmem:[%s6523 + $0x10c] sm:$0xff]
        %v7321 = vld [vmem:[%s6523 + $0x114] sm:$0xff]
        %v7322 = vld [vmem:[%s6523 + $0x12c] sm:$0xff]
        %v7323 = vld [vmem:[%s6523 + $0x134] sm:$0xff]
        %v7324 = vld [vmem:[%s6523 + $0x14c] sm:$0xff]
        %v7325 = vld [vmem:[%s6523 + $0x154] sm:$0xff]
        %v7326 = vld [vmem:[%s6523 + $0x16c] sm:$0xff]
        %v7327 = vld [vmem:[%s6523 + $0x174] sm:$0xff]
        %v7328 = vld [vmem:[%s6523 + $0x18c] sm:$0xff]
        %v7329 = vld [vmem:[%s6523 + $0x194] sm:$0xff]
        %v7330 = vld [vmem:[%s6523 + $0x1ac] sm:$0xff]
        %v7331 = vld [vmem:[%s6523 + $0x1b4] sm:$0xff]
        %v7332 = vld [vmem:[%s6523 + $0x1cc] sm:$0xff]
        %v7333 = vld [vmem:[%s6523 + $0x1d4] sm:$0xff]
        %v7334 = vld [vmem:[%s6523 + $0x1ec] sm:$0xff]
        %v7335 = vld [vmem:[%s6523 + $0x1f4] sm:$0xff]
        %s7336 = scalar_lea.vmem %s3, 32
        %v7337 = vld [vmem:[%s7336] sm:$0xf]
        %v7339 = vsel %vm478, %v7304, 0
        %v7342 = vsel %vm478, %v7305, 0
        %v7345 = vsel %vm478, %v7306, 0
        %v7348 = vsel %vm478, %v7307, 0
        %v7351 = vsel %vm478, %v7308, 0
        %v7354 = vsel %vm478, %v7309, 0
        %v7357 = vsel %vm478, %v7310, 0
        %v7360 = vsel %vm478, %v7311, 0
        %v7363 = vsel %vm478, %v7312, 0
        %v7366 = vsel %vm478, %v7313, 0
        %v7369 = vsel %vm478, %v7314, 0
        %v7372 = vsel %vm478, %v7315, 0
        %v7375 = vsel %vm478, %v7316, 0
        %v7378 = vsel %vm478, %v7317, 0
        %v7381 = vsel %vm478, %v7318, 0
        %v7384 = vsel %vm478, %v7319, 0
        %v7387 = vsel %vm478, %v7320, 0
        %v7390 = vsel %vm478, %v7321, 0
        %v7393 = vsel %vm478, %v7322, 0
        %v7396 = vsel %vm478, %v7323, 0
        %v7399 = vsel %vm478, %v7324, 0
        %v7402 = vsel %vm478, %v7325, 0
        %v7405 = vsel %vm478, %v7326, 0
        %v7408 = vsel %vm478, %v7327, 0
        %v7411 = vsel %vm478, %v7328, 0
        %v7414 = vsel %vm478, %v7329, 0
        %v7417 = vsel %vm478, %v7330, 0
        %v7420 = vsel %vm478, %v7331, 0
        %v7423 = vsel %vm478, %v7332, 0
        %v7426 = vsel %vm478, %v7333, 0
        %v7429 = vsel %vm478, %v7334, 0
        %v7432 = vsel %vm478, %v7335, 0
        %v7435 = vsel %vm4410, %v7337, 0
        %7437 = vmatprep.subr.mxu0 0.0
        %7438 = vmatpush1.msra.mxu0 0.0
        %7439 = vmatprep.subr.mxu0 0.0
        %7440 = vmatpush1.msra.mxu0 0.0
        %7441 = vmatprep.subr.mxu0 0.0
        %7442 = vmatpush1.msra.mxu0 0.0
        %7443 = vmatprep.subr.mxu0 0.0
        %7444 = vmatpush1.msra.mxu0 0.0
        %7445 = vmatprep.subr.mxu0 0.0
        %7446 = vmatpush1.msra.mxu0 0.0
        %7447 = vmatprep.subr.mxu0 0.0
        %7448 = vmatpush1.msra.mxu0 0.0
        %7449 = vmatprep.subr.mxu0 0.0
        %7450 = vmatpush1.msra.mxu0 0.0
        %7451 = vmatprep.subr.mxu0 0.0
        %7452 = vmatpush1.msra.mxu0 0.0
        %7453 = vmatprep.subr.mxu0 0.0
        %7454 = vmatpush1.msra.mxu0 0.0
        %7455 = vmatprep.subr.mxu0 0.0
        %7456 = vmatpush1.msra.mxu0 0.0
        %7457 = vmatprep.subr.mxu0 0.0
        %7458 = vmatpush1.msra.mxu0 0.0
        %7459 = vmatprep.subr.mxu0 0.0
        %7460 = vmatpush1.msra.mxu0 0.0
        %7461 = vmatprep.subr.mxu0 0.0
        %7462 = vmatpush1.msra.mxu0 0.0
        %7463 = vmatprep.subr.mxu0 0.0
        %7464 = vmatpush1.msra.mxu0 0.0
        %7465 = vmatprep.subr.mxu0 0.0
        %7466 = vmatpush1.msra.mxu0 0.0
        %7467 = vmatprep.subr.mxu0 0.0
        %7468 = vmatpush1.msra.mxu0 %v7435
        %7469 = vmatprep.subr.mxu0 0.0
        %7470 = vmatpush2.msra.mxu0 0.0
        %7471 = vmatprep.subr.mxu0 0.0
        %7472 = vmatpush2.msra.mxu0 0.0
        %7473 = vmatprep.subr.mxu0 0.0
        %7474 = vmatpush2.msra.mxu0 0.0
        %7475 = vmatprep.subr.mxu0 0.0
        %7476 = vmatpush2.msra.mxu0 0.0
        %7477 = vmatprep.subr.mxu0 0.0
        %7478 = vmatpush2.msra.mxu0 0.0
        %7479 = vmatprep.subr.mxu0 0.0
        %7480 = vmatpush2.msra.mxu0 0.0
        %7481 = vmatprep.subr.mxu0 0.0
        %7482 = vmatpush2.msra.mxu0 0.0
        %7483 = vmatprep.subr.mxu0 0.0
        %7484 = vmatpush2.msra.mxu0 0.0
        %7485 = vmatprep.subr.mxu0 0.0
        %7486 = vmatpush2.msra.mxu0 0.0
        %7487 = vmatprep.subr.mxu0 0.0
        %7488 = vmatpush2.msra.mxu0 0.0
        %7489 = vmatprep.subr.mxu0 0.0
        %7490 = vmatpush2.msra.mxu0 0.0
        %7491 = vmatprep.subr.mxu0 0.0
        %7492 = vmatpush2.msra.mxu0 0.0
        %7493 = vmatprep.subr.mxu0 0.0
        %7494 = vmatpush2.msra.mxu0 0.0
        %7495 = vmatprep.subr.mxu0 0.0
        %7496 = vmatpush2.msra.mxu0 0.0
        %7497 = vmatprep.subr.mxu0 0.0
        %7498 = vmatpush2.msra.mxu0 0.0
        %7499 = vmatprep.subr.mxu0 0.0
        %7500 = vmatpush2.msra.mxu0 0.0
        %7501 = vmatprep.mubr.f32.mxu0 0.0
        %7502 = vmatmul.mubr.f32.gmra.mxu0 %v7339
        %v7503 = vpop.f32.mrf.mxu0
        %v7504 = vadd.f32 0.0, %v7503
        %v7505 = vpop.f32.mrf.mxu0
        %7506 = vmatprep.mubr.f32.mxu0 0.0
        %7507 = vmatmul.mubr.f32.gmra.mxu0 %v7342
        %v7508 = vpop.f32.mrf.mxu0
        %v7509 = vadd.f32 0.0, %v7508
        %v7510 = vpop.f32.mrf.mxu0
        %7511 = vmatprep.mubr.f32.mxu0 0.0
        %7512 = vmatmul.mubr.f32.gmra.mxu0 %v7345
        %v7513 = vpop.f32.mrf.mxu0
        %v7514 = vadd.f32 0.0, %v7513
        %v7515 = vpop.f32.mrf.mxu0
        %7516 = vmatprep.mubr.f32.mxu0 0.0
        %7517 = vmatmul.mubr.f32.gmra.mxu0 %v7348
        %v7518 = vpop.f32.mrf.mxu0
        %v7519 = vadd.f32 0.0, %v7518
        %v7520 = vpop.f32.mrf.mxu0
        %7521 = vmatprep.mubr.f32.mxu0 0.0
        %7522 = vmatmul.mubr.f32.gmra.mxu0 %v7351
        %v7523 = vpop.f32.mrf.mxu0
        %v7524 = vadd.f32 0.0, %v7523
        %v7525 = vpop.f32.mrf.mxu0
        %7526 = vmatprep.mubr.f32.mxu0 0.0
        %7527 = vmatmul.mubr.f32.gmra.mxu0 %v7354
        %v7528 = vpop.f32.mrf.mxu0
        %v7529 = vadd.f32 0.0, %v7528
        %v7530 = vpop.f32.mrf.mxu0
        %7531 = vmatprep.mubr.f32.mxu0 0.0
        %7532 = vmatmul.mubr.f32.gmra.mxu0 %v7357
        %v7533 = vpop.f32.mrf.mxu0
        %v7534 = vadd.f32 0.0, %v7533
        %v7535 = vpop.f32.mrf.mxu0
        %7536 = vmatprep.mubr.f32.mxu0 0.0
        %7537 = vmatmul.mubr.f32.gmra.mxu0 %v7360
        %v7538 = vpop.f32.mrf.mxu0
        %v7539 = vadd.f32 0.0, %v7538
        %v7540 = vpop.f32.mrf.mxu0
        %7541 = vmatprep.mubr.f32.mxu0 0.0
        %7542 = vmatmul.mubr.f32.gmra.mxu0 %v7363
        %v7543 = vpop.f32.mrf.mxu0
        %v7544 = vadd.f32 0.0, %v7543
        %v7545 = vpop.f32.mrf.mxu0
        %7546 = vmatprep.mubr.f32.mxu0 0.0
        %7547 = vmatmul.mubr.f32.gmra.mxu0 %v7366
        %v7548 = vpop.f32.mrf.mxu0
        %v7549 = vadd.f32 0.0, %v7548
        %v7550 = vpop.f32.mrf.mxu0
        %7551 = vmatprep.mubr.f32.mxu0 0.0
        %7552 = vmatmul.mubr.f32.gmra.mxu0 %v7369
        %v7553 = vpop.f32.mrf.mxu0
        %v7554 = vadd.f32 0.0, %v7553
        %v7555 = vpop.f32.mrf.mxu0
        %7556 = vmatprep.mubr.f32.mxu0 0.0
        %7557 = vmatmul.mubr.f32.gmra.mxu0 %v7372
        %v7558 = vpop.f32.mrf.mxu0
        %v7559 = vadd.f32 0.0, %v7558
        %v7560 = vpop.f32.mrf.mxu0
        %7561 = vmatprep.mubr.f32.mxu0 0.0
        %7562 = vmatmul.mubr.f32.gmra.mxu0 %v7375
        %v7563 = vpop.f32.mrf.mxu0
        %v7564 = vadd.f32 0.0, %v7563
        %v7565 = vpop.f32.mrf.mxu0
        %7566 = vmatprep.mubr.f32.mxu0 0.0
        %7567 = vmatmul.mubr.f32.gmra.mxu0 %v7378
        %v7568 = vpop.f32.mrf.mxu0
        %v7569 = vadd.f32 0.0, %v7568
        %v7570 = vpop.f32.mrf.mxu0
        %7571 = vmatprep.mubr.f32.mxu0 0.0
        %7572 = vmatmul.mubr.f32.gmra.mxu0 %v7381
        %v7573 = vpop.f32.mrf.mxu0
        %v7574 = vadd.f32 0.0, %v7573
        %v7575 = vpop.f32.mrf.mxu0
        %7576 = vmatprep.mubr.f32.mxu0 0.0
        %7577 = vmatmul.mubr.f32.gmra.mxu0 %v7384
        %v7578 = vpop.f32.mrf.mxu0
        %v7579 = vadd.f32 0.0, %v7578
        %v7580 = vpop.f32.mrf.mxu0
        %7581 = vmatprep.mubr.f32.mxu0 0.0
        %7582 = vmatmul.mubr.f32.gmra.mxu0 %v7387
        %v7583 = vpop.f32.mrf.mxu0
        %v7584 = vadd.f32 0.0, %v7583
        %v7585 = vpop.f32.mrf.mxu0
        %7586 = vmatprep.mubr.f32.mxu0 0.0
        %7587 = vmatmul.mubr.f32.gmra.mxu0 %v7390
        %v7588 = vpop.f32.mrf.mxu0
        %v7589 = vadd.f32 0.0, %v7588
        %v7590 = vpop.f32.mrf.mxu0
        %7591 = vmatprep.mubr.f32.mxu0 0.0
        %7592 = vmatmul.mubr.f32.gmra.mxu0 %v7393
        %v7593 = vpop.f32.mrf.mxu0
        %v7594 = vadd.f32 0.0, %v7593
        %v7595 = vpop.f32.mrf.mxu0
        %7596 = vmatprep.mubr.f32.mxu0 0.0
        %7597 = vmatmul.mubr.f32.gmra.mxu0 %v7396
        %v7598 = vpop.f32.mrf.mxu0
        %v7599 = vadd.f32 0.0, %v7598
        %v7600 = vpop.f32.mrf.mxu0
        %7601 = vmatprep.mubr.f32.mxu0 0.0
        %7602 = vmatmul.mubr.f32.gmra.mxu0 %v7399
        %v7603 = vpop.f32.mrf.mxu0
        %v7604 = vadd.f32 0.0, %v7603
        %v7605 = vpop.f32.mrf.mxu0
        %7606 = vmatprep.mubr.f32.mxu0 0.0
        %7607 = vmatmul.mubr.f32.gmra.mxu0 %v7402
        %v7608 = vpop.f32.mrf.mxu0
        %v7609 = vadd.f32 0.0, %v7608
        %v7610 = vpop.f32.mrf.mxu0
        %7611 = vmatprep.mubr.f32.mxu0 0.0
        %7612 = vmatmul.mubr.f32.gmra.mxu0 %v7405
        %v7613 = vpop.f32.mrf.mxu0
        %v7614 = vadd.f32 0.0, %v7613
        %v7615 = vpop.f32.mrf.mxu0
        %7616 = vmatprep.mubr.f32.mxu0 0.0
        %7617 = vmatmul.mubr.f32.gmra.mxu0 %v7408
        %v7618 = vpop.f32.mrf.mxu0
        %v7619 = vadd.f32 0.0, %v7618
        %v7620 = vpop.f32.mrf.mxu0
        %7621 = vmatprep.mubr.f32.mxu0 0.0
        %7622 = vmatmul.mubr.f32.gmra.mxu0 %v7411
        %v7623 = vpop.f32.mrf.mxu0
        %v7624 = vadd.f32 0.0, %v7623
        %v7625 = vpop.f32.mrf.mxu0
        %7626 = vmatprep.mubr.f32.mxu0 0.0
        %7627 = vmatmul.mubr.f32.gmra.mxu0 %v7414
        %v7628 = vpop.f32.mrf.mxu0
        %v7629 = vadd.f32 0.0, %v7628
        %v7630 = vpop.f32.mrf.mxu0
        %7631 = vmatprep.mubr.f32.mxu0 0.0
        %7632 = vmatmul.mubr.f32.gmra.mxu0 %v7417
        %v7633 = vpop.f32.mrf.mxu0
        %v7634 = vadd.f32 0.0, %v7633
        %v7635 = vpop.f32.mrf.mxu0
        %7636 = vmatprep.mubr.f32.mxu0 0.0
        %7637 = vmatmul.mubr.f32.gmra.mxu0 %v7420
        %v7638 = vpop.f32.mrf.mxu0
        %v7639 = vadd.f32 0.0, %v7638
        %v7640 = vpop.f32.mrf.mxu0
        %7641 = vmatprep.mubr.f32.mxu0 0.0
        %7642 = vmatmul.mubr.f32.gmra.mxu0 %v7423
        %v7643 = vpop.f32.mrf.mxu0
        %v7644 = vadd.f32 0.0, %v7643
        %v7645 = vpop.f32.mrf.mxu0
        %7646 = vmatprep.mubr.f32.mxu0 0.0
        %7647 = vmatmul.mubr.f32.gmra.mxu0 %v7426
        %v7648 = vpop.f32.mrf.mxu0
        %v7649 = vadd.f32 0.0, %v7648
        %v7650 = vpop.f32.mrf.mxu0
        %7651 = vmatprep.mubr.f32.mxu0 0.0
        %7652 = vmatmul.mubr.f32.gmra.mxu0 %v7429
        %v7653 = vpop.f32.mrf.mxu0
        %v7654 = vadd.f32 0.0, %v7653
        %v7655 = vpop.f32.mrf.mxu0
        %7656 = vmatprep.mubr.f32.mxu0 0.0
        %7657 = vmatmul.mubr.f32.gmra.mxu0 %v7432
        %v7658 = vpop.f32.mrf.mxu0
        %v7659 = vadd.f32 0.0, %v7658
        %v7660 = vpop.f32.mrf.mxu0
        %7661 = vdwg.mxu0
        %v7662 = vadd.f32 %v7272, %v7504
        %v7663 = vadd.f32 %v7273, %v7509
        %v7664 = vadd.f32 %v7274, %v7514
        %v7665 = vadd.f32 %v7275, %v7519
        %v7666 = vadd.f32 %v7276, %v7524
        %v7667 = vadd.f32 %v7277, %v7529
        %v7668 = vadd.f32 %v7278, %v7534
        %v7669 = vadd.f32 %v7279, %v7539
        %v7670 = vadd.f32 %v7280, %v7544
        %v7671 = vadd.f32 %v7281, %v7549
        %v7672 = vadd.f32 %v7282, %v7554
        %v7673 = vadd.f32 %v7283, %v7559
        %v7674 = vadd.f32 %v7284, %v7564
        %v7675 = vadd.f32 %v7285, %v7569
        %v7676 = vadd.f32 %v7286, %v7574
        %v7677 = vadd.f32 %v7287, %v7579
        %v7678 = vadd.f32 %v7288, %v7584
        %v7679 = vadd.f32 %v7289, %v7589
        %v7680 = vadd.f32 %v7290, %v7594
        %v7681 = vadd.f32 %v7291, %v7599
        %v7682 = vadd.f32 %v7292, %v7604
        %v7683 = vadd.f32 %v7293, %v7609
        %v7684 = vadd.f32 %v7294, %v7614
        %v7685 = vadd.f32 %v7295, %v7619
        %v7686 = vadd.f32 %v7296, %v7624
        %v7687 = vadd.f32 %v7297, %v7629
        %v7688 = vadd.f32 %v7298, %v7634
        %v7689 = vadd.f32 %v7299, %v7639
        %v7690 = vadd.f32 %v7300, %v7644
        %v7691 = vadd.f32 %v7301, %v7649
        %v7692 = vadd.f32 %v7302, %v7654
        %v7693 = vadd.f32 %v7303, %v7659
        %v7694 = vld [vmem:[%s4] sm:$0x1]
        %v7696 = vlaneseq
        %v7697 = vshrl.u32 %v7696, 7
        %v7698 = vsub.s32 0, %v7697
        %v7699 = vrot.slane %v7694, %v7698
        %v7701 = vadd.f32 %v7662, %v7699
        %v7702 = vadd.f32 %v7663, %v7699
        %v7703 = vadd.f32 %v7664, %v7699
        %v7704 = vadd.f32 %v7665, %v7699
        %v7705 = vadd.f32 %v7666, %v7699
        %v7706 = vadd.f32 %v7667, %v7699
        %v7707 = vadd.f32 %v7668, %v7699
        %v7708 = vadd.f32 %v7669, %v7699
        %v7709 = vadd.f32 %v7670, %v7699
        %v7710 = vadd.f32 %v7671, %v7699
        %v7711 = vadd.f32 %v7672, %v7699
        %v7712 = vadd.f32 %v7673, %v7699
        %v7713 = vadd.f32 %v7674, %v7699
        %v7714 = vadd.f32 %v7675, %v7699
        %v7715 = vadd.f32 %v7676, %v7699
        %v7716 = vadd.f32 %v7677, %v7699
        %v7717 = vadd.f32 %v7678, %v7699
        %v7718 = vadd.f32 %v7679, %v7699
        %v7719 = vadd.f32 %v7680, %v7699
        %v7720 = vadd.f32 %v7681, %v7699
        %v7721 = vadd.f32 %v7682, %v7699
        %v7722 = vadd.f32 %v7683, %v7699
        %v7723 = vadd.f32 %v7684, %v7699
        %v7724 = vadd.f32 %v7685, %v7699
        %v7725 = vadd.f32 %v7686, %v7699
        %v7726 = vadd.f32 %v7687, %v7699
        %v7727 = vadd.f32 %v7688, %v7699
        %v7728 = vadd.f32 %v7689, %v7699
        %v7729 = vadd.f32 %v7690, %v7699
        %v7730 = vadd.f32 %v7691, %v7699
        %v7731 = vadd.f32 %v7692, %v7699
        %v7732 = vadd.f32 %v7693, %v7699
        %v7733 = vmax.f32 %v7701, 0.0
        %v7734 = vmax.f32 %v7702, 0.0
        %v7735 = vmax.f32 %v7703, 0.0
        %v7736 = vmax.f32 %v7704, 0.0
        %v7737 = vmax.f32 %v7705, 0.0
        %v7738 = vmax.f32 %v7706, 0.0
        %v7739 = vmax.f32 %v7707, 0.0
        %v7740 = vmax.f32 %v7708, 0.0
        %v7741 = vmax.f32 %v7709, 0.0
        %v7742 = vmax.f32 %v7710, 0.0
        %v7743 = vmax.f32 %v7711, 0.0
        %v7744 = vmax.f32 %v7712, 0.0
        %v7745 = vmax.f32 %v7713, 0.0
        %v7746 = vmax.f32 %v7714, 0.0
        %v7747 = vmax.f32 %v7715, 0.0
        %v7748 = vmax.f32 %v7716, 0.0
        %v7749 = vmax.f32 %v7717, 0.0
        %v7750 = vmax.f32 %v7718, 0.0
        %v7751 = vmax.f32 %v7719, 0.0
        %v7752 = vmax.f32 %v7720, 0.0
        %v7753 = vmax.f32 %v7721, 0.0
        %v7754 = vmax.f32 %v7722, 0.0
        %v7755 = vmax.f32 %v7723, 0.0
        %v7756 = vmax.f32 %v7724, 0.0
        %v7757 = vmax.f32 %v7725, 0.0
        %v7758 = vmax.f32 %v7726, 0.0
        %v7759 = vmax.f32 %v7727, 0.0
        %v7760 = vmax.f32 %v7728, 0.0
        %v7761 = vmax.f32 %v7729, 0.0
        %v7762 = vmax.f32 %v7730, 0.0
        %v7763 = vmax.f32 %v7731, 0.0
        %v7764 = vmax.f32 %v7732, 0.0
        %s7765 = scalar_lea.vmem [#allocation4], 72
        %7766 = vst.msk [vmem:[%s7765 + $0x3] sm:$0xff] %vm478, %v7733
        %7767 = vst.msk [vmem:[%s7765 + $0xb] sm:$0xff] %vm478, %v7734
        %7768 = vst.msk [vmem:[%s7765 + $0x1b] sm:$0xff] %vm478, %v7735
        %7769 = vst.msk [vmem:[%s7765 + $0x23] sm:$0xff] %vm478, %v7736
        %7770 = vst.msk [vmem:[%s7765 + $0x33] sm:$0xff] %vm478, %v7737
        %7771 = vst.msk [vmem:[%s7765 + $0x3b] sm:$0xff] %vm478, %v7738
        %7772 = vst.msk [vmem:[%s7765 + $0x4b] sm:$0xff] %vm478, %v7739
        %7773 = vst.msk [vmem:[%s7765 + $0x53] sm:$0xff] %vm478, %v7740
        %7774 = vst.msk [vmem:[%s7765 + $0x63] sm:$0xff] %vm478, %v7741
        %7775 = vst.msk [vmem:[%s7765 + $0x6b] sm:$0xff] %vm478, %v7742
        %7776 = vst.msk [vmem:[%s7765 + $0x7b] sm:$0xff] %vm478, %v7743
        %7777 = vst.msk [vmem:[%s7765 + $0x83] sm:$0xff] %vm478, %v7744
        %7778 = vst.msk [vmem:[%s7765 + $0x93] sm:$0xff] %vm478, %v7745
        %7779 = vst.msk [vmem:[%s7765 + $0x9b] sm:$0xff] %vm478, %v7746
        %7780 = vst.msk [vmem:[%s7765 + $0xab] sm:$0xff] %vm478, %v7747
        %7781 = vst.msk [vmem:[%s7765 + $0xb3] sm:$0xff] %vm478, %v7748
        %7782 = vst.msk [vmem:[%s7765 + $0xc3] sm:$0xff] %vm478, %v7749
        %7783 = vst.msk [vmem:[%s7765 + $0xcb] sm:$0xff] %vm478, %v7750
        %7784 = vst.msk [vmem:[%s7765 + $0xdb] sm:$0xff] %vm478, %v7751
        %7785 = vst.msk [vmem:[%s7765 + $0xe3] sm:$0xff] %vm478, %v7752
        %7786 = vst.msk [vmem:[%s7765 + $0xf3] sm:$0xff] %vm478, %v7753
        %7787 = vst.msk [vmem:[%s7765 + $0xfb] sm:$0xff] %vm478, %v7754
        %7788 = vst.msk [vmem:[%s7765 + $0x10b] sm:$0xff] %vm478, %v7755
        %7789 = vst.msk [vmem:[%s7765 + $0x113] sm:$0xff] %vm478, %v7756
        %7790 = vst.msk [vmem:[%s7765 + $0x123] sm:$0xff] %vm478, %v7757
        %7791 = vst.msk [vmem:[%s7765 + $0x12b] sm:$0xff] %vm478, %v7758
        %7792 = vst.msk [vmem:[%s7765 + $0x13b] sm:$0xff] %vm478, %v7759
        %7793 = vst.msk [vmem:[%s7765 + $0x143] sm:$0xff] %vm478, %v7760
        %7794 = vst.msk [vmem:[%s7765 + $0x153] sm:$0xff] %vm478, %v7761
        %7795 = vst.msk [vmem:[%s7765 + $0x15b] sm:$0xff] %vm478, %v7762
        %7796 = vst.msk [vmem:[%s7765 + $0x16b] sm:$0xff] %vm478, %v7763
        %7797 = vst.msk [vmem:[%s7765 + $0x173] sm:$0xff] %vm478, %v7764
        %v7798 = vld [vmem:[#allocation4] sm:$0xff]
        %v7799 = vld [vmem:[#allocation4 + $0x8] sm:$0xff]
        %v7800 = vld [vmem:[#allocation4 + $0x18] sm:$0xff]
        %v7801 = vld [vmem:[#allocation4 + $0x20] sm:$0xff]
        %v7802 = vld [vmem:[#allocation4 + $0x30] sm:$0xff]
        %v7803 = vld [vmem:[#allocation4 + $0x38] sm:$0xff]
        %v7804 = vld [vmem:[#allocation4 + $0x48] sm:$0xff]
        %v7805 = vld [vmem:[#allocation4 + $0x50] sm:$0xff]
        %v7806 = vld [vmem:[#allocation4 + $0x60] sm:$0xff]
        %v7807 = vld [vmem:[#allocation4 + $0x68] sm:$0xff]
        %v7808 = vld [vmem:[#allocation4 + $0x78] sm:$0xff]
        %v7809 = vld [vmem:[#allocation4 + $0x80] sm:$0xff]
        %v7810 = vld [vmem:[#allocation4 + $0x90] sm:$0xff]
        %v7811 = vld [vmem:[#allocation4 + $0x98] sm:$0xff]
        %v7812 = vld [vmem:[#allocation4 + $0xa8] sm:$0xff]
        %v7813 = vld [vmem:[#allocation4 + $0xb0] sm:$0xff]
        %v7814 = vld [vmem:[#allocation4 + $0xc0] sm:$0xff]
        %v7815 = vld [vmem:[#allocation4 + $0xc8] sm:$0xff]
        %v7816 = vld [vmem:[#allocation4 + $0xd8] sm:$0xff]
        %v7817 = vld [vmem:[#allocation4 + $0xe0] sm:$0xff]
        %v7818 = vld [vmem:[#allocation4 + $0xf0] sm:$0xff]
        %v7819 = vld [vmem:[#allocation4 + $0xf8] sm:$0xff]
        %v7820 = vld [vmem:[#allocation4 + $0x108] sm:$0xff]
        %v7821 = vld [vmem:[#allocation4 + $0x110] sm:$0xff]
        %v7822 = vld [vmem:[#allocation4 + $0x120] sm:$0xff]
        %v7823 = vld [vmem:[#allocation4 + $0x128] sm:$0xff]
        %v7824 = vld [vmem:[#allocation4 + $0x138] sm:$0xff]
        %v7825 = vld [vmem:[#allocation4 + $0x140] sm:$0xff]
        %v7826 = vld [vmem:[#allocation4 + $0x150] sm:$0xff]
        %v7827 = vld [vmem:[#allocation4 + $0x158] sm:$0xff]
        %v7828 = vld [vmem:[#allocation4 + $0x168] sm:$0xff]
        %v7829 = vld [vmem:[#allocation4 + $0x170] sm:$0xff]
        %v7830 = vld [vmem:[%s5] sm:$0xf]
        %v7831 = vld [vmem:[#allocation4 + $0x3] sm:$0xff]
        %v7832 = vld [vmem:[#allocation4 + $0xb] sm:$0xff]
        %v7833 = vld [vmem:[#allocation4 + $0x1b] sm:$0xff]
        %v7834 = vld [vmem:[#allocation4 + $0x23] sm:$0xff]
        %v7835 = vld [vmem:[#allocation4 + $0x33] sm:$0xff]
        %v7836 = vld [vmem:[#allocation4 + $0x3b] sm:$0xff]
        %v7837 = vld [vmem:[#allocation4 + $0x4b] sm:$0xff]
        %v7838 = vld [vmem:[#allocation4 + $0x53] sm:$0xff]
        %v7839 = vld [vmem:[#allocation4 + $0x63] sm:$0xff]
        %v7840 = vld [vmem:[#allocation4 + $0x6b] sm:$0xff]
        %v7841 = vld [vmem:[#allocation4 + $0x7b] sm:$0xff]
        %v7842 = vld [vmem:[#allocation4 + $0x83] sm:$0xff]
        %v7843 = vld [vmem:[#allocation4 + $0x93] sm:$0xff]
        %v7844 = vld [vmem:[#allocation4 + $0x9b] sm:$0xff]
        %v7845 = vld [vmem:[#allocation4 + $0xab] sm:$0xff]
        %v7846 = vld [vmem:[#allocation4 + $0xb3] sm:$0xff]
        %v7847 = vld [vmem:[#allocation4 + $0xc3] sm:$0xff]
        %v7848 = vld [vmem:[#allocation4 + $0xcb] sm:$0xff]
        %v7849 = vld [vmem:[#allocation4 + $0xdb] sm:$0xff]
        %v7850 = vld [vmem:[#allocation4 + $0xe3] sm:$0xff]
        %v7851 = vld [vmem:[#allocation4 + $0xf3] sm:$0xff]
        %v7852 = vld [vmem:[#allocation4 + $0xfb] sm:$0xff]
        %v7853 = vld [vmem:[#allocation4 + $0x10b] sm:$0xff]
        %v7854 = vld [vmem:[#allocation4 + $0x113] sm:$0xff]
        %v7855 = vld [vmem:[#allocation4 + $0x123] sm:$0xff]
        %v7856 = vld [vmem:[#allocation4 + $0x12b] sm:$0xff]
        %v7857 = vld [vmem:[#allocation4 + $0x13b] sm:$0xff]
        %v7858 = vld [vmem:[#allocation4 + $0x143] sm:$0xff]
        %v7859 = vld [vmem:[#allocation4 + $0x153] sm:$0xff]
        %v7860 = vld [vmem:[#allocation4 + $0x15b] sm:$0xff]
        %v7861 = vld [vmem:[#allocation4 + $0x16b] sm:$0xff]
        %v7862 = vld [vmem:[#allocation4 + $0x173] sm:$0xff]
        %s7863 = scalar_lea.vmem %s5, 4
        %v7864 = vld [vmem:[%s7863] sm:$0xf]
        %v7866 = vsel %vm478, %v7831, 0
        %v7869 = vsel %vm478, %v7832, 0
        %v7872 = vsel %vm478, %v7833, 0
        %v7875 = vsel %vm478, %v7834, 0
        %v7878 = vsel %vm478, %v7835, 0
        %v7881 = vsel %vm478, %v7836, 0
        %v7884 = vsel %vm478, %v7837, 0
        %v7887 = vsel %vm478, %v7838, 0
        %v7890 = vsel %vm478, %v7839, 0
        %v7893 = vsel %vm478, %v7840, 0
        %v7896 = vsel %vm478, %v7841, 0
        %v7899 = vsel %vm478, %v7842, 0
        %v7902 = vsel %vm478, %v7843, 0
        %v7905 = vsel %vm478, %v7844, 0
        %v7908 = vsel %vm478, %v7845, 0
        %v7911 = vsel %vm478, %v7846, 0
        %v7914 = vsel %vm478, %v7847, 0
        %v7917 = vsel %vm478, %v7848, 0
        %v7920 = vsel %vm478, %v7849, 0
        %v7923 = vsel %vm478, %v7850, 0
        %v7926 = vsel %vm478, %v7851, 0
        %v7929 = vsel %vm478, %v7852, 0
        %v7932 = vsel %vm478, %v7853, 0
        %v7935 = vsel %vm478, %v7854, 0
        %v7938 = vsel %vm478, %v7855, 0
        %v7941 = vsel %vm478, %v7856, 0
        %v7944 = vsel %vm478, %v7857, 0
        %v7947 = vsel %vm478, %v7858, 0
        %v7950 = vsel %vm478, %v7859, 0
        %v7953 = vsel %vm478, %v7860, 0
        %v7956 = vsel %vm478, %v7861, 0
        %v7959 = vsel %vm478, %v7862, 0
        %v7962 = vsel %vm4410, %v7864, 0
        %7964 = vmatprep.subr.mxu0 0.0
        %7965 = vmatpush1.msra.mxu0 0.0
        %7966 = vmatprep.subr.mxu0 0.0
        %7967 = vmatpush1.msra.mxu0 0.0
        %7968 = vmatprep.subr.mxu0 0.0
        %7969 = vmatpush1.msra.mxu0 0.0
        %7970 = vmatprep.subr.mxu0 0.0
        %7971 = vmatpush1.msra.mxu0 0.0
        %7972 = vmatprep.subr.mxu0 0.0
        %7973 = vmatpush1.msra.mxu0 0.0
        %7974 = vmatprep.subr.mxu0 0.0
        %7975 = vmatpush1.msra.mxu0 0.0
        %7976 = vmatprep.subr.mxu0 0.0
        %7977 = vmatpush1.msra.mxu0 0.0
        %7978 = vmatprep.subr.mxu0 0.0
        %7979 = vmatpush1.msra.mxu0 0.0
        %7980 = vmatprep.subr.mxu0 0.0
        %7981 = vmatpush1.msra.mxu0 0.0
        %7982 = vmatprep.subr.mxu0 0.0
        %7983 = vmatpush1.msra.mxu0 0.0
        %7984 = vmatprep.subr.mxu0 0.0
        %7985 = vmatpush1.msra.mxu0 0.0
        %7986 = vmatprep.subr.mxu0 0.0
        %7987 = vmatpush1.msra.mxu0 0.0
        %7988 = vmatprep.subr.mxu0 0.0
        %7989 = vmatpush1.msra.mxu0 0.0
        %7990 = vmatprep.subr.mxu0 0.0
        %7991 = vmatpush1.msra.mxu0 0.0
        %7992 = vmatprep.subr.mxu0 0.0
        %7993 = vmatpush1.msra.mxu0 0.0
        %7994 = vmatprep.subr.mxu0 0.0
        %7995 = vmatpush1.msra.mxu0 %v7962
        %7996 = vmatprep.subr.mxu0 0.0
        %7997 = vmatpush2.msra.mxu0 0.0
        %7998 = vmatprep.subr.mxu0 0.0
        %7999 = vmatpush2.msra.mxu0 0.0
        %8000 = vmatprep.subr.mxu0 0.0
        %8001 = vmatpush2.msra.mxu0 0.0
        %8002 = vmatprep.subr.mxu0 0.0
        %8003 = vmatpush2.msra.mxu0 0.0
        %8004 = vmatprep.subr.mxu0 0.0
        %8005 = vmatpush2.msra.mxu0 0.0
        %8006 = vmatprep.subr.mxu0 0.0
        %8007 = vmatpush2.msra.mxu0 0.0
        %8008 = vmatprep.subr.mxu0 0.0
        %8009 = vmatpush2.msra.mxu0 0.0
        %8010 = vmatprep.subr.mxu0 0.0
        %8011 = vmatpush2.msra.mxu0 0.0
        %8012 = vmatprep.subr.mxu0 0.0
        %8013 = vmatpush2.msra.mxu0 0.0
        %8014 = vmatprep.subr.mxu0 0.0
        %8015 = vmatpush2.msra.mxu0 0.0
        %8016 = vmatprep.subr.mxu0 0.0
        %8017 = vmatpush2.msra.mxu0 0.0
        %8018 = vmatprep.subr.mxu0 0.0
        %8019 = vmatpush2.msra.mxu0 0.0
        %8020 = vmatprep.subr.mxu0 0.0
        %8021 = vmatpush2.msra.mxu0 0.0
        %8022 = vmatprep.subr.mxu0 0.0
        %8023 = vmatpush2.msra.mxu0 0.0
        %8024 = vmatprep.subr.mxu0 0.0
        %8025 = vmatpush2.msra.mxu0 0.0
        %8026 = vmatprep.subr.mxu0 0.0
        %8027 = vmatpush2.msra.mxu0 0.0
        %8028 = vmatprep.mubr.f32.mxu0 0.0
        %8029 = vmatmul.mubr.f32.gmra.mxu0 %v7866
        %v8030 = vpop.f32.mrf.mxu0
        %v8031 = vadd.f32 0.0, %v8030
        %v8032 = vpop.f32.mrf.mxu0
        %8033 = vmatprep.mubr.f32.mxu0 0.0
        %8034 = vmatmul.mubr.f32.gmra.mxu0 %v7869
        %v8035 = vpop.f32.mrf.mxu0
        %v8036 = vadd.f32 0.0, %v8035
        %v8037 = vpop.f32.mrf.mxu0
        %8038 = vmatprep.mubr.f32.mxu0 0.0
        %8039 = vmatmul.mubr.f32.gmra.mxu0 %v7872
        %v8040 = vpop.f32.mrf.mxu0
        %v8041 = vadd.f32 0.0, %v8040
        %v8042 = vpop.f32.mrf.mxu0
        %8043 = vmatprep.mubr.f32.mxu0 0.0
        %8044 = vmatmul.mubr.f32.gmra.mxu0 %v7875
        %v8045 = vpop.f32.mrf.mxu0
        %v8046 = vadd.f32 0.0, %v8045
        %v8047 = vpop.f32.mrf.mxu0
        %8048 = vmatprep.mubr.f32.mxu0 0.0
        %8049 = vmatmul.mubr.f32.gmra.mxu0 %v7878
        %v8050 = vpop.f32.mrf.mxu0
        %v8051 = vadd.f32 0.0, %v8050
        %v8052 = vpop.f32.mrf.mxu0
        %8053 = vmatprep.mubr.f32.mxu0 0.0
        %8054 = vmatmul.mubr.f32.gmra.mxu0 %v7881
        %v8055 = vpop.f32.mrf.mxu0
        %v8056 = vadd.f32 0.0, %v8055
        %v8057 = vpop.f32.mrf.mxu0
        %8058 = vmatprep.mubr.f32.mxu0 0.0
        %8059 = vmatmul.mubr.f32.gmra.mxu0 %v7884
        %v8060 = vpop.f32.mrf.mxu0
        %v8061 = vadd.f32 0.0, %v8060
        %v8062 = vpop.f32.mrf.mxu0
        %8063 = vmatprep.mubr.f32.mxu0 0.0
        %8064 = vmatmul.mubr.f32.gmra.mxu0 %v7887
        %v8065 = vpop.f32.mrf.mxu0
        %v8066 = vadd.f32 0.0, %v8065
        %v8067 = vpop.f32.mrf.mxu0
        %8068 = vmatprep.mubr.f32.mxu0 0.0
        %8069 = vmatmul.mubr.f32.gmra.mxu0 %v7890
        %v8070 = vpop.f32.mrf.mxu0
        %v8071 = vadd.f32 0.0, %v8070
        %v8072 = vpop.f32.mrf.mxu0
        %8073 = vmatprep.mubr.f32.mxu0 0.0
        %8074 = vmatmul.mubr.f32.gmra.mxu0 %v7893
        %v8075 = vpop.f32.mrf.mxu0
        %v8076 = vadd.f32 0.0, %v8075
        %v8077 = vpop.f32.mrf.mxu0
        %8078 = vmatprep.mubr.f32.mxu0 0.0
        %8079 = vmatmul.mubr.f32.gmra.mxu0 %v7896
        %v8080 = vpop.f32.mrf.mxu0
        %v8081 = vadd.f32 0.0, %v8080
        %v8082 = vpop.f32.mrf.mxu0
        %8083 = vmatprep.mubr.f32.mxu0 0.0
        %8084 = vmatmul.mubr.f32.gmra.mxu0 %v7899
        %v8085 = vpop.f32.mrf.mxu0
        %v8086 = vadd.f32 0.0, %v8085
        %v8087 = vpop.f32.mrf.mxu0
        %8088 = vmatprep.mubr.f32.mxu0 0.0
        %8089 = vmatmul.mubr.f32.gmra.mxu0 %v7902
        %v8090 = vpop.f32.mrf.mxu0
        %v8091 = vadd.f32 0.0, %v8090
        %v8092 = vpop.f32.mrf.mxu0
        %8093 = vmatprep.mubr.f32.mxu0 0.0
        %8094 = vmatmul.mubr.f32.gmra.mxu0 %v7905
        %v8095 = vpop.f32.mrf.mxu0
        %v8096 = vadd.f32 0.0, %v8095
        %v8097 = vpop.f32.mrf.mxu0
        %8098 = vmatprep.mubr.f32.mxu0 0.0
        %8099 = vmatmul.mubr.f32.gmra.mxu0 %v7908
        %v8100 = vpop.f32.mrf.mxu0
        %v8101 = vadd.f32 0.0, %v8100
        %v8102 = vpop.f32.mrf.mxu0
        %8103 = vmatprep.mubr.f32.mxu0 0.0
        %8104 = vmatmul.mubr.f32.gmra.mxu0 %v7911
        %v8105 = vpop.f32.mrf.mxu0
        %v8106 = vadd.f32 0.0, %v8105
        %v8107 = vpop.f32.mrf.mxu0
        %8108 = vmatprep.mubr.f32.mxu0 0.0
        %8109 = vmatmul.mubr.f32.gmra.mxu0 %v7914
        %v8110 = vpop.f32.mrf.mxu0
        %v8111 = vadd.f32 0.0, %v8110
        %v8112 = vpop.f32.mrf.mxu0
        %8113 = vmatprep.mubr.f32.mxu0 0.0
        %8114 = vmatmul.mubr.f32.gmra.mxu0 %v7917
        %v8115 = vpop.f32.mrf.mxu0
        %v8116 = vadd.f32 0.0, %v8115
        %v8117 = vpop.f32.mrf.mxu0
        %8118 = vmatprep.mubr.f32.mxu0 0.0
        %8119 = vmatmul.mubr.f32.gmra.mxu0 %v7920
        %v8120 = vpop.f32.mrf.mxu0
        %v8121 = vadd.f32 0.0, %v8120
        %v8122 = vpop.f32.mrf.mxu0
        %8123 = vmatprep.mubr.f32.mxu0 0.0
        %8124 = vmatmul.mubr.f32.gmra.mxu0 %v7923
        %v8125 = vpop.f32.mrf.mxu0
        %v8126 = vadd.f32 0.0, %v8125
        %v8127 = vpop.f32.mrf.mxu0
        %8128 = vmatprep.mubr.f32.mxu0 0.0
        %8129 = vmatmul.mubr.f32.gmra.mxu0 %v7926
        %v8130 = vpop.f32.mrf.mxu0
        %v8131 = vadd.f32 0.0, %v8130
        %v8132 = vpop.f32.mrf.mxu0
        %8133 = vmatprep.mubr.f32.mxu0 0.0
        %8134 = vmatmul.mubr.f32.gmra.mxu0 %v7929
        %v8135 = vpop.f32.mrf.mxu0
        %v8136 = vadd.f32 0.0, %v8135
        %v8137 = vpop.f32.mrf.mxu0
        %8138 = vmatprep.mubr.f32.mxu0 0.0
        %8139 = vmatmul.mubr.f32.gmra.mxu0 %v7932
        %v8140 = vpop.f32.mrf.mxu0
        %v8141 = vadd.f32 0.0, %v8140
        %v8142 = vpop.f32.mrf.mxu0
        %8143 = vmatprep.mubr.f32.mxu0 0.0
        %8144 = vmatmul.mubr.f32.gmra.mxu0 %v7935
        %v8145 = vpop.f32.mrf.mxu0
        %v8146 = vadd.f32 0.0, %v8145
        %v8147 = vpop.f32.mrf.mxu0
        %8148 = vmatprep.mubr.f32.mxu0 0.0
        %8149 = vmatmul.mubr.f32.gmra.mxu0 %v7938
        %v8150 = vpop.f32.mrf.mxu0
        %v8151 = vadd.f32 0.0, %v8150
        %v8152 = vpop.f32.mrf.mxu0
        %8153 = vmatprep.mubr.f32.mxu0 0.0
        %8154 = vmatmul.mubr.f32.gmra.mxu0 %v7941
        %v8155 = vpop.f32.mrf.mxu0
        %v8156 = vadd.f32 0.0, %v8155
        %v8157 = vpop.f32.mrf.mxu0
        %8158 = vmatprep.mubr.f32.mxu0 0.0
        %8159 = vmatmul.mubr.f32.gmra.mxu0 %v7944
        %v8160 = vpop.f32.mrf.mxu0
        %v8161 = vadd.f32 0.0, %v8160
        %v8162 = vpop.f32.mrf.mxu0
        %8163 = vmatprep.mubr.f32.mxu0 0.0
        %8164 = vmatmul.mubr.f32.gmra.mxu0 %v7947
        %v8165 = vpop.f32.mrf.mxu0
        %v8166 = vadd.f32 0.0, %v8165
        %v8167 = vpop.f32.mrf.mxu0
        %8168 = vmatprep.mubr.f32.mxu0 0.0
        %8169 = vmatmul.mubr.f32.gmra.mxu0 %v7950
        %v8170 = vpop.f32.mrf.mxu0
        %v8171 = vadd.f32 0.0, %v8170
        %v8172 = vpop.f32.mrf.mxu0
        %8173 = vmatprep.mubr.f32.mxu0 0.0
        %8174 = vmatmul.mubr.f32.gmra.mxu0 %v7953
        %v8175 = vpop.f32.mrf.mxu0
        %v8176 = vadd.f32 0.0, %v8175
        %v8177 = vpop.f32.mrf.mxu0
        %8178 = vmatprep.mubr.f32.mxu0 0.0
        %8179 = vmatmul.mubr.f32.gmra.mxu0 %v7956
        %v8180 = vpop.f32.mrf.mxu0
        %v8181 = vadd.f32 0.0, %v8180
        %v8182 = vpop.f32.mrf.mxu0
        %8183 = vmatprep.mubr.f32.mxu0 0.0
        %8184 = vmatmul.mubr.f32.gmra.mxu0 %v7959
        %v8185 = vpop.f32.mrf.mxu0
        %v8186 = vadd.f32 0.0, %v8185
        %v8187 = vpop.f32.mrf.mxu0
        %8188 = vdwg.mxu0
        %v8190 = vsel %vm478, %v7798, 0
        %v8193 = vsel %vm478, %v7799, 0
        %v8196 = vsel %vm478, %v7800, 0
        %v8199 = vsel %vm478, %v7801, 0
        %v8202 = vsel %vm478, %v7802, 0
        %v8205 = vsel %vm478, %v7803, 0
        %v8208 = vsel %vm478, %v7804, 0
        %v8211 = vsel %vm478, %v7805, 0
        %v8214 = vsel %vm478, %v7806, 0
        %v8217 = vsel %vm478, %v7807, 0
        %v8220 = vsel %vm478, %v7808, 0
        %v8223 = vsel %vm478, %v7809, 0
        %v8226 = vsel %vm478, %v7810, 0
        %v8229 = vsel %vm478, %v7811, 0
        %v8232 = vsel %vm478, %v7812, 0
        %v8235 = vsel %vm478, %v7813, 0
        %v8238 = vsel %vm478, %v7814, 0
        %v8241 = vsel %vm478, %v7815, 0
        %v8244 = vsel %vm478, %v7816, 0
        %v8247 = vsel %vm478, %v7817, 0
        %v8250 = vsel %vm478, %v7818, 0
        %v8253 = vsel %vm478, %v7819, 0
        %v8256 = vsel %vm478, %v7820, 0
        %v8259 = vsel %vm478, %v7821, 0
        %v8262 = vsel %vm478, %v7822, 0
        %v8265 = vsel %vm478, %v7823, 0
        %v8268 = vsel %vm478, %v7824, 0
        %v8271 = vsel %vm478, %v7825, 0
        %v8274 = vsel %vm478, %v7826, 0
        %v8277 = vsel %vm478, %v7827, 0
        %v8280 = vsel %vm478, %v7828, 0
        %v8283 = vsel %vm478, %v7829, 0
        %v8286 = vsel %vm4410, %v7830, 0
        %8288 = vmatprep.subr.mxu0 0.0
        %8289 = vmatpush1.msra.mxu0 0.0
        %8290 = vmatprep.subr.mxu0 0.0
        %8291 = vmatpush1.msra.mxu0 0.0
        %8292 = vmatprep.subr.mxu0 0.0
        %8293 = vmatpush1.msra.mxu0 0.0
        %8294 = vmatprep.subr.mxu0 0.0
        %8295 = vmatpush1.msra.mxu0 0.0
        %8296 = vmatprep.subr.mxu0 0.0
        %8297 = vmatpush1.msra.mxu0 0.0
        %8298 = vmatprep.subr.mxu0 0.0
        %8299 = vmatpush1.msra.mxu0 0.0
        %8300 = vmatprep.subr.mxu0 0.0
        %8301 = vmatpush1.msra.mxu0 0.0
        %8302 = vmatprep.subr.mxu0 0.0
        %8303 = vmatpush1.msra.mxu0 0.0
        %8304 = vmatprep.subr.mxu0 0.0
        %8305 = vmatpush1.msra.mxu0 0.0
        %8306 = vmatprep.subr.mxu0 0.0
        %8307 = vmatpush1.msra.mxu0 0.0
        %8308 = vmatprep.subr.mxu0 0.0
        %8309 = vmatpush1.msra.mxu0 0.0
        %8310 = vmatprep.subr.mxu0 0.0
        %8311 = vmatpush1.msra.mxu0 0.0
        %8312 = vmatprep.subr.mxu0 0.0
        %8313 = vmatpush1.msra.mxu0 0.0
        %8314 = vmatprep.subr.mxu0 0.0
        %8315 = vmatpush1.msra.mxu0 0.0
        %8316 = vmatprep.subr.mxu0 0.0
        %8317 = vmatpush1.msra.mxu0 0.0
        %8318 = vmatprep.subr.mxu0 0.0
        %8319 = vmatpush1.msra.mxu0 %v8286
        %8320 = vmatprep.subr.mxu0 0.0
        %8321 = vmatpush2.msra.mxu0 0.0
        %8322 = vmatprep.subr.mxu0 0.0
        %8323 = vmatpush2.msra.mxu0 0.0
        %8324 = vmatprep.subr.mxu0 0.0
        %8325 = vmatpush2.msra.mxu0 0.0
        %8326 = vmatprep.subr.mxu0 0.0
        %8327 = vmatpush2.msra.mxu0 0.0
        %8328 = vmatprep.subr.mxu0 0.0
        %8329 = vmatpush2.msra.mxu0 0.0
        %8330 = vmatprep.subr.mxu0 0.0
        %8331 = vmatpush2.msra.mxu0 0.0
        %8332 = vmatprep.subr.mxu0 0.0
        %8333 = vmatpush2.msra.mxu0 0.0
        %8334 = vmatprep.subr.mxu0 0.0
        %8335 = vmatpush2.msra.mxu0 0.0
        %8336 = vmatprep.subr.mxu0 0.0
        %8337 = vmatpush2.msra.mxu0 0.0
        %8338 = vmatprep.subr.mxu0 0.0
        %8339 = vmatpush2.msra.mxu0 0.0
        %8340 = vmatprep.subr.mxu0 0.0
        %8341 = vmatpush2.msra.mxu0 0.0
        %8342 = vmatprep.subr.mxu0 0.0
        %8343 = vmatpush2.msra.mxu0 0.0
        %8344 = vmatprep.subr.mxu0 0.0
        %8345 = vmatpush2.msra.mxu0 0.0
        %8346 = vmatprep.subr.mxu0 0.0
        %8347 = vmatpush2.msra.mxu0 0.0
        %8348 = vmatprep.subr.mxu0 0.0
        %8349 = vmatpush2.msra.mxu0 0.0
        %8350 = vmatprep.subr.mxu0 0.0
        %8351 = vmatpush2.msra.mxu0 0.0
        %8352 = vmatprep.mubr.f32.mxu0 0.0
        %8353 = vmatmul.mubr.f32.gmra.mxu0 %v8190
        %v8354 = vpop.f32.mrf.mxu0
        %v8355 = vadd.f32 %v8031, %v8354
        %v8356 = vpop.f32.mrf.mxu0
        %8357 = vmatprep.mubr.f32.mxu0 0.0
        %8358 = vmatmul.mubr.f32.gmra.mxu0 %v8193
        %v8359 = vpop.f32.mrf.mxu0
        %v8360 = vadd.f32 %v8036, %v8359
        %v8361 = vpop.f32.mrf.mxu0
        %8362 = vmatprep.mubr.f32.mxu0 0.0
        %8363 = vmatmul.mubr.f32.gmra.mxu0 %v8196
        %v8364 = vpop.f32.mrf.mxu0
        %v8365 = vadd.f32 %v8041, %v8364
        %v8366 = vpop.f32.mrf.mxu0
        %8367 = vmatprep.mubr.f32.mxu0 0.0
        %8368 = vmatmul.mubr.f32.gmra.mxu0 %v8199
        %v8369 = vpop.f32.mrf.mxu0
        %v8370 = vadd.f32 %v8046, %v8369
        %v8371 = vpop.f32.mrf.mxu0
        %8372 = vmatprep.mubr.f32.mxu0 0.0
        %8373 = vmatmul.mubr.f32.gmra.mxu0 %v8202
        %v8374 = vpop.f32.mrf.mxu0
        %v8375 = vadd.f32 %v8051, %v8374
        %v8376 = vpop.f32.mrf.mxu0
        %8377 = vmatprep.mubr.f32.mxu0 0.0
        %8378 = vmatmul.mubr.f32.gmra.mxu0 %v8205
        %v8379 = vpop.f32.mrf.mxu0
        %v8380 = vadd.f32 %v8056, %v8379
        %v8381 = vpop.f32.mrf.mxu0
        %8382 = vmatprep.mubr.f32.mxu0 0.0
        %8383 = vmatmul.mubr.f32.gmra.mxu0 %v8208
        %v8384 = vpop.f32.mrf.mxu0
        %v8385 = vadd.f32 %v8061, %v8384
        %v8386 = vpop.f32.mrf.mxu0
        %8387 = vmatprep.mubr.f32.mxu0 0.0
        %8388 = vmatmul.mubr.f32.gmra.mxu0 %v8211
        %v8389 = vpop.f32.mrf.mxu0
        %v8390 = vadd.f32 %v8066, %v8389
        %v8391 = vpop.f32.mrf.mxu0
        %8392 = vmatprep.mubr.f32.mxu0 0.0
        %8393 = vmatmul.mubr.f32.gmra.mxu0 %v8214
        %v8394 = vpop.f32.mrf.mxu0
        %v8395 = vadd.f32 %v8071, %v8394
        %v8396 = vpop.f32.mrf.mxu0
        %8397 = vmatprep.mubr.f32.mxu0 0.0
        %8398 = vmatmul.mubr.f32.gmra.mxu0 %v8217
        %v8399 = vpop.f32.mrf.mxu0
        %v8400 = vadd.f32 %v8076, %v8399
        %v8401 = vpop.f32.mrf.mxu0
        %8402 = vmatprep.mubr.f32.mxu0 0.0
        %8403 = vmatmul.mubr.f32.gmra.mxu0 %v8220
        %v8404 = vpop.f32.mrf.mxu0
        %v8405 = vadd.f32 %v8081, %v8404
        %v8406 = vpop.f32.mrf.mxu0
        %8407 = vmatprep.mubr.f32.mxu0 0.0
        %8408 = vmatmul.mubr.f32.gmra.mxu0 %v8223
        %v8409 = vpop.f32.mrf.mxu0
        %v8410 = vadd.f32 %v8086, %v8409
        %v8411 = vpop.f32.mrf.mxu0
        %8412 = vmatprep.mubr.f32.mxu0 0.0
        %8413 = vmatmul.mubr.f32.gmra.mxu0 %v8226
        %v8414 = vpop.f32.mrf.mxu0
        %v8415 = vadd.f32 %v8091, %v8414
        %v8416 = vpop.f32.mrf.mxu0
        %8417 = vmatprep.mubr.f32.mxu0 0.0
        %8418 = vmatmul.mubr.f32.gmra.mxu0 %v8229
        %v8419 = vpop.f32.mrf.mxu0
        %v8420 = vadd.f32 %v8096, %v8419
        %v8421 = vpop.f32.mrf.mxu0
        %8422 = vmatprep.mubr.f32.mxu0 0.0
        %8423 = vmatmul.mubr.f32.gmra.mxu0 %v8232
        %v8424 = vpop.f32.mrf.mxu0
        %v8425 = vadd.f32 %v8101, %v8424
        %v8426 = vpop.f32.mrf.mxu0
        %8427 = vmatprep.mubr.f32.mxu0 0.0
        %8428 = vmatmul.mubr.f32.gmra.mxu0 %v8235
        %v8429 = vpop.f32.mrf.mxu0
        %v8430 = vadd.f32 %v8106, %v8429
        %v8431 = vpop.f32.mrf.mxu0
        %8432 = vmatprep.mubr.f32.mxu0 0.0
        %8433 = vmatmul.mubr.f32.gmra.mxu0 %v8238
        %v8434 = vpop.f32.mrf.mxu0
        %v8435 = vadd.f32 %v8111, %v8434
        %v8436 = vpop.f32.mrf.mxu0
        %8437 = vmatprep.mubr.f32.mxu0 0.0
        %8438 = vmatmul.mubr.f32.gmra.mxu0 %v8241
        %v8439 = vpop.f32.mrf.mxu0
        %v8440 = vadd.f32 %v8116, %v8439
        %v8441 = vpop.f32.mrf.mxu0
        %8442 = vmatprep.mubr.f32.mxu0 0.0
        %8443 = vmatmul.mubr.f32.gmra.mxu0 %v8244
        %v8444 = vpop.f32.mrf.mxu0
        %v8445 = vadd.f32 %v8121, %v8444
        %v8446 = vpop.f32.mrf.mxu0
        %8447 = vmatprep.mubr.f32.mxu0 0.0
        %8448 = vmatmul.mubr.f32.gmra.mxu0 %v8247
        %v8449 = vpop.f32.mrf.mxu0
        %v8450 = vadd.f32 %v8126, %v8449
        %v8451 = vpop.f32.mrf.mxu0
        %8452 = vmatprep.mubr.f32.mxu0 0.0
        %8453 = vmatmul.mubr.f32.gmra.mxu0 %v8250
        %v8454 = vpop.f32.mrf.mxu0
        %v8455 = vadd.f32 %v8131, %v8454
        %v8456 = vpop.f32.mrf.mxu0
        %8457 = vmatprep.mubr.f32.mxu0 0.0
        %8458 = vmatmul.mubr.f32.gmra.mxu0 %v8253
        %v8459 = vpop.f32.mrf.mxu0
        %v8460 = vadd.f32 %v8136, %v8459
        %v8461 = vpop.f32.mrf.mxu0
        %8462 = vmatprep.mubr.f32.mxu0 0.0
        %8463 = vmatmul.mubr.f32.gmra.mxu0 %v8256
        %v8464 = vpop.f32.mrf.mxu0
        %v8465 = vadd.f32 %v8141, %v8464
        %v8466 = vpop.f32.mrf.mxu0
        %8467 = vmatprep.mubr.f32.mxu0 0.0
        %8468 = vmatmul.mubr.f32.gmra.mxu0 %v8259
        %v8469 = vpop.f32.mrf.mxu0
        %v8470 = vadd.f32 %v8146, %v8469
        %v8471 = vpop.f32.mrf.mxu0
        %8472 = vmatprep.mubr.f32.mxu0 0.0
        %8473 = vmatmul.mubr.f32.gmra.mxu0 %v8262
        %v8474 = vpop.f32.mrf.mxu0
        %v8475 = vadd.f32 %v8151, %v8474
        %v8476 = vpop.f32.mrf.mxu0
        %8477 = vmatprep.mubr.f32.mxu0 0.0
        %8478 = vmatmul.mubr.f32.gmra.mxu0 %v8265
        %v8479 = vpop.f32.mrf.mxu0
        %v8480 = vadd.f32 %v8156, %v8479
        %v8481 = vpop.f32.mrf.mxu0
        %8482 = vmatprep.mubr.f32.mxu0 0.0
        %8483 = vmatmul.mubr.f32.gmra.mxu0 %v8268
        %v8484 = vpop.f32.mrf.mxu0
        %v8485 = vadd.f32 %v8161, %v8484
        %v8486 = vpop.f32.mrf.mxu0
        %8487 = vmatprep.mubr.f32.mxu0 0.0
        %8488 = vmatmul.mubr.f32.gmra.mxu0 %v8271
        %v8489 = vpop.f32.mrf.mxu0
        %v8490 = vadd.f32 %v8166, %v8489
        %v8491 = vpop.f32.mrf.mxu0
        %8492 = vmatprep.mubr.f32.mxu0 0.0
        %8493 = vmatmul.mubr.f32.gmra.mxu0 %v8274
        %v8494 = vpop.f32.mrf.mxu0
        %v8495 = vadd.f32 %v8171, %v8494
        %v8496 = vpop.f32.mrf.mxu0
        %8497 = vmatprep.mubr.f32.mxu0 0.0
        %8498 = vmatmul.mubr.f32.gmra.mxu0 %v8277
        %v8499 = vpop.f32.mrf.mxu0
        %v8500 = vadd.f32 %v8176, %v8499
        %v8501 = vpop.f32.mrf.mxu0
        %8502 = vmatprep.mubr.f32.mxu0 0.0
        %8503 = vmatmul.mubr.f32.gmra.mxu0 %v8280
        %v8504 = vpop.f32.mrf.mxu0
        %v8505 = vadd.f32 %v8181, %v8504
        %v8506 = vpop.f32.mrf.mxu0
        %8507 = vmatprep.mubr.f32.mxu0 0.0
        %8508 = vmatmul.mubr.f32.gmra.mxu0 %v8283
        %v8509 = vpop.f32.mrf.mxu0
        %v8510 = vadd.f32 %v8186, %v8509
        %v8511 = vpop.f32.mrf.mxu0
        %8512 = vdwg.mxu0
        %v8513 = vld [vmem:[#allocation4 + $0x6] sm:$0xff]
        %v8514 = vld [vmem:[#allocation4 + $0xe] sm:$0xff]
        %v8515 = vld [vmem:[#allocation4 + $0x1e] sm:$0xff]
        %v8516 = vld [vmem:[#allocation4 + $0x26] sm:$0xff]
        %v8517 = vld [vmem:[#allocation4 + $0x36] sm:$0xff]
        %v8518 = vld [vmem:[#allocation4 + $0x3e] sm:$0xff]
        %v8519 = vld [vmem:[#allocation4 + $0x4e] sm:$0xff]
        %v8520 = vld [vmem:[#allocation4 + $0x56] sm:$0xff]
        %v8521 = vld [vmem:[#allocation4 + $0x66] sm:$0xff]
        %v8522 = vld [vmem:[#allocation4 + $0x6e] sm:$0xff]
        %v8523 = vld [vmem:[#allocation4 + $0x7e] sm:$0xff]
        %v8524 = vld [vmem:[#allocation4 + $0x86] sm:$0xff]
        %v8525 = vld [vmem:[#allocation4 + $0x96] sm:$0xff]
        %v8526 = vld [vmem:[#allocation4 + $0x9e] sm:$0xff]
        %v8527 = vld [vmem:[#allocation4 + $0xae] sm:$0xff]
        %v8528 = vld [vmem:[#allocation4 + $0xb6] sm:$0xff]
        %v8529 = vld [vmem:[#allocation4 + $0xc6] sm:$0xff]
        %v8530 = vld [vmem:[#allocation4 + $0xce] sm:$0xff]
        %v8531 = vld [vmem:[#allocation4 + $0xde] sm:$0xff]
        %v8532 = vld [vmem:[#allocation4 + $0xe6] sm:$0xff]
        %v8533 = vld [vmem:[#allocation4 + $0xf6] sm:$0xff]
        %v8534 = vld [vmem:[#allocation4 + $0xfe] sm:$0xff]
        %v8535 = vld [vmem:[#allocation4 + $0x10e] sm:$0xff]
        %v8536 = vld [vmem:[#allocation4 + $0x116] sm:$0xff]
        %v8537 = vld [vmem:[#allocation4 + $0x126] sm:$0xff]
        %v8538 = vld [vmem:[#allocation4 + $0x12e] sm:$0xff]
        %v8539 = vld [vmem:[#allocation4 + $0x13e] sm:$0xff]
        %v8540 = vld [vmem:[#allocation4 + $0x146] sm:$0xff]
        %v8541 = vld [vmem:[#allocation4 + $0x156] sm:$0xff]
        %v8542 = vld [vmem:[#allocation4 + $0x15e] sm:$0xff]
        %v8543 = vld [vmem:[#allocation4 + $0x16e] sm:$0xff]
        %v8544 = vld [vmem:[#allocation4 + $0x176] sm:$0xff]
        %s8545 = scalar_lea.vmem %s5, 8
        %v8546 = vld [vmem:[%s8545] sm:$0xf]
        %v8548 = vsel %vm478, %v8513, 0
        %v8551 = vsel %vm478, %v8514, 0
        %v8554 = vsel %vm478, %v8515, 0
        %v8557 = vsel %vm478, %v8516, 0
        %v8560 = vsel %vm478, %v8517, 0
        %v8563 = vsel %vm478, %v8518, 0
        %v8566 = vsel %vm478, %v8519, 0
        %v8569 = vsel %vm478, %v8520, 0
        %v8572 = vsel %vm478, %v8521, 0
        %v8575 = vsel %vm478, %v8522, 0
        %v8578 = vsel %vm478, %v8523, 0
        %v8581 = vsel %vm478, %v8524, 0
        %v8584 = vsel %vm478, %v8525, 0
        %v8587 = vsel %vm478, %v8526, 0
        %v8590 = vsel %vm478, %v8527, 0
        %v8593 = vsel %vm478, %v8528, 0
        %v8596 = vsel %vm478, %v8529, 0
        %v8599 = vsel %vm478, %v8530, 0
        %v8602 = vsel %vm478, %v8531, 0
        %v8605 = vsel %vm478, %v8532, 0
        %v8608 = vsel %vm478, %v8533, 0
        %v8611 = vsel %vm478, %v8534, 0
        %v8614 = vsel %vm478, %v8535, 0
        %v8617 = vsel %vm478, %v8536, 0
        %v8620 = vsel %vm478, %v8537, 0
        %v8623 = vsel %vm478, %v8538, 0
        %v8626 = vsel %vm478, %v8539, 0
        %v8629 = vsel %vm478, %v8540, 0
        %v8632 = vsel %vm478, %v8541, 0
        %v8635 = vsel %vm478, %v8542, 0
        %v8638 = vsel %vm478, %v8543, 0
        %v8641 = vsel %vm478, %v8544, 0
        %v8644 = vsel %vm4410, %v8546, 0
        %8646 = vmatprep.subr.mxu0 0.0
        %8647 = vmatpush1.msra.mxu0 0.0
        %8648 = vmatprep.subr.mxu0 0.0
        %8649 = vmatpush1.msra.mxu0 0.0
        %8650 = vmatprep.subr.mxu0 0.0
        %8651 = vmatpush1.msra.mxu0 0.0
        %8652 = vmatprep.subr.mxu0 0.0
        %8653 = vmatpush1.msra.mxu0 0.0
        %8654 = vmatprep.subr.mxu0 0.0
        %8655 = vmatpush1.msra.mxu0 0.0
        %8656 = vmatprep.subr.mxu0 0.0
        %8657 = vmatpush1.msra.mxu0 0.0
        %8658 = vmatprep.subr.mxu0 0.0
        %8659 = vmatpush1.msra.mxu0 0.0
        %8660 = vmatprep.subr.mxu0 0.0
        %8661 = vmatpush1.msra.mxu0 0.0
        %8662 = vmatprep.subr.mxu0 0.0
        %8663 = vmatpush1.msra.mxu0 0.0
        %8664 = vmatprep.subr.mxu0 0.0
        %8665 = vmatpush1.msra.mxu0 0.0
        %8666 = vmatprep.subr.mxu0 0.0
        %8667 = vmatpush1.msra.mxu0 0.0
        %8668 = vmatprep.subr.mxu0 0.0
        %8669 = vmatpush1.msra.mxu0 0.0
        %8670 = vmatprep.subr.mxu0 0.0
        %8671 = vmatpush1.msra.mxu0 0.0
        %8672 = vmatprep.subr.mxu0 0.0
        %8673 = vmatpush1.msra.mxu0 0.0
        %8674 = vmatprep.subr.mxu0 0.0
        %8675 = vmatpush1.msra.mxu0 0.0
        %8676 = vmatprep.subr.mxu0 0.0
        %8677 = vmatpush1.msra.mxu0 %v8644
        %8678 = vmatprep.subr.mxu0 0.0
        %8679 = vmatpush2.msra.mxu0 0.0
        %8680 = vmatprep.subr.mxu0 0.0
        %8681 = vmatpush2.msra.mxu0 0.0
        %8682 = vmatprep.subr.mxu0 0.0
        %8683 = vmatpush2.msra.mxu0 0.0
        %8684 = vmatprep.subr.mxu0 0.0
        %8685 = vmatpush2.msra.mxu0 0.0
        %8686 = vmatprep.subr.mxu0 0.0
        %8687 = vmatpush2.msra.mxu0 0.0
        %8688 = vmatprep.subr.mxu0 0.0
        %8689 = vmatpush2.msra.mxu0 0.0
        %8690 = vmatprep.subr.mxu0 0.0
        %8691 = vmatpush2.msra.mxu0 0.0
        %8692 = vmatprep.subr.mxu0 0.0
        %8693 = vmatpush2.msra.mxu0 0.0
        %8694 = vmatprep.subr.mxu0 0.0
        %8695 = vmatpush2.msra.mxu0 0.0
        %8696 = vmatprep.subr.mxu0 0.0
        %8697 = vmatpush2.msra.mxu0 0.0
        %8698 = vmatprep.subr.mxu0 0.0
        %8699 = vmatpush2.msra.mxu0 0.0
        %8700 = vmatprep.subr.mxu0 0.0
        %8701 = vmatpush2.msra.mxu0 0.0
        %8702 = vmatprep.subr.mxu0 0.0
        %8703 = vmatpush2.msra.mxu0 0.0
        %8704 = vmatprep.subr.mxu0 0.0
        %8705 = vmatpush2.msra.mxu0 0.0
        %8706 = vmatprep.subr.mxu0 0.0
        %8707 = vmatpush2.msra.mxu0 0.0
        %8708 = vmatprep.subr.mxu0 0.0
        %8709 = vmatpush2.msra.mxu0 0.0
        %8710 = vmatprep.mubr.f32.mxu0 0.0
        %8711 = vmatmul.mubr.f32.gmra.mxu0 %v8548
        %v8712 = vpop.f32.mrf.mxu0
        %v8713 = vadd.f32 0.0, %v8712
        %v8714 = vpop.f32.mrf.mxu0
        %8715 = vmatprep.mubr.f32.mxu0 0.0
        %8716 = vmatmul.mubr.f32.gmra.mxu0 %v8551
        %v8717 = vpop.f32.mrf.mxu0
        %v8718 = vadd.f32 0.0, %v8717
        %v8719 = vpop.f32.mrf.mxu0
        %8720 = vmatprep.mubr.f32.mxu0 0.0
        %8721 = vmatmul.mubr.f32.gmra.mxu0 %v8554
        %v8722 = vpop.f32.mrf.mxu0
        %v8723 = vadd.f32 0.0, %v8722
        %v8724 = vpop.f32.mrf.mxu0
        %8725 = vmatprep.mubr.f32.mxu0 0.0
        %8726 = vmatmul.mubr.f32.gmra.mxu0 %v8557
        %v8727 = vpop.f32.mrf.mxu0
        %v8728 = vadd.f32 0.0, %v8727
        %v8729 = vpop.f32.mrf.mxu0
        %8730 = vmatprep.mubr.f32.mxu0 0.0
        %8731 = vmatmul.mubr.f32.gmra.mxu0 %v8560
        %v8732 = vpop.f32.mrf.mxu0
        %v8733 = vadd.f32 0.0, %v8732
        %v8734 = vpop.f32.mrf.mxu0
        %8735 = vmatprep.mubr.f32.mxu0 0.0
        %8736 = vmatmul.mubr.f32.gmra.mxu0 %v8563
        %v8737 = vpop.f32.mrf.mxu0
        %v8738 = vadd.f32 0.0, %v8737
        %v8739 = vpop.f32.mrf.mxu0
        %8740 = vmatprep.mubr.f32.mxu0 0.0
        %8741 = vmatmul.mubr.f32.gmra.mxu0 %v8566
        %v8742 = vpop.f32.mrf.mxu0
        %v8743 = vadd.f32 0.0, %v8742
        %v8744 = vpop.f32.mrf.mxu0
        %8745 = vmatprep.mubr.f32.mxu0 0.0
        %8746 = vmatmul.mubr.f32.gmra.mxu0 %v8569
        %v8747 = vpop.f32.mrf.mxu0
        %v8748 = vadd.f32 0.0, %v8747
        %v8749 = vpop.f32.mrf.mxu0
        %8750 = vmatprep.mubr.f32.mxu0 0.0
        %8751 = vmatmul.mubr.f32.gmra.mxu0 %v8572
        %v8752 = vpop.f32.mrf.mxu0
        %v8753 = vadd.f32 0.0, %v8752
        %v8754 = vpop.f32.mrf.mxu0
        %8755 = vmatprep.mubr.f32.mxu0 0.0
        %8756 = vmatmul.mubr.f32.gmra.mxu0 %v8575
        %v8757 = vpop.f32.mrf.mxu0
        %v8758 = vadd.f32 0.0, %v8757
        %v8759 = vpop.f32.mrf.mxu0
        %8760 = vmatprep.mubr.f32.mxu0 0.0
        %8761 = vmatmul.mubr.f32.gmra.mxu0 %v8578
        %v8762 = vpop.f32.mrf.mxu0
        %v8763 = vadd.f32 0.0, %v8762
        %v8764 = vpop.f32.mrf.mxu0
        %8765 = vmatprep.mubr.f32.mxu0 0.0
        %8766 = vmatmul.mubr.f32.gmra.mxu0 %v8581
        %v8767 = vpop.f32.mrf.mxu0
        %v8768 = vadd.f32 0.0, %v8767
        %v8769 = vpop.f32.mrf.mxu0
        %8770 = vmatprep.mubr.f32.mxu0 0.0
        %8771 = vmatmul.mubr.f32.gmra.mxu0 %v8584
        %v8772 = vpop.f32.mrf.mxu0
        %v8773 = vadd.f32 0.0, %v8772
        %v8774 = vpop.f32.mrf.mxu0
        %8775 = vmatprep.mubr.f32.mxu0 0.0
        %8776 = vmatmul.mubr.f32.gmra.mxu0 %v8587
        %v8777 = vpop.f32.mrf.mxu0
        %v8778 = vadd.f32 0.0, %v8777
        %v8779 = vpop.f32.mrf.mxu0
        %8780 = vmatprep.mubr.f32.mxu0 0.0
        %8781 = vmatmul.mubr.f32.gmra.mxu0 %v8590
        %v8782 = vpop.f32.mrf.mxu0
        %v8783 = vadd.f32 0.0, %v8782
        %v8784 = vpop.f32.mrf.mxu0
        %8785 = vmatprep.mubr.f32.mxu0 0.0
        %8786 = vmatmul.mubr.f32.gmra.mxu0 %v8593
        %v8787 = vpop.f32.mrf.mxu0
        %v8788 = vadd.f32 0.0, %v8787
        %v8789 = vpop.f32.mrf.mxu0
        %8790 = vmatprep.mubr.f32.mxu0 0.0
        %8791 = vmatmul.mubr.f32.gmra.mxu0 %v8596
        %v8792 = vpop.f32.mrf.mxu0
        %v8793 = vadd.f32 0.0, %v8792
        %v8794 = vpop.f32.mrf.mxu0
        %8795 = vmatprep.mubr.f32.mxu0 0.0
        %8796 = vmatmul.mubr.f32.gmra.mxu0 %v8599
        %v8797 = vpop.f32.mrf.mxu0
        %v8798 = vadd.f32 0.0, %v8797
        %v8799 = vpop.f32.mrf.mxu0
        %8800 = vmatprep.mubr.f32.mxu0 0.0
        %8801 = vmatmul.mubr.f32.gmra.mxu0 %v8602
        %v8802 = vpop.f32.mrf.mxu0
        %v8803 = vadd.f32 0.0, %v8802
        %v8804 = vpop.f32.mrf.mxu0
        %8805 = vmatprep.mubr.f32.mxu0 0.0
        %8806 = vmatmul.mubr.f32.gmra.mxu0 %v8605
        %v8807 = vpop.f32.mrf.mxu0
        %v8808 = vadd.f32 0.0, %v8807
        %v8809 = vpop.f32.mrf.mxu0
        %8810 = vmatprep.mubr.f32.mxu0 0.0
        %8811 = vmatmul.mubr.f32.gmra.mxu0 %v8608
        %v8812 = vpop.f32.mrf.mxu0
        %v8813 = vadd.f32 0.0, %v8812
        %v8814 = vpop.f32.mrf.mxu0
        %8815 = vmatprep.mubr.f32.mxu0 0.0
        %8816 = vmatmul.mubr.f32.gmra.mxu0 %v8611
        %v8817 = vpop.f32.mrf.mxu0
        %v8818 = vadd.f32 0.0, %v8817
        %v8819 = vpop.f32.mrf.mxu0
        %8820 = vmatprep.mubr.f32.mxu0 0.0
        %8821 = vmatmul.mubr.f32.gmra.mxu0 %v8614
        %v8822 = vpop.f32.mrf.mxu0
        %v8823 = vadd.f32 0.0, %v8822
        %v8824 = vpop.f32.mrf.mxu0
        %8825 = vmatprep.mubr.f32.mxu0 0.0
        %8826 = vmatmul.mubr.f32.gmra.mxu0 %v8617
        %v8827 = vpop.f32.mrf.mxu0
        %v8828 = vadd.f32 0.0, %v8827
        %v8829 = vpop.f32.mrf.mxu0
        %8830 = vmatprep.mubr.f32.mxu0 0.0
        %8831 = vmatmul.mubr.f32.gmra.mxu0 %v8620
        %v8832 = vpop.f32.mrf.mxu0
        %v8833 = vadd.f32 0.0, %v8832
        %v8834 = vpop.f32.mrf.mxu0
        %8835 = vmatprep.mubr.f32.mxu0 0.0
        %8836 = vmatmul.mubr.f32.gmra.mxu0 %v8623
        %v8837 = vpop.f32.mrf.mxu0
        %v8838 = vadd.f32 0.0, %v8837
        %v8839 = vpop.f32.mrf.mxu0
        %8840 = vmatprep.mubr.f32.mxu0 0.0
        %8841 = vmatmul.mubr.f32.gmra.mxu0 %v8626
        %v8842 = vpop.f32.mrf.mxu0
        %v8843 = vadd.f32 0.0, %v8842
        %v8844 = vpop.f32.mrf.mxu0
        %8845 = vmatprep.mubr.f32.mxu0 0.0
        %8846 = vmatmul.mubr.f32.gmra.mxu0 %v8629
        %v8847 = vpop.f32.mrf.mxu0
        %v8848 = vadd.f32 0.0, %v8847
        %v8849 = vpop.f32.mrf.mxu0
        %8850 = vmatprep.mubr.f32.mxu0 0.0
        %8851 = vmatmul.mubr.f32.gmra.mxu0 %v8632
        %v8852 = vpop.f32.mrf.mxu0
        %v8853 = vadd.f32 0.0, %v8852
        %v8854 = vpop.f32.mrf.mxu0
        %8855 = vmatprep.mubr.f32.mxu0 0.0
        %8856 = vmatmul.mubr.f32.gmra.mxu0 %v8635
        %v8857 = vpop.f32.mrf.mxu0
        %v8858 = vadd.f32 0.0, %v8857
        %v8859 = vpop.f32.mrf.mxu0
        %8860 = vmatprep.mubr.f32.mxu0 0.0
        %8861 = vmatmul.mubr.f32.gmra.mxu0 %v8638
        %v8862 = vpop.f32.mrf.mxu0
        %v8863 = vadd.f32 0.0, %v8862
        %v8864 = vpop.f32.mrf.mxu0
        %8865 = vmatprep.mubr.f32.mxu0 0.0
        %8866 = vmatmul.mubr.f32.gmra.mxu0 %v8641
        %v8867 = vpop.f32.mrf.mxu0
        %v8868 = vadd.f32 0.0, %v8867
        %v8869 = vpop.f32.mrf.mxu0
        %8870 = vdwg.mxu0
        %v8871 = vadd.f32 %v8355, %v8713
        %v8872 = vadd.f32 %v8360, %v8718
        %v8873 = vadd.f32 %v8365, %v8723
        %v8874 = vadd.f32 %v8370, %v8728
        %v8875 = vadd.f32 %v8375, %v8733
        %v8876 = vadd.f32 %v8380, %v8738
        %v8877 = vadd.f32 %v8385, %v8743
        %v8878 = vadd.f32 %v8390, %v8748
        %v8879 = vadd.f32 %v8395, %v8753
        %v8880 = vadd.f32 %v8400, %v8758
        %v8881 = vadd.f32 %v8405, %v8763
        %v8882 = vadd.f32 %v8410, %v8768
        %v8883 = vadd.f32 %v8415, %v8773
        %v8884 = vadd.f32 %v8420, %v8778
        %v8885 = vadd.f32 %v8425, %v8783
        %v8886 = vadd.f32 %v8430, %v8788
        %v8887 = vadd.f32 %v8435, %v8793
        %v8888 = vadd.f32 %v8440, %v8798
        %v8889 = vadd.f32 %v8445, %v8803
        %v8890 = vadd.f32 %v8450, %v8808
        %v8891 = vadd.f32 %v8455, %v8813
        %v8892 = vadd.f32 %v8460, %v8818
        %v8893 = vadd.f32 %v8465, %v8823
        %v8894 = vadd.f32 %v8470, %v8828
        %v8895 = vadd.f32 %v8475, %v8833
        %v8896 = vadd.f32 %v8480, %v8838
        %v8897 = vadd.f32 %v8485, %v8843
        %v8898 = vadd.f32 %v8490, %v8848
        %v8899 = vadd.f32 %v8495, %v8853
        %v8900 = vadd.f32 %v8500, %v8858
        %v8901 = vadd.f32 %v8505, %v8863
        %v8902 = vadd.f32 %v8510, %v8868
        %v8903 = vld [vmem:[%s7765] sm:$0xff]
        %v8904 = vld [vmem:[%s7765 + $0x8] sm:$0xff]
        %v8905 = vld [vmem:[%s7765 + $0x18] sm:$0xff]
        %v8906 = vld [vmem:[%s7765 + $0x20] sm:$0xff]
        %v8907 = vld [vmem:[%s7765 + $0x30] sm:$0xff]
        %v8908 = vld [vmem:[%s7765 + $0x38] sm:$0xff]
        %v8909 = vld [vmem:[%s7765 + $0x48] sm:$0xff]
        %v8910 = vld [vmem:[%s7765 + $0x50] sm:$0xff]
        %v8911 = vld [vmem:[%s7765 + $0x60] sm:$0xff]
        %v8912 = vld [vmem:[%s7765 + $0x68] sm:$0xff]
        %v8913 = vld [vmem:[%s7765 + $0x78] sm:$0xff]
        %v8914 = vld [vmem:[%s7765 + $0x80] sm:$0xff]
        %v8915 = vld [vmem:[%s7765 + $0x90] sm:$0xff]
        %v8916 = vld [vmem:[%s7765 + $0x98] sm:$0xff]
        %v8917 = vld [vmem:[%s7765 + $0xa8] sm:$0xff]
        %v8918 = vld [vmem:[%s7765 + $0xb0] sm:$0xff]
        %v8919 = vld [vmem:[%s7765 + $0xc0] sm:$0xff]
        %v8920 = vld [vmem:[%s7765 + $0xc8] sm:$0xff]
        %v8921 = vld [vmem:[%s7765 + $0xd8] sm:$0xff]
        %v8922 = vld [vmem:[%s7765 + $0xe0] sm:$0xff]
        %v8923 = vld [vmem:[%s7765 + $0xf0] sm:$0xff]
        %v8924 = vld [vmem:[%s7765 + $0xf8] sm:$0xff]
        %v8925 = vld [vmem:[%s7765 + $0x108] sm:$0xff]
        %v8926 = vld [vmem:[%s7765 + $0x110] sm:$0xff]
        %v8927 = vld [vmem:[%s7765 + $0x120] sm:$0xff]
        %v8928 = vld [vmem:[%s7765 + $0x128] sm:$0xff]
        %v8929 = vld [vmem:[%s7765 + $0x138] sm:$0xff]
        %v8930 = vld [vmem:[%s7765 + $0x140] sm:$0xff]
        %v8931 = vld [vmem:[%s7765 + $0x150] sm:$0xff]
        %v8932 = vld [vmem:[%s7765 + $0x158] sm:$0xff]
        %v8933 = vld [vmem:[%s7765 + $0x168] sm:$0xff]
        %v8934 = vld [vmem:[%s7765 + $0x170] sm:$0xff]
        %s8935 = scalar_lea.vmem %s5, 12
        %v8936 = vld [vmem:[%s8935] sm:$0xf]
        %v8938 = vsel %vm478, %v8903, 0
        %v8941 = vsel %vm478, %v8904, 0
        %v8944 = vsel %vm478, %v8905, 0
        %v8947 = vsel %vm478, %v8906, 0
        %v8950 = vsel %vm478, %v8907, 0
        %v8953 = vsel %vm478, %v8908, 0
        %v8956 = vsel %vm478, %v8909, 0
        %v8959 = vsel %vm478, %v8910, 0
        %v8962 = vsel %vm478, %v8911, 0
        %v8965 = vsel %vm478, %v8912, 0
        %v8968 = vsel %vm478, %v8913, 0
        %v8971 = vsel %vm478, %v8914, 0
        %v8974 = vsel %vm478, %v8915, 0
        %v8977 = vsel %vm478, %v8916, 0
        %v8980 = vsel %vm478, %v8917, 0
        %v8983 = vsel %vm478, %v8918, 0
        %v8986 = vsel %vm478, %v8919, 0
        %v8989 = vsel %vm478, %v8920, 0
        %v8992 = vsel %vm478, %v8921, 0
        %v8995 = vsel %vm478, %v8922, 0
        %v8998 = vsel %vm478, %v8923, 0
        %v9001 = vsel %vm478, %v8924, 0
        %v9004 = vsel %vm478, %v8925, 0
        %v9007 = vsel %vm478, %v8926, 0
        %v9010 = vsel %vm478, %v8927, 0
        %v9013 = vsel %vm478, %v8928, 0
        %v9016 = vsel %vm478, %v8929, 0
        %v9019 = vsel %vm478, %v8930, 0
        %v9022 = vsel %vm478, %v8931, 0
        %v9025 = vsel %vm478, %v8932, 0
        %v9028 = vsel %vm478, %v8933, 0
        %v9031 = vsel %vm478, %v8934, 0
        %v9034 = vsel %vm4410, %v8936, 0
        %9036 = vmatprep.subr.mxu0 0.0
        %9037 = vmatpush1.msra.mxu0 0.0
        %9038 = vmatprep.subr.mxu0 0.0
        %9039 = vmatpush1.msra.mxu0 0.0
        %9040 = vmatprep.subr.mxu0 0.0
        %9041 = vmatpush1.msra.mxu0 0.0
        %9042 = vmatprep.subr.mxu0 0.0
        %9043 = vmatpush1.msra.mxu0 0.0
        %9044 = vmatprep.subr.mxu0 0.0
        %9045 = vmatpush1.msra.mxu0 0.0
        %9046 = vmatprep.subr.mxu0 0.0
        %9047 = vmatpush1.msra.mxu0 0.0
        %9048 = vmatprep.subr.mxu0 0.0
        %9049 = vmatpush1.msra.mxu0 0.0
        %9050 = vmatprep.subr.mxu0 0.0
        %9051 = vmatpush1.msra.mxu0 0.0
        %9052 = vmatprep.subr.mxu0 0.0
        %9053 = vmatpush1.msra.mxu0 0.0
        %9054 = vmatprep.subr.mxu0 0.0
        %9055 = vmatpush1.msra.mxu0 0.0
        %9056 = vmatprep.subr.mxu0 0.0
        %9057 = vmatpush1.msra.mxu0 0.0
        %9058 = vmatprep.subr.mxu0 0.0
        %9059 = vmatpush1.msra.mxu0 0.0
        %9060 = vmatprep.subr.mxu0 0.0
        %9061 = vmatpush1.msra.mxu0 0.0
        %9062 = vmatprep.subr.mxu0 0.0
        %9063 = vmatpush1.msra.mxu0 0.0
        %9064 = vmatprep.subr.mxu0 0.0
        %9065 = vmatpush1.msra.mxu0 0.0
        %9066 = vmatprep.subr.mxu0 0.0
        %9067 = vmatpush1.msra.mxu0 %v9034
        %9068 = vmatprep.subr.mxu0 0.0
        %9069 = vmatpush2.msra.mxu0 0.0
        %9070 = vmatprep.subr.mxu0 0.0
        %9071 = vmatpush2.msra.mxu0 0.0
        %9072 = vmatprep.subr.mxu0 0.0
        %9073 = vmatpush2.msra.mxu0 0.0
        %9074 = vmatprep.subr.mxu0 0.0
        %9075 = vmatpush2.msra.mxu0 0.0
        %9076 = vmatprep.subr.mxu0 0.0
        %9077 = vmatpush2.msra.mxu0 0.0
        %9078 = vmatprep.subr.mxu0 0.0
        %9079 = vmatpush2.msra.mxu0 0.0
        %9080 = vmatprep.subr.mxu0 0.0
        %9081 = vmatpush2.msra.mxu0 0.0
        %9082 = vmatprep.subr.mxu0 0.0
        %9083 = vmatpush2.msra.mxu0 0.0
        %9084 = vmatprep.subr.mxu0 0.0
        %9085 = vmatpush2.msra.mxu0 0.0
        %9086 = vmatprep.subr.mxu0 0.0
        %9087 = vmatpush2.msra.mxu0 0.0
        %9088 = vmatprep.subr.mxu0 0.0
        %9089 = vmatpush2.msra.mxu0 0.0
        %9090 = vmatprep.subr.mxu0 0.0
        %9091 = vmatpush2.msra.mxu0 0.0
        %9092 = vmatprep.subr.mxu0 0.0
        %9093 = vmatpush2.msra.mxu0 0.0
        %9094 = vmatprep.subr.mxu0 0.0
        %9095 = vmatpush2.msra.mxu0 0.0
        %9096 = vmatprep.subr.mxu0 0.0
        %9097 = vmatpush2.msra.mxu0 0.0
        %9098 = vmatprep.subr.mxu0 0.0
        %9099 = vmatpush2.msra.mxu0 0.0
        %9100 = vmatprep.mubr.f32.mxu0 0.0
        %9101 = vmatmul.mubr.f32.gmra.mxu0 %v8938
        %v9102 = vpop.f32.mrf.mxu0
        %v9103 = vadd.f32 0.0, %v9102
        %v9104 = vpop.f32.mrf.mxu0
        %9105 = vmatprep.mubr.f32.mxu0 0.0
        %9106 = vmatmul.mubr.f32.gmra.mxu0 %v8941
        %v9107 = vpop.f32.mrf.mxu0
        %v9108 = vadd.f32 0.0, %v9107
        %v9109 = vpop.f32.mrf.mxu0
        %9110 = vmatprep.mubr.f32.mxu0 0.0
        %9111 = vmatmul.mubr.f32.gmra.mxu0 %v8944
        %v9112 = vpop.f32.mrf.mxu0
        %v9113 = vadd.f32 0.0, %v9112
        %v9114 = vpop.f32.mrf.mxu0
        %9115 = vmatprep.mubr.f32.mxu0 0.0
        %9116 = vmatmul.mubr.f32.gmra.mxu0 %v8947
        %v9117 = vpop.f32.mrf.mxu0
        %v9118 = vadd.f32 0.0, %v9117
        %v9119 = vpop.f32.mrf.mxu0
        %9120 = vmatprep.mubr.f32.mxu0 0.0
        %9121 = vmatmul.mubr.f32.gmra.mxu0 %v8950
        %v9122 = vpop.f32.mrf.mxu0
        %v9123 = vadd.f32 0.0, %v9122
        %v9124 = vpop.f32.mrf.mxu0
        %9125 = vmatprep.mubr.f32.mxu0 0.0
        %9126 = vmatmul.mubr.f32.gmra.mxu0 %v8953
        %v9127 = vpop.f32.mrf.mxu0
        %v9128 = vadd.f32 0.0, %v9127
        %v9129 = vpop.f32.mrf.mxu0
        %9130 = vmatprep.mubr.f32.mxu0 0.0
        %9131 = vmatmul.mubr.f32.gmra.mxu0 %v8956
        %v9132 = vpop.f32.mrf.mxu0
        %v9133 = vadd.f32 0.0, %v9132
        %v9134 = vpop.f32.mrf.mxu0
        %9135 = vmatprep.mubr.f32.mxu0 0.0
        %9136 = vmatmul.mubr.f32.gmra.mxu0 %v8959
        %v9137 = vpop.f32.mrf.mxu0
        %v9138 = vadd.f32 0.0, %v9137
        %v9139 = vpop.f32.mrf.mxu0
        %9140 = vmatprep.mubr.f32.mxu0 0.0
        %9141 = vmatmul.mubr.f32.gmra.mxu0 %v8962
        %v9142 = vpop.f32.mrf.mxu0
        %v9143 = vadd.f32 0.0, %v9142
        %v9144 = vpop.f32.mrf.mxu0
        %9145 = vmatprep.mubr.f32.mxu0 0.0
        %9146 = vmatmul.mubr.f32.gmra.mxu0 %v8965
        %v9147 = vpop.f32.mrf.mxu0
        %v9148 = vadd.f32 0.0, %v9147
        %v9149 = vpop.f32.mrf.mxu0
        %9150 = vmatprep.mubr.f32.mxu0 0.0
        %9151 = vmatmul.mubr.f32.gmra.mxu0 %v8968
        %v9152 = vpop.f32.mrf.mxu0
        %v9153 = vadd.f32 0.0, %v9152
        %v9154 = vpop.f32.mrf.mxu0
        %9155 = vmatprep.mubr.f32.mxu0 0.0
        %9156 = vmatmul.mubr.f32.gmra.mxu0 %v8971
        %v9157 = vpop.f32.mrf.mxu0
        %v9158 = vadd.f32 0.0, %v9157
        %v9159 = vpop.f32.mrf.mxu0
        %9160 = vmatprep.mubr.f32.mxu0 0.0
        %9161 = vmatmul.mubr.f32.gmra.mxu0 %v8974
        %v9162 = vpop.f32.mrf.mxu0
        %v9163 = vadd.f32 0.0, %v9162
        %v9164 = vpop.f32.mrf.mxu0
        %9165 = vmatprep.mubr.f32.mxu0 0.0
        %9166 = vmatmul.mubr.f32.gmra.mxu0 %v8977
        %v9167 = vpop.f32.mrf.mxu0
        %v9168 = vadd.f32 0.0, %v9167
        %v9169 = vpop.f32.mrf.mxu0
        %9170 = vmatprep.mubr.f32.mxu0 0.0
        %9171 = vmatmul.mubr.f32.gmra.mxu0 %v8980
        %v9172 = vpop.f32.mrf.mxu0
        %v9173 = vadd.f32 0.0, %v9172
        %v9174 = vpop.f32.mrf.mxu0
        %9175 = vmatprep.mubr.f32.mxu0 0.0
        %9176 = vmatmul.mubr.f32.gmra.mxu0 %v8983
        %v9177 = vpop.f32.mrf.mxu0
        %v9178 = vadd.f32 0.0, %v9177
        %v9179 = vpop.f32.mrf.mxu0
        %9180 = vmatprep.mubr.f32.mxu0 0.0
        %9181 = vmatmul.mubr.f32.gmra.mxu0 %v8986
        %v9182 = vpop.f32.mrf.mxu0
        %v9183 = vadd.f32 0.0, %v9182
        %v9184 = vpop.f32.mrf.mxu0
        %9185 = vmatprep.mubr.f32.mxu0 0.0
        %9186 = vmatmul.mubr.f32.gmra.mxu0 %v8989
        %v9187 = vpop.f32.mrf.mxu0
        %v9188 = vadd.f32 0.0, %v9187
        %v9189 = vpop.f32.mrf.mxu0
        %9190 = vmatprep.mubr.f32.mxu0 0.0
        %9191 = vmatmul.mubr.f32.gmra.mxu0 %v8992
        %v9192 = vpop.f32.mrf.mxu0
        %v9193 = vadd.f32 0.0, %v9192
        %v9194 = vpop.f32.mrf.mxu0
        %9195 = vmatprep.mubr.f32.mxu0 0.0
        %9196 = vmatmul.mubr.f32.gmra.mxu0 %v8995
        %v9197 = vpop.f32.mrf.mxu0
        %v9198 = vadd.f32 0.0, %v9197
        %v9199 = vpop.f32.mrf.mxu0
        %9200 = vmatprep.mubr.f32.mxu0 0.0
        %9201 = vmatmul.mubr.f32.gmra.mxu0 %v8998
        %v9202 = vpop.f32.mrf.mxu0
        %v9203 = vadd.f32 0.0, %v9202
        %v9204 = vpop.f32.mrf.mxu0
        %9205 = vmatprep.mubr.f32.mxu0 0.0
        %9206 = vmatmul.mubr.f32.gmra.mxu0 %v9001
        %v9207 = vpop.f32.mrf.mxu0
        %v9208 = vadd.f32 0.0, %v9207
        %v9209 = vpop.f32.mrf.mxu0
        %9210 = vmatprep.mubr.f32.mxu0 0.0
        %9211 = vmatmul.mubr.f32.gmra.mxu0 %v9004
        %v9212 = vpop.f32.mrf.mxu0
        %v9213 = vadd.f32 0.0, %v9212
        %v9214 = vpop.f32.mrf.mxu0
        %9215 = vmatprep.mubr.f32.mxu0 0.0
        %9216 = vmatmul.mubr.f32.gmra.mxu0 %v9007
        %v9217 = vpop.f32.mrf.mxu0
        %v9218 = vadd.f32 0.0, %v9217
        %v9219 = vpop.f32.mrf.mxu0
        %9220 = vmatprep.mubr.f32.mxu0 0.0
        %9221 = vmatmul.mubr.f32.gmra.mxu0 %v9010
        %v9222 = vpop.f32.mrf.mxu0
        %v9223 = vadd.f32 0.0, %v9222
        %v9224 = vpop.f32.mrf.mxu0
        %9225 = vmatprep.mubr.f32.mxu0 0.0
        %9226 = vmatmul.mubr.f32.gmra.mxu0 %v9013
        %v9227 = vpop.f32.mrf.mxu0
        %v9228 = vadd.f32 0.0, %v9227
        %v9229 = vpop.f32.mrf.mxu0
        %9230 = vmatprep.mubr.f32.mxu0 0.0
        %9231 = vmatmul.mubr.f32.gmra.mxu0 %v9016
        %v9232 = vpop.f32.mrf.mxu0
        %v9233 = vadd.f32 0.0, %v9232
        %v9234 = vpop.f32.mrf.mxu0
        %9235 = vmatprep.mubr.f32.mxu0 0.0
        %9236 = vmatmul.mubr.f32.gmra.mxu0 %v9019
        %v9237 = vpop.f32.mrf.mxu0
        %v9238 = vadd.f32 0.0, %v9237
        %v9239 = vpop.f32.mrf.mxu0
        %9240 = vmatprep.mubr.f32.mxu0 0.0
        %9241 = vmatmul.mubr.f32.gmra.mxu0 %v9022
        %v9242 = vpop.f32.mrf.mxu0
        %v9243 = vadd.f32 0.0, %v9242
        %v9244 = vpop.f32.mrf.mxu0
        %9245 = vmatprep.mubr.f32.mxu0 0.0
        %9246 = vmatmul.mubr.f32.gmra.mxu0 %v9025
        %v9247 = vpop.f32.mrf.mxu0
        %v9248 = vadd.f32 0.0, %v9247
        %v9249 = vpop.f32.mrf.mxu0
        %9250 = vmatprep.mubr.f32.mxu0 0.0
        %9251 = vmatmul.mubr.f32.gmra.mxu0 %v9028
        %v9252 = vpop.f32.mrf.mxu0
        %v9253 = vadd.f32 0.0, %v9252
        %v9254 = vpop.f32.mrf.mxu0
        %9255 = vmatprep.mubr.f32.mxu0 0.0
        %9256 = vmatmul.mubr.f32.gmra.mxu0 %v9031
        %v9257 = vpop.f32.mrf.mxu0
        %v9258 = vadd.f32 0.0, %v9257
        %v9259 = vpop.f32.mrf.mxu0
        %9260 = vdwg.mxu0
        %v9261 = vadd.f32 %v8871, %v9103
        %v9262 = vadd.f32 %v8872, %v9108
        %v9263 = vadd.f32 %v8873, %v9113
        %v9264 = vadd.f32 %v8874, %v9118
        %v9265 = vadd.f32 %v8875, %v9123
        %v9266 = vadd.f32 %v8876, %v9128
        %v9267 = vadd.f32 %v8877, %v9133
        %v9268 = vadd.f32 %v8878, %v9138
        %v9269 = vadd.f32 %v8879, %v9143
        %v9270 = vadd.f32 %v8880, %v9148
        %v9271 = vadd.f32 %v8881, %v9153
        %v9272 = vadd.f32 %v8882, %v9158
        %v9273 = vadd.f32 %v8883, %v9163
        %v9274 = vadd.f32 %v8884, %v9168
        %v9275 = vadd.f32 %v8885, %v9173
        %v9276 = vadd.f32 %v8886, %v9178
        %v9277 = vadd.f32 %v8887, %v9183
        %v9278 = vadd.f32 %v8888, %v9188
        %v9279 = vadd.f32 %v8889, %v9193
        %v9280 = vadd.f32 %v8890, %v9198
        %v9281 = vadd.f32 %v8891, %v9203
        %v9282 = vadd.f32 %v8892, %v9208
        %v9283 = vadd.f32 %v8893, %v9213
        %v9284 = vadd.f32 %v8894, %v9218
        %v9285 = vadd.f32 %v8895, %v9223
        %v9286 = vadd.f32 %v8896, %v9228
        %v9287 = vadd.f32 %v8897, %v9233
        %v9288 = vadd.f32 %v8898, %v9238
        %v9289 = vadd.f32 %v8899, %v9243
        %v9290 = vadd.f32 %v8900, %v9248
        %v9291 = vadd.f32 %v8901, %v9253
        %v9292 = vadd.f32 %v8902, %v9258
        %v9293 = vld [vmem:[%s7765 + $0x3] sm:$0xff]
        %v9294 = vld [vmem:[%s7765 + $0xb] sm:$0xff]
        %v9295 = vld [vmem:[%s7765 + $0x1b] sm:$0xff]
        %v9296 = vld [vmem:[%s7765 + $0x23] sm:$0xff]
        %v9297 = vld [vmem:[%s7765 + $0x33] sm:$0xff]
        %v9298 = vld [vmem:[%s7765 + $0x3b] sm:$0xff]
        %v9299 = vld [vmem:[%s7765 + $0x4b] sm:$0xff]
        %v9300 = vld [vmem:[%s7765 + $0x53] sm:$0xff]
        %v9301 = vld [vmem:[%s7765 + $0x63] sm:$0xff]
        %v9302 = vld [vmem:[%s7765 + $0x6b] sm:$0xff]
        %v9303 = vld [vmem:[%s7765 + $0x7b] sm:$0xff]
        %v9304 = vld [vmem:[%s7765 + $0x83] sm:$0xff]
        %v9305 = vld [vmem:[%s7765 + $0x93] sm:$0xff]
        %v9306 = vld [vmem:[%s7765 + $0x9b] sm:$0xff]
        %v9307 = vld [vmem:[%s7765 + $0xab] sm:$0xff]
        %v9308 = vld [vmem:[%s7765 + $0xb3] sm:$0xff]
        %v9309 = vld [vmem:[%s7765 + $0xc3] sm:$0xff]
        %v9310 = vld [vmem:[%s7765 + $0xcb] sm:$0xff]
        %v9311 = vld [vmem:[%s7765 + $0xdb] sm:$0xff]
        %v9312 = vld [vmem:[%s7765 + $0xe3] sm:$0xff]
        %v9313 = vld [vmem:[%s7765 + $0xf3] sm:$0xff]
        %v9314 = vld [vmem:[%s7765 + $0xfb] sm:$0xff]
        %v9315 = vld [vmem:[%s7765 + $0x10b] sm:$0xff]
        %v9316 = vld [vmem:[%s7765 + $0x113] sm:$0xff]
        %v9317 = vld [vmem:[%s7765 + $0x123] sm:$0xff]
        %v9318 = vld [vmem:[%s7765 + $0x12b] sm:$0xff]
        %v9319 = vld [vmem:[%s7765 + $0x13b] sm:$0xff]
        %v9320 = vld [vmem:[%s7765 + $0x143] sm:$0xff]
        %v9321 = vld [vmem:[%s7765 + $0x153] sm:$0xff]
        %v9322 = vld [vmem:[%s7765 + $0x15b] sm:$0xff]
        %v9323 = vld [vmem:[%s7765 + $0x16b] sm:$0xff]
        %v9324 = vld [vmem:[%s7765 + $0x173] sm:$0xff]
        %s9325 = scalar_lea.vmem %s5, 16
        %v9326 = vld [vmem:[%s9325] sm:$0xf]
        %v9328 = vsel %vm478, %v9293, 0
        %v9331 = vsel %vm478, %v9294, 0
        %v9334 = vsel %vm478, %v9295, 0
        %v9337 = vsel %vm478, %v9296, 0
        %v9340 = vsel %vm478, %v9297, 0
        %v9343 = vsel %vm478, %v9298, 0
        %v9346 = vsel %vm478, %v9299, 0
        %v9349 = vsel %vm478, %v9300, 0
        %v9352 = vsel %vm478, %v9301, 0
        %v9355 = vsel %vm478, %v9302, 0
        %v9358 = vsel %vm478, %v9303, 0
        %v9361 = vsel %vm478, %v9304, 0
        %v9364 = vsel %vm478, %v9305, 0
        %v9367 = vsel %vm478, %v9306, 0
        %v9370 = vsel %vm478, %v9307, 0
        %v9373 = vsel %vm478, %v9308, 0
        %v9376 = vsel %vm478, %v9309, 0
        %v9379 = vsel %vm478, %v9310, 0
        %v9382 = vsel %vm478, %v9311, 0
        %v9385 = vsel %vm478, %v9312, 0
        %v9388 = vsel %vm478, %v9313, 0
        %v9391 = vsel %vm478, %v9314, 0
        %v9394 = vsel %vm478, %v9315, 0
        %v9397 = vsel %vm478, %v9316, 0
        %v9400 = vsel %vm478, %v9317, 0
        %v9403 = vsel %vm478, %v9318, 0
        %v9406 = vsel %vm478, %v9319, 0
        %v9409 = vsel %vm478, %v9320, 0
        %v9412 = vsel %vm478, %v9321, 0
        %v9415 = vsel %vm478, %v9322, 0
        %v9418 = vsel %vm478, %v9323, 0
        %v9421 = vsel %vm478, %v9324, 0
        %v9424 = vsel %vm4410, %v9326, 0
        %9426 = vmatprep.subr.mxu0 0.0
        %9427 = vmatpush1.msra.mxu0 0.0
        %9428 = vmatprep.subr.mxu0 0.0
        %9429 = vmatpush1.msra.mxu0 0.0
        %9430 = vmatprep.subr.mxu0 0.0
        %9431 = vmatpush1.msra.mxu0 0.0
        %9432 = vmatprep.subr.mxu0 0.0
        %9433 = vmatpush1.msra.mxu0 0.0
        %9434 = vmatprep.subr.mxu0 0.0
        %9435 = vmatpush1.msra.mxu0 0.0
        %9436 = vmatprep.subr.mxu0 0.0
        %9437 = vmatpush1.msra.mxu0 0.0
        %9438 = vmatprep.subr.mxu0 0.0
        %9439 = vmatpush1.msra.mxu0 0.0
        %9440 = vmatprep.subr.mxu0 0.0
        %9441 = vmatpush1.msra.mxu0 0.0
        %9442 = vmatprep.subr.mxu0 0.0
        %9443 = vmatpush1.msra.mxu0 0.0
        %9444 = vmatprep.subr.mxu0 0.0
        %9445 = vmatpush1.msra.mxu0 0.0
        %9446 = vmatprep.subr.mxu0 0.0
        %9447 = vmatpush1.msra.mxu0 0.0
        %9448 = vmatprep.subr.mxu0 0.0
        %9449 = vmatpush1.msra.mxu0 0.0
        %9450 = vmatprep.subr.mxu0 0.0
        %9451 = vmatpush1.msra.mxu0 0.0
        %9452 = vmatprep.subr.mxu0 0.0
        %9453 = vmatpush1.msra.mxu0 0.0
        %9454 = vmatprep.subr.mxu0 0.0
        %9455 = vmatpush1.msra.mxu0 0.0
        %9456 = vmatprep.subr.mxu0 0.0
        %9457 = vmatpush1.msra.mxu0 %v9424
        %9458 = vmatprep.subr.mxu0 0.0
        %9459 = vmatpush2.msra.mxu0 0.0
        %9460 = vmatprep.subr.mxu0 0.0
        %9461 = vmatpush2.msra.mxu0 0.0
        %9462 = vmatprep.subr.mxu0 0.0
        %9463 = vmatpush2.msra.mxu0 0.0
        %9464 = vmatprep.subr.mxu0 0.0
        %9465 = vmatpush2.msra.mxu0 0.0
        %9466 = vmatprep.subr.mxu0 0.0
        %9467 = vmatpush2.msra.mxu0 0.0
        %9468 = vmatprep.subr.mxu0 0.0
        %9469 = vmatpush2.msra.mxu0 0.0
        %9470 = vmatprep.subr.mxu0 0.0
        %9471 = vmatpush2.msra.mxu0 0.0
        %9472 = vmatprep.subr.mxu0 0.0
        %9473 = vmatpush2.msra.mxu0 0.0
        %9474 = vmatprep.subr.mxu0 0.0
        %9475 = vmatpush2.msra.mxu0 0.0
        %9476 = vmatprep.subr.mxu0 0.0
        %9477 = vmatpush2.msra.mxu0 0.0
        %9478 = vmatprep.subr.mxu0 0.0
        %9479 = vmatpush2.msra.mxu0 0.0
        %9480 = vmatprep.subr.mxu0 0.0
        %9481 = vmatpush2.msra.mxu0 0.0
        %9482 = vmatprep.subr.mxu0 0.0
        %9483 = vmatpush2.msra.mxu0 0.0
        %9484 = vmatprep.subr.mxu0 0.0
        %9485 = vmatpush2.msra.mxu0 0.0
        %9486 = vmatprep.subr.mxu0 0.0
        %9487 = vmatpush2.msra.mxu0 0.0
        %9488 = vmatprep.subr.mxu0 0.0
        %9489 = vmatpush2.msra.mxu0 0.0
        %9490 = vmatprep.mubr.f32.mxu0 0.0
        %9491 = vmatmul.mubr.f32.gmra.mxu0 %v9328
        %v9492 = vpop.f32.mrf.mxu0
        %v9493 = vadd.f32 0.0, %v9492
        %v9494 = vpop.f32.mrf.mxu0
        %9495 = vmatprep.mubr.f32.mxu0 0.0
        %9496 = vmatmul.mubr.f32.gmra.mxu0 %v9331
        %v9497 = vpop.f32.mrf.mxu0
        %v9498 = vadd.f32 0.0, %v9497
        %v9499 = vpop.f32.mrf.mxu0
        %9500 = vmatprep.mubr.f32.mxu0 0.0
        %9501 = vmatmul.mubr.f32.gmra.mxu0 %v9334
        %v9502 = vpop.f32.mrf.mxu0
        %v9503 = vadd.f32 0.0, %v9502
        %v9504 = vpop.f32.mrf.mxu0
        %9505 = vmatprep.mubr.f32.mxu0 0.0
        %9506 = vmatmul.mubr.f32.gmra.mxu0 %v9337
        %v9507 = vpop.f32.mrf.mxu0
        %v9508 = vadd.f32 0.0, %v9507
        %v9509 = vpop.f32.mrf.mxu0
        %9510 = vmatprep.mubr.f32.mxu0 0.0
        %9511 = vmatmul.mubr.f32.gmra.mxu0 %v9340
        %v9512 = vpop.f32.mrf.mxu0
        %v9513 = vadd.f32 0.0, %v9512
        %v9514 = vpop.f32.mrf.mxu0
        %9515 = vmatprep.mubr.f32.mxu0 0.0
        %9516 = vmatmul.mubr.f32.gmra.mxu0 %v9343
        %v9517 = vpop.f32.mrf.mxu0
        %v9518 = vadd.f32 0.0, %v9517
        %v9519 = vpop.f32.mrf.mxu0
        %9520 = vmatprep.mubr.f32.mxu0 0.0
        %9521 = vmatmul.mubr.f32.gmra.mxu0 %v9346
        %v9522 = vpop.f32.mrf.mxu0
        %v9523 = vadd.f32 0.0, %v9522
        %v9524 = vpop.f32.mrf.mxu0
        %9525 = vmatprep.mubr.f32.mxu0 0.0
        %9526 = vmatmul.mubr.f32.gmra.mxu0 %v9349
        %v9527 = vpop.f32.mrf.mxu0
        %v9528 = vadd.f32 0.0, %v9527
        %v9529 = vpop.f32.mrf.mxu0
        %9530 = vmatprep.mubr.f32.mxu0 0.0
        %9531 = vmatmul.mubr.f32.gmra.mxu0 %v9352
        %v9532 = vpop.f32.mrf.mxu0
        %v9533 = vadd.f32 0.0, %v9532
        %v9534 = vpop.f32.mrf.mxu0
        %9535 = vmatprep.mubr.f32.mxu0 0.0
        %9536 = vmatmul.mubr.f32.gmra.mxu0 %v9355
        %v9537 = vpop.f32.mrf.mxu0
        %v9538 = vadd.f32 0.0, %v9537
        %v9539 = vpop.f32.mrf.mxu0
        %9540 = vmatprep.mubr.f32.mxu0 0.0
        %9541 = vmatmul.mubr.f32.gmra.mxu0 %v9358
        %v9542 = vpop.f32.mrf.mxu0
        %v9543 = vadd.f32 0.0, %v9542
        %v9544 = vpop.f32.mrf.mxu0
        %9545 = vmatprep.mubr.f32.mxu0 0.0
        %9546 = vmatmul.mubr.f32.gmra.mxu0 %v9361
        %v9547 = vpop.f32.mrf.mxu0
        %v9548 = vadd.f32 0.0, %v9547
        %v9549 = vpop.f32.mrf.mxu0
        %9550 = vmatprep.mubr.f32.mxu0 0.0
        %9551 = vmatmul.mubr.f32.gmra.mxu0 %v9364
        %v9552 = vpop.f32.mrf.mxu0
        %v9553 = vadd.f32 0.0, %v9552
        %v9554 = vpop.f32.mrf.mxu0
        %9555 = vmatprep.mubr.f32.mxu0 0.0
        %9556 = vmatmul.mubr.f32.gmra.mxu0 %v9367
        %v9557 = vpop.f32.mrf.mxu0
        %v9558 = vadd.f32 0.0, %v9557
        %v9559 = vpop.f32.mrf.mxu0
        %9560 = vmatprep.mubr.f32.mxu0 0.0
        %9561 = vmatmul.mubr.f32.gmra.mxu0 %v9370
        %v9562 = vpop.f32.mrf.mxu0
        %v9563 = vadd.f32 0.0, %v9562
        %v9564 = vpop.f32.mrf.mxu0
        %9565 = vmatprep.mubr.f32.mxu0 0.0
        %9566 = vmatmul.mubr.f32.gmra.mxu0 %v9373
        %v9567 = vpop.f32.mrf.mxu0
        %v9568 = vadd.f32 0.0, %v9567
        %v9569 = vpop.f32.mrf.mxu0
        %9570 = vmatprep.mubr.f32.mxu0 0.0
        %9571 = vmatmul.mubr.f32.gmra.mxu0 %v9376
        %v9572 = vpop.f32.mrf.mxu0
        %v9573 = vadd.f32 0.0, %v9572
        %v9574 = vpop.f32.mrf.mxu0
        %9575 = vmatprep.mubr.f32.mxu0 0.0
        %9576 = vmatmul.mubr.f32.gmra.mxu0 %v9379
        %v9577 = vpop.f32.mrf.mxu0
        %v9578 = vadd.f32 0.0, %v9577
        %v9579 = vpop.f32.mrf.mxu0
        %9580 = vmatprep.mubr.f32.mxu0 0.0
        %9581 = vmatmul.mubr.f32.gmra.mxu0 %v9382
        %v9582 = vpop.f32.mrf.mxu0
        %v9583 = vadd.f32 0.0, %v9582
        %v9584 = vpop.f32.mrf.mxu0
        %9585 = vmatprep.mubr.f32.mxu0 0.0
        %9586 = vmatmul.mubr.f32.gmra.mxu0 %v9385
        %v9587 = vpop.f32.mrf.mxu0
        %v9588 = vadd.f32 0.0, %v9587
        %v9589 = vpop.f32.mrf.mxu0
        %9590 = vmatprep.mubr.f32.mxu0 0.0
        %9591 = vmatmul.mubr.f32.gmra.mxu0 %v9388
        %v9592 = vpop.f32.mrf.mxu0
        %v9593 = vadd.f32 0.0, %v9592
        %v9594 = vpop.f32.mrf.mxu0
        %9595 = vmatprep.mubr.f32.mxu0 0.0
        %9596 = vmatmul.mubr.f32.gmra.mxu0 %v9391
        %v9597 = vpop.f32.mrf.mxu0
        %v9598 = vadd.f32 0.0, %v9597
        %v9599 = vpop.f32.mrf.mxu0
        %9600 = vmatprep.mubr.f32.mxu0 0.0
        %9601 = vmatmul.mubr.f32.gmra.mxu0 %v9394
        %v9602 = vpop.f32.mrf.mxu0
        %v9603 = vadd.f32 0.0, %v9602
        %v9604 = vpop.f32.mrf.mxu0
        %9605 = vmatprep.mubr.f32.mxu0 0.0
        %9606 = vmatmul.mubr.f32.gmra.mxu0 %v9397
        %v9607 = vpop.f32.mrf.mxu0
        %v9608 = vadd.f32 0.0, %v9607
        %v9609 = vpop.f32.mrf.mxu0
        %9610 = vmatprep.mubr.f32.mxu0 0.0
        %9611 = vmatmul.mubr.f32.gmra.mxu0 %v9400
        %v9612 = vpop.f32.mrf.mxu0
        %v9613 = vadd.f32 0.0, %v9612
        %v9614 = vpop.f32.mrf.mxu0
        %9615 = vmatprep.mubr.f32.mxu0 0.0
        %9616 = vmatmul.mubr.f32.gmra.mxu0 %v9403
        %v9617 = vpop.f32.mrf.mxu0
        %v9618 = vadd.f32 0.0, %v9617
        %v9619 = vpop.f32.mrf.mxu0
        %9620 = vmatprep.mubr.f32.mxu0 0.0
        %9621 = vmatmul.mubr.f32.gmra.mxu0 %v9406
        %v9622 = vpop.f32.mrf.mxu0
        %v9623 = vadd.f32 0.0, %v9622
        %v9624 = vpop.f32.mrf.mxu0
        %9625 = vmatprep.mubr.f32.mxu0 0.0
        %9626 = vmatmul.mubr.f32.gmra.mxu0 %v9409
        %v9627 = vpop.f32.mrf.mxu0
        %v9628 = vadd.f32 0.0, %v9627
        %v9629 = vpop.f32.mrf.mxu0
        %9630 = vmatprep.mubr.f32.mxu0 0.0
        %9631 = vmatmul.mubr.f32.gmra.mxu0 %v9412
        %v9632 = vpop.f32.mrf.mxu0
        %v9633 = vadd.f32 0.0, %v9632
        %v9634 = vpop.f32.mrf.mxu0
        %9635 = vmatprep.mubr.f32.mxu0 0.0
        %9636 = vmatmul.mubr.f32.gmra.mxu0 %v9415
        %v9637 = vpop.f32.mrf.mxu0
        %v9638 = vadd.f32 0.0, %v9637
        %v9639 = vpop.f32.mrf.mxu0
        %9640 = vmatprep.mubr.f32.mxu0 0.0
        %9641 = vmatmul.mubr.f32.gmra.mxu0 %v9418
        %v9642 = vpop.f32.mrf.mxu0
        %v9643 = vadd.f32 0.0, %v9642
        %v9644 = vpop.f32.mrf.mxu0
        %9645 = vmatprep.mubr.f32.mxu0 0.0
        %9646 = vmatmul.mubr.f32.gmra.mxu0 %v9421
        %v9647 = vpop.f32.mrf.mxu0
        %v9648 = vadd.f32 0.0, %v9647
        %v9649 = vpop.f32.mrf.mxu0
        %9650 = vdwg.mxu0
        %v9651 = vadd.f32 %v9261, %v9493
        %v9652 = vadd.f32 %v9262, %v9498
        %v9653 = vadd.f32 %v9263, %v9503
        %v9654 = vadd.f32 %v9264, %v9508
        %v9655 = vadd.f32 %v9265, %v9513
        %v9656 = vadd.f32 %v9266, %v9518
        %v9657 = vadd.f32 %v9267, %v9523
        %v9658 = vadd.f32 %v9268, %v9528
        %v9659 = vadd.f32 %v9269, %v9533
        %v9660 = vadd.f32 %v9270, %v9538
        %v9661 = vadd.f32 %v9271, %v9543
        %v9662 = vadd.f32 %v9272, %v9548
        %v9663 = vadd.f32 %v9273, %v9553
        %v9664 = vadd.f32 %v9274, %v9558
        %v9665 = vadd.f32 %v9275, %v9563
        %v9666 = vadd.f32 %v9276, %v9568
        %v9667 = vadd.f32 %v9277, %v9573
        %v9668 = vadd.f32 %v9278, %v9578
        %v9669 = vadd.f32 %v9279, %v9583
        %v9670 = vadd.f32 %v9280, %v9588
        %v9671 = vadd.f32 %v9281, %v9593
        %v9672 = vadd.f32 %v9282, %v9598
        %v9673 = vadd.f32 %v9283, %v9603
        %v9674 = vadd.f32 %v9284, %v9608
        %v9675 = vadd.f32 %v9285, %v9613
        %v9676 = vadd.f32 %v9286, %v9618
        %v9677 = vadd.f32 %v9287, %v9623
        %v9678 = vadd.f32 %v9288, %v9628
        %v9679 = vadd.f32 %v9289, %v9633
        %v9680 = vadd.f32 %v9290, %v9638
        %v9681 = vadd.f32 %v9291, %v9643
        %v9682 = vadd.f32 %v9292, %v9648
        %v9683 = vld [vmem:[%s7765 + $0x6] sm:$0xff]
        %v9684 = vld [vmem:[%s7765 + $0xe] sm:$0xff]
        %v9685 = vld [vmem:[%s7765 + $0x1e] sm:$0xff]
        %v9686 = vld [vmem:[%s7765 + $0x26] sm:$0xff]
        %v9687 = vld [vmem:[%s7765 + $0x36] sm:$0xff]
        %v9688 = vld [vmem:[%s7765 + $0x3e] sm:$0xff]
        %v9689 = vld [vmem:[%s7765 + $0x4e] sm:$0xff]
        %v9690 = vld [vmem:[%s7765 + $0x56] sm:$0xff]
        %v9691 = vld [vmem:[%s7765 + $0x66] sm:$0xff]
        %v9692 = vld [vmem:[%s7765 + $0x6e] sm:$0xff]
        %v9693 = vld [vmem:[%s7765 + $0x7e] sm:$0xff]
        %v9694 = vld [vmem:[%s7765 + $0x86] sm:$0xff]
        %v9695 = vld [vmem:[%s7765 + $0x96] sm:$0xff]
        %v9696 = vld [vmem:[%s7765 + $0x9e] sm:$0xff]
        %v9697 = vld [vmem:[%s7765 + $0xae] sm:$0xff]
        %v9698 = vld [vmem:[%s7765 + $0xb6] sm:$0xff]
        %v9699 = vld [vmem:[%s7765 + $0xc6] sm:$0xff]
        %v9700 = vld [vmem:[%s7765 + $0xce] sm:$0xff]
        %v9701 = vld [vmem:[%s7765 + $0xde] sm:$0xff]
        %v9702 = vld [vmem:[%s7765 + $0xe6] sm:$0xff]
        %v9703 = vld [vmem:[%s7765 + $0xf6] sm:$0xff]
        %v9704 = vld [vmem:[%s7765 + $0xfe] sm:$0xff]
        %v9705 = vld [vmem:[%s7765 + $0x10e] sm:$0xff]
        %v9706 = vld [vmem:[%s7765 + $0x116] sm:$0xff]
        %v9707 = vld [vmem:[%s7765 + $0x126] sm:$0xff]
        %v9708 = vld [vmem:[%s7765 + $0x12e] sm:$0xff]
        %v9709 = vld [vmem:[%s7765 + $0x13e] sm:$0xff]
        %v9710 = vld [vmem:[%s7765 + $0x146] sm:$0xff]
        %v9711 = vld [vmem:[%s7765 + $0x156] sm:$0xff]
        %v9712 = vld [vmem:[%s7765 + $0x15e] sm:$0xff]
        %v9713 = vld [vmem:[%s7765 + $0x16e] sm:$0xff]
        %v9714 = vld [vmem:[%s7765 + $0x176] sm:$0xff]
        %s9715 = scalar_lea.vmem %s5, 20
        %v9716 = vld [vmem:[%s9715] sm:$0xf]
        %v9718 = vsel %vm478, %v9683, 0
        %v9721 = vsel %vm478, %v9684, 0
        %v9724 = vsel %vm478, %v9685, 0
        %v9727 = vsel %vm478, %v9686, 0
        %v9730 = vsel %vm478, %v9687, 0
        %v9733 = vsel %vm478, %v9688, 0
        %v9736 = vsel %vm478, %v9689, 0
        %v9739 = vsel %vm478, %v9690, 0
        %v9742 = vsel %vm478, %v9691, 0
        %v9745 = vsel %vm478, %v9692, 0
        %v9748 = vsel %vm478, %v9693, 0
        %v9751 = vsel %vm478, %v9694, 0
        %v9754 = vsel %vm478, %v9695, 0
        %v9757 = vsel %vm478, %v9696, 0
        %v9760 = vsel %vm478, %v9697, 0
        %v9763 = vsel %vm478, %v9698, 0
        %v9766 = vsel %vm478, %v9699, 0
        %v9769 = vsel %vm478, %v9700, 0
        %v9772 = vsel %vm478, %v9701, 0
        %v9775 = vsel %vm478, %v9702, 0
        %v9778 = vsel %vm478, %v9703, 0
        %v9781 = vsel %vm478, %v9704, 0
        %v9784 = vsel %vm478, %v9705, 0
        %v9787 = vsel %vm478, %v9706, 0
        %v9790 = vsel %vm478, %v9707, 0
        %v9793 = vsel %vm478, %v9708, 0
        %v9796 = vsel %vm478, %v9709, 0
        %v9799 = vsel %vm478, %v9710, 0
        %v9802 = vsel %vm478, %v9711, 0
        %v9805 = vsel %vm478, %v9712, 0
        %v9808 = vsel %vm478, %v9713, 0
        %v9811 = vsel %vm478, %v9714, 0
        %v9814 = vsel %vm4410, %v9716, 0
        %9816 = vmatprep.subr.mxu0 0.0
        %9817 = vmatpush1.msra.mxu0 0.0
        %9818 = vmatprep.subr.mxu0 0.0
        %9819 = vmatpush1.msra.mxu0 0.0
        %9820 = vmatprep.subr.mxu0 0.0
        %9821 = vmatpush1.msra.mxu0 0.0
        %9822 = vmatprep.subr.mxu0 0.0
        %9823 = vmatpush1.msra.mxu0 0.0
        %9824 = vmatprep.subr.mxu0 0.0
        %9825 = vmatpush1.msra.mxu0 0.0
        %9826 = vmatprep.subr.mxu0 0.0
        %9827 = vmatpush1.msra.mxu0 0.0
        %9828 = vmatprep.subr.mxu0 0.0
        %9829 = vmatpush1.msra.mxu0 0.0
        %9830 = vmatprep.subr.mxu0 0.0
        %9831 = vmatpush1.msra.mxu0 0.0
        %9832 = vmatprep.subr.mxu0 0.0
        %9833 = vmatpush1.msra.mxu0 0.0
        %9834 = vmatprep.subr.mxu0 0.0
        %9835 = vmatpush1.msra.mxu0 0.0
        %9836 = vmatprep.subr.mxu0 0.0
        %9837 = vmatpush1.msra.mxu0 0.0
        %9838 = vmatprep.subr.mxu0 0.0
        %9839 = vmatpush1.msra.mxu0 0.0
        %9840 = vmatprep.subr.mxu0 0.0
        %9841 = vmatpush1.msra.mxu0 0.0
        %9842 = vmatprep.subr.mxu0 0.0
        %9843 = vmatpush1.msra.mxu0 0.0
        %9844 = vmatprep.subr.mxu0 0.0
        %9845 = vmatpush1.msra.mxu0 0.0
        %9846 = vmatprep.subr.mxu0 0.0
        %9847 = vmatpush1.msra.mxu0 %v9814
        %9848 = vmatprep.subr.mxu0 0.0
        %9849 = vmatpush2.msra.mxu0 0.0
        %9850 = vmatprep.subr.mxu0 0.0
        %9851 = vmatpush2.msra.mxu0 0.0
        %9852 = vmatprep.subr.mxu0 0.0
        %9853 = vmatpush2.msra.mxu0 0.0
        %9854 = vmatprep.subr.mxu0 0.0
        %9855 = vmatpush2.msra.mxu0 0.0
        %9856 = vmatprep.subr.mxu0 0.0
        %9857 = vmatpush2.msra.mxu0 0.0
        %9858 = vmatprep.subr.mxu0 0.0
        %9859 = vmatpush2.msra.mxu0 0.0
        %9860 = vmatprep.subr.mxu0 0.0
        %9861 = vmatpush2.msra.mxu0 0.0
        %9862 = vmatprep.subr.mxu0 0.0
        %9863 = vmatpush2.msra.mxu0 0.0
        %9864 = vmatprep.subr.mxu0 0.0
        %9865 = vmatpush2.msra.mxu0 0.0
        %9866 = vmatprep.subr.mxu0 0.0
        %9867 = vmatpush2.msra.mxu0 0.0
        %9868 = vmatprep.subr.mxu0 0.0
        %9869 = vmatpush2.msra.mxu0 0.0
        %9870 = vmatprep.subr.mxu0 0.0
        %9871 = vmatpush2.msra.mxu0 0.0
        %9872 = vmatprep.subr.mxu0 0.0
        %9873 = vmatpush2.msra.mxu0 0.0
        %9874 = vmatprep.subr.mxu0 0.0
        %9875 = vmatpush2.msra.mxu0 0.0
        %9876 = vmatprep.subr.mxu0 0.0
        %9877 = vmatpush2.msra.mxu0 0.0
        %9878 = vmatprep.subr.mxu0 0.0
        %9879 = vmatpush2.msra.mxu0 0.0
        %9880 = vmatprep.mubr.f32.mxu0 0.0
        %9881 = vmatmul.mubr.f32.gmra.mxu0 %v9718
        %v9882 = vpop.f32.mrf.mxu0
        %v9883 = vadd.f32 0.0, %v9882
        %v9884 = vpop.f32.mrf.mxu0
        %9885 = vmatprep.mubr.f32.mxu0 0.0
        %9886 = vmatmul.mubr.f32.gmra.mxu0 %v9721
        %v9887 = vpop.f32.mrf.mxu0
        %v9888 = vadd.f32 0.0, %v9887
        %v9889 = vpop.f32.mrf.mxu0
        %9890 = vmatprep.mubr.f32.mxu0 0.0
        %9891 = vmatmul.mubr.f32.gmra.mxu0 %v9724
        %v9892 = vpop.f32.mrf.mxu0
        %v9893 = vadd.f32 0.0, %v9892
        %v9894 = vpop.f32.mrf.mxu0
        %9895 = vmatprep.mubr.f32.mxu0 0.0
        %9896 = vmatmul.mubr.f32.gmra.mxu0 %v9727
        %v9897 = vpop.f32.mrf.mxu0
        %v9898 = vadd.f32 0.0, %v9897
        %v9899 = vpop.f32.mrf.mxu0
        %9900 = vmatprep.mubr.f32.mxu0 0.0
        %9901 = vmatmul.mubr.f32.gmra.mxu0 %v9730
        %v9902 = vpop.f32.mrf.mxu0
        %v9903 = vadd.f32 0.0, %v9902
        %v9904 = vpop.f32.mrf.mxu0
        %9905 = vmatprep.mubr.f32.mxu0 0.0
        %9906 = vmatmul.mubr.f32.gmra.mxu0 %v9733
        %v9907 = vpop.f32.mrf.mxu0
        %v9908 = vadd.f32 0.0, %v9907
        %v9909 = vpop.f32.mrf.mxu0
        %9910 = vmatprep.mubr.f32.mxu0 0.0
        %9911 = vmatmul.mubr.f32.gmra.mxu0 %v9736
        %v9912 = vpop.f32.mrf.mxu0
        %v9913 = vadd.f32 0.0, %v9912
        %v9914 = vpop.f32.mrf.mxu0
        %9915 = vmatprep.mubr.f32.mxu0 0.0
        %9916 = vmatmul.mubr.f32.gmra.mxu0 %v9739
        %v9917 = vpop.f32.mrf.mxu0
        %v9918 = vadd.f32 0.0, %v9917
        %v9919 = vpop.f32.mrf.mxu0
        %9920 = vmatprep.mubr.f32.mxu0 0.0
        %9921 = vmatmul.mubr.f32.gmra.mxu0 %v9742
        %v9922 = vpop.f32.mrf.mxu0
        %v9923 = vadd.f32 0.0, %v9922
        %v9924 = vpop.f32.mrf.mxu0
        %9925 = vmatprep.mubr.f32.mxu0 0.0
        %9926 = vmatmul.mubr.f32.gmra.mxu0 %v9745
        %v9927 = vpop.f32.mrf.mxu0
        %v9928 = vadd.f32 0.0, %v9927
        %v9929 = vpop.f32.mrf.mxu0
        %9930 = vmatprep.mubr.f32.mxu0 0.0
        %9931 = vmatmul.mubr.f32.gmra.mxu0 %v9748
        %v9932 = vpop.f32.mrf.mxu0
        %v9933 = vadd.f32 0.0, %v9932
        %v9934 = vpop.f32.mrf.mxu0
        %9935 = vmatprep.mubr.f32.mxu0 0.0
        %9936 = vmatmul.mubr.f32.gmra.mxu0 %v9751
        %v9937 = vpop.f32.mrf.mxu0
        %v9938 = vadd.f32 0.0, %v9937
        %v9939 = vpop.f32.mrf.mxu0
        %9940 = vmatprep.mubr.f32.mxu0 0.0
        %9941 = vmatmul.mubr.f32.gmra.mxu0 %v9754
        %v9942 = vpop.f32.mrf.mxu0
        %v9943 = vadd.f32 0.0, %v9942
        %v9944 = vpop.f32.mrf.mxu0
        %9945 = vmatprep.mubr.f32.mxu0 0.0
        %9946 = vmatmul.mubr.f32.gmra.mxu0 %v9757
        %v9947 = vpop.f32.mrf.mxu0
        %v9948 = vadd.f32 0.0, %v9947
        %v9949 = vpop.f32.mrf.mxu0
        %9950 = vmatprep.mubr.f32.mxu0 0.0
        %9951 = vmatmul.mubr.f32.gmra.mxu0 %v9760
        %v9952 = vpop.f32.mrf.mxu0
        %v9953 = vadd.f32 0.0, %v9952
        %v9954 = vpop.f32.mrf.mxu0
        %9955 = vmatprep.mubr.f32.mxu0 0.0
        %9956 = vmatmul.mubr.f32.gmra.mxu0 %v9763
        %v9957 = vpop.f32.mrf.mxu0
        %v9958 = vadd.f32 0.0, %v9957
        %v9959 = vpop.f32.mrf.mxu0
        %9960 = vmatprep.mubr.f32.mxu0 0.0
        %9961 = vmatmul.mubr.f32.gmra.mxu0 %v9766
        %v9962 = vpop.f32.mrf.mxu0
        %v9963 = vadd.f32 0.0, %v9962
        %v9964 = vpop.f32.mrf.mxu0
        %9965 = vmatprep.mubr.f32.mxu0 0.0
        %9966 = vmatmul.mubr.f32.gmra.mxu0 %v9769
        %v9967 = vpop.f32.mrf.mxu0
        %v9968 = vadd.f32 0.0, %v9967
        %v9969 = vpop.f32.mrf.mxu0
        %9970 = vmatprep.mubr.f32.mxu0 0.0
        %9971 = vmatmul.mubr.f32.gmra.mxu0 %v9772
        %v9972 = vpop.f32.mrf.mxu0
        %v9973 = vadd.f32 0.0, %v9972
        %v9974 = vpop.f32.mrf.mxu0
        %9975 = vmatprep.mubr.f32.mxu0 0.0
        %9976 = vmatmul.mubr.f32.gmra.mxu0 %v9775
        %v9977 = vpop.f32.mrf.mxu0
        %v9978 = vadd.f32 0.0, %v9977
        %v9979 = vpop.f32.mrf.mxu0
        %9980 = vmatprep.mubr.f32.mxu0 0.0
        %9981 = vmatmul.mubr.f32.gmra.mxu0 %v9778
        %v9982 = vpop.f32.mrf.mxu0
        %v9983 = vadd.f32 0.0, %v9982
        %v9984 = vpop.f32.mrf.mxu0
        %9985 = vmatprep.mubr.f32.mxu0 0.0
        %9986 = vmatmul.mubr.f32.gmra.mxu0 %v9781
        %v9987 = vpop.f32.mrf.mxu0
        %v9988 = vadd.f32 0.0, %v9987
        %v9989 = vpop.f32.mrf.mxu0
        %9990 = vmatprep.mubr.f32.mxu0 0.0
        %9991 = vmatmul.mubr.f32.gmra.mxu0 %v9784
        %v9992 = vpop.f32.mrf.mxu0
        %v9993 = vadd.f32 0.0, %v9992
        %v9994 = vpop.f32.mrf.mxu0
        %9995 = vmatprep.mubr.f32.mxu0 0.0
        %9996 = vmatmul.mubr.f32.gmra.mxu0 %v9787
        %v9997 = vpop.f32.mrf.mxu0
        %v9998 = vadd.f32 0.0, %v9997
        %v9999 = vpop.f32.mrf.mxu0
        %10000 = vmatprep.mubr.f32.mxu0 0.0
        %10001 = vmatmul.mubr.f32.gmra.mxu0 %v9790
        %v10002 = vpop.f32.mrf.mxu0
        %v10003 = vadd.f32 0.0, %v10002
        %v10004 = vpop.f32.mrf.mxu0
        %10005 = vmatprep.mubr.f32.mxu0 0.0
        %10006 = vmatmul.mubr.f32.gmra.mxu0 %v9793
        %v10007 = vpop.f32.mrf.mxu0
        %v10008 = vadd.f32 0.0, %v10007
        %v10009 = vpop.f32.mrf.mxu0
        %10010 = vmatprep.mubr.f32.mxu0 0.0
        %10011 = vmatmul.mubr.f32.gmra.mxu0 %v9796
        %v10012 = vpop.f32.mrf.mxu0
        %v10013 = vadd.f32 0.0, %v10012
        %v10014 = vpop.f32.mrf.mxu0
        %10015 = vmatprep.mubr.f32.mxu0 0.0
        %10016 = vmatmul.mubr.f32.gmra.mxu0 %v9799
        %v10017 = vpop.f32.mrf.mxu0
        %v10018 = vadd.f32 0.0, %v10017
        %v10019 = vpop.f32.mrf.mxu0
        %10020 = vmatprep.mubr.f32.mxu0 0.0
        %10021 = vmatmul.mubr.f32.gmra.mxu0 %v9802
        %v10022 = vpop.f32.mrf.mxu0
        %v10023 = vadd.f32 0.0, %v10022
        %v10024 = vpop.f32.mrf.mxu0
        %10025 = vmatprep.mubr.f32.mxu0 0.0
        %10026 = vmatmul.mubr.f32.gmra.mxu0 %v9805
        %v10027 = vpop.f32.mrf.mxu0
        %v10028 = vadd.f32 0.0, %v10027
        %v10029 = vpop.f32.mrf.mxu0
        %10030 = vmatprep.mubr.f32.mxu0 0.0
        %10031 = vmatmul.mubr.f32.gmra.mxu0 %v9808
        %v10032 = vpop.f32.mrf.mxu0
        %v10033 = vadd.f32 0.0, %v10032
        %v10034 = vpop.f32.mrf.mxu0
        %10035 = vmatprep.mubr.f32.mxu0 0.0
        %10036 = vmatmul.mubr.f32.gmra.mxu0 %v9811
        %v10037 = vpop.f32.mrf.mxu0
        %v10038 = vadd.f32 0.0, %v10037
        %v10039 = vpop.f32.mrf.mxu0
        %10040 = vdwg.mxu0
        %v10041 = vadd.f32 %v9651, %v9883
        %v10042 = vadd.f32 %v9652, %v9888
        %v10043 = vadd.f32 %v9653, %v9893
        %v10044 = vadd.f32 %v9654, %v9898
        %v10045 = vadd.f32 %v9655, %v9903
        %v10046 = vadd.f32 %v9656, %v9908
        %v10047 = vadd.f32 %v9657, %v9913
        %v10048 = vadd.f32 %v9658, %v9918
        %v10049 = vadd.f32 %v9659, %v9923
        %v10050 = vadd.f32 %v9660, %v9928
        %v10051 = vadd.f32 %v9661, %v9933
        %v10052 = vadd.f32 %v9662, %v9938
        %v10053 = vadd.f32 %v9663, %v9943
        %v10054 = vadd.f32 %v9664, %v9948
        %v10055 = vadd.f32 %v9665, %v9953
        %v10056 = vadd.f32 %v9666, %v9958
        %v10057 = vadd.f32 %v9667, %v9963
        %v10058 = vadd.f32 %v9668, %v9968
        %v10059 = vadd.f32 %v9669, %v9973
        %v10060 = vadd.f32 %v9670, %v9978
        %v10061 = vadd.f32 %v9671, %v9983
        %v10062 = vadd.f32 %v9672, %v9988
        %v10063 = vadd.f32 %v9673, %v9993
        %v10064 = vadd.f32 %v9674, %v9998
        %v10065 = vadd.f32 %v9675, %v10003
        %v10066 = vadd.f32 %v9676, %v10008
        %v10067 = vadd.f32 %v9677, %v10013
        %v10068 = vadd.f32 %v9678, %v10018
        %v10069 = vadd.f32 %v9679, %v10023
        %v10070 = vadd.f32 %v9680, %v10028
        %v10071 = vadd.f32 %v9681, %v10033
        %v10072 = vadd.f32 %v9682, %v10038
        %s10073 = scalar_lea.vmem [#allocation4], 144
        %v10074 = vld [vmem:[%s10073] sm:$0xff]
        %v10075 = vld [vmem:[%s10073 + $0x8] sm:$0xff]
        %v10076 = vld [vmem:[%s10073 + $0x18] sm:$0xff]
        %v10077 = vld [vmem:[%s10073 + $0x20] sm:$0xff]
        %v10078 = vld [vmem:[%s10073 + $0x30] sm:$0xff]
        %v10079 = vld [vmem:[%s10073 + $0x38] sm:$0xff]
        %v10080 = vld [vmem:[%s10073 + $0x48] sm:$0xff]
        %v10081 = vld [vmem:[%s10073 + $0x50] sm:$0xff]
        %v10082 = vld [vmem:[%s10073 + $0x60] sm:$0xff]
        %v10083 = vld [vmem:[%s10073 + $0x68] sm:$0xff]
        %v10084 = vld [vmem:[%s10073 + $0x78] sm:$0xff]
        %v10085 = vld [vmem:[%s10073 + $0x80] sm:$0xff]
        %v10086 = vld [vmem:[%s10073 + $0x90] sm:$0xff]
        %v10087 = vld [vmem:[%s10073 + $0x98] sm:$0xff]
        %v10088 = vld [vmem:[%s10073 + $0xa8] sm:$0xff]
        %v10089 = vld [vmem:[%s10073 + $0xb0] sm:$0xff]
        %v10090 = vld [vmem:[%s10073 + $0xc0] sm:$0xff]
        %v10091 = vld [vmem:[%s10073 + $0xc8] sm:$0xff]
        %v10092 = vld [vmem:[%s10073 + $0xd8] sm:$0xff]
        %v10093 = vld [vmem:[%s10073 + $0xe0] sm:$0xff]
        %v10094 = vld [vmem:[%s10073 + $0xf0] sm:$0xff]
        %v10095 = vld [vmem:[%s10073 + $0xf8] sm:$0xff]
        %v10096 = vld [vmem:[%s10073 + $0x108] sm:$0xff]
        %v10097 = vld [vmem:[%s10073 + $0x110] sm:$0xff]
        %v10098 = vld [vmem:[%s10073 + $0x120] sm:$0xff]
        %v10099 = vld [vmem:[%s10073 + $0x128] sm:$0xff]
        %v10100 = vld [vmem:[%s10073 + $0x138] sm:$0xff]
        %v10101 = vld [vmem:[%s10073 + $0x140] sm:$0xff]
        %v10102 = vld [vmem:[%s10073 + $0x150] sm:$0xff]
        %v10103 = vld [vmem:[%s10073 + $0x158] sm:$0xff]
        %v10104 = vld [vmem:[%s10073 + $0x168] sm:$0xff]
        %v10105 = vld [vmem:[%s10073 + $0x170] sm:$0xff]
        %s10106 = scalar_lea.vmem %s5, 24
        %v10107 = vld [vmem:[%s10106] sm:$0xf]
        %v10109 = vsel %vm478, %v10074, 0
        %v10112 = vsel %vm478, %v10075, 0
        %v10115 = vsel %vm478, %v10076, 0
        %v10118 = vsel %vm478, %v10077, 0
        %v10121 = vsel %vm478, %v10078, 0
        %v10124 = vsel %vm478, %v10079, 0
        %v10127 = vsel %vm478, %v10080, 0
        %v10130 = vsel %vm478, %v10081, 0
        %v10133 = vsel %vm478, %v10082, 0
        %v10136 = vsel %vm478, %v10083, 0
        %v10139 = vsel %vm478, %v10084, 0
        %v10142 = vsel %vm478, %v10085, 0
        %v10145 = vsel %vm478, %v10086, 0
        %v10148 = vsel %vm478, %v10087, 0
        %v10151 = vsel %vm478, %v10088, 0
        %v10154 = vsel %vm478, %v10089, 0
        %v10157 = vsel %vm478, %v10090, 0
        %v10160 = vsel %vm478, %v10091, 0
        %v10163 = vsel %vm478, %v10092, 0
        %v10166 = vsel %vm478, %v10093, 0
        %v10169 = vsel %vm478, %v10094, 0
        %v10172 = vsel %vm478, %v10095, 0
        %v10175 = vsel %vm478, %v10096, 0
        %v10178 = vsel %vm478, %v10097, 0
        %v10181 = vsel %vm478, %v10098, 0
        %v10184 = vsel %vm478, %v10099, 0
        %v10187 = vsel %vm478, %v10100, 0
        %v10190 = vsel %vm478, %v10101, 0
        %v10193 = vsel %vm478, %v10102, 0
        %v10196 = vsel %vm478, %v10103, 0
        %v10199 = vsel %vm478, %v10104, 0
        %v10202 = vsel %vm478, %v10105, 0
        %v10205 = vsel %vm4410, %v10107, 0
        %10207 = vmatprep.subr.mxu0 0.0
        %10208 = vmatpush1.msra.mxu0 0.0
        %10209 = vmatprep.subr.mxu0 0.0
        %10210 = vmatpush1.msra.mxu0 0.0
        %10211 = vmatprep.subr.mxu0 0.0
        %10212 = vmatpush1.msra.mxu0 0.0
        %10213 = vmatprep.subr.mxu0 0.0
        %10214 = vmatpush1.msra.mxu0 0.0
        %10215 = vmatprep.subr.mxu0 0.0
        %10216 = vmatpush1.msra.mxu0 0.0
        %10217 = vmatprep.subr.mxu0 0.0
        %10218 = vmatpush1.msra.mxu0 0.0
        %10219 = vmatprep.subr.mxu0 0.0
        %10220 = vmatpush1.msra.mxu0 0.0
        %10221 = vmatprep.subr.mxu0 0.0
        %10222 = vmatpush1.msra.mxu0 0.0
        %10223 = vmatprep.subr.mxu0 0.0
        %10224 = vmatpush1.msra.mxu0 0.0
        %10225 = vmatprep.subr.mxu0 0.0
        %10226 = vmatpush1.msra.mxu0 0.0
        %10227 = vmatprep.subr.mxu0 0.0
        %10228 = vmatpush1.msra.mxu0 0.0
        %10229 = vmatprep.subr.mxu0 0.0
        %10230 = vmatpush1.msra.mxu0 0.0
        %10231 = vmatprep.subr.mxu0 0.0
        %10232 = vmatpush1.msra.mxu0 0.0
        %10233 = vmatprep.subr.mxu0 0.0
        %10234 = vmatpush1.msra.mxu0 0.0
        %10235 = vmatprep.subr.mxu0 0.0
        %10236 = vmatpush1.msra.mxu0 0.0
        %10237 = vmatprep.subr.mxu0 0.0
        %10238 = vmatpush1.msra.mxu0 %v10205
        %10239 = vmatprep.subr.mxu0 0.0
        %10240 = vmatpush2.msra.mxu0 0.0
        %10241 = vmatprep.subr.mxu0 0.0
        %10242 = vmatpush2.msra.mxu0 0.0
        %10243 = vmatprep.subr.mxu0 0.0
        %10244 = vmatpush2.msra.mxu0 0.0
        %10245 = vmatprep.subr.mxu0 0.0
        %10246 = vmatpush2.msra.mxu0 0.0
        %10247 = vmatprep.subr.mxu0 0.0
        %10248 = vmatpush2.msra.mxu0 0.0
        %10249 = vmatprep.subr.mxu0 0.0
        %10250 = vmatpush2.msra.mxu0 0.0
        %10251 = vmatprep.subr.mxu0 0.0
        %10252 = vmatpush2.msra.mxu0 0.0
        %10253 = vmatprep.subr.mxu0 0.0
        %10254 = vmatpush2.msra.mxu0 0.0
        %10255 = vmatprep.subr.mxu0 0.0
        %10256 = vmatpush2.msra.mxu0 0.0
        %10257 = vmatprep.subr.mxu0 0.0
        %10258 = vmatpush2.msra.mxu0 0.0
        %10259 = vmatprep.subr.mxu0 0.0
        %10260 = vmatpush2.msra.mxu0 0.0
        %10261 = vmatprep.subr.mxu0 0.0
        %10262 = vmatpush2.msra.mxu0 0.0
        %10263 = vmatprep.subr.mxu0 0.0
        %10264 = vmatpush2.msra.mxu0 0.0
        %10265 = vmatprep.subr.mxu0 0.0
        %10266 = vmatpush2.msra.mxu0 0.0
        %10267 = vmatprep.subr.mxu0 0.0
        %10268 = vmatpush2.msra.mxu0 0.0
        %10269 = vmatprep.subr.mxu0 0.0
        %10270 = vmatpush2.msra.mxu0 0.0
        %10271 = vmatprep.mubr.f32.mxu0 0.0
        %10272 = vmatmul.mubr.f32.gmra.mxu0 %v10109
        %v10273 = vpop.f32.mrf.mxu0
        %v10274 = vadd.f32 0.0, %v10273
        %v10275 = vpop.f32.mrf.mxu0
        %10276 = vmatprep.mubr.f32.mxu0 0.0
        %10277 = vmatmul.mubr.f32.gmra.mxu0 %v10112
        %v10278 = vpop.f32.mrf.mxu0
        %v10279 = vadd.f32 0.0, %v10278
        %v10280 = vpop.f32.mrf.mxu0
        %10281 = vmatprep.mubr.f32.mxu0 0.0
        %10282 = vmatmul.mubr.f32.gmra.mxu0 %v10115
        %v10283 = vpop.f32.mrf.mxu0
        %v10284 = vadd.f32 0.0, %v10283
        %v10285 = vpop.f32.mrf.mxu0
        %10286 = vmatprep.mubr.f32.mxu0 0.0
        %10287 = vmatmul.mubr.f32.gmra.mxu0 %v10118
        %v10288 = vpop.f32.mrf.mxu0
        %v10289 = vadd.f32 0.0, %v10288
        %v10290 = vpop.f32.mrf.mxu0
        %10291 = vmatprep.mubr.f32.mxu0 0.0
        %10292 = vmatmul.mubr.f32.gmra.mxu0 %v10121
        %v10293 = vpop.f32.mrf.mxu0
        %v10294 = vadd.f32 0.0, %v10293
        %v10295 = vpop.f32.mrf.mxu0
        %10296 = vmatprep.mubr.f32.mxu0 0.0
        %10297 = vmatmul.mubr.f32.gmra.mxu0 %v10124
        %v10298 = vpop.f32.mrf.mxu0
        %v10299 = vadd.f32 0.0, %v10298
        %v10300 = vpop.f32.mrf.mxu0
        %10301 = vmatprep.mubr.f32.mxu0 0.0
        %10302 = vmatmul.mubr.f32.gmra.mxu0 %v10127
        %v10303 = vpop.f32.mrf.mxu0
        %v10304 = vadd.f32 0.0, %v10303
        %v10305 = vpop.f32.mrf.mxu0
        %10306 = vmatprep.mubr.f32.mxu0 0.0
        %10307 = vmatmul.mubr.f32.gmra.mxu0 %v10130
        %v10308 = vpop.f32.mrf.mxu0
        %v10309 = vadd.f32 0.0, %v10308
        %v10310 = vpop.f32.mrf.mxu0
        %10311 = vmatprep.mubr.f32.mxu0 0.0
        %10312 = vmatmul.mubr.f32.gmra.mxu0 %v10133
        %v10313 = vpop.f32.mrf.mxu0
        %v10314 = vadd.f32 0.0, %v10313
        %v10315 = vpop.f32.mrf.mxu0
        %10316 = vmatprep.mubr.f32.mxu0 0.0
        %10317 = vmatmul.mubr.f32.gmra.mxu0 %v10136
        %v10318 = vpop.f32.mrf.mxu0
        %v10319 = vadd.f32 0.0, %v10318
        %v10320 = vpop.f32.mrf.mxu0
        %10321 = vmatprep.mubr.f32.mxu0 0.0
        %10322 = vmatmul.mubr.f32.gmra.mxu0 %v10139
        %v10323 = vpop.f32.mrf.mxu0
        %v10324 = vadd.f32 0.0, %v10323
        %v10325 = vpop.f32.mrf.mxu0
        %10326 = vmatprep.mubr.f32.mxu0 0.0
        %10327 = vmatmul.mubr.f32.gmra.mxu0 %v10142
        %v10328 = vpop.f32.mrf.mxu0
        %v10329 = vadd.f32 0.0, %v10328
        %v10330 = vpop.f32.mrf.mxu0
        %10331 = vmatprep.mubr.f32.mxu0 0.0
        %10332 = vmatmul.mubr.f32.gmra.mxu0 %v10145
        %v10333 = vpop.f32.mrf.mxu0
        %v10334 = vadd.f32 0.0, %v10333
        %v10335 = vpop.f32.mrf.mxu0
        %10336 = vmatprep.mubr.f32.mxu0 0.0
        %10337 = vmatmul.mubr.f32.gmra.mxu0 %v10148
        %v10338 = vpop.f32.mrf.mxu0
        %v10339 = vadd.f32 0.0, %v10338
        %v10340 = vpop.f32.mrf.mxu0
        %10341 = vmatprep.mubr.f32.mxu0 0.0
        %10342 = vmatmul.mubr.f32.gmra.mxu0 %v10151
        %v10343 = vpop.f32.mrf.mxu0
        %v10344 = vadd.f32 0.0, %v10343
        %v10345 = vpop.f32.mrf.mxu0
        %10346 = vmatprep.mubr.f32.mxu0 0.0
        %10347 = vmatmul.mubr.f32.gmra.mxu0 %v10154
        %v10348 = vpop.f32.mrf.mxu0
        %v10349 = vadd.f32 0.0, %v10348
        %v10350 = vpop.f32.mrf.mxu0
        %10351 = vmatprep.mubr.f32.mxu0 0.0
        %10352 = vmatmul.mubr.f32.gmra.mxu0 %v10157
        %v10353 = vpop.f32.mrf.mxu0
        %v10354 = vadd.f32 0.0, %v10353
        %v10355 = vpop.f32.mrf.mxu0
        %10356 = vmatprep.mubr.f32.mxu0 0.0
        %10357 = vmatmul.mubr.f32.gmra.mxu0 %v10160
        %v10358 = vpop.f32.mrf.mxu0
        %v10359 = vadd.f32 0.0, %v10358
        %v10360 = vpop.f32.mrf.mxu0
        %10361 = vmatprep.mubr.f32.mxu0 0.0
        %10362 = vmatmul.mubr.f32.gmra.mxu0 %v10163
        %v10363 = vpop.f32.mrf.mxu0
        %v10364 = vadd.f32 0.0, %v10363
        %v10365 = vpop.f32.mrf.mxu0
        %10366 = vmatprep.mubr.f32.mxu0 0.0
        %10367 = vmatmul.mubr.f32.gmra.mxu0 %v10166
        %v10368 = vpop.f32.mrf.mxu0
        %v10369 = vadd.f32 0.0, %v10368
        %v10370 = vpop.f32.mrf.mxu0
        %10371 = vmatprep.mubr.f32.mxu0 0.0
        %10372 = vmatmul.mubr.f32.gmra.mxu0 %v10169
        %v10373 = vpop.f32.mrf.mxu0
        %v10374 = vadd.f32 0.0, %v10373
        %v10375 = vpop.f32.mrf.mxu0
        %10376 = vmatprep.mubr.f32.mxu0 0.0
        %10377 = vmatmul.mubr.f32.gmra.mxu0 %v10172
        %v10378 = vpop.f32.mrf.mxu0
        %v10379 = vadd.f32 0.0, %v10378
        %v10380 = vpop.f32.mrf.mxu0
        %10381 = vmatprep.mubr.f32.mxu0 0.0
        %10382 = vmatmul.mubr.f32.gmra.mxu0 %v10175
        %v10383 = vpop.f32.mrf.mxu0
        %v10384 = vadd.f32 0.0, %v10383
        %v10385 = vpop.f32.mrf.mxu0
        %10386 = vmatprep.mubr.f32.mxu0 0.0
        %10387 = vmatmul.mubr.f32.gmra.mxu0 %v10178
        %v10388 = vpop.f32.mrf.mxu0
        %v10389 = vadd.f32 0.0, %v10388
        %v10390 = vpop.f32.mrf.mxu0
        %10391 = vmatprep.mubr.f32.mxu0 0.0
        %10392 = vmatmul.mubr.f32.gmra.mxu0 %v10181
        %v10393 = vpop.f32.mrf.mxu0
        %v10394 = vadd.f32 0.0, %v10393
        %v10395 = vpop.f32.mrf.mxu0
        %10396 = vmatprep.mubr.f32.mxu0 0.0
        %10397 = vmatmul.mubr.f32.gmra.mxu0 %v10184
        %v10398 = vpop.f32.mrf.mxu0
        %v10399 = vadd.f32 0.0, %v10398
        %v10400 = vpop.f32.mrf.mxu0
        %10401 = vmatprep.mubr.f32.mxu0 0.0
        %10402 = vmatmul.mubr.f32.gmra.mxu0 %v10187
        %v10403 = vpop.f32.mrf.mxu0
        %v10404 = vadd.f32 0.0, %v10403
        %v10405 = vpop.f32.mrf.mxu0
        %10406 = vmatprep.mubr.f32.mxu0 0.0
        %10407 = vmatmul.mubr.f32.gmra.mxu0 %v10190
        %v10408 = vpop.f32.mrf.mxu0
        %v10409 = vadd.f32 0.0, %v10408
        %v10410 = vpop.f32.mrf.mxu0
        %10411 = vmatprep.mubr.f32.mxu0 0.0
        %10412 = vmatmul.mubr.f32.gmra.mxu0 %v10193
        %v10413 = vpop.f32.mrf.mxu0
        %v10414 = vadd.f32 0.0, %v10413
        %v10415 = vpop.f32.mrf.mxu0
        %10416 = vmatprep.mubr.f32.mxu0 0.0
        %10417 = vmatmul.mubr.f32.gmra.mxu0 %v10196
        %v10418 = vpop.f32.mrf.mxu0
        %v10419 = vadd.f32 0.0, %v10418
        %v10420 = vpop.f32.mrf.mxu0
        %10421 = vmatprep.mubr.f32.mxu0 0.0
        %10422 = vmatmul.mubr.f32.gmra.mxu0 %v10199
        %v10423 = vpop.f32.mrf.mxu0
        %v10424 = vadd.f32 0.0, %v10423
        %v10425 = vpop.f32.mrf.mxu0
        %10426 = vmatprep.mubr.f32.mxu0 0.0
        %10427 = vmatmul.mubr.f32.gmra.mxu0 %v10202
        %v10428 = vpop.f32.mrf.mxu0
        %v10429 = vadd.f32 0.0, %v10428
        %v10430 = vpop.f32.mrf.mxu0
        %10431 = vdwg.mxu0
        %v10432 = vadd.f32 %v10041, %v10274
        %v10433 = vadd.f32 %v10042, %v10279
        %v10434 = vadd.f32 %v10043, %v10284
        %v10435 = vadd.f32 %v10044, %v10289
        %v10436 = vadd.f32 %v10045, %v10294
        %v10437 = vadd.f32 %v10046, %v10299
        %v10438 = vadd.f32 %v10047, %v10304
        %v10439 = vadd.f32 %v10048, %v10309
        %v10440 = vadd.f32 %v10049, %v10314
        %v10441 = vadd.f32 %v10050, %v10319
        %v10442 = vadd.f32 %v10051, %v10324
        %v10443 = vadd.f32 %v10052, %v10329
        %v10444 = vadd.f32 %v10053, %v10334
        %v10445 = vadd.f32 %v10054, %v10339
        %v10446 = vadd.f32 %v10055, %v10344
        %v10447 = vadd.f32 %v10056, %v10349
        %v10448 = vadd.f32 %v10057, %v10354
        %v10449 = vadd.f32 %v10058, %v10359
        %v10450 = vadd.f32 %v10059, %v10364
        %v10451 = vadd.f32 %v10060, %v10369
        %v10452 = vadd.f32 %v10061, %v10374
        %v10453 = vadd.f32 %v10062, %v10379
        %v10454 = vadd.f32 %v10063, %v10384
        %v10455 = vadd.f32 %v10064, %v10389
        %v10456 = vadd.f32 %v10065, %v10394
        %v10457 = vadd.f32 %v10066, %v10399
        %v10458 = vadd.f32 %v10067, %v10404
        %v10459 = vadd.f32 %v10068, %v10409
        %v10460 = vadd.f32 %v10069, %v10414
        %v10461 = vadd.f32 %v10070, %v10419
        %v10462 = vadd.f32 %v10071, %v10424
        %v10463 = vadd.f32 %v10072, %v10429
        %v10464 = vld [vmem:[%s10073 + $0x3] sm:$0xff]
        %v10465 = vld [vmem:[%s10073 + $0xb] sm:$0xff]
        %v10466 = vld [vmem:[%s10073 + $0x1b] sm:$0xff]
        %v10467 = vld [vmem:[%s10073 + $0x23] sm:$0xff]
        %v10468 = vld [vmem:[%s10073 + $0x33] sm:$0xff]
        %v10469 = vld [vmem:[%s10073 + $0x3b] sm:$0xff]
        %v10470 = vld [vmem:[%s10073 + $0x4b] sm:$0xff]
        %v10471 = vld [vmem:[%s10073 + $0x53] sm:$0xff]
        %v10472 = vld [vmem:[%s10073 + $0x63] sm:$0xff]
        %v10473 = vld [vmem:[%s10073 + $0x6b] sm:$0xff]
        %v10474 = vld [vmem:[%s10073 + $0x7b] sm:$0xff]
        %v10475 = vld [vmem:[%s10073 + $0x83] sm:$0xff]
        %v10476 = vld [vmem:[%s10073 + $0x93] sm:$0xff]
        %v10477 = vld [vmem:[%s10073 + $0x9b] sm:$0xff]
        %v10478 = vld [vmem:[%s10073 + $0xab] sm:$0xff]
        %v10479 = vld [vmem:[%s10073 + $0xb3] sm:$0xff]
        %v10480 = vld [vmem:[%s10073 + $0xc3] sm:$0xff]
        %v10481 = vld [vmem:[%s10073 + $0xcb] sm:$0xff]
        %v10482 = vld [vmem:[%s10073 + $0xdb] sm:$0xff]
        %v10483 = vld [vmem:[%s10073 + $0xe3] sm:$0xff]
        %v10484 = vld [vmem:[%s10073 + $0xf3] sm:$0xff]
        %v10485 = vld [vmem:[%s10073 + $0xfb] sm:$0xff]
        %v10486 = vld [vmem:[%s10073 + $0x10b] sm:$0xff]
        %v10487 = vld [vmem:[%s10073 + $0x113] sm:$0xff]
        %v10488 = vld [vmem:[%s10073 + $0x123] sm:$0xff]
        %v10489 = vld [vmem:[%s10073 + $0x12b] sm:$0xff]
        %v10490 = vld [vmem:[%s10073 + $0x13b] sm:$0xff]
        %v10491 = vld [vmem:[%s10073 + $0x143] sm:$0xff]
        %v10492 = vld [vmem:[%s10073 + $0x153] sm:$0xff]
        %v10493 = vld [vmem:[%s10073 + $0x15b] sm:$0xff]
        %v10494 = vld [vmem:[%s10073 + $0x16b] sm:$0xff]
        %v10495 = vld [vmem:[%s10073 + $0x173] sm:$0xff]
        %s10496 = scalar_lea.vmem %s5, 28
        %v10497 = vld [vmem:[%s10496] sm:$0xf]
        %v10499 = vsel %vm478, %v10464, 0
        %v10502 = vsel %vm478, %v10465, 0
        %v10505 = vsel %vm478, %v10466, 0
        %v10508 = vsel %vm478, %v10467, 0
        %v10511 = vsel %vm478, %v10468, 0
        %v10514 = vsel %vm478, %v10469, 0
        %v10517 = vsel %vm478, %v10470, 0
        %v10520 = vsel %vm478, %v10471, 0
        %v10523 = vsel %vm478, %v10472, 0
        %v10526 = vsel %vm478, %v10473, 0
        %v10529 = vsel %vm478, %v10474, 0
        %v10532 = vsel %vm478, %v10475, 0
        %v10535 = vsel %vm478, %v10476, 0
        %v10538 = vsel %vm478, %v10477, 0
        %v10541 = vsel %vm478, %v10478, 0
        %v10544 = vsel %vm478, %v10479, 0
        %v10547 = vsel %vm478, %v10480, 0
        %v10550 = vsel %vm478, %v10481, 0
        %v10553 = vsel %vm478, %v10482, 0
        %v10556 = vsel %vm478, %v10483, 0
        %v10559 = vsel %vm478, %v10484, 0
        %v10562 = vsel %vm478, %v10485, 0
        %v10565 = vsel %vm478, %v10486, 0
        %v10568 = vsel %vm478, %v10487, 0
        %v10571 = vsel %vm478, %v10488, 0
        %v10574 = vsel %vm478, %v10489, 0
        %v10577 = vsel %vm478, %v10490, 0
        %v10580 = vsel %vm478, %v10491, 0
        %v10583 = vsel %vm478, %v10492, 0
        %v10586 = vsel %vm478, %v10493, 0
        %v10589 = vsel %vm478, %v10494, 0
        %v10592 = vsel %vm478, %v10495, 0
        %v10595 = vsel %vm4410, %v10497, 0
        %10597 = vmatprep.subr.mxu0 0.0
        %10598 = vmatpush1.msra.mxu0 0.0
        %10599 = vmatprep.subr.mxu0 0.0
        %10600 = vmatpush1.msra.mxu0 0.0
        %10601 = vmatprep.subr.mxu0 0.0
        %10602 = vmatpush1.msra.mxu0 0.0
        %10603 = vmatprep.subr.mxu0 0.0
        %10604 = vmatpush1.msra.mxu0 0.0
        %10605 = vmatprep.subr.mxu0 0.0
        %10606 = vmatpush1.msra.mxu0 0.0
        %10607 = vmatprep.subr.mxu0 0.0
        %10608 = vmatpush1.msra.mxu0 0.0
        %10609 = vmatprep.subr.mxu0 0.0
        %10610 = vmatpush1.msra.mxu0 0.0
        %10611 = vmatprep.subr.mxu0 0.0
        %10612 = vmatpush1.msra.mxu0 0.0
        %10613 = vmatprep.subr.mxu0 0.0
        %10614 = vmatpush1.msra.mxu0 0.0
        %10615 = vmatprep.subr.mxu0 0.0
        %10616 = vmatpush1.msra.mxu0 0.0
        %10617 = vmatprep.subr.mxu0 0.0
        %10618 = vmatpush1.msra.mxu0 0.0
        %10619 = vmatprep.subr.mxu0 0.0
        %10620 = vmatpush1.msra.mxu0 0.0
        %10621 = vmatprep.subr.mxu0 0.0
        %10622 = vmatpush1.msra.mxu0 0.0
        %10623 = vmatprep.subr.mxu0 0.0
        %10624 = vmatpush1.msra.mxu0 0.0
        %10625 = vmatprep.subr.mxu0 0.0
        %10626 = vmatpush1.msra.mxu0 0.0
        %10627 = vmatprep.subr.mxu0 0.0
        %10628 = vmatpush1.msra.mxu0 %v10595
        %10629 = vmatprep.subr.mxu0 0.0
        %10630 = vmatpush2.msra.mxu0 0.0
        %10631 = vmatprep.subr.mxu0 0.0
        %10632 = vmatpush2.msra.mxu0 0.0
        %10633 = vmatprep.subr.mxu0 0.0
        %10634 = vmatpush2.msra.mxu0 0.0
        %10635 = vmatprep.subr.mxu0 0.0
        %10636 = vmatpush2.msra.mxu0 0.0
        %10637 = vmatprep.subr.mxu0 0.0
        %10638 = vmatpush2.msra.mxu0 0.0
        %10639 = vmatprep.subr.mxu0 0.0
        %10640 = vmatpush2.msra.mxu0 0.0
        %10641 = vmatprep.subr.mxu0 0.0
        %10642 = vmatpush2.msra.mxu0 0.0
        %10643 = vmatprep.subr.mxu0 0.0
        %10644 = vmatpush2.msra.mxu0 0.0
        %10645 = vmatprep.subr.mxu0 0.0
        %10646 = vmatpush2.msra.mxu0 0.0
        %10647 = vmatprep.subr.mxu0 0.0
        %10648 = vmatpush2.msra.mxu0 0.0
        %10649 = vmatprep.subr.mxu0 0.0
        %10650 = vmatpush2.msra.mxu0 0.0
        %10651 = vmatprep.subr.mxu0 0.0
        %10652 = vmatpush2.msra.mxu0 0.0
        %10653 = vmatprep.subr.mxu0 0.0
        %10654 = vmatpush2.msra.mxu0 0.0
        %10655 = vmatprep.subr.mxu0 0.0
        %10656 = vmatpush2.msra.mxu0 0.0
        %10657 = vmatprep.subr.mxu0 0.0
        %10658 = vmatpush2.msra.mxu0 0.0
        %10659 = vmatprep.subr.mxu0 0.0
        %10660 = vmatpush2.msra.mxu0 0.0
        %10661 = vmatprep.mubr.f32.mxu0 0.0
        %10662 = vmatmul.mubr.f32.gmra.mxu0 %v10499
        %v10663 = vpop.f32.mrf.mxu0
        %v10664 = vadd.f32 0.0, %v10663
        %v10665 = vpop.f32.mrf.mxu0
        %10666 = vmatprep.mubr.f32.mxu0 0.0
        %10667 = vmatmul.mubr.f32.gmra.mxu0 %v10502
        %v10668 = vpop.f32.mrf.mxu0
        %v10669 = vadd.f32 0.0, %v10668
        %v10670 = vpop.f32.mrf.mxu0
        %10671 = vmatprep.mubr.f32.mxu0 0.0
        %10672 = vmatmul.mubr.f32.gmra.mxu0 %v10505
        %v10673 = vpop.f32.mrf.mxu0
        %v10674 = vadd.f32 0.0, %v10673
        %v10675 = vpop.f32.mrf.mxu0
        %10676 = vmatprep.mubr.f32.mxu0 0.0
        %10677 = vmatmul.mubr.f32.gmra.mxu0 %v10508
        %v10678 = vpop.f32.mrf.mxu0
        %v10679 = vadd.f32 0.0, %v10678
        %v10680 = vpop.f32.mrf.mxu0
        %10681 = vmatprep.mubr.f32.mxu0 0.0
        %10682 = vmatmul.mubr.f32.gmra.mxu0 %v10511
        %v10683 = vpop.f32.mrf.mxu0
        %v10684 = vadd.f32 0.0, %v10683
        %v10685 = vpop.f32.mrf.mxu0
        %10686 = vmatprep.mubr.f32.mxu0 0.0
        %10687 = vmatmul.mubr.f32.gmra.mxu0 %v10514
        %v10688 = vpop.f32.mrf.mxu0
        %v10689 = vadd.f32 0.0, %v10688
        %v10690 = vpop.f32.mrf.mxu0
        %10691 = vmatprep.mubr.f32.mxu0 0.0
        %10692 = vmatmul.mubr.f32.gmra.mxu0 %v10517
        %v10693 = vpop.f32.mrf.mxu0
        %v10694 = vadd.f32 0.0, %v10693
        %v10695 = vpop.f32.mrf.mxu0
        %10696 = vmatprep.mubr.f32.mxu0 0.0
        %10697 = vmatmul.mubr.f32.gmra.mxu0 %v10520
        %v10698 = vpop.f32.mrf.mxu0
        %v10699 = vadd.f32 0.0, %v10698
        %v10700 = vpop.f32.mrf.mxu0
        %10701 = vmatprep.mubr.f32.mxu0 0.0
        %10702 = vmatmul.mubr.f32.gmra.mxu0 %v10523
        %v10703 = vpop.f32.mrf.mxu0
        %v10704 = vadd.f32 0.0, %v10703
        %v10705 = vpop.f32.mrf.mxu0
        %10706 = vmatprep.mubr.f32.mxu0 0.0
        %10707 = vmatmul.mubr.f32.gmra.mxu0 %v10526
        %v10708 = vpop.f32.mrf.mxu0
        %v10709 = vadd.f32 0.0, %v10708
        %v10710 = vpop.f32.mrf.mxu0
        %10711 = vmatprep.mubr.f32.mxu0 0.0
        %10712 = vmatmul.mubr.f32.gmra.mxu0 %v10529
        %v10713 = vpop.f32.mrf.mxu0
        %v10714 = vadd.f32 0.0, %v10713
        %v10715 = vpop.f32.mrf.mxu0
        %10716 = vmatprep.mubr.f32.mxu0 0.0
        %10717 = vmatmul.mubr.f32.gmra.mxu0 %v10532
        %v10718 = vpop.f32.mrf.mxu0
        %v10719 = vadd.f32 0.0, %v10718
        %v10720 = vpop.f32.mrf.mxu0
        %10721 = vmatprep.mubr.f32.mxu0 0.0
        %10722 = vmatmul.mubr.f32.gmra.mxu0 %v10535
        %v10723 = vpop.f32.mrf.mxu0
        %v10724 = vadd.f32 0.0, %v10723
        %v10725 = vpop.f32.mrf.mxu0
        %10726 = vmatprep.mubr.f32.mxu0 0.0
        %10727 = vmatmul.mubr.f32.gmra.mxu0 %v10538
        %v10728 = vpop.f32.mrf.mxu0
        %v10729 = vadd.f32 0.0, %v10728
        %v10730 = vpop.f32.mrf.mxu0
        %10731 = vmatprep.mubr.f32.mxu0 0.0
        %10732 = vmatmul.mubr.f32.gmra.mxu0 %v10541
        %v10733 = vpop.f32.mrf.mxu0
        %v10734 = vadd.f32 0.0, %v10733
        %v10735 = vpop.f32.mrf.mxu0
        %10736 = vmatprep.mubr.f32.mxu0 0.0
        %10737 = vmatmul.mubr.f32.gmra.mxu0 %v10544
        %v10738 = vpop.f32.mrf.mxu0
        %v10739 = vadd.f32 0.0, %v10738
        %v10740 = vpop.f32.mrf.mxu0
        %10741 = vmatprep.mubr.f32.mxu0 0.0
        %10742 = vmatmul.mubr.f32.gmra.mxu0 %v10547
        %v10743 = vpop.f32.mrf.mxu0
        %v10744 = vadd.f32 0.0, %v10743
        %v10745 = vpop.f32.mrf.mxu0
        %10746 = vmatprep.mubr.f32.mxu0 0.0
        %10747 = vmatmul.mubr.f32.gmra.mxu0 %v10550
        %v10748 = vpop.f32.mrf.mxu0
        %v10749 = vadd.f32 0.0, %v10748
        %v10750 = vpop.f32.mrf.mxu0
        %10751 = vmatprep.mubr.f32.mxu0 0.0
        %10752 = vmatmul.mubr.f32.gmra.mxu0 %v10553
        %v10753 = vpop.f32.mrf.mxu0
        %v10754 = vadd.f32 0.0, %v10753
        %v10755 = vpop.f32.mrf.mxu0
        %10756 = vmatprep.mubr.f32.mxu0 0.0
        %10757 = vmatmul.mubr.f32.gmra.mxu0 %v10556
        %v10758 = vpop.f32.mrf.mxu0
        %v10759 = vadd.f32 0.0, %v10758
        %v10760 = vpop.f32.mrf.mxu0
        %10761 = vmatprep.mubr.f32.mxu0 0.0
        %10762 = vmatmul.mubr.f32.gmra.mxu0 %v10559
        %v10763 = vpop.f32.mrf.mxu0
        %v10764 = vadd.f32 0.0, %v10763
        %v10765 = vpop.f32.mrf.mxu0
        %10766 = vmatprep.mubr.f32.mxu0 0.0
        %10767 = vmatmul.mubr.f32.gmra.mxu0 %v10562
        %v10768 = vpop.f32.mrf.mxu0
        %v10769 = vadd.f32 0.0, %v10768
        %v10770 = vpop.f32.mrf.mxu0
        %10771 = vmatprep.mubr.f32.mxu0 0.0
        %10772 = vmatmul.mubr.f32.gmra.mxu0 %v10565
        %v10773 = vpop.f32.mrf.mxu0
        %v10774 = vadd.f32 0.0, %v10773
        %v10775 = vpop.f32.mrf.mxu0
        %10776 = vmatprep.mubr.f32.mxu0 0.0
        %10777 = vmatmul.mubr.f32.gmra.mxu0 %v10568
        %v10778 = vpop.f32.mrf.mxu0
        %v10779 = vadd.f32 0.0, %v10778
        %v10780 = vpop.f32.mrf.mxu0
        %10781 = vmatprep.mubr.f32.mxu0 0.0
        %10782 = vmatmul.mubr.f32.gmra.mxu0 %v10571
        %v10783 = vpop.f32.mrf.mxu0
        %v10784 = vadd.f32 0.0, %v10783
        %v10785 = vpop.f32.mrf.mxu0
        %10786 = vmatprep.mubr.f32.mxu0 0.0
        %10787 = vmatmul.mubr.f32.gmra.mxu0 %v10574
        %v10788 = vpop.f32.mrf.mxu0
        %v10789 = vadd.f32 0.0, %v10788
        %v10790 = vpop.f32.mrf.mxu0
        %10791 = vmatprep.mubr.f32.mxu0 0.0
        %10792 = vmatmul.mubr.f32.gmra.mxu0 %v10577
        %v10793 = vpop.f32.mrf.mxu0
        %v10794 = vadd.f32 0.0, %v10793
        %v10795 = vpop.f32.mrf.mxu0
        %10796 = vmatprep.mubr.f32.mxu0 0.0
        %10797 = vmatmul.mubr.f32.gmra.mxu0 %v10580
        %v10798 = vpop.f32.mrf.mxu0
        %v10799 = vadd.f32 0.0, %v10798
        %v10800 = vpop.f32.mrf.mxu0
        %10801 = vmatprep.mubr.f32.mxu0 0.0
        %10802 = vmatmul.mubr.f32.gmra.mxu0 %v10583
        %v10803 = vpop.f32.mrf.mxu0
        %v10804 = vadd.f32 0.0, %v10803
        %v10805 = vpop.f32.mrf.mxu0
        %10806 = vmatprep.mubr.f32.mxu0 0.0
        %10807 = vmatmul.mubr.f32.gmra.mxu0 %v10586
        %v10808 = vpop.f32.mrf.mxu0
        %v10809 = vadd.f32 0.0, %v10808
        %v10810 = vpop.f32.mrf.mxu0
        %10811 = vmatprep.mubr.f32.mxu0 0.0
        %10812 = vmatmul.mubr.f32.gmra.mxu0 %v10589
        %v10813 = vpop.f32.mrf.mxu0
        %v10814 = vadd.f32 0.0, %v10813
        %v10815 = vpop.f32.mrf.mxu0
        %10816 = vmatprep.mubr.f32.mxu0 0.0
        %10817 = vmatmul.mubr.f32.gmra.mxu0 %v10592
        %v10818 = vpop.f32.mrf.mxu0
        %v10819 = vadd.f32 0.0, %v10818
        %v10820 = vpop.f32.mrf.mxu0
        %10821 = vdwg.mxu0
        %v10822 = vadd.f32 %v10432, %v10664
        %v10823 = vadd.f32 %v10433, %v10669
        %v10824 = vadd.f32 %v10434, %v10674
        %v10825 = vadd.f32 %v10435, %v10679
        %v10826 = vadd.f32 %v10436, %v10684
        %v10827 = vadd.f32 %v10437, %v10689
        %v10828 = vadd.f32 %v10438, %v10694
        %v10829 = vadd.f32 %v10439, %v10699
        %v10830 = vadd.f32 %v10440, %v10704
        %v10831 = vadd.f32 %v10441, %v10709
        %v10832 = vadd.f32 %v10442, %v10714
        %v10833 = vadd.f32 %v10443, %v10719
        %v10834 = vadd.f32 %v10444, %v10724
        %v10835 = vadd.f32 %v10445, %v10729
        %v10836 = vadd.f32 %v10446, %v10734
        %v10837 = vadd.f32 %v10447, %v10739
        %v10838 = vadd.f32 %v10448, %v10744
        %v10839 = vadd.f32 %v10449, %v10749
        %v10840 = vadd.f32 %v10450, %v10754
        %v10841 = vadd.f32 %v10451, %v10759
        %v10842 = vadd.f32 %v10452, %v10764
        %v10843 = vadd.f32 %v10453, %v10769
        %v10844 = vadd.f32 %v10454, %v10774
        %v10845 = vadd.f32 %v10455, %v10779
        %v10846 = vadd.f32 %v10456, %v10784
        %v10847 = vadd.f32 %v10457, %v10789
        %v10848 = vadd.f32 %v10458, %v10794
        %v10849 = vadd.f32 %v10459, %v10799
        %v10850 = vadd.f32 %v10460, %v10804
        %v10851 = vadd.f32 %v10461, %v10809
        %v10852 = vadd.f32 %v10462, %v10814
        %v10853 = vadd.f32 %v10463, %v10819
        %v10854 = vld [vmem:[%s10073 + $0x6] sm:$0xff]
        %v10855 = vld [vmem:[%s10073 + $0xe] sm:$0xff]
        %v10856 = vld [vmem:[%s10073 + $0x1e] sm:$0xff]
        %v10857 = vld [vmem:[%s10073 + $0x26] sm:$0xff]
        %v10858 = vld [vmem:[%s10073 + $0x36] sm:$0xff]
        %v10859 = vld [vmem:[%s10073 + $0x3e] sm:$0xff]
        %v10860 = vld [vmem:[%s10073 + $0x4e] sm:$0xff]
        %v10861 = vld [vmem:[%s10073 + $0x56] sm:$0xff]
        %v10862 = vld [vmem:[%s10073 + $0x66] sm:$0xff]
        %v10863 = vld [vmem:[%s10073 + $0x6e] sm:$0xff]
        %v10864 = vld [vmem:[%s10073 + $0x7e] sm:$0xff]
        %v10865 = vld [vmem:[%s10073 + $0x86] sm:$0xff]
        %v10866 = vld [vmem:[%s10073 + $0x96] sm:$0xff]
        %v10867 = vld [vmem:[%s10073 + $0x9e] sm:$0xff]
        %v10868 = vld [vmem:[%s10073 + $0xae] sm:$0xff]
        %v10869 = vld [vmem:[%s10073 + $0xb6] sm:$0xff]
        %v10870 = vld [vmem:[%s10073 + $0xc6] sm:$0xff]
        %v10871 = vld [vmem:[%s10073 + $0xce] sm:$0xff]
        %v10872 = vld [vmem:[%s10073 + $0xde] sm:$0xff]
        %v10873 = vld [vmem:[%s10073 + $0xe6] sm:$0xff]
        %v10874 = vld [vmem:[%s10073 + $0xf6] sm:$0xff]
        %v10875 = vld [vmem:[%s10073 + $0xfe] sm:$0xff]
        %v10876 = vld [vmem:[%s10073 + $0x10e] sm:$0xff]
        %v10877 = vld [vmem:[%s10073 + $0x116] sm:$0xff]
        %v10878 = vld [vmem:[%s10073 + $0x126] sm:$0xff]
        %v10879 = vld [vmem:[%s10073 + $0x12e] sm:$0xff]
        %v10880 = vld [vmem:[%s10073 + $0x13e] sm:$0xff]
        %v10881 = vld [vmem:[%s10073 + $0x146] sm:$0xff]
        %v10882 = vld [vmem:[%s10073 + $0x156] sm:$0xff]
        %v10883 = vld [vmem:[%s10073 + $0x15e] sm:$0xff]
        %v10884 = vld [vmem:[%s10073 + $0x16e] sm:$0xff]
        %v10885 = vld [vmem:[%s10073 + $0x176] sm:$0xff]
        %s10886 = scalar_lea.vmem %s5, 32
        %v10887 = vld [vmem:[%s10886] sm:$0xf]
        %v10889 = vsel %vm478, %v10854, 0
        %v10892 = vsel %vm478, %v10855, 0
        %v10895 = vsel %vm478, %v10856, 0
        %v10898 = vsel %vm478, %v10857, 0
        %v10901 = vsel %vm478, %v10858, 0
        %v10904 = vsel %vm478, %v10859, 0
        %v10907 = vsel %vm478, %v10860, 0
        %v10910 = vsel %vm478, %v10861, 0
        %v10913 = vsel %vm478, %v10862, 0
        %v10916 = vsel %vm478, %v10863, 0
        %v10919 = vsel %vm478, %v10864, 0
        %v10922 = vsel %vm478, %v10865, 0
        %v10925 = vsel %vm478, %v10866, 0
        %v10928 = vsel %vm478, %v10867, 0
        %v10931 = vsel %vm478, %v10868, 0
        %v10934 = vsel %vm478, %v10869, 0
        %v10937 = vsel %vm478, %v10870, 0
        %v10940 = vsel %vm478, %v10871, 0
        %v10943 = vsel %vm478, %v10872, 0
        %v10946 = vsel %vm478, %v10873, 0
        %v10949 = vsel %vm478, %v10874, 0
        %v10952 = vsel %vm478, %v10875, 0
        %v10955 = vsel %vm478, %v10876, 0
        %v10958 = vsel %vm478, %v10877, 0
        %v10961 = vsel %vm478, %v10878, 0
        %v10964 = vsel %vm478, %v10879, 0
        %v10967 = vsel %vm478, %v10880, 0
        %v10970 = vsel %vm478, %v10881, 0
        %v10973 = vsel %vm478, %v10882, 0
        %v10976 = vsel %vm478, %v10883, 0
        %v10979 = vsel %vm478, %v10884, 0
        %v10982 = vsel %vm478, %v10885, 0
        %v10985 = vsel %vm4410, %v10887, 0
        %10987 = vmatprep.subr.mxu0 0.0
        %10988 = vmatpush1.msra.mxu0 0.0
        %10989 = vmatprep.subr.mxu0 0.0
        %10990 = vmatpush1.msra.mxu0 0.0
        %10991 = vmatprep.subr.mxu0 0.0
        %10992 = vmatpush1.msra.mxu0 0.0
        %10993 = vmatprep.subr.mxu0 0.0
        %10994 = vmatpush1.msra.mxu0 0.0
        %10995 = vmatprep.subr.mxu0 0.0
        %10996 = vmatpush1.msra.mxu0 0.0
        %10997 = vmatprep.subr.mxu0 0.0
        %10998 = vmatpush1.msra.mxu0 0.0
        %10999 = vmatprep.subr.mxu0 0.0
        %11000 = vmatpush1.msra.mxu0 0.0
        %11001 = vmatprep.subr.mxu0 0.0
        %11002 = vmatpush1.msra.mxu0 0.0
        %11003 = vmatprep.subr.mxu0 0.0
        %11004 = vmatpush1.msra.mxu0 0.0
        %11005 = vmatprep.subr.mxu0 0.0
        %11006 = vmatpush1.msra.mxu0 0.0
        %11007 = vmatprep.subr.mxu0 0.0
        %11008 = vmatpush1.msra.mxu0 0.0
        %11009 = vmatprep.subr.mxu0 0.0
        %11010 = vmatpush1.msra.mxu0 0.0
        %11011 = vmatprep.subr.mxu0 0.0
        %11012 = vmatpush1.msra.mxu0 0.0
        %11013 = vmatprep.subr.mxu0 0.0
        %11014 = vmatpush1.msra.mxu0 0.0
        %11015 = vmatprep.subr.mxu0 0.0
        %11016 = vmatpush1.msra.mxu0 0.0
        %11017 = vmatprep.subr.mxu0 0.0
        %11018 = vmatpush1.msra.mxu0 %v10985
        %11019 = vmatprep.subr.mxu0 0.0
        %11020 = vmatpush2.msra.mxu0 0.0
        %11021 = vmatprep.subr.mxu0 0.0
        %11022 = vmatpush2.msra.mxu0 0.0
        %11023 = vmatprep.subr.mxu0 0.0
        %11024 = vmatpush2.msra.mxu0 0.0
        %11025 = vmatprep.subr.mxu0 0.0
        %11026 = vmatpush2.msra.mxu0 0.0
        %11027 = vmatprep.subr.mxu0 0.0
        %11028 = vmatpush2.msra.mxu0 0.0
        %11029 = vmatprep.subr.mxu0 0.0
        %11030 = vmatpush2.msra.mxu0 0.0
        %11031 = vmatprep.subr.mxu0 0.0
        %11032 = vmatpush2.msra.mxu0 0.0
        %11033 = vmatprep.subr.mxu0 0.0
        %11034 = vmatpush2.msra.mxu0 0.0
        %11035 = vmatprep.subr.mxu0 0.0
        %11036 = vmatpush2.msra.mxu0 0.0
        %11037 = vmatprep.subr.mxu0 0.0
        %11038 = vmatpush2.msra.mxu0 0.0
        %11039 = vmatprep.subr.mxu0 0.0
        %11040 = vmatpush2.msra.mxu0 0.0
        %11041 = vmatprep.subr.mxu0 0.0
        %11042 = vmatpush2.msra.mxu0 0.0
        %11043 = vmatprep.subr.mxu0 0.0
        %11044 = vmatpush2.msra.mxu0 0.0
        %11045 = vmatprep.subr.mxu0 0.0
        %11046 = vmatpush2.msra.mxu0 0.0
        %11047 = vmatprep.subr.mxu0 0.0
        %11048 = vmatpush2.msra.mxu0 0.0
        %11049 = vmatprep.subr.mxu0 0.0
        %11050 = vmatpush2.msra.mxu0 0.0
        %11051 = vmatprep.mubr.f32.mxu0 0.0
        %11052 = vmatmul.mubr.f32.gmra.mxu0 %v10889
        %v11053 = vpop.f32.mrf.mxu0
        %v11054 = vadd.f32 0.0, %v11053
        %v11055 = vpop.f32.mrf.mxu0
        %11056 = vmatprep.mubr.f32.mxu0 0.0
        %11057 = vmatmul.mubr.f32.gmra.mxu0 %v10892
        %v11058 = vpop.f32.mrf.mxu0
        %v11059 = vadd.f32 0.0, %v11058
        %v11060 = vpop.f32.mrf.mxu0
        %11061 = vmatprep.mubr.f32.mxu0 0.0
        %11062 = vmatmul.mubr.f32.gmra.mxu0 %v10895
        %v11063 = vpop.f32.mrf.mxu0
        %v11064 = vadd.f32 0.0, %v11063
        %v11065 = vpop.f32.mrf.mxu0
        %11066 = vmatprep.mubr.f32.mxu0 0.0
        %11067 = vmatmul.mubr.f32.gmra.mxu0 %v10898
        %v11068 = vpop.f32.mrf.mxu0
        %v11069 = vadd.f32 0.0, %v11068
        %v11070 = vpop.f32.mrf.mxu0
        %11071 = vmatprep.mubr.f32.mxu0 0.0
        %11072 = vmatmul.mubr.f32.gmra.mxu0 %v10901
        %v11073 = vpop.f32.mrf.mxu0
        %v11074 = vadd.f32 0.0, %v11073
        %v11075 = vpop.f32.mrf.mxu0
        %11076 = vmatprep.mubr.f32.mxu0 0.0
        %11077 = vmatmul.mubr.f32.gmra.mxu0 %v10904
        %v11078 = vpop.f32.mrf.mxu0
        %v11079 = vadd.f32 0.0, %v11078
        %v11080 = vpop.f32.mrf.mxu0
        %11081 = vmatprep.mubr.f32.mxu0 0.0
        %11082 = vmatmul.mubr.f32.gmra.mxu0 %v10907
        %v11083 = vpop.f32.mrf.mxu0
        %v11084 = vadd.f32 0.0, %v11083
        %v11085 = vpop.f32.mrf.mxu0
        %11086 = vmatprep.mubr.f32.mxu0 0.0
        %11087 = vmatmul.mubr.f32.gmra.mxu0 %v10910
        %v11088 = vpop.f32.mrf.mxu0
        %v11089 = vadd.f32 0.0, %v11088
        %v11090 = vpop.f32.mrf.mxu0
        %11091 = vmatprep.mubr.f32.mxu0 0.0
        %11092 = vmatmul.mubr.f32.gmra.mxu0 %v10913
        %v11093 = vpop.f32.mrf.mxu0
        %v11094 = vadd.f32 0.0, %v11093
        %v11095 = vpop.f32.mrf.mxu0
        %11096 = vmatprep.mubr.f32.mxu0 0.0
        %11097 = vmatmul.mubr.f32.gmra.mxu0 %v10916
        %v11098 = vpop.f32.mrf.mxu0
        %v11099 = vadd.f32 0.0, %v11098
        %v11100 = vpop.f32.mrf.mxu0
        %11101 = vmatprep.mubr.f32.mxu0 0.0
        %11102 = vmatmul.mubr.f32.gmra.mxu0 %v10919
        %v11103 = vpop.f32.mrf.mxu0
        %v11104 = vadd.f32 0.0, %v11103
        %v11105 = vpop.f32.mrf.mxu0
        %11106 = vmatprep.mubr.f32.mxu0 0.0
        %11107 = vmatmul.mubr.f32.gmra.mxu0 %v10922
        %v11108 = vpop.f32.mrf.mxu0
        %v11109 = vadd.f32 0.0, %v11108
        %v11110 = vpop.f32.mrf.mxu0
        %11111 = vmatprep.mubr.f32.mxu0 0.0
        %11112 = vmatmul.mubr.f32.gmra.mxu0 %v10925
        %v11113 = vpop.f32.mrf.mxu0
        %v11114 = vadd.f32 0.0, %v11113
        %v11115 = vpop.f32.mrf.mxu0
        %11116 = vmatprep.mubr.f32.mxu0 0.0
        %11117 = vmatmul.mubr.f32.gmra.mxu0 %v10928
        %v11118 = vpop.f32.mrf.mxu0
        %v11119 = vadd.f32 0.0, %v11118
        %v11120 = vpop.f32.mrf.mxu0
        %11121 = vmatprep.mubr.f32.mxu0 0.0
        %11122 = vmatmul.mubr.f32.gmra.mxu0 %v10931
        %v11123 = vpop.f32.mrf.mxu0
        %v11124 = vadd.f32 0.0, %v11123
        %v11125 = vpop.f32.mrf.mxu0
        %11126 = vmatprep.mubr.f32.mxu0 0.0
        %11127 = vmatmul.mubr.f32.gmra.mxu0 %v10934
        %v11128 = vpop.f32.mrf.mxu0
        %v11129 = vadd.f32 0.0, %v11128
        %v11130 = vpop.f32.mrf.mxu0
        %11131 = vmatprep.mubr.f32.mxu0 0.0
        %11132 = vmatmul.mubr.f32.gmra.mxu0 %v10937
        %v11133 = vpop.f32.mrf.mxu0
        %v11134 = vadd.f32 0.0, %v11133
        %v11135 = vpop.f32.mrf.mxu0
        %11136 = vmatprep.mubr.f32.mxu0 0.0
        %11137 = vmatmul.mubr.f32.gmra.mxu0 %v10940
        %v11138 = vpop.f32.mrf.mxu0
        %v11139 = vadd.f32 0.0, %v11138
        %v11140 = vpop.f32.mrf.mxu0
        %11141 = vmatprep.mubr.f32.mxu0 0.0
        %11142 = vmatmul.mubr.f32.gmra.mxu0 %v10943
        %v11143 = vpop.f32.mrf.mxu0
        %v11144 = vadd.f32 0.0, %v11143
        %v11145 = vpop.f32.mrf.mxu0
        %11146 = vmatprep.mubr.f32.mxu0 0.0
        %11147 = vmatmul.mubr.f32.gmra.mxu0 %v10946
        %v11148 = vpop.f32.mrf.mxu0
        %v11149 = vadd.f32 0.0, %v11148
        %v11150 = vpop.f32.mrf.mxu0
        %11151 = vmatprep.mubr.f32.mxu0 0.0
        %11152 = vmatmul.mubr.f32.gmra.mxu0 %v10949
        %v11153 = vpop.f32.mrf.mxu0
        %v11154 = vadd.f32 0.0, %v11153
        %v11155 = vpop.f32.mrf.mxu0
        %11156 = vmatprep.mubr.f32.mxu0 0.0
        %11157 = vmatmul.mubr.f32.gmra.mxu0 %v10952
        %v11158 = vpop.f32.mrf.mxu0
        %v11159 = vadd.f32 0.0, %v11158
        %v11160 = vpop.f32.mrf.mxu0
        %11161 = vmatprep.mubr.f32.mxu0 0.0
        %11162 = vmatmul.mubr.f32.gmra.mxu0 %v10955
        %v11163 = vpop.f32.mrf.mxu0
        %v11164 = vadd.f32 0.0, %v11163
        %v11165 = vpop.f32.mrf.mxu0
        %11166 = vmatprep.mubr.f32.mxu0 0.0
        %11167 = vmatmul.mubr.f32.gmra.mxu0 %v10958
        %v11168 = vpop.f32.mrf.mxu0
        %v11169 = vadd.f32 0.0, %v11168
        %v11170 = vpop.f32.mrf.mxu0
        %11171 = vmatprep.mubr.f32.mxu0 0.0
        %11172 = vmatmul.mubr.f32.gmra.mxu0 %v10961
        %v11173 = vpop.f32.mrf.mxu0
        %v11174 = vadd.f32 0.0, %v11173
        %v11175 = vpop.f32.mrf.mxu0
        %11176 = vmatprep.mubr.f32.mxu0 0.0
        %11177 = vmatmul.mubr.f32.gmra.mxu0 %v10964
        %v11178 = vpop.f32.mrf.mxu0
        %v11179 = vadd.f32 0.0, %v11178
        %v11180 = vpop.f32.mrf.mxu0
        %11181 = vmatprep.mubr.f32.mxu0 0.0
        %11182 = vmatmul.mubr.f32.gmra.mxu0 %v10967
        %v11183 = vpop.f32.mrf.mxu0
        %v11184 = vadd.f32 0.0, %v11183
        %v11185 = vpop.f32.mrf.mxu0
        %11186 = vmatprep.mubr.f32.mxu0 0.0
        %11187 = vmatmul.mubr.f32.gmra.mxu0 %v10970
        %v11188 = vpop.f32.mrf.mxu0
        %v11189 = vadd.f32 0.0, %v11188
        %v11190 = vpop.f32.mrf.mxu0
        %11191 = vmatprep.mubr.f32.mxu0 0.0
        %11192 = vmatmul.mubr.f32.gmra.mxu0 %v10973
        %v11193 = vpop.f32.mrf.mxu0
        %v11194 = vadd.f32 0.0, %v11193
        %v11195 = vpop.f32.mrf.mxu0
        %11196 = vmatprep.mubr.f32.mxu0 0.0
        %11197 = vmatmul.mubr.f32.gmra.mxu0 %v10976
        %v11198 = vpop.f32.mrf.mxu0
        %v11199 = vadd.f32 0.0, %v11198
        %v11200 = vpop.f32.mrf.mxu0
        %11201 = vmatprep.mubr.f32.mxu0 0.0
        %11202 = vmatmul.mubr.f32.gmra.mxu0 %v10979
        %v11203 = vpop.f32.mrf.mxu0
        %v11204 = vadd.f32 0.0, %v11203
        %v11205 = vpop.f32.mrf.mxu0
        %11206 = vmatprep.mubr.f32.mxu0 0.0
        %11207 = vmatmul.mubr.f32.gmra.mxu0 %v10982
        %v11208 = vpop.f32.mrf.mxu0
        %v11209 = vadd.f32 0.0, %v11208
        %v11210 = vpop.f32.mrf.mxu0
        %11211 = vdwg.mxu0
        %v11212 = vadd.f32 %v10822, %v11054
        %v11213 = vadd.f32 %v10823, %v11059
        %v11214 = vadd.f32 %v10824, %v11064
        %v11215 = vadd.f32 %v10825, %v11069
        %v11216 = vadd.f32 %v10826, %v11074
        %v11217 = vadd.f32 %v10827, %v11079
        %v11218 = vadd.f32 %v10828, %v11084
        %v11219 = vadd.f32 %v10829, %v11089
        %v11220 = vadd.f32 %v10830, %v11094
        %v11221 = vadd.f32 %v10831, %v11099
        %v11222 = vadd.f32 %v10832, %v11104
        %v11223 = vadd.f32 %v10833, %v11109
        %v11224 = vadd.f32 %v10834, %v11114
        %v11225 = vadd.f32 %v10835, %v11119
        %v11226 = vadd.f32 %v10836, %v11124
        %v11227 = vadd.f32 %v10837, %v11129
        %v11228 = vadd.f32 %v10838, %v11134
        %v11229 = vadd.f32 %v10839, %v11139
        %v11230 = vadd.f32 %v10840, %v11144
        %v11231 = vadd.f32 %v10841, %v11149
        %v11232 = vadd.f32 %v10842, %v11154
        %v11233 = vadd.f32 %v10843, %v11159
        %v11234 = vadd.f32 %v10844, %v11164
        %v11235 = vadd.f32 %v10845, %v11169
        %v11236 = vadd.f32 %v10846, %v11174
        %v11237 = vadd.f32 %v10847, %v11179
        %v11238 = vadd.f32 %v10848, %v11184
        %v11239 = vadd.f32 %v10849, %v11189
        %v11240 = vadd.f32 %v10850, %v11194
        %v11241 = vadd.f32 %v10851, %v11199
        %v11242 = vadd.f32 %v10852, %v11204
        %v11243 = vadd.f32 %v10853, %v11209
        %v11244 = vld [vmem:[%s6] sm:$0x1]
        %v11246 = vlaneseq
        %v11247 = vshrl.u32 %v11246, 7
        %v11248 = vsub.s32 0, %v11247
        %v11249 = vrot.slane %v11244, %v11248
        %v11251 = vadd.f32 %v11212, %v11249
        %v11252 = vadd.f32 %v11213, %v11249
        %v11253 = vadd.f32 %v11214, %v11249
        %v11254 = vadd.f32 %v11215, %v11249
        %v11255 = vadd.f32 %v11216, %v11249
        %v11256 = vadd.f32 %v11217, %v11249
        %v11257 = vadd.f32 %v11218, %v11249
        %v11258 = vadd.f32 %v11219, %v11249
        %v11259 = vadd.f32 %v11220, %v11249
        %v11260 = vadd.f32 %v11221, %v11249
        %v11261 = vadd.f32 %v11222, %v11249
        %v11262 = vadd.f32 %v11223, %v11249
        %v11263 = vadd.f32 %v11224, %v11249
        %v11264 = vadd.f32 %v11225, %v11249
        %v11265 = vadd.f32 %v11226, %v11249
        %v11266 = vadd.f32 %v11227, %v11249
        %v11267 = vadd.f32 %v11228, %v11249
        %v11268 = vadd.f32 %v11229, %v11249
        %v11269 = vadd.f32 %v11230, %v11249
        %v11270 = vadd.f32 %v11231, %v11249
        %v11271 = vadd.f32 %v11232, %v11249
        %v11272 = vadd.f32 %v11233, %v11249
        %v11273 = vadd.f32 %v11234, %v11249
        %v11274 = vadd.f32 %v11235, %v11249
        %v11275 = vadd.f32 %v11236, %v11249
        %v11276 = vadd.f32 %v11237, %v11249
        %v11277 = vadd.f32 %v11238, %v11249
        %v11278 = vadd.f32 %v11239, %v11249
        %v11279 = vadd.f32 %v11240, %v11249
        %v11280 = vadd.f32 %v11241, %v11249
        %v11281 = vadd.f32 %v11242, %v11249
        %v11282 = vadd.f32 %v11243, %v11249
        %v11283 = vmax.f32 %v11251, 0.0
        %v11284 = vmax.f32 %v11252, 0.0
        %v11285 = vmax.f32 %v11253, 0.0
        %v11286 = vmax.f32 %v11254, 0.0
        %v11287 = vmax.f32 %v11255, 0.0
        %v11288 = vmax.f32 %v11256, 0.0
        %v11289 = vmax.f32 %v11257, 0.0
        %v11290 = vmax.f32 %v11258, 0.0
        %v11291 = vmax.f32 %v11259, 0.0
        %v11292 = vmax.f32 %v11260, 0.0
        %v11293 = vmax.f32 %v11261, 0.0
        %v11294 = vmax.f32 %v11262, 0.0
        %v11295 = vmax.f32 %v11263, 0.0
        %v11296 = vmax.f32 %v11264, 0.0
        %v11297 = vmax.f32 %v11265, 0.0
        %v11298 = vmax.f32 %v11266, 0.0
        %v11299 = vmax.f32 %v11267, 0.0
        %v11300 = vmax.f32 %v11268, 0.0
        %v11301 = vmax.f32 %v11269, 0.0
        %v11302 = vmax.f32 %v11270, 0.0
        %v11303 = vmax.f32 %v11271, 0.0
        %v11304 = vmax.f32 %v11272, 0.0
        %v11305 = vmax.f32 %v11273, 0.0
        %v11306 = vmax.f32 %v11274, 0.0
        %v11307 = vmax.f32 %v11275, 0.0
        %v11308 = vmax.f32 %v11276, 0.0
        %v11309 = vmax.f32 %v11277, 0.0
        %v11310 = vmax.f32 %v11278, 0.0
        %v11311 = vmax.f32 %v11279, 0.0
        %v11312 = vmax.f32 %v11280, 0.0
        %v11313 = vmax.f32 %v11281, 0.0
        %v11314 = vmax.f32 %v11282, 0.0
        %11315 = vxpose.xlu0.b32.start [1/16] %v11283, 128
        %11316 = vxpose.xlu0.b32.cont [2/16] %v11284, 128
        %11317 = vxpose.xlu0.b32.cont [3/16] %v11285, 128
        %11318 = vxpose.xlu0.b32.cont [4/16] %v11286, 128
        %11319 = vxpose.xlu0.b32.cont [5/16] %v11287, 128
        %11320 = vxpose.xlu0.b32.cont [6/16] %v11288, 128
        %11321 = vxpose.xlu0.b32.cont [7/16] %v11289, 128
        %11322 = vxpose.xlu0.b32.cont [8/16] %v11290, 128
        %11323 = vxpose.xlu0.b32.cont [9/16] %v11291, 128
        %11324 = vxpose.xlu0.b32.cont [10/16] %v11292, 128
        %11325 = vxpose.xlu0.b32.cont [11/16] %v11293, 128
        %11326 = vxpose.xlu0.b32.cont [12/16] %v11294, 128
        %11327 = vxpose.xlu0.b32.cont [13/16] %v11295, 128
        %11328 = vxpose.xlu0.b32.cont [14/16] %v11296, 128
        %11329 = vxpose.xlu0.b32.cont [15/16] %v11297, 128
        %11330 = vxpose.xlu0.b32.end [16/16] %v11298, 128
        %v11331 = vpop.trf.xlu0
        %v11332 = vpop.trf.xlu0
        %v11333 = vpop.trf.xlu0
        %v11334 = vpop.trf.xlu0
        %v11335 = vpop.trf.xlu0
        %v11336 = vpop.trf.xlu0
        %v11337 = vpop.trf.xlu0
        %v11338 = vpop.trf.xlu0
        %v11339 = vpop.trf.xlu0
        %v11340 = vpop.trf.xlu0
        %v11341 = vpop.trf.xlu0
        %v11342 = vpop.trf.xlu0
        %v11343 = vpop.trf.xlu0
        %v11344 = vpop.trf.xlu0
        %v11345 = vpop.trf.xlu0
        %v11346 = vpop.trf.xlu0
        %11347 = vxpose.xlu0.b32.start [1/16] %v11299, 128
        %11348 = vxpose.xlu0.b32.cont [2/16] %v11300, 128
        %11349 = vxpose.xlu0.b32.cont [3/16] %v11301, 128
        %11350 = vxpose.xlu0.b32.cont [4/16] %v11302, 128
        %11351 = vxpose.xlu0.b32.cont [5/16] %v11303, 128
        %11352 = vxpose.xlu0.b32.cont [6/16] %v11304, 128
        %11353 = vxpose.xlu0.b32.cont [7/16] %v11305, 128
        %11354 = vxpose.xlu0.b32.cont [8/16] %v11306, 128
        %11355 = vxpose.xlu0.b32.cont [9/16] %v11307, 128
        %11356 = vxpose.xlu0.b32.cont [10/16] %v11308, 128
        %11357 = vxpose.xlu0.b32.cont [11/16] %v11309, 128
        %11358 = vxpose.xlu0.b32.cont [12/16] %v11310, 128
        %11359 = vxpose.xlu0.b32.cont [13/16] %v11311, 128
        %11360 = vxpose.xlu0.b32.cont [14/16] %v11312, 128
        %11361 = vxpose.xlu0.b32.cont [15/16] %v11313, 128
        %11362 = vxpose.xlu0.b32.end [16/16] %v11314, 128
        %v11363 = vpop.trf.xlu0
        %v11364 = vpop.trf.xlu0
        %v11365 = vpop.trf.xlu0
        %v11366 = vpop.trf.xlu0
        %v11367 = vpop.trf.xlu0
        %v11368 = vpop.trf.xlu0
        %v11369 = vpop.trf.xlu0
        %v11370 = vpop.trf.xlu0
        %v11371 = vpop.trf.xlu0
        %v11372 = vpop.trf.xlu0
        %v11373 = vpop.trf.xlu0
        %v11374 = vpop.trf.xlu0
        %v11375 = vpop.trf.xlu0
        %v11376 = vpop.trf.xlu0
        %v11377 = vpop.trf.xlu0
        %v11378 = vpop.trf.xlu0
        %11379 = vst [vmem:[%s271] sm:$0xff] %v11331
        %11380 = vst [vmem:[%s271 + $0x8] sm:$0xff] %v11363
        %s11381 = sand.u32 %s181, 1
        %s11382 = scalar_lea.sflag [#allocation6], %s11381
        %s11383 = sand.u32 %s181, 1
        %s11384 = smul.addr %s11383, 16
        %s11385 = scalar_lea.vmem [#allocation5], %s11384
        // Predicated region
        $region49: #{tpu_custom_call.1} parent=47 // pred_check
          %p11386 = pneg %p191
        $region50: #{tpu_custom_call.1} parent=47 // pred_check_branch
          %11388 = sbr.rel (%p11386) target = $region52
        $region51: #{tpu_custom_call.1} parent=47 // pred_region
          %s11390 = ssub.s32 256, 256
          %11391 = vsyncadd %s11382, %s11390
          %s11392 = smul.addr %s21, 2
          %s11393 = smul.addr %s11392, 128
          %s11394 = scalar_lea.hbm %s7, %s11393
          %s11396 = sshll.u32 %s11385, 4
          %s11397 = int_to_ptr.vmem [resolvable:$true] %s11396
          %11399 = dma.vmem_to_hbm [thread:$0]  %s11397, 256, %s11394, %s11382
        $region52: #{tpu_custom_call.1} parent=47 // pred_fallthru
          _
      $region48: #{tpu_custom_call.1} parent=5 // pred_fallthru
        _
      %p11400 = scmp.le.s32.totalorder 2, %s16
      // Predicated region
      $region53: #{tpu_custom_call.1} parent=5 // pred_check
        %p11401 = pneg %p11400
      $region54: #{tpu_custom_call.1} parent=5 // pred_check_branch
        %11403 = sbr.rel (%p11401) target = $region56
      $region55: #{tpu_custom_call.1} parent=5 // pred_region
        %s11404 = ssub.s32 %s16, 2
        // Predicated region
        $region57: #{tpu_custom_call.1} parent=55 // pred_check
          %p11405 = pneg %p197
        $region58: #{tpu_custom_call.1} parent=55 // pred_check_branch
          %11407 = sbr.rel (%p11405) target = $region60
        $region59: #{tpu_custom_call.1} parent=55 // pred_region
          %s11408 = sand.u32 %s182, 1
          %s11409 = scalar_lea.sflag [#allocation6], %s11408
          %s11410 = sand.u32 %s182, 1
          %s11411 = smul.addr %s11410, 16
          %s11412 = scalar_lea.vmem [#allocation5], %s11411
          %11413 = dma.done %s11409, 256
        $region60: #{tpu_custom_call.1} parent=55 // pred_fallthru
          _
      $region56: #{tpu_custom_call.1} parent=5 // pred_fallthru
        _
    $region6: #{tpu_custom_call.1} parent=1 // loop_footer
      %s20 = sadd.s32 1, %s16
    $region7: #{tpu_custom_call.1} parent=1 // loop_footer_branch
      %15 = sbr.rel target = $region3
    $region8: #{tpu_custom_call.1} parent=1 // loop_exit
      _
    %11414 = vsyncpa [#allocation6], 1
    %s11415 = scalar_lea.sflag [#allocation6], 1
    %11416 = vsyncpa %s11415, 1

</llo_original>
